<compile_context>
chip_gen: v5e
topology: v5e:2x2
jax: 0.10.0
libtpu: 0.0.40
codegen_flags: <defaults>
</compile_context>

<pallas_src>
import jax
import jax.numpy as jnp
from jax import lax
from jax.experimental import pallas as pl
from jax.experimental.pallas import tpu as pltpu

INPUT_SIZE = 6
HIDDEN = 128                       # lstm1 hidden; lstm2 = 64; lstm3 = 32
H1, H2, H3 = HIDDEN, HIDDEN // 2, HIDDEN // 4
FC1_OUT = 16
FC2_OUT = 1

F_PAD = 8                          # input features padded 6 -> 8
GBLK = 128                         # lane width of each gate column block (vreg aligned)
GW = 4 * GBLK                      # fused gate width, order [i, f, o, g]
OUT_PAD = 128                      # FC head padded to one full lane tile
SUBLANE_PACK = 16                  # bf16 packs 16 sublanes per vreg -> batch pad granule
MATMUL_DTYPE = jnp.bfloat16        # MXU operand dtype for the recurrent matmuls

GATE_ORDER = (0, 1, 3, 2)          # kernel layout [i, f, o, g] from reference [i, f, g, o]


# -----------------------------------------------------------------------------
# Kernel
# -----------------------------------------------------------------------------
def _price_kernel(x_ref,
                  w1x_ref, w1h_ref, b1_ref,
                  w2x_ref, w2h_ref, b2_ref,
                  w3x_ref, w3h_ref, b3_ref,
                  fc1w_ref, fc1b_ref, fc2w_ref, fc2b_ref,
                  out_ref, g1_ref):
    TB = x_ref.shape[0]
    B = out_ref.shape[0]
    T = TB // B

    # ---- Layer-1 input projection for the whole sequence: one f32 MXU matmul ----
    # (bias folded in here, so the per-step layer-1 path is a single recurrent dot).
    g1_ref[...] = (jnp.dot(x_ref[...], w1x_ref[...],
                           preferred_element_type=jnp.float32) + b1_ref[...])

    # Hoist weights once; pre-broadcast biases to full (B, GW) so the per-step "+b"
    # is a plain full-width vreg add (no re-emitted broadcast inside the unrolled body).
    w1h = w1h_ref[...]
    w2x = w2x_ref[...]
    w2h = w2h_ref[...]
    w3x = w3x_ref[...]
    w3h = w3h_ref[...]
    b2 = jnp.broadcast_to(b2_ref[...], (B, GW))
    b3 = jnp.broadcast_to(b3_ref[...], (B, GW))

    def cell(gx, h_prev, c_prev, wh, hdim):
        # gx: (B, GW) f32 x-side gate pre-activations (+bias); add the recurrent dot.
        gates = gx + jnp.dot(h_prev.astype(MATMUL_DTYPE), wh,
                             preferred_element_type=jnp.float32)
        sig = jax.nn.sigmoid(gates[:, :3 * GBLK])              # [i, f, o] in one launch
        g = jnp.tanh(gates[:, 3 * GBLK:3 * GBLK + hdim])
        i = sig[:, 0 * GBLK:0 * GBLK + hdim]
        f = sig[:, 1 * GBLK:1 * GBLK + hdim]
        o = sig[:, 2 * GBLK:2 * GBLK + hdim]
        c_new = f * c_prev + i * g
        h_new = o * jnp.tanh(c_new)
        return h_new, c_new

    def step(t, carry):
        h1, c1, h2, c2, h3, c3 = carry
        base = pl.multiple_of(t * B, B)
        gx1 = g1_ref[pl.ds(base, B), :]                        # (B, GW), bias included
        h1, c1 = cell(gx1, h1, c1, w1h, H1)                    # dropout1 = identity
        gx2 = jnp.dot(h1.astype(MATMUL_DTYPE), w2x,
                      preferred_element_type=jnp.float32) + b2
        h2, c2 = cell(gx2, h2, c2, w2h, H2)                    # dropout2 = identity
        gx3 = jnp.dot(h2.astype(MATMUL_DTYPE), w3x,
                      preferred_element_type=jnp.float32) + b3
        h3, c3 = cell(gx3, h3, c3, w3h, H3)
        return (h1, c1, h2, c2, h3, c3)

    zeros = lambda h: jnp.zeros((B, h), jnp.float32)
    init = (zeros(H1), zeros(H1), zeros(H2), zeros(H2), zeros(H3), zeros(H3))
    # Full unroll (T small) exposes layer(l, t+1) / layer(l+1, t) overlap to the
    # scheduler; drop to unroll=2/4 if the bundle dump ever shows vreg spills.
    _, _, _, _, h3, _ = lax.fori_loop(0, T, step, init, unroll=True)

    # ---- FC head on the last step (f32, 128-lane-dense unmasked store) ----
    y = jnp.dot(h3, fc1w_ref[...], preferred_element_type=jnp.float32) + fc1b_ref[...]
    y = jnp.maximum(y, 0.0)
    out_ref[...] = jnp.dot(y, fc2w_ref[...],
                           preferred_element_type=jnp.float32) + fc2b_ref[...]


# -----------------------------------------------------------------------------
# Wrapper / parameter packing
# -----------------------------------------------------------------------------
def _fuse_gate_cols(per_gate, hdim, dtype):
    """(4, d_in, hdim) -> (d_in, GW); gate k's columns at lanes [k*GBLK, k*GBLK+hdim)."""
    d_in = per_gate.shape[1]
    w = jnp.zeros((d_in, GW), jnp.float32)
    for k, gidx in enumerate(GATE_ORDER):
        w = w.at[:, k * GBLK:k * GBLK + hdim].set(per_gate[gidx])
    return w.astype(dtype)


def _fuse_gate_bias(per_gate, hdim):
    """(4, 1, hdim) -> (1, GW) f32 with the same aligned gate-block layout."""
    b = jnp.zeros((1, GW), jnp.float32)
    for k, gidx in enumerate(GATE_ORDER):
        b = b.at[:, k * GBLK:k * GBLK + hdim].set(per_gate[gidx])
    return b


def pack_params(p):
    """Fuse per-gate params into lane-aligned kernel params (gate order [i, f, o, g])."""
    # Layer-1 input-side weight stays f32 (used once outside the recurrence); all
    # recurrent / inter-layer weights are bf16 with f32 accumulation.
    w1x = jnp.zeros((F_PAD, GW), jnp.float32).at[:INPUT_SIZE, :].set(
        _fuse_gate_cols(p["wih1"], H1, jnp.float32))            # (8, 512)   f32
    w1h = _fuse_gate_cols(p["whh1"], H1, MATMUL_DTYPE)          # (128, 512) bf16
    b1 = _fuse_gate_bias(p["b1"], H1)                           # (1, 512)   f32

    w2x = _fuse_gate_cols(p["wih2"], H2, MATMUL_DTYPE)          # (128, 512) bf16
    w2h = _fuse_gate_cols(p["whh2"], H2, MATMUL_DTYPE)          # (64, 512)  bf16
    b2 = _fuse_gate_bias(p["b2"], H2)

    w3x = _fuse_gate_cols(p["wih3"], H3, MATMUL_DTYPE)          # (64, 512)  bf16
    w3h = _fuse_gate_cols(p["whh3"], H3, MATMUL_DTYPE)          # (32, 512)  bf16
    b3 = _fuse_gate_bias(p["b3"], H3)

    # FC head padded to 128 lanes; padded columns stay exactly zero through relu/fc2.
    fc1w = jnp.zeros((H3, OUT_PAD), jnp.float32).at[:, :FC1_OUT].set(p["fc1w"])
    fc1b = jnp.zeros((1, OUT_PAD), jnp.float32).at[:, :FC1_OUT].set(p["fc1b"])
    fc2w = jnp.zeros((OUT_PAD, OUT_PAD), jnp.float32).at[:FC1_OUT, :FC2_OUT].set(p["fc2w"])
    fc2b = jnp.zeros((1, OUT_PAD), jnp.float32).at[:, :FC2_OUT].set(p["fc2b"])
    return (w1x, w1h, b1, w2x, w2h, b2, w3x, w3h, b3, fc1w, fc1b, fc2w, fc2b)


def price_prediction_forward(x_btf, packed):
    """x_btf: (B, T, INPUT_SIZE) float32 -> (B, 1) float32."""
    B, T, F = x_btf.shape
    assert F == INPUT_SIZE
    B_pad = max(SUBLANE_PACK, ((B + SUBLANE_PACK - 1) // SUBLANE_PACK) * SUBLANE_PACK)

    # Time-major, batch padded to a bf16-sublane multiple, features padded 6 -> 8,
    # flattened to (T*B_pad, F_PAD) so the layer-1 input GEMM is a single matmul.
    x_tbf = jnp.transpose(x_btf, (1, 0, 2)).astype(jnp.float32)
    x_pad = jnp.zeros((T, B_pad, F_PAD), jnp.float32).at[:, :B, :F].set(x_tbf)
    x_flat = x_pad.reshape(T * B_pad, F_PAD)

    vmem = pl.BlockSpec(memory_space=pltpu.MemorySpace.VMEM)
    out = pl.pallas_call(
        _price_kernel,
        out_shape=jax.ShapeDtypeStruct((B_pad, OUT_PAD), jnp.float32),
        in_specs=[vmem] * (1 + len(packed)),
        out_specs=vmem,
        scratch_shapes=[pltpu.VMEM((T * B_pad, GW), jnp.float32)],
    )(x_flat, *packed)
    return out[:B, :FC2_OUT]


# -----------------------------------------------------------------------------
# Deterministic synthetic parameters + pure-JAX reference
# -----------------------------------------------------------------------------
def init_params(key):
    """PyTorch-style uniform init, per-gate layout (reference gate order [i, f, g, o])."""
    keys = iter(jax.random.split(key, 32))
    p = {}

    def uni(k, shape, bound):
        return jax.random.uniform(k, shape, jnp.float32, -bound, bound)

    layer_dims = [(INPUT_SIZE, H1), (H1, H2), (H2, H3)]
    for idx, (d_in, h) in enumerate(layer_dims, start=1):
        bound = 1.0 / jnp.sqrt(h)
        p[f"wih{idx}"] = uni(next(keys), (4, d_in, h), bound)
        p[f"whh{idx}"] = uni(next(keys), (4, h, h), bound)
        # combined bias b_ih + b_hh
        p[f"b{idx}"] = uni(next(keys), (4, 1, h), bound) + uni(next(keys), (4, 1, h), bound)

    b_fc1 = 1.0 / jnp.sqrt(H3)
    p["fc1w"] = uni(next(keys), (H3, FC1_OUT), b_fc1)
    p["fc1b"] = uni(next(keys), (1, FC1_OUT), b_fc1)
    b_fc2 = 1.0 / jnp.sqrt(FC1_OUT)
    p["fc2w"] = uni(next(keys), (FC1_OUT, FC2_OUT), b_fc2)
    p["fc2b"] = uni(next(keys), (1, FC2_OUT), b_fc2)
    return p


def reference_forward(x_btf, p):
    """Pure-JAX f32 reference of the PyTorch forward (eval mode)."""
    B, T, _ = x_btf.shape

    def run_layer(x, wih, whh, b, h_dim):
        h = jnp.zeros((B, h_dim), jnp.float32)
        c = jnp.zeros((B, h_dim), jnp.float32)
        outs = []
        for t in range(T):
            xt = x[:, t, :]
            i = jax.nn.sigmoid(xt @ wih[0] + h @ whh[0] + b[0])
            f = jax.nn.sigmoid(xt @ wih[1] + h @ whh[1] + b[1])
            g = jnp.tanh(xt @ wih[2] + h @ whh[2] + b[2])
            o = jax.nn.sigmoid(xt @ wih[3] + h @ whh[3] + b[3])
            c = f * c + i * g
            h = o * jnp.tanh(c)
            outs.append(h)
        return jnp.stack(outs, axis=1)

    y = run_layer(x_btf, p["wih1"], p["whh1"], p["b1"], H1)
    y = run_layer(y, p["wih2"], p["whh2"], p["b2"], H2)
    y = run_layer(y, p["wih3"], p["whh3"], p["b3"], H3)
    z = jnp.maximum(y[:, -1, :] @ p["fc1w"] + p["fc1b"], 0.0)
    return z @ p["fc2w"] + p["fc2b"]


if __name__ == "__main__":
    key = jax.random.PRNGKey(0)
    k_param, k_x = jax.random.split(key)

    B, T = 4, 8
    x = jax.random.normal(k_x, (B, T, INPUT_SIZE), jnp.float32)
    params = init_params(k_param)
    packed = pack_params(params)

    fwd = jax.jit(price_prediction_forward)
    out = jax.block_until_ready(fwd(x, packed))

    ref = reference_forward(x, params)
    assert out.shape == (B, FC2_OUT)
    # bf16 recurrent MXU operands vs. pure-f32 reference: allow ~1e-2-level deviation.
    assert jnp.allclose(out, ref, atol=5e-2, rtol=5e-2), (out, ref)

    print("KERNEL_OK")
</pallas_src>

<mosaic_0001>
module attributes {stable_mosaic.version = 11 : i64} {
  func.func @_price_kernel(%arg0: memref<128x8xf32, #tpu.memory_space<vmem>>, %arg1: memref<8x512xf32, #tpu.memory_space<vmem>>, %arg2: memref<128x512xbf16, #tpu.memory_space<vmem>>, %arg3: memref<1x512xf32, #tpu.memory_space<vmem>>, %arg4: memref<128x512xbf16, #tpu.memory_space<vmem>>, %arg5: memref<64x512xbf16, #tpu.memory_space<vmem>>, %arg6: memref<1x512xf32, #tpu.memory_space<vmem>>, %arg7: memref<64x512xbf16, #tpu.memory_space<vmem>>, %arg8: memref<32x512xbf16, #tpu.memory_space<vmem>>, %arg9: memref<1x512xf32, #tpu.memory_space<vmem>>, %arg10: memref<32x128xf32, #tpu.memory_space<vmem>>, %arg11: memref<1x128xf32, #tpu.memory_space<vmem>>, %arg12: memref<128x128xf32, #tpu.memory_space<vmem>>, %arg13: memref<1x128xf32, #tpu.memory_space<vmem>>, %arg14: memref<16x128xf32, #tpu.memory_space<vmem>>, %arg15: memref<128x512xf32, #tpu.memory_space<vmem>>) attributes {dimension_semantics = [], scalar_prefetch = 0 : i64, scratch_operands = 1 : i64, tpu.core_type = #tpu.core_type<tc>} {
    %c0 = arith.constant 0 : index
    %c0_0 = arith.constant 0 : index
    %0 = vector.load %arg0[%c0, %c0_0] : memref<128x8xf32, #tpu.memory_space<vmem>>, vector<128x8xf32>
    %c0_1 = arith.constant 0 : index
    %c0_2 = arith.constant 0 : index
    %1 = vector.load %arg1[%c0_1, %c0_2] : memref<8x512xf32, #tpu.memory_space<vmem>>, vector<8x512xf32>
    %cst = arith.constant dense<0.000000e+00> : vector<128x512xf32>
    %2 = tpu.matmul %0, %1, %cst {dimension_numbers = #tpu.dot_dimension_numbers<[1], [0], [0], [1], [0, 0, 1, 1], [], []>} : vector<128x8xf32>, vector<8x512xf32>, vector<128x512xf32> -> vector<128x512xf32>
    %c0_3 = arith.constant 0 : index
    %c0_4 = arith.constant 0 : index
    %3 = vector.load %arg3[%c0_3, %c0_4] : memref<1x512xf32, #tpu.memory_space<vmem>>, vector<1x512xf32>
    %4 = vector.broadcast %3 : vector<1x512xf32> to vector<128x512xf32>
    %5 = arith.addf %2, %4 : vector<128x512xf32>
    %c0_5 = arith.constant 0 : index
    %c0_6 = arith.constant 0 : index
    %6 = vector.load %arg15[%c0_5, %c0_6] : memref<128x512xf32, #tpu.memory_space<vmem>>, vector<128x512xf32>
    tpu.vector_store %arg15[%c0_5, %c0_6], %5 {strides = array<i32>} : memref<128x512xf32, #tpu.memory_space<vmem>>, vector<128x512xf32>,
    %c0_7 = arith.constant 0 : index
    %c0_8 = arith.constant 0 : index
    %7 = vector.load %arg2[%c0_7, %c0_8] : memref<128x512xbf16, #tpu.memory_space<vmem>>, vector<128x512xbf16>
    %c0_9 = arith.constant 0 : index
    %c0_10 = arith.constant 0 : index
    %8 = vector.load %arg4[%c0_9, %c0_10] : memref<128x512xbf16, #tpu.memory_space<vmem>>, vector<128x512xbf16>
    %c0_11 = arith.constant 0 : index
    %c0_12 = arith.constant 0 : index
    %9 = vector.load %arg5[%c0_11, %c0_12] : memref<64x512xbf16, #tpu.memory_space<vmem>>, vector<64x512xbf16>
    %c0_13 = arith.constant 0 : index
    %c0_14 = arith.constant 0 : index
    %10 = vector.load %arg7[%c0_13, %c0_14] : memref<64x512xbf16, #tpu.memory_space<vmem>>, vector<64x512xbf16>
    %c0_15 = arith.constant 0 : index
    %c0_16 = arith.constant 0 : index
    %11 = vector.load %arg8[%c0_15, %c0_16] : memref<32x512xbf16, #tpu.memory_space<vmem>>, vector<32x512xbf16>
    %c0_17 = arith.constant 0 : index
    %c0_18 = arith.constant 0 : index
    %12 = vector.load %arg6[%c0_17, %c0_18] : memref<1x512xf32, #tpu.memory_space<vmem>>, vector<1x512xf32>
    %13 = vector.shape_cast %12 : vector<1x512xf32> to vector<1x512xf32>
    %14 = vector.broadcast %13 : vector<1x512xf32> to vector<16x512xf32>
    %c0_19 = arith.constant 0 : index
    %c0_20 = arith.constant 0 : index
    %15 = vector.load %arg9[%c0_19, %c0_20] : memref<1x512xf32, #tpu.memory_space<vmem>>, vector<1x512xf32>
    %16 = vector.shape_cast %15 : vector<1x512xf32> to vector<1x512xf32>
    %17 = vector.broadcast %16 : vector<1x512xf32> to vector<16x512xf32>
    %cst_21 = arith.constant 0.000000e+00 : f32
    %18 = vector.broadcast %cst_21 : f32 to vector<16x128xf32>
    %cst_22 = arith.constant 0.000000e+00 : f32
    %19 = vector.broadcast %cst_22 : f32 to vector<16x128xf32>
    %cst_23 = arith.constant 0.000000e+00 : f32
    %20 = vector.broadcast %cst_23 : f32 to vector<16x64xf32>
    %cst_24 = arith.constant 0.000000e+00 : f32
    %21 = vector.broadcast %cst_24 : f32 to vector<16x64xf32>
    %cst_25 = arith.constant 0.000000e+00 : f32
    %22 = vector.broadcast %cst_25 : f32 to vector<16x32xf32>
    %cst_26 = arith.constant 0.000000e+00 : f32
    %23 = vector.broadcast %cst_26 : f32 to vector<16x32xf32>
    %c0_i32 = arith.constant 0 : i32
    %c16_i32 = arith.constant 16 : i32
    %24 = arith.muli %c0_i32, %c16_i32 : i32
    %25 = tpu.assume_multiple %24, 16 : i32
    %26 = arith.index_cast %25 : i32 to index
    %c0_27 = arith.constant 0 : index
    %27 = vector.load %arg15[%26, %c0_27] : memref<128x512xf32, #tpu.memory_space<vmem>>, vector<16x512xf32>
    %28 = arith.truncf %18 : vector<16x128xf32> to vector<16x128xbf16>
    %cst_28 = arith.constant dense<0.000000e+00> : vector<16x512xf32>
    %29 = tpu.matmul %28, %7, %cst_28 {dimension_numbers = #tpu.dot_dimension_numbers<[1], [0], [0], [1], [0, 0, 1, 1], [], []>} : vector<16x128xbf16>, vector<128x512xbf16>, vector<16x512xf32> -> vector<16x512xf32>
    %30 = arith.addf %27, %29 : vector<16x512xf32>
    %31 = vector.extract_strided_slice %30 {offsets = [0, 0], sizes = [16, 384], strides = [1, 1]} : vector<16x512xf32> to vector<16x384xf32>
    %32 = arith.negf %31 : vector<16x384xf32>
    %33 = math.exp %32 : vector<16x384xf32>
    %cst_29 = arith.constant 1.000000e+00 : f32
    %34 = vector.broadcast %cst_29 : f32 to vector<16x384xf32>
    %35 = arith.addf %34, %33 : vector<16x384xf32>
    %36 = arith.divf %34, %35 : vector<16x384xf32>
    %37 = vector.extract_strided_slice %30 {offsets = [0, 384], sizes = [16, 128], strides = [1, 1]} : vector<16x512xf32> to vector<16x128xf32>
    %38 = math.tanh %37 : vector<16x128xf32>
    %39 = vector.extract_strided_slice %36 {offsets = [0, 0], sizes = [16, 128], strides = [1, 1]} : vector<16x384xf32> to vector<16x128xf32>
    %40 = vector.extract_strided_slice %36 {offsets = [0, 128], sizes = [16, 128], strides = [1, 1]} : vector<16x384xf32> to vector<16x128xf32>
    %41 = vector.extract_strided_slice %36 {offsets = [0, 256], sizes = [16, 128], strides = [1, 1]} : vector<16x384xf32> to vector<16x128xf32>
    %42 = arith.mulf %40, %19 : vector<16x128xf32>
    %43 = arith.mulf %39, %38 : vector<16x128xf32>
    %44 = arith.addf %42, %43 : vector<16x128xf32>
    %45 = math.tanh %44 : vector<16x128xf32>
    %46 = arith.mulf %41, %45 : vector<16x128xf32>
    %47 = arith.truncf %46 : vector<16x128xf32> to vector<16x128xbf16>
    %cst_30 = arith.constant dense<0.000000e+00> : vector<16x512xf32>
    %48 = tpu.matmul %47, %8, %cst_30 {dimension_numbers = #tpu.dot_dimension_numbers<[1], [0], [0], [1], [0, 0, 1, 1], [], []>} : vector<16x128xbf16>, vector<128x512xbf16>, vector<16x512xf32> -> vector<16x512xf32>
    %49 = arith.addf %48, %14 : vector<16x512xf32>
    %50 = arith.truncf %20 : vector<16x64xf32> to vector<16x64xbf16>
    %cst_31 = arith.constant dense<0.000000e+00> : vector<16x512xf32>
    %51 = tpu.matmul %50, %9, %cst_31 {dimension_numbers = #tpu.dot_dimension_numbers<[1], [0], [0], [1], [0, 0, 1, 1], [], []>} : vector<16x64xbf16>, vector<64x512xbf16>, vector<16x512xf32> -> vector<16x512xf32>
    %52 = arith.addf %49, %51 : vector<16x512xf32>
    %53 = vector.extract_strided_slice %52 {offsets = [0, 0], sizes = [16, 384], strides = [1, 1]} : vector<16x512xf32> to vector<16x384xf32>
    %54 = arith.negf %53 : vector<16x384xf32>
    %55 = math.exp %54 : vector<16x384xf32>
    %cst_32 = arith.constant 1.000000e+00 : f32
    %56 = vector.broadcast %cst_32 : f32 to vector<16x384xf32>
    %57 = arith.addf %56, %55 : vector<16x384xf32>
    %58 = arith.divf %56, %57 : vector<16x384xf32>
    %59 = vector.extract_strided_slice %52 {offsets = [0, 384], sizes = [16, 64], strides = [1, 1]} : vector<16x512xf32> to vector<16x64xf32>
    %60 = math.tanh %59 : vector<16x64xf32>
    %61 = vector.extract_strided_slice %58 {offsets = [0, 0], sizes = [16, 64], strides = [1, 1]} : vector<16x384xf32> to vector<16x64xf32>
    %62 = vector.extract_strided_slice %58 {offsets = [0, 128], sizes = [16, 64], strides = [1, 1]} : vector<16x384xf32> to vector<16x64xf32>
    %63 = vector.extract_strided_slice %58 {offsets = [0, 256], sizes = [16, 64], strides = [1, 1]} : vector<16x384xf32> to vector<16x64xf32>
    %64 = arith.mulf %62, %21 : vector<16x64xf32>
    %65 = arith.mulf %61, %60 : vector<16x64xf32>
    %66 = arith.addf %64, %65 : vector<16x64xf32>
    %67 = math.tanh %66 : vector<16x64xf32>
    %68 = arith.mulf %63, %67 : vector<16x64xf32>
    %69 = arith.truncf %68 : vector<16x64xf32> to vector<16x64xbf16>
    %cst_33 = arith.constant dense<0.000000e+00> : vector<16x512xf32>
    %70 = tpu.matmul %69, %10, %cst_33 {dimension_numbers = #tpu.dot_dimension_numbers<[1], [0], [0], [1], [0, 0, 1, 1], [], []>} : vector<16x64xbf16>, vector<64x512xbf16>, vector<16x512xf32> -> vector<16x512xf32>
    %71 = arith.addf %70, %17 : vector<16x512xf32>
    %72 = arith.truncf %22 : vector<16x32xf32> to vector<16x32xbf16>
    %cst_34 = arith.constant dense<0.000000e+00> : vector<16x512xf32>
    %73 = tpu.matmul %72, %11, %cst_34 {dimension_numbers = #tpu.dot_dimension_numbers<[1], [0], [0], [1], [0, 0, 1, 1], [], []>} : vector<16x32xbf16>, vector<32x512xbf16>, vector<16x512xf32> -> vector<16x512xf32>
    %74 = arith.addf %71, %73 : vector<16x512xf32>
    %75 = vector.extract_strided_slice %74 {offsets = [0, 0], sizes = [16, 384], strides = [1, 1]} : vector<16x512xf32> to vector<16x384xf32>
    %76 = arith.negf %75 : vector<16x384xf32>
    %77 = math.exp %76 : vector<16x384xf32>
    %cst_35 = arith.constant 1.000000e+00 : f32
    %78 = vector.broadcast %cst_35 : f32 to vector<16x384xf32>
    %79 = arith.addf %78, %77 : vector<16x384xf32>
    %80 = arith.divf %78, %79 : vector<16x384xf32>
    %81 = vector.extract_strided_slice %74 {offsets = [0, 384], sizes = [16, 32], strides = [1, 1]} : vector<16x512xf32> to vector<16x32xf32>
    %82 = math.tanh %81 : vector<16x32xf32>
    %83 = vector.extract_strided_slice %80 {offsets = [0, 0], sizes = [16, 32], strides = [1, 1]} : vector<16x384xf32> to vector<16x32xf32>
    %84 = vector.extract_strided_slice %80 {offsets = [0, 128], sizes = [16, 32], strides = [1, 1]} : vector<16x384xf32> to vector<16x32xf32>
    %85 = vector.extract_strided_slice %80 {offsets = [0, 256], sizes = [16, 32], strides = [1, 1]} : vector<16x384xf32> to vector<16x32xf32>
    %86 = arith.mulf %84, %23 : vector<16x32xf32>
    %87 = arith.mulf %83, %82 : vector<16x32xf32>
    %88 = arith.addf %86, %87 : vector<16x32xf32>
    %89 = math.tanh %88 : vector<16x32xf32>
    %90 = arith.mulf %85, %89 : vector<16x32xf32>
    %c1_i32 = arith.constant 1 : i32
    %c16_i32_36 = arith.constant 16 : i32
    %91 = arith.muli %c1_i32, %c16_i32_36 : i32
    %92 = tpu.assume_multiple %91, 16 : i32
    %93 = arith.index_cast %92 : i32 to index
    %c0_37 = arith.constant 0 : index
    %94 = vector.load %arg15[%93, %c0_37] : memref<128x512xf32, #tpu.memory_space<vmem>>, vector<16x512xf32>
    %95 = arith.truncf %46 : vector<16x128xf32> to vector<16x128xbf16>
    %cst_38 = arith.constant dense<0.000000e+00> : vector<16x512xf32>
    %96 = tpu.matmul %95, %7, %cst_38 {dimension_numbers = #tpu.dot_dimension_numbers<[1], [0], [0], [1], [0, 0, 1, 1], [], []>} : vector<16x128xbf16>, vector<128x512xbf16>, vector<16x512xf32> -> vector<16x512xf32>
    %97 = arith.addf %94, %96 : vector<16x512xf32>
    %98 = vector.extract_strided_slice %97 {offsets = [0, 0], sizes = [16, 384], strides = [1, 1]} : vector<16x512xf32> to vector<16x384xf32>
    %99 = arith.negf %98 : vector<16x384xf32>
    %100 = math.exp %99 : vector<16x384xf32>
    %cst_39 = arith.constant 1.000000e+00 : f32
    %101 = vector.broadcast %cst_39 : f32 to vector<16x384xf32>
    %102 = arith.addf %101, %100 : vector<16x384xf32>
    %103 = arith.divf %101, %102 : vector<16x384xf32>
    %104 = vector.extract_strided_slice %97 {offsets = [0, 384], sizes = [16, 128], strides = [1, 1]} : vector<16x512xf32> to vector<16x128xf32>
    %105 = math.tanh %104 : vector<16x128xf32>
    %106 = vector.extract_strided_slice %103 {offsets = [0, 0], sizes = [16, 128], strides = [1, 1]} : vector<16x384xf32> to vector<16x128xf32>
    %107 = vector.extract_strided_slice %103 {offsets = [0, 128], sizes = [16, 128], strides = [1, 1]} : vector<16x384xf32> to vector<16x128xf32>
    %108 = vector.extract_strided_slice %103 {offsets = [0, 256], sizes = [16, 128], strides = [1, 1]} : vector<16x384xf32> to vector<16x128xf32>
    %109 = arith.mulf %107, %44 : vector<16x128xf32>
    %110 = arith.mulf %106, %105 : vector<16x128xf32>
    %111 = arith.addf %109, %110 : vector<16x128xf32>
    %112 = math.tanh %111 : vector<16x128xf32>
    %113 = arith.mulf %108, %112 : vector<16x128xf32>
    %114 = arith.truncf %113 : vector<16x128xf32> to vector<16x128xbf16>
    %cst_40 = arith.constant dense<0.000000e+00> : vector<16x512xf32>
    %115 = tpu.matmul %114, %8, %cst_40 {dimension_numbers = #tpu.dot_dimension_numbers<[1], [0], [0], [1], [0, 0, 1, 1], [], []>} : vector<16x128xbf16>, vector<128x512xbf16>, vector<16x512xf32> -> vector<16x512xf32>
    %116 = arith.addf %115, %14 : vector<16x512xf32>
    %117 = arith.truncf %68 : vector<16x64xf32> to vector<16x64xbf16>
    %cst_41 = arith.constant dense<0.000000e+00> : vector<16x512xf32>
    %118 = tpu.matmul %117, %9, %cst_41 {dimension_numbers = #tpu.dot_dimension_numbers<[1], [0], [0], [1], [0, 0, 1, 1], [], []>} : vector<16x64xbf16>, vector<64x512xbf16>, vector<16x512xf32> -> vector<16x512xf32>
    %119 = arith.addf %116, %118 : vector<16x512xf32>
    %120 = vector.extract_strided_slice %119 {offsets = [0, 0], sizes = [16, 384], strides = [1, 1]} : vector<16x512xf32> to vector<16x384xf32>
    %121 = arith.negf %120 : vector<16x384xf32>
    %122 = math.exp %121 : vector<16x384xf32>
    %cst_42 = arith.constant 1.000000e+00 : f32
    %123 = vector.broadcast %cst_42 : f32 to vector<16x384xf32>
    %124 = arith.addf %123, %122 : vector<16x384xf32>
    %125 = arith.divf %123, %124 : vector<16x384xf32>
    %126 = vector.extract_strided_slice %119 {offsets = [0, 384], sizes = [16, 64], strides = [1, 1]} : vector<16x512xf32> to vector<16x64xf32>
    %127 = math.tanh %126 : vector<16x64xf32>
    %128 = vector.extract_strided_slice %125 {offsets = [0, 0], sizes = [16, 64], strides = [1, 1]} : vector<16x384xf32> to vector<16x64xf32>
    %129 = vector.extract_strided_slice %125 {offsets = [0, 128], sizes = [16, 64], strides = [1, 1]} : vector<16x384xf32> to vector<16x64xf32>
    %130 = vector.extract_strided_slice %125 {offsets = [0, 256], sizes = [16, 64], strides = [1, 1]} : vector<16x384xf32> to vector<16x64xf32>
    %131 = arith.mulf %129, %66 : vector<16x64xf32>
    %132 = arith.mulf %128, %127 : vector<16x64xf32>
    %133 = arith.addf %131, %132 : vector<16x64xf32>
    %134 = math.tanh %133 : vector<16x64xf32>
    %135 = arith.mulf %130, %134 : vector<16x64xf32>
    %136 = arith.truncf %135 : vector<16x64xf32> to vector<16x64xbf16>
    %cst_43 = arith.constant dense<0.000000e+00> : vector<16x512xf32>
    %137 = tpu.matmul %136, %10, %cst_43 {dimension_numbers = #tpu.dot_dimension_numbers<[1], [0], [0], [1], [0, 0, 1, 1], [], []>} : vector<16x64xbf16>, vector<64x512xbf16>, vector<16x512xf32> -> vector<16x512xf32>
    %138 = arith.addf %137, %17 : vector<16x512xf32>
    %139 = arith.truncf %90 : vector<16x32xf32> to vector<16x32xbf16>
    %cst_44 = arith.constant dense<0.000000e+00> : vector<16x512xf32>
    %140 = tpu.matmul %139, %11, %cst_44 {dimension_numbers = #tpu.dot_dimension_numbers<[1], [0], [0], [1], [0, 0, 1, 1], [], []>} : vector<16x32xbf16>, vector<32x512xbf16>, vector<16x512xf32> -> vector<16x512xf32>
    %141 = arith.addf %138, %140 : vector<16x512xf32>
    %142 = vector.extract_strided_slice %141 {offsets = [0, 0], sizes = [16, 384], strides = [1, 1]} : vector<16x512xf32> to vector<16x384xf32>
    %143 = arith.negf %142 : vector<16x384xf32>
    %144 = math.exp %143 : vector<16x384xf32>
    %cst_45 = arith.constant 1.000000e+00 : f32
    %145 = vector.broadcast %cst_45 : f32 to vector<16x384xf32>
    %146 = arith.addf %145, %144 : vector<16x384xf32>
    %147 = arith.divf %145, %146 : vector<16x384xf32>
    %148 = vector.extract_strided_slice %141 {offsets = [0, 384], sizes = [16, 32], strides = [1, 1]} : vector<16x512xf32> to vector<16x32xf32>
    %149 = math.tanh %148 : vector<16x32xf32>
    %150 = vector.extract_strided_slice %147 {offsets = [0, 0], sizes = [16, 32], strides = [1, 1]} : vector<16x384xf32> to vector<16x32xf32>
    %151 = vector.extract_strided_slice %147 {offsets = [0, 128], sizes = [16, 32], strides = [1, 1]} : vector<16x384xf32> to vector<16x32xf32>
    %152 = vector.extract_strided_slice %147 {offsets = [0, 256], sizes = [16, 32], strides = [1, 1]} : vector<16x384xf32> to vector<16x32xf32>
    %153 = arith.mulf %151, %88 : vector<16x32xf32>
    %154 = arith.mulf %150, %149 : vector<16x32xf32>
    %155 = arith.addf %153, %154 : vector<16x32xf32>
    %156 = math.tanh %155 : vector<16x32xf32>
    %157 = arith.mulf %152, %156 : vector<16x32xf32>
    %c2_i32 = arith.constant 2 : i32
    %c16_i32_46 = arith.constant 16 : i32
    %158 = arith.muli %c2_i32, %c16_i32_46 : i32
    %159 = tpu.assume_multiple %158, 16 : i32
    %160 = arith.index_cast %159 : i32 to index
    %c0_47 = arith.constant 0 : index
    %161 = vector.load %arg15[%160, %c0_47] : memref<128x512xf32, #tpu.memory_space<vmem>>, vector<16x512xf32>
    %162 = arith.truncf %113 : vector<16x128xf32> to vector<16x128xbf16>
    %cst_48 = arith.constant dense<0.000000e+00> : vector<16x512xf32>
    %163 = tpu.matmul %162, %7, %cst_48 {dimension_numbers = #tpu.dot_dimension_numbers<[1], [0], [0], [1], [0, 0, 1, 1], [], []>} : vector<16x128xbf16>, vector<128x512xbf16>, vector<16x512xf32> -> vector<16x512xf32>
    %164 = arith.addf %161, %163 : vector<16x512xf32>
    %165 = vector.extract_strided_slice %164 {offsets = [0, 0], sizes = [16, 384], strides = [1, 1]} : vector<16x512xf32> to vector<16x384xf32>
    %166 = arith.negf %165 : vector<16x384xf32>
    %167 = math.exp %166 : vector<16x384xf32>
    %cst_49 = arith.constant 1.000000e+00 : f32
    %168 = vector.broadcast %cst_49 : f32 to vector<16x384xf32>
    %169 = arith.addf %168, %167 : vector<16x384xf32>
    %170 = arith.divf %168, %169 : vector<16x384xf32>
    %171 = vector.extract_strided_slice %164 {offsets = [0, 384], sizes = [16, 128], strides = [1, 1]} : vector<16x512xf32> to vector<16x128xf32>
    %172 = math.tanh %171 : vector<16x128xf32>
    %173 = vector.extract_strided_slice %170 {offsets = [0, 0], sizes = [16, 128], strides = [1, 1]} : vector<16x384xf32> to vector<16x128xf32>
    %174 = vector.extract_strided_slice %170 {offsets = [0, 128], sizes = [16, 128], strides = [1, 1]} : vector<16x384xf32> to vector<16x128xf32>
    %175 = vector.extract_strided_slice %170 {offsets = [0, 256], sizes = [16, 128], strides = [1, 1]} : vector<16x384xf32> to vector<16x128xf32>
    %176 = arith.mulf %174, %111 : vector<16x128xf32>
    %177 = arith.mulf %173, %172 : vector<16x128xf32>
    %178 = arith.addf %176, %177 : vector<16x128xf32>
    %179 = math.tanh %178 : vector<16x128xf32>
    %180 = arith.mulf %175, %179 : vector<16x128xf32>
    %181 = arith.truncf %180 : vector<16x128xf32> to vector<16x128xbf16>
    %cst_50 = arith.constant dense<0.000000e+00> : vector<16x512xf32>
    %182 = tpu.matmul %181, %8, %cst_50 {dimension_numbers = #tpu.dot_dimension_numbers<[1], [0], [0], [1], [0, 0, 1, 1], [], []>} : vector<16x128xbf16>, vector<128x512xbf16>, vector<16x512xf32> -> vector<16x512xf32>
    %183 = arith.addf %182, %14 : vector<16x512xf32>
    %184 = arith.truncf %135 : vector<16x64xf32> to vector<16x64xbf16>
    %cst_51 = arith.constant dense<0.000000e+00> : vector<16x512xf32>
    %185 = tpu.matmul %184, %9, %cst_51 {dimension_numbers = #tpu.dot_dimension_numbers<[1], [0], [0], [1], [0, 0, 1, 1], [], []>} : vector<16x64xbf16>, vector<64x512xbf16>, vector<16x512xf32> -> vector<16x512xf32>
    %186 = arith.addf %183, %185 : vector<16x512xf32>
    %187 = vector.extract_strided_slice %186 {offsets = [0, 0], sizes = [16, 384], strides = [1, 1]} : vector<16x512xf32> to vector<16x384xf32>
    %188 = arith.negf %187 : vector<16x384xf32>
    %189 = math.exp %188 : vector<16x384xf32>
    %cst_52 = arith.constant 1.000000e+00 : f32
    %190 = vector.broadcast %cst_52 : f32 to vector<16x384xf32>
    %191 = arith.addf %190, %189 : vector<16x384xf32>
    %192 = arith.divf %190, %191 : vector<16x384xf32>
    %193 = vector.extract_strided_slice %186 {offsets = [0, 384], sizes = [16, 64], strides = [1, 1]} : vector<16x512xf32> to vector<16x64xf32>
    %194 = math.tanh %193 : vector<16x64xf32>
    %195 = vector.extract_strided_slice %192 {offsets = [0, 0], sizes = [16, 64], strides = [1, 1]} : vector<16x384xf32> to vector<16x64xf32>
    %196 = vector.extract_strided_slice %192 {offsets = [0, 128], sizes = [16, 64], strides = [1, 1]} : vector<16x384xf32> to vector<16x64xf32>
    %197 = vector.extract_strided_slice %192 {offsets = [0, 256], sizes = [16, 64], strides = [1, 1]} : vector<16x384xf32> to vector<16x64xf32>
    %198 = arith.mulf %196, %133 : vector<16x64xf32>
    %199 = arith.mulf %195, %194 : vector<16x64xf32>
    %200 = arith.addf %198, %199 : vector<16x64xf32>
    %201 = math.tanh %200 : vector<16x64xf32>
    %202 = arith.mulf %197, %201 : vector<16x64xf32>
    %203 = arith.truncf %202 : vector<16x64xf32> to vector<16x64xbf16>
    %cst_53 = arith.constant dense<0.000000e+00> : vector<16x512xf32>
    %204 = tpu.matmul %203, %10, %cst_53 {dimension_numbers = #tpu.dot_dimension_numbers<[1], [0], [0], [1], [0, 0, 1, 1], [], []>} : vector<16x64xbf16>, vector<64x512xbf16>, vector<16x512xf32> -> vector<16x512xf32>
    %205 = arith.addf %204, %17 : vector<16x512xf32>
    %206 = arith.truncf %157 : vector<16x32xf32> to vector<16x32xbf16>
    %cst_54 = arith.constant dense<0.000000e+00> : vector<16x512xf32>
    %207 = tpu.matmul %206, %11, %cst_54 {dimension_numbers = #tpu.dot_dimension_numbers<[1], [0], [0], [1], [0, 0, 1, 1], [], []>} : vector<16x32xbf16>, vector<32x512xbf16>, vector<16x512xf32> -> vector<16x512xf32>
    %208 = arith.addf %205, %207 : vector<16x512xf32>
    %209 = vector.extract_strided_slice %208 {offsets = [0, 0], sizes = [16, 384], strides = [1, 1]} : vector<16x512xf32> to vector<16x384xf32>
    %210 = arith.negf %209 : vector<16x384xf32>
    %211 = math.exp %210 : vector<16x384xf32>
    %cst_55 = arith.constant 1.000000e+00 : f32
    %212 = vector.broadcast %cst_55 : f32 to vector<16x384xf32>
    %213 = arith.addf %212, %211 : vector<16x384xf32>
    %214 = arith.divf %212, %213 : vector<16x384xf32>
    %215 = vector.extract_strided_slice %208 {offsets = [0, 384], sizes = [16, 32], strides = [1, 1]} : vector<16x512xf32> to vector<16x32xf32>
    %216 = math.tanh %215 : vector<16x32xf32>
    %217 = vector.extract_strided_slice %214 {offsets = [0, 0], sizes = [16, 32], strides = [1, 1]} : vector<16x384xf32> to vector<16x32xf32>
    %218 = vector.extract_strided_slice %214 {offsets = [0, 128], sizes = [16, 32], strides = [1, 1]} : vector<16x384xf32> to vector<16x32xf32>
    %219 = vector.extract_strided_slice %214 {offsets = [0, 256], sizes = [16, 32], strides = [1, 1]} : vector<16x384xf32> to vector<16x32xf32>
    %220 = arith.mulf %218, %155 : vector<16x32xf32>
    %221 = arith.mulf %217, %216 : vector<16x32xf32>
    %222 = arith.addf %220, %221 : vector<16x32xf32>
    %223 = math.tanh %222 : vector<16x32xf32>
    %224 = arith.mulf %219, %223 : vector<16x32xf32>
    %c3_i32 = arith.constant 3 : i32
    %c16_i32_56 = arith.constant 16 : i32
    %225 = arith.muli %c3_i32, %c16_i32_56 : i32
    %226 = tpu.assume_multiple %225, 16 : i32
    %227 = arith.index_cast %226 : i32 to index
    %c0_57 = arith.constant 0 : index
    %228 = vector.load %arg15[%227, %c0_57] : memref<128x512xf32, #tpu.memory_space<vmem>>, vector<16x512xf32>
    %229 = arith.truncf %180 : vector<16x128xf32> to vector<16x128xbf16>
    %cst_58 = arith.constant dense<0.000000e+00> : vector<16x512xf32>
    %230 = tpu.matmul %229, %7, %cst_58 {dimension_numbers = #tpu.dot_dimension_numbers<[1], [0], [0], [1], [0, 0, 1, 1], [], []>} : vector<16x128xbf16>, vector<128x512xbf16>, vector<16x512xf32> -> vector<16x512xf32>
    %231 = arith.addf %228, %230 : vector<16x512xf32>
    %232 = vector.extract_strided_slice %231 {offsets = [0, 0], sizes = [16, 384], strides = [1, 1]} : vector<16x512xf32> to vector<16x384xf32>
    %233 = arith.negf %232 : vector<16x384xf32>
    %234 = math.exp %233 : vector<16x384xf32>
    %cst_59 = arith.constant 1.000000e+00 : f32
    %235 = vector.broadcast %cst_59 : f32 to vector<16x384xf32>
    %236 = arith.addf %235, %234 : vector<16x384xf32>
    %237 = arith.divf %235, %236 : vector<16x384xf32>
    %238 = vector.extract_strided_slice %231 {offsets = [0, 384], sizes = [16, 128], strides = [1, 1]} : vector<16x512xf32> to vector<16x128xf32>
    %239 = math.tanh %238 : vector<16x128xf32>
    %240 = vector.extract_strided_slice %237 {offsets = [0, 0], sizes = [16, 128], strides = [1, 1]} : vector<16x384xf32> to vector<16x128xf32>
    %241 = vector.extract_strided_slice %237 {offsets = [0, 128], sizes = [16, 128], strides = [1, 1]} : vector<16x384xf32> to vector<16x128xf32>
    %242 = vector.extract_strided_slice %237 {offsets = [0, 256], sizes = [16, 128], strides = [1, 1]} : vector<16x384xf32> to vector<16x128xf32>
    %243 = arith.mulf %241, %178 : vector<16x128xf32>
    %244 = arith.mulf %240, %239 : vector<16x128xf32>
    %245 = arith.addf %243, %244 : vector<16x128xf32>
    %246 = math.tanh %245 : vector<16x128xf32>
    %247 = arith.mulf %242, %246 : vector<16x128xf32>
    %248 = arith.truncf %247 : vector<16x128xf32> to vector<16x128xbf16>
    %cst_60 = arith.constant dense<0.000000e+00> : vector<16x512xf32>
    %249 = tpu.matmul %248, %8, %cst_60 {dimension_numbers = #tpu.dot_dimension_numbers<[1], [0], [0], [1], [0, 0, 1, 1], [], []>} : vector<16x128xbf16>, vector<128x512xbf16>, vector<16x512xf32> -> vector<16x512xf32>
    %250 = arith.addf %249, %14 : vector<16x512xf32>
    %251 = arith.truncf %202 : vector<16x64xf32> to vector<16x64xbf16>
    %cst_61 = arith.constant dense<0.000000e+00> : vector<16x512xf32>
    %252 = tpu.matmul %251, %9, %cst_61 {dimension_numbers = #tpu.dot_dimension_numbers<[1], [0], [0], [1], [0, 0, 1, 1], [], []>} : vector<16x64xbf16>, vector<64x512xbf16>, vector<16x512xf32> -> vector<16x512xf32>
    %253 = arith.addf %250, %252 : vector<16x512xf32>
    %254 = vector.extract_strided_slice %253 {offsets = [0, 0], sizes = [16, 384], strides = [1, 1]} : vector<16x512xf32> to vector<16x384xf32>
    %255 = arith.negf %254 : vector<16x384xf32>
    %256 = math.exp %255 : vector<16x384xf32>
    %cst_62 = arith.constant 1.000000e+00 : f32
    %257 = vector.broadcast %cst_62 : f32 to vector<16x384xf32>
    %258 = arith.addf %257, %256 : vector<16x384xf32>
    %259 = arith.divf %257, %258 : vector<16x384xf32>
    %260 = vector.extract_strided_slice %253 {offsets = [0, 384], sizes = [16, 64], strides = [1, 1]} : vector<16x512xf32> to vector<16x64xf32>
    %261 = math.tanh %260 : vector<16x64xf32>
    %262 = vector.extract_strided_slice %259 {offsets = [0, 0], sizes = [16, 64], strides = [1, 1]} : vector<16x384xf32> to vector<16x64xf32>
    %263 = vector.extract_strided_slice %259 {offsets = [0, 128], sizes = [16, 64], strides = [1, 1]} : vector<16x384xf32> to vector<16x64xf32>
    %264 = vector.extract_strided_slice %259 {offsets = [0, 256], sizes = [16, 64], strides = [1, 1]} : vector<16x384xf32> to vector<16x64xf32>
    %265 = arith.mulf %263, %200 : vector<16x64xf32>
    %266 = arith.mulf %262, %261 : vector<16x64xf32>
    %267 = arith.addf %265, %266 : vector<16x64xf32>
    %268 = math.tanh %267 : vector<16x64xf32>
    %269 = arith.mulf %264, %268 : vector<16x64xf32>
    %270 = arith.truncf %269 : vector<16x64xf32> to vector<16x64xbf16>
    %cst_63 = arith.constant dense<0.000000e+00> : vector<16x512xf32>
    %271 = tpu.matmul %270, %10, %cst_63 {dimension_numbers = #tpu.dot_dimension_numbers<[1], [0], [0], [1], [0, 0, 1, 1], [], []>} : vector<16x64xbf16>, vector<64x512xbf16>, vector<16x512xf32> -> vector<16x512xf32>
    %272 = arith.addf %271, %17 : vector<16x512xf32>
    %273 = arith.truncf %224 : vector<16x32xf32> to vector<16x32xbf16>
    %cst_64 = arith.constant dense<0.000000e+00> : vector<16x512xf32>
    %274 = tpu.matmul %273, %11, %cst_64 {dimension_numbers = #tpu.dot_dimension_numbers<[1], [0], [0], [1], [0, 0, 1, 1], [], []>} : vector<16x32xbf16>, vector<32x512xbf16>, vector<16x512xf32> -> vector<16x512xf32>
    %275 = arith.addf %272, %274 : vector<16x512xf32>
    %276 = vector.extract_strided_slice %275 {offsets = [0, 0], sizes = [16, 384], strides = [1, 1]} : vector<16x512xf32> to vector<16x384xf32>
    %277 = arith.negf %276 : vector<16x384xf32>
    %278 = math.exp %277 : vector<16x384xf32>
    %cst_65 = arith.constant 1.000000e+00 : f32
    %279 = vector.broadcast %cst_65 : f32 to vector<16x384xf32>
    %280 = arith.addf %279, %278 : vector<16x384xf32>
    %281 = arith.divf %279, %280 : vector<16x384xf32>
    %282 = vector.extract_strided_slice %275 {offsets = [0, 384], sizes = [16, 32], strides = [1, 1]} : vector<16x512xf32> to vector<16x32xf32>
    %283 = math.tanh %282 : vector<16x32xf32>
    %284 = vector.extract_strided_slice %281 {offsets = [0, 0], sizes = [16, 32], strides = [1, 1]} : vector<16x384xf32> to vector<16x32xf32>
    %285 = vector.extract_strided_slice %281 {offsets = [0, 128], sizes = [16, 32], strides = [1, 1]} : vector<16x384xf32> to vector<16x32xf32>
    %286 = vector.extract_strided_slice %281 {offsets = [0, 256], sizes = [16, 32], strides = [1, 1]} : vector<16x384xf32> to vector<16x32xf32>
    %287 = arith.mulf %285, %222 : vector<16x32xf32>
    %288 = arith.mulf %284, %283 : vector<16x32xf32>
    %289 = arith.addf %287, %288 : vector<16x32xf32>
    %290 = math.tanh %289 : vector<16x32xf32>
    %291 = arith.mulf %286, %290 : vector<16x32xf32>
    %c4_i32 = arith.constant 4 : i32
    %c16_i32_66 = arith.constant 16 : i32
    %292 = arith.muli %c4_i32, %c16_i32_66 : i32
    %293 = tpu.assume_multiple %292, 16 : i32
    %294 = arith.index_cast %293 : i32 to index
    %c0_67 = arith.constant 0 : index
    %295 = vector.load %arg15[%294, %c0_67] : memref<128x512xf32, #tpu.memory_space<vmem>>, vector<16x512xf32>
    %296 = arith.truncf %247 : vector<16x128xf32> to vector<16x128xbf16>
    %cst_68 = arith.constant dense<0.000000e+00> : vector<16x512xf32>
    %297 = tpu.matmul %296, %7, %cst_68 {dimension_numbers = #tpu.dot_dimension_numbers<[1], [0], [0], [1], [0, 0, 1, 1], [], []>} : vector<16x128xbf16>, vector<128x512xbf16>, vector<16x512xf32> -> vector<16x512xf32>
    %298 = arith.addf %295, %297 : vector<16x512xf32>
    %299 = vector.extract_strided_slice %298 {offsets = [0, 0], sizes = [16, 384], strides = [1, 1]} : vector<16x512xf32> to vector<16x384xf32>
    %300 = arith.negf %299 : vector<16x384xf32>
    %301 = math.exp %300 : vector<16x384xf32>
    %cst_69 = arith.constant 1.000000e+00 : f32
    %302 = vector.broadcast %cst_69 : f32 to vector<16x384xf32>
    %303 = arith.addf %302, %301 : vector<16x384xf32>
    %304 = arith.divf %302, %303 : vector<16x384xf32>
    %305 = vector.extract_strided_slice %298 {offsets = [0, 384], sizes = [16, 128], strides = [1, 1]} : vector<16x512xf32> to vector<16x128xf32>
    %306 = math.tanh %305 : vector<16x128xf32>
    %307 = vector.extract_strided_slice %304 {offsets = [0, 0], sizes = [16, 128], strides = [1, 1]} : vector<16x384xf32> to vector<16x128xf32>
    %308 = vector.extract_strided_slice %304 {offsets = [0, 128], sizes = [16, 128], strides = [1, 1]} : vector<16x384xf32> to vector<16x128xf32>
    %309 = vector.extract_strided_slice %304 {offsets = [0, 256], sizes = [16, 128], strides = [1, 1]} : vector<16x384xf32> to vector<16x128xf32>
    %310 = arith.mulf %308, %245 : vector<16x128xf32>
    %311 = arith.mulf %307, %306 : vector<16x128xf32>
    %312 = arith.addf %310, %311 : vector<16x128xf32>
    %313 = math.tanh %312 : vector<16x128xf32>
    %314 = arith.mulf %309, %313 : vector<16x128xf32>
    %315 = arith.truncf %314 : vector<16x128xf32> to vector<16x128xbf16>
    %cst_70 = arith.constant dense<0.000000e+00> : vector<16x512xf32>
    %316 = tpu.matmul %315, %8, %cst_70 {dimension_numbers = #tpu.dot_dimension_numbers<[1], [0], [0], [1], [0, 0, 1, 1], [], []>} : vector<16x128xbf16>, vector<128x512xbf16>, vector<16x512xf32> -> vector<16x512xf32>
    %317 = arith.addf %316, %14 : vector<16x512xf32>
    %318 = arith.truncf %269 : vector<16x64xf32> to vector<16x64xbf16>
    %cst_71 = arith.constant dense<0.000000e+00> : vector<16x512xf32>
    %319 = tpu.matmul %318, %9, %cst_71 {dimension_numbers = #tpu.dot_dimension_numbers<[1], [0], [0], [1], [0, 0, 1, 1], [], []>} : vector<16x64xbf16>, vector<64x512xbf16>, vector<16x512xf32> -> vector<16x512xf32>
    %320 = arith.addf %317, %319 : vector<16x512xf32>
    %321 = vector.extract_strided_slice %320 {offsets = [0, 0], sizes = [16, 384], strides = [1, 1]} : vector<16x512xf32> to vector<16x384xf32>
    %322 = arith.negf %321 : vector<16x384xf32>
    %323 = math.exp %322 : vector<16x384xf32>
    %cst_72 = arith.constant 1.000000e+00 : f32
    %324 = vector.broadcast %cst_72 : f32 to vector<16x384xf32>
    %325 = arith.addf %324, %323 : vector<16x384xf32>
    %326 = arith.divf %324, %325 : vector<16x384xf32>
    %327 = vector.extract_strided_slice %320 {offsets = [0, 384], sizes = [16, 64], strides = [1, 1]} : vector<16x512xf32> to vector<16x64xf32>
    %328 = math.tanh %327 : vector<16x64xf32>
    %329 = vector.extract_strided_slice %326 {offsets = [0, 0], sizes = [16, 64], strides = [1, 1]} : vector<16x384xf32> to vector<16x64xf32>
    %330 = vector.extract_strided_slice %326 {offsets = [0, 128], sizes = [16, 64], strides = [1, 1]} : vector<16x384xf32> to vector<16x64xf32>
    %331 = vector.extract_strided_slice %326 {offsets = [0, 256], sizes = [16, 64], strides = [1, 1]} : vector<16x384xf32> to vector<16x64xf32>
    %332 = arith.mulf %330, %267 : vector<16x64xf32>
    %333 = arith.mulf %329, %328 : vector<16x64xf32>
    %334 = arith.addf %332, %333 : vector<16x64xf32>
    %335 = math.tanh %334 : vector<16x64xf32>
    %336 = arith.mulf %331, %335 : vector<16x64xf32>
    %337 = arith.truncf %336 : vector<16x64xf32> to vector<16x64xbf16>
    %cst_73 = arith.constant dense<0.000000e+00> : vector<16x512xf32>
    %338 = tpu.matmul %337, %10, %cst_73 {dimension_numbers = #tpu.dot_dimension_numbers<[1], [0], [0], [1], [0, 0, 1, 1], [], []>} : vector<16x64xbf16>, vector<64x512xbf16>, vector<16x512xf32> -> vector<16x512xf32>
    %339 = arith.addf %338, %17 : vector<16x512xf32>
    %340 = arith.truncf %291 : vector<16x32xf32> to vector<16x32xbf16>
    %cst_74 = arith.constant dense<0.000000e+00> : vector<16x512xf32>
    %341 = tpu.matmul %340, %11, %cst_74 {dimension_numbers = #tpu.dot_dimension_numbers<[1], [0], [0], [1], [0, 0, 1, 1], [], []>} : vector<16x32xbf16>, vector<32x512xbf16>, vector<16x512xf32> -> vector<16x512xf32>
    %342 = arith.addf %339, %341 : vector<16x512xf32>
    %343 = vector.extract_strided_slice %342 {offsets = [0, 0], sizes = [16, 384], strides = [1, 1]} : vector<16x512xf32> to vector<16x384xf32>
    %344 = arith.negf %343 : vector<16x384xf32>
    %345 = math.exp %344 : vector<16x384xf32>
    %cst_75 = arith.constant 1.000000e+00 : f32
    %346 = vector.broadcast %cst_75 : f32 to vector<16x384xf32>
    %347 = arith.addf %346, %345 : vector<16x384xf32>
    %348 = arith.divf %346, %347 : vector<16x384xf32>
    %349 = vector.extract_strided_slice %342 {offsets = [0, 384], sizes = [16, 32], strides = [1, 1]} : vector<16x512xf32> to vector<16x32xf32>
    %350 = math.tanh %349 : vector<16x32xf32>
    %351 = vector.extract_strided_slice %348 {offsets = [0, 0], sizes = [16, 32], strides = [1, 1]} : vector<16x384xf32> to vector<16x32xf32>
    %352 = vector.extract_strided_slice %348 {offsets = [0, 128], sizes = [16, 32], strides = [1, 1]} : vector<16x384xf32> to vector<16x32xf32>
    %353 = vector.extract_strided_slice %348 {offsets = [0, 256], sizes = [16, 32], strides = [1, 1]} : vector<16x384xf32> to vector<16x32xf32>
    %354 = arith.mulf %352, %289 : vector<16x32xf32>
    %355 = arith.mulf %351, %350 : vector<16x32xf32>
    %356 = arith.addf %354, %355 : vector<16x32xf32>
    %357 = math.tanh %356 : vector<16x32xf32>
    %358 = arith.mulf %353, %357 : vector<16x32xf32>
    %c5_i32 = arith.constant 5 : i32
    %c16_i32_76 = arith.constant 16 : i32
    %359 = arith.muli %c5_i32, %c16_i32_76 : i32
    %360 = tpu.assume_multiple %359, 16 : i32
    %361 = arith.index_cast %360 : i32 to index
    %c0_77 = arith.constant 0 : index
    %362 = vector.load %arg15[%361, %c0_77] : memref<128x512xf32, #tpu.memory_space<vmem>>, vector<16x512xf32>
    %363 = arith.truncf %314 : vector<16x128xf32> to vector<16x128xbf16>
    %cst_78 = arith.constant dense<0.000000e+00> : vector<16x512xf32>
    %364 = tpu.matmul %363, %7, %cst_78 {dimension_numbers = #tpu.dot_dimension_numbers<[1], [0], [0], [1], [0, 0, 1, 1], [], []>} : vector<16x128xbf16>, vector<128x512xbf16>, vector<16x512xf32> -> vector<16x512xf32>
    %365 = arith.addf %362, %364 : vector<16x512xf32>
    %366 = vector.extract_strided_slice %365 {offsets = [0, 0], sizes = [16, 384], strides = [1, 1]} : vector<16x512xf32> to vector<16x384xf32>
    %367 = arith.negf %366 : vector<16x384xf32>
    %368 = math.exp %367 : vector<16x384xf32>
    %cst_79 = arith.constant 1.000000e+00 : f32
    %369 = vector.broadcast %cst_79 : f32 to vector<16x384xf32>
    %370 = arith.addf %369, %368 : vector<16x384xf32>
    %371 = arith.divf %369, %370 : vector<16x384xf32>
    %372 = vector.extract_strided_slice %365 {offsets = [0, 384], sizes = [16, 128], strides = [1, 1]} : vector<16x512xf32> to vector<16x128xf32>
    %373 = math.tanh %372 : vector<16x128xf32>
    %374 = vector.extract_strided_slice %371 {offsets = [0, 0], sizes = [16, 128], strides = [1, 1]} : vector<16x384xf32> to vector<16x128xf32>
    %375 = vector.extract_strided_slice %371 {offsets = [0, 128], sizes = [16, 128], strides = [1, 1]} : vector<16x384xf32> to vector<16x128xf32>
    %376 = vector.extract_strided_slice %371 {offsets = [0, 256], sizes = [16, 128], strides = [1, 1]} : vector<16x384xf32> to vector<16x128xf32>
    %377 = arith.mulf %375, %312 : vector<16x128xf32>
    %378 = arith.mulf %374, %373 : vector<16x128xf32>
    %379 = arith.addf %377, %378 : vector<16x128xf32>
    %380 = math.tanh %379 : vector<16x128xf32>
    %381 = arith.mulf %376, %380 : vector<16x128xf32>
    %382 = arith.truncf %381 : vector<16x128xf32> to vector<16x128xbf16>
    %cst_80 = arith.constant dense<0.000000e+00> : vector<16x512xf32>
    %383 = tpu.matmul %382, %8, %cst_80 {dimension_numbers = #tpu.dot_dimension_numbers<[1], [0], [0], [1], [0, 0, 1, 1], [], []>} : vector<16x128xbf16>, vector<128x512xbf16>, vector<16x512xf32> -> vector<16x512xf32>
    %384 = arith.addf %383, %14 : vector<16x512xf32>
    %385 = arith.truncf %336 : vector<16x64xf32> to vector<16x64xbf16>
    %cst_81 = arith.constant dense<0.000000e+00> : vector<16x512xf32>
    %386 = tpu.matmul %385, %9, %cst_81 {dimension_numbers = #tpu.dot_dimension_numbers<[1], [0], [0], [1], [0, 0, 1, 1], [], []>} : vector<16x64xbf16>, vector<64x512xbf16>, vector<16x512xf32> -> vector<16x512xf32>
    %387 = arith.addf %384, %386 : vector<16x512xf32>
    %388 = vector.extract_strided_slice %387 {offsets = [0, 0], sizes = [16, 384], strides = [1, 1]} : vector<16x512xf32> to vector<16x384xf32>
    %389 = arith.negf %388 : vector<16x384xf32>
    %390 = math.exp %389 : vector<16x384xf32>
    %cst_82 = arith.constant 1.000000e+00 : f32
    %391 = vector.broadcast %cst_82 : f32 to vector<16x384xf32>
    %392 = arith.addf %391, %390 : vector<16x384xf32>
    %393 = arith.divf %391, %392 : vector<16x384xf32>
    %394 = vector.extract_strided_slice %387 {offsets = [0, 384], sizes = [16, 64], strides = [1, 1]} : vector<16x512xf32> to vector<16x64xf32>
    %395 = math.tanh %394 : vector<16x64xf32>
    %396 = vector.extract_strided_slice %393 {offsets = [0, 0], sizes = [16, 64], strides = [1, 1]} : vector<16x384xf32> to vector<16x64xf32>
    %397 = vector.extract_strided_slice %393 {offsets = [0, 128], sizes = [16, 64], strides = [1, 1]} : vector<16x384xf32> to vector<16x64xf32>
    %398 = vector.extract_strided_slice %393 {offsets = [0, 256], sizes = [16, 64], strides = [1, 1]} : vector<16x384xf32> to vector<16x64xf32>
    %399 = arith.mulf %397, %334 : vector<16x64xf32>
    %400 = arith.mulf %396, %395 : vector<16x64xf32>
    %401 = arith.addf %399, %400 : vector<16x64xf32>
    %402 = math.tanh %401 : vector<16x64xf32>
    %403 = arith.mulf %398, %402 : vector<16x64xf32>
    %404 = arith.truncf %403 : vector<16x64xf32> to vector<16x64xbf16>
    %cst_83 = arith.constant dense<0.000000e+00> : vector<16x512xf32>
    %405 = tpu.matmul %404, %10, %cst_83 {dimension_numbers = #tpu.dot_dimension_numbers<[1], [0], [0], [1], [0, 0, 1, 1], [], []>} : vector<16x64xbf16>, vector<64x512xbf16>, vector<16x512xf32> -> vector<16x512xf32>
    %406 = arith.addf %405, %17 : vector<16x512xf32>
    %407 = arith.truncf %358 : vector<16x32xf32> to vector<16x32xbf16>
    %cst_84 = arith.constant dense<0.000000e+00> : vector<16x512xf32>
    %408 = tpu.matmul %407, %11, %cst_84 {dimension_numbers = #tpu.dot_dimension_numbers<[1], [0], [0], [1], [0, 0, 1, 1], [], []>} : vector<16x32xbf16>, vector<32x512xbf16>, vector<16x512xf32> -> vector<16x512xf32>
    %409 = arith.addf %406, %408 : vector<16x512xf32>
    %410 = vector.extract_strided_slice %409 {offsets = [0, 0], sizes = [16, 384], strides = [1, 1]} : vector<16x512xf32> to vector<16x384xf32>
    %411 = arith.negf %410 : vector<16x384xf32>
    %412 = math.exp %411 : vector<16x384xf32>
    %cst_85 = arith.constant 1.000000e+00 : f32
    %413 = vector.broadcast %cst_85 : f32 to vector<16x384xf32>
    %414 = arith.addf %413, %412 : vector<16x384xf32>
    %415 = arith.divf %413, %414 : vector<16x384xf32>
    %416 = vector.extract_strided_slice %409 {offsets = [0, 384], sizes = [16, 32], strides = [1, 1]} : vector<16x512xf32> to vector<16x32xf32>
    %417 = math.tanh %416 : vector<16x32xf32>
    %418 = vector.extract_strided_slice %415 {offsets = [0, 0], sizes = [16, 32], strides = [1, 1]} : vector<16x384xf32> to vector<16x32xf32>
    %419 = vector.extract_strided_slice %415 {offsets = [0, 128], sizes = [16, 32], strides = [1, 1]} : vector<16x384xf32> to vector<16x32xf32>
    %420 = vector.extract_strided_slice %415 {offsets = [0, 256], sizes = [16, 32], strides = [1, 1]} : vector<16x384xf32> to vector<16x32xf32>
    %421 = arith.mulf %419, %356 : vector<16x32xf32>
    %422 = arith.mulf %418, %417 : vector<16x32xf32>
    %423 = arith.addf %421, %422 : vector<16x32xf32>
    %424 = math.tanh %423 : vector<16x32xf32>
    %425 = arith.mulf %420, %424 : vector<16x32xf32>
    %c6_i32 = arith.constant 6 : i32
    %c16_i32_86 = arith.constant 16 : i32
    %426 = arith.muli %c6_i32, %c16_i32_86 : i32
    %427 = tpu.assume_multiple %426, 16 : i32
    %428 = arith.index_cast %427 : i32 to index
    %c0_87 = arith.constant 0 : index
    %429 = vector.load %arg15[%428, %c0_87] : memref<128x512xf32, #tpu.memory_space<vmem>>, vector<16x512xf32>
    %430 = arith.truncf %381 : vector<16x128xf32> to vector<16x128xbf16>
    %cst_88 = arith.constant dense<0.000000e+00> : vector<16x512xf32>
    %431 = tpu.matmul %430, %7, %cst_88 {dimension_numbers = #tpu.dot_dimension_numbers<[1], [0], [0], [1], [0, 0, 1, 1], [], []>} : vector<16x128xbf16>, vector<128x512xbf16>, vector<16x512xf32> -> vector<16x512xf32>
    %432 = arith.addf %429, %431 : vector<16x512xf32>
    %433 = vector.extract_strided_slice %432 {offsets = [0, 0], sizes = [16, 384], strides = [1, 1]} : vector<16x512xf32> to vector<16x384xf32>
    %434 = arith.negf %433 : vector<16x384xf32>
    %435 = math.exp %434 : vector<16x384xf32>
    %cst_89 = arith.constant 1.000000e+00 : f32
    %436 = vector.broadcast %cst_89 : f32 to vector<16x384xf32>
    %437 = arith.addf %436, %435 : vector<16x384xf32>
    %438 = arith.divf %436, %437 : vector<16x384xf32>
    %439 = vector.extract_strided_slice %432 {offsets = [0, 384], sizes = [16, 128], strides = [1, 1]} : vector<16x512xf32> to vector<16x128xf32>
    %440 = math.tanh %439 : vector<16x128xf32>
    %441 = vector.extract_strided_slice %438 {offsets = [0, 0], sizes = [16, 128], strides = [1, 1]} : vector<16x384xf32> to vector<16x128xf32>
    %442 = vector.extract_strided_slice %438 {offsets = [0, 128], sizes = [16, 128], strides = [1, 1]} : vector<16x384xf32> to vector<16x128xf32>
    %443 = vector.extract_strided_slice %438 {offsets = [0, 256], sizes = [16, 128], strides = [1, 1]} : vector<16x384xf32> to vector<16x128xf32>
    %444 = arith.mulf %442, %379 : vector<16x128xf32>
    %445 = arith.mulf %441, %440 : vector<16x128xf32>
    %446 = arith.addf %444, %445 : vector<16x128xf32>
    %447 = math.tanh %446 : vector<16x128xf32>
    %448 = arith.mulf %443, %447 : vector<16x128xf32>
    %449 = arith.truncf %448 : vector<16x128xf32> to vector<16x128xbf16>
    %cst_90 = arith.constant dense<0.000000e+00> : vector<16x512xf32>
    %450 = tpu.matmul %449, %8, %cst_90 {dimension_numbers = #tpu.dot_dimension_numbers<[1], [0], [0], [1], [0, 0, 1, 1], [], []>} : vector<16x128xbf16>, vector<128x512xbf16>, vector<16x512xf32> -> vector<16x512xf32>
    %451 = arith.addf %450, %14 : vector<16x512xf32>
    %452 = arith.truncf %403 : vector<16x64xf32> to vector<16x64xbf16>
    %cst_91 = arith.constant dense<0.000000e+00> : vector<16x512xf32>
    %453 = tpu.matmul %452, %9, %cst_91 {dimension_numbers = #tpu.dot_dimension_numbers<[1], [0], [0], [1], [0, 0, 1, 1], [], []>} : vector<16x64xbf16>, vector<64x512xbf16>, vector<16x512xf32> -> vector<16x512xf32>
    %454 = arith.addf %451, %453 : vector<16x512xf32>
    %455 = vector.extract_strided_slice %454 {offsets = [0, 0], sizes = [16, 384], strides = [1, 1]} : vector<16x512xf32> to vector<16x384xf32>
    %456 = arith.negf %455 : vector<16x384xf32>
    %457 = math.exp %456 : vector<16x384xf32>
    %cst_92 = arith.constant 1.000000e+00 : f32
    %458 = vector.broadcast %cst_92 : f32 to vector<16x384xf32>
    %459 = arith.addf %458, %457 : vector<16x384xf32>
    %460 = arith.divf %458, %459 : vector<16x384xf32>
    %461 = vector.extract_strided_slice %454 {offsets = [0, 384], sizes = [16, 64], strides = [1, 1]} : vector<16x512xf32> to vector<16x64xf32>
    %462 = math.tanh %461 : vector<16x64xf32>
    %463 = vector.extract_strided_slice %460 {offsets = [0, 0], sizes = [16, 64], strides = [1, 1]} : vector<16x384xf32> to vector<16x64xf32>
    %464 = vector.extract_strided_slice %460 {offsets = [0, 128], sizes = [16, 64], strides = [1, 1]} : vector<16x384xf32> to vector<16x64xf32>
    %465 = vector.extract_strided_slice %460 {offsets = [0, 256], sizes = [16, 64], strides = [1, 1]} : vector<16x384xf32> to vector<16x64xf32>
    %466 = arith.mulf %464, %401 : vector<16x64xf32>
    %467 = arith.mulf %463, %462 : vector<16x64xf32>
    %468 = arith.addf %466, %467 : vector<16x64xf32>
    %469 = math.tanh %468 : vector<16x64xf32>
    %470 = arith.mulf %465, %469 : vector<16x64xf32>
    %471 = arith.truncf %470 : vector<16x64xf32> to vector<16x64xbf16>
    %cst_93 = arith.constant dense<0.000000e+00> : vector<16x512xf32>
    %472 = tpu.matmul %471, %10, %cst_93 {dimension_numbers = #tpu.dot_dimension_numbers<[1], [0], [0], [1], [0, 0, 1, 1], [], []>} : vector<16x64xbf16>, vector<64x512xbf16>, vector<16x512xf32> -> vector<16x512xf32>
    %473 = arith.addf %472, %17 : vector<16x512xf32>
    %474 = arith.truncf %425 : vector<16x32xf32> to vector<16x32xbf16>
    %cst_94 = arith.constant dense<0.000000e+00> : vector<16x512xf32>
    %475 = tpu.matmul %474, %11, %cst_94 {dimension_numbers = #tpu.dot_dimension_numbers<[1], [0], [0], [1], [0, 0, 1, 1], [], []>} : vector<16x32xbf16>, vector<32x512xbf16>, vector<16x512xf32> -> vector<16x512xf32>
    %476 = arith.addf %473, %475 : vector<16x512xf32>
    %477 = vector.extract_strided_slice %476 {offsets = [0, 0], sizes = [16, 384], strides = [1, 1]} : vector<16x512xf32> to vector<16x384xf32>
    %478 = arith.negf %477 : vector<16x384xf32>
    %479 = math.exp %478 : vector<16x384xf32>
    %cst_95 = arith.constant 1.000000e+00 : f32
    %480 = vector.broadcast %cst_95 : f32 to vector<16x384xf32>
    %481 = arith.addf %480, %479 : vector<16x384xf32>
    %482 = arith.divf %480, %481 : vector<16x384xf32>
    %483 = vector.extract_strided_slice %476 {offsets = [0, 384], sizes = [16, 32], strides = [1, 1]} : vector<16x512xf32> to vector<16x32xf32>
    %484 = math.tanh %483 : vector<16x32xf32>
    %485 = vector.extract_strided_slice %482 {offsets = [0, 0], sizes = [16, 32], strides = [1, 1]} : vector<16x384xf32> to vector<16x32xf32>
    %486 = vector.extract_strided_slice %482 {offsets = [0, 128], sizes = [16, 32], strides = [1, 1]} : vector<16x384xf32> to vector<16x32xf32>
    %487 = vector.extract_strided_slice %482 {offsets = [0, 256], sizes = [16, 32], strides = [1, 1]} : vector<16x384xf32> to vector<16x32xf32>
    %488 = arith.mulf %486, %423 : vector<16x32xf32>
    %489 = arith.mulf %485, %484 : vector<16x32xf32>
    %490 = arith.addf %488, %489 : vector<16x32xf32>
    %491 = math.tanh %490 : vector<16x32xf32>
    %492 = arith.mulf %487, %491 : vector<16x32xf32>
    %c7_i32 = arith.constant 7 : i32
    %c16_i32_96 = arith.constant 16 : i32
    %493 = arith.muli %c7_i32, %c16_i32_96 : i32
    %494 = tpu.assume_multiple %493, 16 : i32
    %495 = arith.index_cast %494 : i32 to index
    %c0_97 = arith.constant 0 : index
    %496 = vector.load %arg15[%495, %c0_97] : memref<128x512xf32, #tpu.memory_space<vmem>>, vector<16x512xf32>
    %497 = arith.truncf %448 : vector<16x128xf32> to vector<16x128xbf16>
    %cst_98 = arith.constant dense<0.000000e+00> : vector<16x512xf32>
    %498 = tpu.matmul %497, %7, %cst_98 {dimension_numbers = #tpu.dot_dimension_numbers<[1], [0], [0], [1], [0, 0, 1, 1], [], []>} : vector<16x128xbf16>, vector<128x512xbf16>, vector<16x512xf32> -> vector<16x512xf32>
    %499 = arith.addf %496, %498 : vector<16x512xf32>
    %500 = vector.extract_strided_slice %499 {offsets = [0, 0], sizes = [16, 384], strides = [1, 1]} : vector<16x512xf32> to vector<16x384xf32>
    %501 = arith.negf %500 : vector<16x384xf32>
    %502 = math.exp %501 : vector<16x384xf32>
    %cst_99 = arith.constant 1.000000e+00 : f32
    %503 = vector.broadcast %cst_99 : f32 to vector<16x384xf32>
    %504 = arith.addf %503, %502 : vector<16x384xf32>
    %505 = arith.divf %503, %504 : vector<16x384xf32>
    %506 = vector.extract_strided_slice %499 {offsets = [0, 384], sizes = [16, 128], strides = [1, 1]} : vector<16x512xf32> to vector<16x128xf32>
    %507 = math.tanh %506 : vector<16x128xf32>
    %508 = vector.extract_strided_slice %505 {offsets = [0, 0], sizes = [16, 128], strides = [1, 1]} : vector<16x384xf32> to vector<16x128xf32>
    %509 = vector.extract_strided_slice %505 {offsets = [0, 128], sizes = [16, 128], strides = [1, 1]} : vector<16x384xf32> to vector<16x128xf32>
    %510 = vector.extract_strided_slice %505 {offsets = [0, 256], sizes = [16, 128], strides = [1, 1]} : vector<16x384xf32> to vector<16x128xf32>
    %511 = arith.mulf %509, %446 : vector<16x128xf32>
    %512 = arith.mulf %508, %507 : vector<16x128xf32>
    %513 = arith.addf %511, %512 : vector<16x128xf32>
    %514 = math.tanh %513 : vector<16x128xf32>
    %515 = arith.mulf %510, %514 : vector<16x128xf32>
    %516 = arith.truncf %515 : vector<16x128xf32> to vector<16x128xbf16>
    %cst_100 = arith.constant dense<0.000000e+00> : vector<16x512xf32>
    %517 = tpu.matmul %516, %8, %cst_100 {dimension_numbers = #tpu.dot_dimension_numbers<[1], [0], [0], [1], [0, 0, 1, 1], [], []>} : vector<16x128xbf16>, vector<128x512xbf16>, vector<16x512xf32> -> vector<16x512xf32>
    %518 = arith.addf %517, %14 : vector<16x512xf32>
    %519 = arith.truncf %470 : vector<16x64xf32> to vector<16x64xbf16>
    %cst_101 = arith.constant dense<0.000000e+00> : vector<16x512xf32>
    %520 = tpu.matmul %519, %9, %cst_101 {dimension_numbers = #tpu.dot_dimension_numbers<[1], [0], [0], [1], [0, 0, 1, 1], [], []>} : vector<16x64xbf16>, vector<64x512xbf16>, vector<16x512xf32> -> vector<16x512xf32>
    %521 = arith.addf %518, %520 : vector<16x512xf32>
    %522 = vector.extract_strided_slice %521 {offsets = [0, 0], sizes = [16, 384], strides = [1, 1]} : vector<16x512xf32> to vector<16x384xf32>
    %523 = arith.negf %522 : vector<16x384xf32>
    %524 = math.exp %523 : vector<16x384xf32>
    %cst_102 = arith.constant 1.000000e+00 : f32
    %525 = vector.broadcast %cst_102 : f32 to vector<16x384xf32>
    %526 = arith.addf %525, %524 : vector<16x384xf32>
    %527 = arith.divf %525, %526 : vector<16x384xf32>
    %528 = vector.extract_strided_slice %521 {offsets = [0, 384], sizes = [16, 64], strides = [1, 1]} : vector<16x512xf32> to vector<16x64xf32>
    %529 = math.tanh %528 : vector<16x64xf32>
    %530 = vector.extract_strided_slice %527 {offsets = [0, 0], sizes = [16, 64], strides = [1, 1]} : vector<16x384xf32> to vector<16x64xf32>
    %531 = vector.extract_strided_slice %527 {offsets = [0, 128], sizes = [16, 64], strides = [1, 1]} : vector<16x384xf32> to vector<16x64xf32>
    %532 = vector.extract_strided_slice %527 {offsets = [0, 256], sizes = [16, 64], strides = [1, 1]} : vector<16x384xf32> to vector<16x64xf32>
    %533 = arith.mulf %531, %468 : vector<16x64xf32>
    %534 = arith.mulf %530, %529 : vector<16x64xf32>
    %535 = arith.addf %533, %534 : vector<16x64xf32>
    %536 = math.tanh %535 : vector<16x64xf32>
    %537 = arith.mulf %532, %536 : vector<16x64xf32>
    %538 = arith.truncf %537 : vector<16x64xf32> to vector<16x64xbf16>
    %cst_103 = arith.constant dense<0.000000e+00> : vector<16x512xf32>
    %539 = tpu.matmul %538, %10, %cst_103 {dimension_numbers = #tpu.dot_dimension_numbers<[1], [0], [0], [1], [0, 0, 1, 1], [], []>} : vector<16x64xbf16>, vector<64x512xbf16>, vector<16x512xf32> -> vector<16x512xf32>
    %540 = arith.addf %539, %17 : vector<16x512xf32>
    %541 = arith.truncf %492 : vector<16x32xf32> to vector<16x32xbf16>
    %cst_104 = arith.constant dense<0.000000e+00> : vector<16x512xf32>
    %542 = tpu.matmul %541, %11, %cst_104 {dimension_numbers = #tpu.dot_dimension_numbers<[1], [0], [0], [1], [0, 0, 1, 1], [], []>} : vector<16x32xbf16>, vector<32x512xbf16>, vector<16x512xf32> -> vector<16x512xf32>
    %543 = arith.addf %540, %542 : vector<16x512xf32>
    %544 = vector.extract_strided_slice %543 {offsets = [0, 0], sizes = [16, 384], strides = [1, 1]} : vector<16x512xf32> to vector<16x384xf32>
    %545 = arith.negf %544 : vector<16x384xf32>
    %546 = math.exp %545 : vector<16x384xf32>
    %cst_105 = arith.constant 1.000000e+00 : f32
    %547 = vector.broadcast %cst_105 : f32 to vector<16x384xf32>
    %548 = arith.addf %547, %546 : vector<16x384xf32>
    %549 = arith.divf %547, %548 : vector<16x384xf32>
    %550 = vector.extract_strided_slice %543 {offsets = [0, 384], sizes = [16, 32], strides = [1, 1]} : vector<16x512xf32> to vector<16x32xf32>
    %551 = math.tanh %550 : vector<16x32xf32>
    %552 = vector.extract_strided_slice %549 {offsets = [0, 0], sizes = [16, 32], strides = [1, 1]} : vector<16x384xf32> to vector<16x32xf32>
    %553 = vector.extract_strided_slice %549 {offsets = [0, 128], sizes = [16, 32], strides = [1, 1]} : vector<16x384xf32> to vector<16x32xf32>
    %554 = vector.extract_strided_slice %549 {offsets = [0, 256], sizes = [16, 32], strides = [1, 1]} : vector<16x384xf32> to vector<16x32xf32>
    %555 = arith.mulf %553, %490 : vector<16x32xf32>
    %556 = arith.mulf %552, %551 : vector<16x32xf32>
    %557 = arith.addf %555, %556 : vector<16x32xf32>
    %558 = math.tanh %557 : vector<16x32xf32>
    %559 = arith.mulf %554, %558 : vector<16x32xf32>
    %c8_i32 = arith.constant 8 : i32
    %c0_106 = arith.constant 0 : index
    %c0_107 = arith.constant 0 : index
    %560 = vector.load %arg10[%c0_106, %c0_107] : memref<32x128xf32, #tpu.memory_space<vmem>>, vector<32x128xf32>
    %cst_108 = arith.constant dense<0.000000e+00> : vector<16x128xf32>
    %561 = tpu.matmul %559, %560, %cst_108 {dimension_numbers = #tpu.dot_dimension_numbers<[1], [0], [0], [1], [0, 0, 1, 1], [], []>} : vector<16x32xf32>, vector<32x128xf32>, vector<16x128xf32> -> vector<16x128xf32>
    %c0_109 = arith.constant 0 : index
    %c0_110 = arith.constant 0 : index
    %562 = vector.load %arg11[%c0_109, %c0_110] : memref<1x128xf32, #tpu.memory_space<vmem>>, vector<1x128xf32>
    %563 = vector.broadcast %562 : vector<1x128xf32> to vector<16x128xf32>
    %564 = arith.addf %561, %563 : vector<16x128xf32>
    %cst_111 = arith.constant 0.000000e+00 : f32
    %565 = vector.broadcast %cst_111 : f32 to vector<16x128xf32>
    %566 = arith.maximumf %564, %565 : vector<16x128xf32>
    %c0_112 = arith.constant 0 : index
    %c0_113 = arith.constant 0 : index
    %567 = vector.load %arg12[%c0_112, %c0_113] : memref<128x128xf32, #tpu.memory_space<vmem>>, vector<128x128xf32>
    %cst_114 = arith.constant dense<0.000000e+00> : vector<16x128xf32>
    %568 = tpu.matmul %566, %567, %cst_114 {dimension_numbers = #tpu.dot_dimension_numbers<[1], [0], [0], [1], [0, 0, 1, 1], [], []>} : vector<16x128xf32>, vector<128x128xf32>, vector<16x128xf32> -> vector<16x128xf32>
    %c0_115 = arith.constant 0 : index
    %c0_116 = arith.constant 0 : index
    %569 = vector.load %arg13[%c0_115, %c0_116] : memref<1x128xf32, #tpu.memory_space<vmem>>, vector<1x128xf32>
    %570 = vector.broadcast %569 : vector<1x128xf32> to vector<16x128xf32>
    %571 = arith.addf %568, %570 : vector<16x128xf32>
    %c0_117 = arith.constant 0 : index
    %c0_118 = arith.constant 0 : index
    %572 = vector.load %arg14[%c0_117, %c0_118] : memref<16x128xf32, #tpu.memory_space<vmem>>, vector<16x128xf32>
    tpu.vector_store %arg14[%c0_117, %c0_118], %571 {strides = array<i32>} : memref<16x128xf32, #tpu.memory_space<vmem>>, vector<16x128xf32>,
    return
  }
}

</mosaic_0001>

<llo_original>
// kernel: price_prediction_forward.1
$region0: #{price_prediction_forward.1}
  #allocation0 [shape = 'u32[]', space=smem, size = 0x4, offset = 0x4, fixed_abs, tag = 'smem constant byte address 0x4 - core index']
  #allocation1 [shape = 'u32[72,128]{1,0:T(1,128)}', space=vmem, size = 0x9000, scoped, tag = 'internal scratch']
  #allocation2 [shape = 'f32[128,512]{1,0:T(8,128)}', space=vmem, size = 0x40000, scoped, tag = 'scratch operand']
  %s0 = inlined_call_operand.vmem [shape: f32[128,8], index: 0, kind: input, shape index: {}]
  %s1 = inlined_call_operand.hbm [shape: f32[8,512], index: 1, kind: input, shape index: {}]
  %s2 = inlined_call_operand.hbm [shape: bf16[128,512], index: 2, kind: input, shape index: {}]
  %s3 = inlined_call_operand.hbm [shape: f32[1,512], index: 3, kind: input, shape index: {}]
  %s4 = inlined_call_operand.hbm [shape: bf16[128,512], index: 4, kind: input, shape index: {}]
  %s5 = inlined_call_operand.vmem [shape: bf16[64,512], index: 5, kind: input, shape index: {}]
  %s6 = inlined_call_operand.hbm [shape: f32[1,512], index: 6, kind: input, shape index: {}]
  %s7 = inlined_call_operand.hbm [shape: bf16[64,512], index: 7, kind: input, shape index: {}]
  %s8 = inlined_call_operand.vmem [shape: bf16[32,512], index: 8, kind: input, shape index: {}]
  %s9 = inlined_call_operand.hbm [shape: f32[1,512], index: 9, kind: input, shape index: {}]
  %s10 = inlined_call_operand.vmem [shape: f32[32,128], index: 10, kind: input, shape index: {}]
  %s11 = inlined_call_operand.vmem [shape: f32[1,128], index: 11, kind: input, shape index: {}]
  %s12 = inlined_call_operand.hbm [shape: f32[128,128], index: 12, kind: input, shape index: {}]
  %s13 = inlined_call_operand.vmem [shape: f32[1,128], index: 13, kind: input, shape index: {}]
  %s14 = inlined_call_operand.vmem [shape: f32[16,128], index: 14, kind: output, shape index: {}]
  %s15 = sld [smem:[#allocation0]]
  $region98: #{price_prediction_forward.1} parent=0
    _
  %s17 = ssub.s32 1, %s15
  %s18 = scalar_select 0, %s17, %s15
  $region1: #{price_prediction_forward.1} parent=0
    #allocation3 [shape = 'u8[16384]{0}', space=vmem, size = 0x4000, scoped, tag = 'input window, operand 1, single buffered']
    #allocation4 [shape = 's32[1]{0}', space=sflag, size = 0x4, scoped, tag = 'scoped memory for price_prediction_forward.1']
    #allocation5 [shape = 'u8[131072]{0}', space=vmem, size = 0x20000, scoped, tag = 'input window, operand 2, single buffered']
    #allocation6 [shape = 's32[1]{0}', space=sflag, size = 0x4, scoped, tag = 'scoped memory for price_prediction_forward.1']
    #allocation7 [shape = 'u8[2048]{0}', space=vmem, size = 0x800, scoped, tag = 'input window, operand 3, single buffered']
    #allocation8 [shape = 'u8[131072]{0}', space=vmem, size = 0x20000, scoped, tag = 'input window, operand 4, single buffered']
    #allocation9 [shape = 's32[1]{0}', space=sflag, size = 0x4, scoped, tag = 'scoped memory for price_prediction_forward.1']
    #allocation10 [shape = 'u8[2048]{0}', space=vmem, size = 0x800, scoped, tag = 'input window, operand 6, single buffered']
    #allocation11 [shape = 'u8[65536]{0}', space=vmem, size = 0x10000, scoped, tag = 'input window, operand 7, single buffered']
    #allocation12 [shape = 's32[1]{0}', space=sflag, size = 0x4, scoped, tag = 'scoped memory for price_prediction_forward.1']
    #allocation13 [shape = 'u8[2048]{0}', space=vmem, size = 0x800, scoped, tag = 'input window, operand 9, single buffered']
    #allocation14 [shape = 'u8[65536]{0}', space=vmem, size = 0x10000, scoped, tag = 'input window, operand 12, single buffered']
    #allocation15 [shape = 's32[1]{0}', space=sflag, size = 0x4, scoped, tag = 'scoped memory for price_prediction_forward.1']
    %19 = vsyncpa [#allocation4], 0
    %20 = vsyncpa [#allocation6], 0
    %21 = vsyncpa [#allocation9], 0
    %22 = vsyncpa [#allocation12], 0
    %23 = vsyncpa [#allocation15], 0
    // Predicated region
    $region2: #{price_prediction_forward.1} parent=1 // pred_check
      _
    $region3: #{price_prediction_forward.1} parent=1 // pred_check_branch
      %25 = sbr.rel (0) target = $region5
    $region4: #{price_prediction_forward.1} parent=1 // pred_region
      _
    $region5: #{price_prediction_forward.1} parent=1 // pred_fallthru
      _
    // Predicated region
    $region6: #{price_prediction_forward.1} parent=1 // pred_check
      _
    $region7: #{price_prediction_forward.1} parent=1 // pred_check_branch
      %27 = sbr.rel (0) target = $region9
    $region8: #{price_prediction_forward.1} parent=1 // pred_region
      %29 = vsyncadd [#allocation4], 0
      %s31 = sshll.u32 %s1, 4
      %s32 = int_to_ptr.hbm [resolvable:$true] %s31
      %s33 = sshll.u32 [#allocation3], 4
      %s34 = int_to_ptr.vmem [resolvable:$true] %s33
      %36 = dma.hbm_to_vmem [thread:$0]  %s32, 512, %s34, [#allocation4]
    $region9: #{price_prediction_forward.1} parent=1 // pred_fallthru
      _
    // Predicated region
    $region10: #{price_prediction_forward.1} parent=1 // pred_check
      _
    $region11: #{price_prediction_forward.1} parent=1 // pred_check_branch
      %38 = sbr.rel (0) target = $region13
    $region12: #{price_prediction_forward.1} parent=1 // pred_region
      %40 = vsyncadd [#allocation6], 0
      %s41 = sshll.u32 %s2, 4
      %s42 = int_to_ptr.hbm [resolvable:$true] %s41
      %s43 = sshll.u32 [#allocation5], 4
      %s44 = int_to_ptr.vmem [resolvable:$true] %s43
      %49 = dma.hbm_to_vmem [thread:$0]  %s42, 4096, %s44, [#allocation6], 256, 256, 16
    $region13: #{price_prediction_forward.1} parent=1 // pred_fallthru
      _
    // Predicated region
    $region14: #{price_prediction_forward.1} parent=1 // pred_check
      _
    $region15: #{price_prediction_forward.1} parent=1 // pred_check_branch
      %51 = sbr.rel (0) target = $region17
    $region16: #{price_prediction_forward.1} parent=1 // pred_region
      %53 = vsyncadd [#allocation6], 0
      %s55 = sshll.u32 %s3, 4
      %s56 = int_to_ptr.hbm [resolvable:$true] %s55
      %s57 = sshll.u32 [#allocation7], 4
      %s58 = int_to_ptr.vmem [resolvable:$true] %s57
      %60 = dma.hbm_to_vmem [thread:$0]  %s56, 64, %s58, [#allocation6]
    $region17: #{price_prediction_forward.1} parent=1 // pred_fallthru
      _
    // Predicated region
    $region18: #{price_prediction_forward.1} parent=1 // pred_check
      _
    $region19: #{price_prediction_forward.1} parent=1 // pred_check_branch
      %62 = sbr.rel (0) target = $region21
    $region20: #{price_prediction_forward.1} parent=1 // pred_region
      %64 = vsyncadd [#allocation9], 0
      %s65 = sshll.u32 %s4, 4
      %s66 = int_to_ptr.hbm [resolvable:$true] %s65
      %s67 = sshll.u32 [#allocation8], 4
      %s68 = int_to_ptr.vmem [resolvable:$true] %s67
      %73 = dma.hbm_to_vmem [thread:$0]  %s66, 4096, %s68, [#allocation9], 256, 256, 16
    $region21: #{price_prediction_forward.1} parent=1 // pred_fallthru
      _
    // Predicated region
    $region22: #{price_prediction_forward.1} parent=1 // pred_check
      _
    $region23: #{price_prediction_forward.1} parent=1 // pred_check_branch
      %75 = sbr.rel (0) target = $region25
    $region24: #{price_prediction_forward.1} parent=1 // pred_region
      _
    $region25: #{price_prediction_forward.1} parent=1 // pred_fallthru
      _
    // Predicated region
    $region26: #{price_prediction_forward.1} parent=1 // pred_check
      _
    $region27: #{price_prediction_forward.1} parent=1 // pred_check_branch
      %77 = sbr.rel (0) target = $region29
    $region28: #{price_prediction_forward.1} parent=1 // pred_region
      %79 = vsyncadd [#allocation9], 0
      %s81 = sshll.u32 %s6, 4
      %s82 = int_to_ptr.hbm [resolvable:$true] %s81
      %s83 = sshll.u32 [#allocation10], 4
      %s84 = int_to_ptr.vmem [resolvable:$true] %s83
      %86 = dma.hbm_to_vmem [thread:$0]  %s82, 64, %s84, [#allocation9]
    $region29: #{price_prediction_forward.1} parent=1 // pred_fallthru
      _
    // Predicated region
    $region30: #{price_prediction_forward.1} parent=1 // pred_check
      _
    $region31: #{price_prediction_forward.1} parent=1 // pred_check_branch
      %88 = sbr.rel (0) target = $region33
    $region32: #{price_prediction_forward.1} parent=1 // pred_region
      %90 = vsyncadd [#allocation12], 0
      %s91 = sshll.u32 %s7, 4
      %s92 = int_to_ptr.hbm [resolvable:$true] %s91
      %s93 = sshll.u32 [#allocation11], 4
      %s94 = int_to_ptr.vmem [resolvable:$true] %s93
      %99 = dma.hbm_to_vmem [thread:$0]  %s92, 2048, %s94, [#allocation12], 256, 256, 16
    $region33: #{price_prediction_forward.1} parent=1 // pred_fallthru
      _
    // Predicated region
    $region34: #{price_prediction_forward.1} parent=1 // pred_check
      _
    $region35: #{price_prediction_forward.1} parent=1 // pred_check_branch
      %101 = sbr.rel (0) target = $region37
    $region36: #{price_prediction_forward.1} parent=1 // pred_region
      _
    $region37: #{price_prediction_forward.1} parent=1 // pred_fallthru
      _
    // Predicated region
    $region38: #{price_prediction_forward.1} parent=1 // pred_check
      _
    $region39: #{price_prediction_forward.1} parent=1 // pred_check_branch
      %103 = sbr.rel (0) target = $region41
    $region40: #{price_prediction_forward.1} parent=1 // pred_region
      %105 = vsyncadd [#allocation12], 0
      %s107 = sshll.u32 %s9, 4
      %s108 = int_to_ptr.hbm [resolvable:$true] %s107
      %s109 = sshll.u32 [#allocation13], 4
      %s110 = int_to_ptr.vmem [resolvable:$true] %s109
      %112 = dma.hbm_to_vmem [thread:$0]  %s108, 64, %s110, [#allocation12]
    $region41: #{price_prediction_forward.1} parent=1 // pred_fallthru
      _
    // Predicated region
    $region42: #{price_prediction_forward.1} parent=1 // pred_check
      _
    $region43: #{price_prediction_forward.1} parent=1 // pred_check_branch
      %114 = sbr.rel (0) target = $region45
    $region44: #{price_prediction_forward.1} parent=1 // pred_region
      _
    $region45: #{price_prediction_forward.1} parent=1 // pred_fallthru
      _
    // Predicated region
    $region46: #{price_prediction_forward.1} parent=1 // pred_check
      _
    $region47: #{price_prediction_forward.1} parent=1 // pred_check_branch
      %116 = sbr.rel (0) target = $region49
    $region48: #{price_prediction_forward.1} parent=1 // pred_region
      _
    $region49: #{price_prediction_forward.1} parent=1 // pred_fallthru
      _
    // Predicated region
    $region50: #{price_prediction_forward.1} parent=1 // pred_check
      _
    $region51: #{price_prediction_forward.1} parent=1 // pred_check_branch
      %118 = sbr.rel (0) target = $region53
    $region52: #{price_prediction_forward.1} parent=1 // pred_region
      %120 = vsyncadd [#allocation15], 0
      %s121 = sshll.u32 %s12, 4
      %s122 = int_to_ptr.hbm [resolvable:$true] %s121
      %s123 = sshll.u32 [#allocation14], 4
      %s124 = int_to_ptr.vmem [resolvable:$true] %s123
      %129 = dma.hbm_to_vmem [thread:$0]  %s122, 2048, %s124, [#allocation15], 128, 128, 8
    $region53: #{price_prediction_forward.1} parent=1 // pred_fallthru
      _
    // Predicated region
    $region54: #{price_prediction_forward.1} parent=1 // pred_check
      _
    $region55: #{price_prediction_forward.1} parent=1 // pred_check_branch
      %131 = sbr.rel (0) target = $region57
    $region56: #{price_prediction_forward.1} parent=1 // pred_region
      _
    $region57: #{price_prediction_forward.1} parent=1 // pred_fallthru
      _
    // Predicated region
    $region58: #{price_prediction_forward.1} parent=1 // pred_check
      _
    $region59: #{price_prediction_forward.1} parent=1 // pred_check_branch
      %133 = sbr.rel (0) target = $region61
    $region60: #{price_prediction_forward.1} parent=1 // pred_region
      %135 = dma.done [#allocation4], 512
    $region61: #{price_prediction_forward.1} parent=1 // pred_fallthru
      _
    // Predicated region
    $region62: #{price_prediction_forward.1} parent=1 // pred_check
      _
    $region63: #{price_prediction_forward.1} parent=1 // pred_check_branch
      %137 = sbr.rel (0) target = $region65
    $region64: #{price_prediction_forward.1} parent=1 // pred_region
      %139 = dma.done [#allocation6], 4096
    $region65: #{price_prediction_forward.1} parent=1 // pred_fallthru
      _
    // Predicated region
    $region66: #{price_prediction_forward.1} parent=1 // pred_check
      _
    $region67: #{price_prediction_forward.1} parent=1 // pred_check_branch
      %141 = sbr.rel (0) target = $region69
    $region68: #{price_prediction_forward.1} parent=1 // pred_region
      %143 = dma.done [#allocation6], 64
    $region69: #{price_prediction_forward.1} parent=1 // pred_fallthru
      _
    // Predicated region
    $region70: #{price_prediction_forward.1} parent=1 // pred_check
      _
    $region71: #{price_prediction_forward.1} parent=1 // pred_check_branch
      %145 = sbr.rel (0) target = $region73
    $region72: #{price_prediction_forward.1} parent=1 // pred_region
      %147 = dma.done [#allocation9], 4096
    $region73: #{price_prediction_forward.1} parent=1 // pred_fallthru
      _
    // Predicated region
    $region74: #{price_prediction_forward.1} parent=1 // pred_check
      _
    $region75: #{price_prediction_forward.1} parent=1 // pred_check_branch
      %149 = sbr.rel (0) target = $region77
    $region76: #{price_prediction_forward.1} parent=1 // pred_region
      %151 = dma.done [#allocation9], 64
    $region77: #{price_prediction_forward.1} parent=1 // pred_fallthru
      _
    // Predicated region
    $region78: #{price_prediction_forward.1} parent=1 // pred_check
      _
    $region79: #{price_prediction_forward.1} parent=1 // pred_check_branch
      %153 = sbr.rel (0) target = $region81
    $region80: #{price_prediction_forward.1} parent=1 // pred_region
      %155 = dma.done [#allocation12], 2048
    $region81: #{price_prediction_forward.1} parent=1 // pred_fallthru
      _
    // Predicated region
    $region82: #{price_prediction_forward.1} parent=1 // pred_check
      _
    $region83: #{price_prediction_forward.1} parent=1 // pred_check_branch
      %157 = sbr.rel (0) target = $region85
    $region84: #{price_prediction_forward.1} parent=1 // pred_region
      %159 = dma.done [#allocation12], 64
    $region85: #{price_prediction_forward.1} parent=1 // pred_fallthru
      _
    // Predicated region
    $region86: #{price_prediction_forward.1} parent=1 // pred_check
      _
    $region87: #{price_prediction_forward.1} parent=1 // pred_check_branch
      %161 = sbr.rel (0) target = $region89
    $region88: #{price_prediction_forward.1} parent=1 // pred_region
      %163 = dma.done [#allocation15], 2048
    $region89: #{price_prediction_forward.1} parent=1 // pred_fallthru
      _
    %v165 = vld [vmem:[%s0] sm:$0xff]
    %v166 = vld [vmem:[%s0 + $0x8] sm:$0xff]
    %v167 = vld [vmem:[%s0 + $0x10] sm:$0xff]
    %v168 = vld [vmem:[%s0 + $0x18] sm:$0xff]
    %v169 = vld [vmem:[%s0 + $0x20] sm:$0xff]
    %v170 = vld [vmem:[%s0 + $0x28] sm:$0xff]
    %v171 = vld [vmem:[%s0 + $0x30] sm:$0xff]
    %v172 = vld [vmem:[%s0 + $0x38] sm:$0xff]
    %v173 = vld [vmem:[%s0 + $0x40] sm:$0xff]
    %v174 = vld [vmem:[%s0 + $0x48] sm:$0xff]
    %v175 = vld [vmem:[%s0 + $0x50] sm:$0xff]
    %v176 = vld [vmem:[%s0 + $0x58] sm:$0xff]
    %v177 = vld [vmem:[%s0 + $0x60] sm:$0xff]
    %v178 = vld [vmem:[%s0 + $0x68] sm:$0xff]
    %v179 = vld [vmem:[%s0 + $0x70] sm:$0xff]
    %v180 = vld [vmem:[%s0 + $0x78] sm:$0xff]
    %v181 = vld [vmem:[#allocation3] sm:$0xff]
    %v182 = vld [vmem:[#allocation3 + $0x8] sm:$0xff]
    %v183 = vld [vmem:[#allocation3 + $0x10] sm:$0xff]
    %v184 = vld [vmem:[#allocation3 + $0x18] sm:$0xff]
    %v185 = vld [vmem:[#allocation7] sm:$0xf]
    %v187 = vperm.slane %v185, 0
    %v188 = vperm.slane %v185, 1
    %v189 = vperm.slane %v185, 2
    %v190 = vperm.slane %v185, 3
    %vm195 = vcmask 64512
    %v197 = vsel %vm195, %v165, 0
    %v200 = vsel %vm195, %v166, 0
    %v203 = vsel %vm195, %v167, 0
    %v206 = vsel %vm195, %v168, 0
    %v209 = vsel %vm195, %v169, 0
    %v212 = vsel %vm195, %v170, 0
    %v215 = vsel %vm195, %v171, 0
    %v218 = vsel %vm195, %v172, 0
    %v221 = vsel %vm195, %v173, 0
    %v224 = vsel %vm195, %v174, 0
    %v227 = vsel %vm195, %v175, 0
    %v230 = vsel %vm195, %v176, 0
    %v233 = vsel %vm195, %v177, 0
    %v236 = vsel %vm195, %v178, 0
    %v239 = vsel %vm195, %v179, 0
    %v242 = vsel %vm195, %v180, 0
    %244 = vmatpush.msra.mxu0 0.0
    %245 = vmatpush.msra.mxu0 0.0
    %246 = vmatpush.msra.mxu0 0.0
    %247 = vmatpush.msra.mxu0 0.0
    %248 = vmatpush.msra.mxu0 0.0
    %249 = vmatpush.msra.mxu0 0.0
    %250 = vmatpush.msra.mxu0 0.0
    %251 = vmatpush.msra.mxu0 0.0
    %252 = vmatpush.msra.mxu0 0.0
    %253 = vmatpush.msra.mxu0 0.0
    %254 = vmatpush.msra.mxu0 0.0
    %255 = vmatpush.msra.mxu0 0.0
    %256 = vmatpush.msra.mxu0 0.0
    %257 = vmatpush.msra.mxu0 0.0
    %258 = vmatpush.msra.mxu0 0.0
    %259 = vmatpush.msra.mxu0 %v181
    %260 = vmatmul.f32.gmra.mxu0 %v197
    %v261 = vpop.f32.mrf.mxu0
    %v262 = vadd.f32 %v187, %v261
    %263 = vmatmul.f32.gmra.mxu0 %v200
    %v264 = vpop.f32.mrf.mxu0
    %v265 = vadd.f32 %v187, %v264
    %266 = vmatmul.f32.gmra.mxu0 %v203
    %v267 = vpop.f32.mrf.mxu0
    %v268 = vadd.f32 %v187, %v267
    %269 = vmatmul.f32.gmra.mxu0 %v206
    %v270 = vpop.f32.mrf.mxu0
    %v271 = vadd.f32 %v187, %v270
    %272 = vmatmul.f32.gmra.mxu0 %v209
    %v273 = vpop.f32.mrf.mxu0
    %v274 = vadd.f32 %v187, %v273
    %275 = vmatmul.f32.gmra.mxu0 %v212
    %v276 = vpop.f32.mrf.mxu0
    %v277 = vadd.f32 %v187, %v276
    %278 = vmatmul.f32.gmra.mxu0 %v215
    %v279 = vpop.f32.mrf.mxu0
    %v280 = vadd.f32 %v187, %v279
    %281 = vmatmul.f32.gmra.mxu0 %v218
    %v282 = vpop.f32.mrf.mxu0
    %v283 = vadd.f32 %v187, %v282
    %284 = vmatmul.f32.gmra.mxu0 %v221
    %v285 = vpop.f32.mrf.mxu0
    %v286 = vadd.f32 %v187, %v285
    %287 = vmatmul.f32.gmra.mxu0 %v224
    %v288 = vpop.f32.mrf.mxu0
    %v289 = vadd.f32 %v187, %v288
    %290 = vmatmul.f32.gmra.mxu0 %v227
    %v291 = vpop.f32.mrf.mxu0
    %v292 = vadd.f32 %v187, %v291
    %293 = vmatmul.f32.gmra.mxu0 %v230
    %v294 = vpop.f32.mrf.mxu0
    %v295 = vadd.f32 %v187, %v294
    %296 = vmatmul.f32.gmra.mxu0 %v233
    %v297 = vpop.f32.mrf.mxu0
    %v298 = vadd.f32 %v187, %v297
    %299 = vmatmul.f32.gmra.mxu0 %v236
    %v300 = vpop.f32.mrf.mxu0
    %v301 = vadd.f32 %v187, %v300
    %302 = vmatmul.f32.gmra.mxu0 %v239
    %v303 = vpop.f32.mrf.mxu0
    %v304 = vadd.f32 %v187, %v303
    %305 = vmatmul.f32.gmra.mxu0 %v242
    %v306 = vpop.f32.mrf.mxu0
    %v307 = vadd.f32 %v187, %v306
    %308 = vdwg.mxu0
    %309 = vmatpush.msra.mxu0 0.0
    %310 = vmatpush.msra.mxu0 0.0
    %311 = vmatpush.msra.mxu0 0.0
    %312 = vmatpush.msra.mxu0 0.0
    %313 = vmatpush.msra.mxu0 0.0
    %314 = vmatpush.msra.mxu0 0.0
    %315 = vmatpush.msra.mxu0 0.0
    %316 = vmatpush.msra.mxu0 0.0
    %317 = vmatpush.msra.mxu0 0.0
    %318 = vmatpush.msra.mxu0 0.0
    %319 = vmatpush.msra.mxu0 0.0
    %320 = vmatpush.msra.mxu0 0.0
    %321 = vmatpush.msra.mxu0 0.0
    %322 = vmatpush.msra.mxu0 0.0
    %323 = vmatpush.msra.mxu0 0.0
    %324 = vmatpush.msra.mxu0 %v182
    %325 = vmatmul.f32.gmra.mxu0 %v197
    %v326 = vpop.f32.mrf.mxu0
    %v327 = vadd.f32 %v188, %v326
    %328 = vmatmul.f32.gmra.mxu0 %v200
    %v329 = vpop.f32.mrf.mxu0
    %v330 = vadd.f32 %v188, %v329
    %331 = vmatmul.f32.gmra.mxu0 %v203
    %v332 = vpop.f32.mrf.mxu0
    %v333 = vadd.f32 %v188, %v332
    %334 = vmatmul.f32.gmra.mxu0 %v206
    %v335 = vpop.f32.mrf.mxu0
    %v336 = vadd.f32 %v188, %v335
    %337 = vmatmul.f32.gmra.mxu0 %v209
    %v338 = vpop.f32.mrf.mxu0
    %v339 = vadd.f32 %v188, %v338
    %340 = vmatmul.f32.gmra.mxu0 %v212
    %v341 = vpop.f32.mrf.mxu0
    %v342 = vadd.f32 %v188, %v341
    %343 = vmatmul.f32.gmra.mxu0 %v215
    %v344 = vpop.f32.mrf.mxu0
    %v345 = vadd.f32 %v188, %v344
    %346 = vmatmul.f32.gmra.mxu0 %v218
    %v347 = vpop.f32.mrf.mxu0
    %v348 = vadd.f32 %v188, %v347
    %349 = vmatmul.f32.gmra.mxu0 %v221
    %v350 = vpop.f32.mrf.mxu0
    %v351 = vadd.f32 %v188, %v350
    %352 = vmatmul.f32.gmra.mxu0 %v224
    %v353 = vpop.f32.mrf.mxu0
    %v354 = vadd.f32 %v188, %v353
    %355 = vmatmul.f32.gmra.mxu0 %v227
    %v356 = vpop.f32.mrf.mxu0
    %v357 = vadd.f32 %v188, %v356
    %358 = vmatmul.f32.gmra.mxu0 %v230
    %v359 = vpop.f32.mrf.mxu0
    %v360 = vadd.f32 %v188, %v359
    %361 = vmatmul.f32.gmra.mxu0 %v233
    %v362 = vpop.f32.mrf.mxu0
    %v363 = vadd.f32 %v188, %v362
    %364 = vmatmul.f32.gmra.mxu0 %v236
    %v365 = vpop.f32.mrf.mxu0
    %v366 = vadd.f32 %v188, %v365
    %367 = vmatmul.f32.gmra.mxu0 %v239
    %v368 = vpop.f32.mrf.mxu0
    %v369 = vadd.f32 %v188, %v368
    %370 = vmatmul.f32.gmra.mxu0 %v242
    %v371 = vpop.f32.mrf.mxu0
    %v372 = vadd.f32 %v188, %v371
    %373 = vdwg.mxu0
    %374 = vmatpush.msra.mxu0 0.0
    %375 = vmatpush.msra.mxu0 0.0
    %376 = vmatpush.msra.mxu0 0.0
    %377 = vmatpush.msra.mxu0 0.0
    %378 = vmatpush.msra.mxu0 0.0
    %379 = vmatpush.msra.mxu0 0.0
    %380 = vmatpush.msra.mxu0 0.0
    %381 = vmatpush.msra.mxu0 0.0
    %382 = vmatpush.msra.mxu0 0.0
    %383 = vmatpush.msra.mxu0 0.0
    %384 = vmatpush.msra.mxu0 0.0
    %385 = vmatpush.msra.mxu0 0.0
    %386 = vmatpush.msra.mxu0 0.0
    %387 = vmatpush.msra.mxu0 0.0
    %388 = vmatpush.msra.mxu0 0.0
    %389 = vmatpush.msra.mxu0 %v183
    %390 = vmatmul.f32.gmra.mxu0 %v197
    %v391 = vpop.f32.mrf.mxu0
    %v392 = vadd.f32 %v189, %v391
    %393 = vmatmul.f32.gmra.mxu0 %v200
    %v394 = vpop.f32.mrf.mxu0
    %v395 = vadd.f32 %v189, %v394
    %396 = vmatmul.f32.gmra.mxu0 %v203
    %v397 = vpop.f32.mrf.mxu0
    %v398 = vadd.f32 %v189, %v397
    %399 = vmatmul.f32.gmra.mxu0 %v206
    %v400 = vpop.f32.mrf.mxu0
    %v401 = vadd.f32 %v189, %v400
    %402 = vmatmul.f32.gmra.mxu0 %v209
    %v403 = vpop.f32.mrf.mxu0
    %v404 = vadd.f32 %v189, %v403
    %405 = vmatmul.f32.gmra.mxu0 %v212
    %v406 = vpop.f32.mrf.mxu0
    %v407 = vadd.f32 %v189, %v406
    %408 = vmatmul.f32.gmra.mxu0 %v215
    %v409 = vpop.f32.mrf.mxu0
    %v410 = vadd.f32 %v189, %v409
    %411 = vmatmul.f32.gmra.mxu0 %v218
    %v412 = vpop.f32.mrf.mxu0
    %v413 = vadd.f32 %v189, %v412
    %414 = vmatmul.f32.gmra.mxu0 %v221
    %v415 = vpop.f32.mrf.mxu0
    %v416 = vadd.f32 %v189, %v415
    %417 = vmatmul.f32.gmra.mxu0 %v224
    %v418 = vpop.f32.mrf.mxu0
    %v419 = vadd.f32 %v189, %v418
    %420 = vmatmul.f32.gmra.mxu0 %v227
    %v421 = vpop.f32.mrf.mxu0
    %v422 = vadd.f32 %v189, %v421
    %423 = vmatmul.f32.gmra.mxu0 %v230
    %v424 = vpop.f32.mrf.mxu0
    %v425 = vadd.f32 %v189, %v424
    %426 = vmatmul.f32.gmra.mxu0 %v233
    %v427 = vpop.f32.mrf.mxu0
    %v428 = vadd.f32 %v189, %v427
    %429 = vmatmul.f32.gmra.mxu0 %v236
    %v430 = vpop.f32.mrf.mxu0
    %v431 = vadd.f32 %v189, %v430
    %432 = vmatmul.f32.gmra.mxu0 %v239
    %v433 = vpop.f32.mrf.mxu0
    %v434 = vadd.f32 %v189, %v433
    %435 = vmatmul.f32.gmra.mxu0 %v242
    %v436 = vpop.f32.mrf.mxu0
    %v437 = vadd.f32 %v189, %v436
    %438 = vdwg.mxu0
    %439 = vmatpush.msra.mxu0 0.0
    %440 = vmatpush.msra.mxu0 0.0
    %441 = vmatpush.msra.mxu0 0.0
    %442 = vmatpush.msra.mxu0 0.0
    %443 = vmatpush.msra.mxu0 0.0
    %444 = vmatpush.msra.mxu0 0.0
    %445 = vmatpush.msra.mxu0 0.0
    %446 = vmatpush.msra.mxu0 0.0
    %447 = vmatpush.msra.mxu0 0.0
    %448 = vmatpush.msra.mxu0 0.0
    %449 = vmatpush.msra.mxu0 0.0
    %450 = vmatpush.msra.mxu0 0.0
    %451 = vmatpush.msra.mxu0 0.0
    %452 = vmatpush.msra.mxu0 0.0
    %453 = vmatpush.msra.mxu0 0.0
    %454 = vmatpush.msra.mxu0 %v184
    %455 = vmatmul.f32.gmra.mxu0 %v197
    %v456 = vpop.f32.mrf.mxu0
    %v457 = vadd.f32 %v190, %v456
    %458 = vmatmul.f32.gmra.mxu0 %v200
    %v459 = vpop.f32.mrf.mxu0
    %v460 = vadd.f32 %v190, %v459
    %461 = vmatmul.f32.gmra.mxu0 %v203
    %v462 = vpop.f32.mrf.mxu0
    %v463 = vadd.f32 %v190, %v462
    %464 = vmatmul.f32.gmra.mxu0 %v206
    %v465 = vpop.f32.mrf.mxu0
    %v466 = vadd.f32 %v190, %v465
    %467 = vmatmul.f32.gmra.mxu0 %v209
    %v468 = vpop.f32.mrf.mxu0
    %v469 = vadd.f32 %v190, %v468
    %470 = vmatmul.f32.gmra.mxu0 %v212
    %v471 = vpop.f32.mrf.mxu0
    %v472 = vadd.f32 %v190, %v471
    %473 = vmatmul.f32.gmra.mxu0 %v215
    %v474 = vpop.f32.mrf.mxu0
    %v475 = vadd.f32 %v190, %v474
    %476 = vmatmul.f32.gmra.mxu0 %v218
    %v477 = vpop.f32.mrf.mxu0
    %v478 = vadd.f32 %v190, %v477
    %479 = vmatmul.f32.gmra.mxu0 %v221
    %v480 = vpop.f32.mrf.mxu0
    %v481 = vadd.f32 %v190, %v480
    %482 = vmatmul.f32.gmra.mxu0 %v224
    %v483 = vpop.f32.mrf.mxu0
    %v484 = vadd.f32 %v190, %v483
    %485 = vmatmul.f32.gmra.mxu0 %v227
    %v486 = vpop.f32.mrf.mxu0
    %v487 = vadd.f32 %v190, %v486
    %488 = vmatmul.f32.gmra.mxu0 %v230
    %v489 = vpop.f32.mrf.mxu0
    %v490 = vadd.f32 %v190, %v489
    %491 = vmatmul.f32.gmra.mxu0 %v233
    %v492 = vpop.f32.mrf.mxu0
    %v493 = vadd.f32 %v190, %v492
    %494 = vmatmul.f32.gmra.mxu0 %v236
    %v495 = vpop.f32.mrf.mxu0
    %v496 = vadd.f32 %v190, %v495
    %497 = vmatmul.f32.gmra.mxu0 %v239
    %v498 = vpop.f32.mrf.mxu0
    %v499 = vadd.f32 %v190, %v498
    %500 = vmatmul.f32.gmra.mxu0 %v242
    %v501 = vpop.f32.mrf.mxu0
    %v502 = vadd.f32 %v190, %v501
    %503 = vdwg.mxu0
    %504 = vst [vmem:[#allocation2] sm:$0xff] %v262
    %505 = vst [vmem:[#allocation2 + $0x8] sm:$0xff] %v327
    %506 = vst [vmem:[#allocation2 + $0x10] sm:$0xff] %v392
    %507 = vst [vmem:[#allocation2 + $0x18] sm:$0xff] %v457
    %508 = vst [vmem:[#allocation2 + $0x20] sm:$0xff] %v265
    %509 = vst [vmem:[#allocation2 + $0x28] sm:$0xff] %v330
    %510 = vst [vmem:[#allocation2 + $0x30] sm:$0xff] %v395
    %511 = vst [vmem:[#allocation2 + $0x38] sm:$0xff] %v460
    %512 = vst [vmem:[#allocation2 + $0x40] sm:$0xff] %v268
    %513 = vst [vmem:[#allocation2 + $0x48] sm:$0xff] %v333
    %514 = vst [vmem:[#allocation2 + $0x50] sm:$0xff] %v398
    %515 = vst [vmem:[#allocation2 + $0x58] sm:$0xff] %v463
    %516 = vst [vmem:[#allocation2 + $0x60] sm:$0xff] %v271
    %517 = vst [vmem:[#allocation2 + $0x68] sm:$0xff] %v336
    %518 = vst [vmem:[#allocation2 + $0x70] sm:$0xff] %v401
    %519 = vst [vmem:[#allocation2 + $0x78] sm:$0xff] %v466
    %520 = vst [vmem:[#allocation2 + $0x80] sm:$0xff] %v274
    %521 = vst [vmem:[#allocation2 + $0x88] sm:$0xff] %v339
    %522 = vst [vmem:[#allocation2 + $0x90] sm:$0xff] %v404
    %523 = vst [vmem:[#allocation2 + $0x98] sm:$0xff] %v469
    %524 = vst [vmem:[#allocation2 + $0xa0] sm:$0xff] %v277
    %525 = vst [vmem:[#allocation2 + $0xa8] sm:$0xff] %v342
    %526 = vst [vmem:[#allocation2 + $0xb0] sm:$0xff] %v407
    %527 = vst [vmem:[#allocation2 + $0xb8] sm:$0xff] %v472
    %528 = vst [vmem:[#allocation2 + $0xc0] sm:$0xff] %v280
    %529 = vst [vmem:[#allocation2 + $0xc8] sm:$0xff] %v345
    %530 = vst [vmem:[#allocation2 + $0xd0] sm:$0xff] %v410
    %531 = vst [vmem:[#allocation2 + $0xd8] sm:$0xff] %v475
    %532 = vst [vmem:[#allocation2 + $0xe0] sm:$0xff] %v283
    %533 = vst [vmem:[#allocation2 + $0xe8] sm:$0xff] %v348
    %534 = vst [vmem:[#allocation2 + $0xf0] sm:$0xff] %v413
    %535 = vst [vmem:[#allocation2 + $0xf8] sm:$0xff] %v478
    %536 = vst [vmem:[#allocation2 + $0x100] sm:$0xff] %v286
    %537 = vst [vmem:[#allocation2 + $0x108] sm:$0xff] %v351
    %538 = vst [vmem:[#allocation2 + $0x110] sm:$0xff] %v416
    %539 = vst [vmem:[#allocation2 + $0x118] sm:$0xff] %v481
    %540 = vst [vmem:[#allocation2 + $0x120] sm:$0xff] %v289
    %541 = vst [vmem:[#allocation2 + $0x128] sm:$0xff] %v354
    %542 = vst [vmem:[#allocation2 + $0x130] sm:$0xff] %v419
    %543 = vst [vmem:[#allocation2 + $0x138] sm:$0xff] %v484
    %544 = vst [vmem:[#allocation2 + $0x140] sm:$0xff] %v292
    %545 = vst [vmem:[#allocation2 + $0x148] sm:$0xff] %v357
    %546 = vst [vmem:[#allocation2 + $0x150] sm:$0xff] %v422
    %547 = vst [vmem:[#allocation2 + $0x158] sm:$0xff] %v487
    %548 = vst [vmem:[#allocation2 + $0x160] sm:$0xff] %v295
    %549 = vst [vmem:[#allocation2 + $0x168] sm:$0xff] %v360
    %550 = vst [vmem:[#allocation2 + $0x170] sm:$0xff] %v425
    %551 = vst [vmem:[#allocation2 + $0x178] sm:$0xff] %v490
    %552 = vst [vmem:[#allocation2 + $0x180] sm:$0xff] %v298
    %553 = vst [vmem:[#allocation2 + $0x188] sm:$0xff] %v363
    %554 = vst [vmem:[#allocation2 + $0x190] sm:$0xff] %v428
    %555 = vst [vmem:[#allocation2 + $0x198] sm:$0xff] %v493
    %556 = vst [vmem:[#allocation2 + $0x1a0] sm:$0xff] %v301
    %557 = vst [vmem:[#allocation2 + $0x1a8] sm:$0xff] %v366
    %558 = vst [vmem:[#allocation2 + $0x1b0] sm:$0xff] %v431
    %559 = vst [vmem:[#allocation2 + $0x1b8] sm:$0xff] %v496
    %560 = vst [vmem:[#allocation2 + $0x1c0] sm:$0xff] %v304
    %561 = vst [vmem:[#allocation2 + $0x1c8] sm:$0xff] %v369
    %562 = vst [vmem:[#allocation2 + $0x1d0] sm:$0xff] %v434
    %563 = vst [vmem:[#allocation2 + $0x1d8] sm:$0xff] %v499
    %564 = vst [vmem:[#allocation2 + $0x1e0] sm:$0xff] %v307
    %565 = vst [vmem:[#allocation2 + $0x1e8] sm:$0xff] %v372
    %566 = vst [vmem:[#allocation2 + $0x1f0] sm:$0xff] %v437
    %567 = vst [vmem:[#allocation2 + $0x1f8] sm:$0xff] %v502
    %v568 = vld [vmem:[#allocation5] sm:$0xff]
    %v569 = vld [vmem:[#allocation5 + $0x8] sm:$0xff]
    %v570 = vld [vmem:[#allocation5 + $0x10] sm:$0xff]
    %v571 = vld [vmem:[#allocation5 + $0x18] sm:$0xff]
    %v572 = vld [vmem:[#allocation5 + $0x20] sm:$0xff]
    %v573 = vld [vmem:[#allocation5 + $0x28] sm:$0xff]
    %v574 = vld [vmem:[#allocation5 + $0x30] sm:$0xff]
    %v575 = vld [vmem:[#allocation5 + $0x38] sm:$0xff]
    %v576 = vld [vmem:[#allocation5 + $0x40] sm:$0xff]
    %v577 = vld [vmem:[#allocation5 + $0x48] sm:$0xff]
    %v578 = vld [vmem:[#allocation5 + $0x50] sm:$0xff]
    %v579 = vld [vmem:[#allocation5 + $0x58] sm:$0xff]
    %v580 = vld [vmem:[#allocation5 + $0x60] sm:$0xff]
    %v581 = vld [vmem:[#allocation5 + $0x68] sm:$0xff]
    %v582 = vld [vmem:[#allocation5 + $0x70] sm:$0xff]
    %v583 = vld [vmem:[#allocation5 + $0x78] sm:$0xff]
    %v584 = vld [vmem:[#allocation5 + $0x80] sm:$0xff]
    %v585 = vld [vmem:[#allocation5 + $0x88] sm:$0xff]
    %v586 = vld [vmem:[#allocation5 + $0x90] sm:$0xff]
    %v587 = vld [vmem:[#allocation5 + $0x98] sm:$0xff]
    %v588 = vld [vmem:[#allocation5 + $0xa0] sm:$0xff]
    %v589 = vld [vmem:[#allocation5 + $0xa8] sm:$0xff]
    %v590 = vld [vmem:[#allocation5 + $0xb0] sm:$0xff]
    %v591 = vld [vmem:[#allocation5 + $0xb8] sm:$0xff]
    %v592 = vld [vmem:[#allocation5 + $0xc0] sm:$0xff]
    %v593 = vld [vmem:[#allocation5 + $0xc8] sm:$0xff]
    %v594 = vld [vmem:[#allocation5 + $0xd0] sm:$0xff]
    %v595 = vld [vmem:[#allocation5 + $0xd8] sm:$0xff]
    %v596 = vld [vmem:[#allocation5 + $0xe0] sm:$0xff]
    %v597 = vld [vmem:[#allocation5 + $0xe8] sm:$0xff]
    %v598 = vld [vmem:[#allocation5 + $0xf0] sm:$0xff]
    %v599 = vld [vmem:[#allocation5 + $0xf8] sm:$0xff]
    %v600 = vld [vmem:[#allocation8] sm:$0xff]
    %v601 = vld [vmem:[#allocation8 + $0x8] sm:$0xff]
    %v602 = vld [vmem:[#allocation8 + $0x10] sm:$0xff]
    %v603 = vld [vmem:[#allocation8 + $0x18] sm:$0xff]
    %v604 = vld [vmem:[#allocation8 + $0x20] sm:$0xff]
    %v605 = vld [vmem:[#allocation8 + $0x28] sm:$0xff]
    %v606 = vld [vmem:[#allocation8 + $0x30] sm:$0xff]
    %v607 = vld [vmem:[#allocation8 + $0x38] sm:$0xff]
    %v608 = vld [vmem:[#allocation8 + $0x40] sm:$0xff]
    %v609 = vld [vmem:[#allocation8 + $0x48] sm:$0xff]
    %v610 = vld [vmem:[#allocation8 + $0x50] sm:$0xff]
    %v611 = vld [vmem:[#allocation8 + $0x58] sm:$0xff]
    %v612 = vld [vmem:[#allocation8 + $0x60] sm:$0xff]
    %v613 = vld [vmem:[#allocation8 + $0x68] sm:$0xff]
    %v614 = vld [vmem:[#allocation8 + $0x70] sm:$0xff]
    %v615 = vld [vmem:[#allocation8 + $0x78] sm:$0xff]
    %v616 = vld [vmem:[#allocation8 + $0x80] sm:$0xff]
    %v617 = vld [vmem:[#allocation8 + $0x88] sm:$0xff]
    %v618 = vld [vmem:[#allocation8 + $0x90] sm:$0xff]
    %v619 = vld [vmem:[#allocation8 + $0x98] sm:$0xff]
    %v620 = vld [vmem:[#allocation8 + $0xa0] sm:$0xff]
    %v621 = vld [vmem:[#allocation8 + $0xa8] sm:$0xff]
    %v622 = vld [vmem:[#allocation8 + $0xb0] sm:$0xff]
    %v623 = vld [vmem:[#allocation8 + $0xb8] sm:$0xff]
    %v624 = vld [vmem:[#allocation8 + $0xc0] sm:$0xff]
    %v625 = vld [vmem:[#allocation8 + $0xc8] sm:$0xff]
    %v626 = vld [vmem:[#allocation8 + $0xd0] sm:$0xff]
    %v627 = vld [vmem:[#allocation8 + $0xd8] sm:$0xff]
    %v628 = vld [vmem:[#allocation8 + $0xe0] sm:$0xff]
    %v629 = vld [vmem:[#allocation8 + $0xe8] sm:$0xff]
    %v630 = vld [vmem:[#allocation8 + $0xf0] sm:$0xff]
    %v631 = vld [vmem:[#allocation8 + $0xf8] sm:$0xff]
    %v632 = vld [vmem:[%s5] sm:$0xff]
    %v633 = vld [vmem:[%s5 + $0x8] sm:$0xff]
    %v634 = vld [vmem:[%s5 + $0x10] sm:$0xff]
    %v635 = vld [vmem:[%s5 + $0x18] sm:$0xff]
    %v636 = vld [vmem:[%s5 + $0x20] sm:$0xff]
    %v637 = vld [vmem:[%s5 + $0x28] sm:$0xff]
    %v638 = vld [vmem:[%s5 + $0x30] sm:$0xff]
    %v639 = vld [vmem:[%s5 + $0x38] sm:$0xff]
    %v640 = vld [vmem:[%s5 + $0x40] sm:$0xff]
    %v641 = vld [vmem:[%s5 + $0x48] sm:$0xff]
    %v642 = vld [vmem:[%s5 + $0x50] sm:$0xff]
    %v643 = vld [vmem:[%s5 + $0x58] sm:$0xff]
    %v644 = vld [vmem:[%s5 + $0x60] sm:$0xff]
    %v645 = vld [vmem:[%s5 + $0x68] sm:$0xff]
    %v646 = vld [vmem:[%s5 + $0x70] sm:$0xff]
    %v647 = vld [vmem:[%s5 + $0x78] sm:$0xff]
    %v648 = vld [vmem:[#allocation11] sm:$0xff]
    %v649 = vld [vmem:[#allocation11 + $0x8] sm:$0xff]
    %v650 = vld [vmem:[#allocation11 + $0x10] sm:$0xff]
    %v651 = vld [vmem:[#allocation11 + $0x18] sm:$0xff]
    %v652 = vld [vmem:[#allocation11 + $0x20] sm:$0xff]
    %v653 = vld [vmem:[#allocation11 + $0x28] sm:$0xff]
    %v654 = vld [vmem:[#allocation11 + $0x30] sm:$0xff]
    %v655 = vld [vmem:[#allocation11 + $0x38] sm:$0xff]
    %v656 = vld [vmem:[#allocation11 + $0x40] sm:$0xff]
    %v657 = vld [vmem:[#allocation11 + $0x48] sm:$0xff]
    %v658 = vld [vmem:[#allocation11 + $0x50] sm:$0xff]
    %v659 = vld [vmem:[#allocation11 + $0x58] sm:$0xff]
    %v660 = vld [vmem:[#allocation11 + $0x60] sm:$0xff]
    %v661 = vld [vmem:[#allocation11 + $0x68] sm:$0xff]
    %v662 = vld [vmem:[#allocation11 + $0x70] sm:$0xff]
    %v663 = vld [vmem:[#allocation11 + $0x78] sm:$0xff]
    %v664 = vld [vmem:[%s8] sm:$0xff]
    %v665 = vld [vmem:[%s8 + $0x8] sm:$0xff]
    %v666 = vld [vmem:[%s8 + $0x10] sm:$0xff]
    %v667 = vld [vmem:[%s8 + $0x18] sm:$0xff]
    %v668 = vld [vmem:[%s8 + $0x20] sm:$0xff]
    %v669 = vld [vmem:[%s8 + $0x28] sm:$0xff]
    %v670 = vld [vmem:[%s8 + $0x30] sm:$0xff]
    %v671 = vld [vmem:[%s8 + $0x38] sm:$0xff]
    %v672 = vld [vmem:[#allocation10] sm:$0xf]
    %v674 = vperm.slane %v672, 0
    %v675 = vperm.slane %v672, 1
    %v676 = vperm.slane %v672, 2
    %v677 = vperm.slane %v672, 3
    %v682 = vld [vmem:[#allocation13] sm:$0xf]
    %v684 = vperm.slane %v682, 0
    %v685 = vperm.slane %v682, 1
    %v686 = vperm.slane %v682, 2
    %v687 = vperm.slane %v682, 3
    %s692 = smul.u32 0, 4
    %s693 = smul.addr %s692, 8
    %s694 = scalar_lea.vmem [#allocation2], %s693
    %v695 = vld [vmem:[%s694] sm:$0xff]
    %v696 = vld [vmem:[%s694 + $0x8] sm:$0xff]
    %v697 = vld [vmem:[%s694 + $0x10] sm:$0xff]
    %v698 = vld [vmem:[%s694 + $0x18] sm:$0xff]
    %v699 = vld [vmem:[%s694 + $0x20] sm:$0xff]
    %v700 = vld [vmem:[%s694 + $0x28] sm:$0xff]
    %v701 = vld [vmem:[%s694 + $0x30] sm:$0xff]
    %v702 = vld [vmem:[%s694 + $0x38] sm:$0xff]
    %v735 = vunpack.c.l.b16 %v568
    %v736 = vunpack.c.h.b16 %v568
    %v737 = vunpack.c.l.b16 %v569
    %v738 = vunpack.c.h.b16 %v569
    %v739 = vunpack.c.l.b16 %v570
    %v740 = vunpack.c.h.b16 %v570
    %v741 = vunpack.c.l.b16 %v571
    %v742 = vunpack.c.h.b16 %v571
    %v743 = vunpack.c.l.b16 %v572
    %v744 = vunpack.c.h.b16 %v572
    %v745 = vunpack.c.l.b16 %v573
    %v746 = vunpack.c.h.b16 %v573
    %v747 = vunpack.c.l.b16 %v574
    %v748 = vunpack.c.h.b16 %v574
    %v749 = vunpack.c.l.b16 %v575
    %v750 = vunpack.c.h.b16 %v575
    %v751 = vunpack.c.l.b16 %v576
    %v752 = vunpack.c.h.b16 %v576
    %v753 = vunpack.c.l.b16 %v577
    %v754 = vunpack.c.h.b16 %v577
    %v755 = vunpack.c.l.b16 %v578
    %v756 = vunpack.c.h.b16 %v578
    %v757 = vunpack.c.l.b16 %v579
    %v758 = vunpack.c.h.b16 %v579
    %v759 = vunpack.c.l.b16 %v580
    %v760 = vunpack.c.h.b16 %v580
    %v761 = vunpack.c.l.b16 %v581
    %v762 = vunpack.c.h.b16 %v581
    %v763 = vunpack.c.l.b16 %v582
    %v764 = vunpack.c.h.b16 %v582
    %v765 = vunpack.c.l.b16 %v583
    %v766 = vunpack.c.h.b16 %v583
    %v767 = vunpack.c.l.b16 %v584
    %v768 = vunpack.c.h.b16 %v584
    %v769 = vunpack.c.l.b16 %v585
    %v770 = vunpack.c.h.b16 %v585
    %v771 = vunpack.c.l.b16 %v586
    %v772 = vunpack.c.h.b16 %v586
    %v773 = vunpack.c.l.b16 %v587
    %v774 = vunpack.c.h.b16 %v587
    %v775 = vunpack.c.l.b16 %v588
    %v776 = vunpack.c.h.b16 %v588
    %v777 = vunpack.c.l.b16 %v589
    %v778 = vunpack.c.h.b16 %v589
    %v779 = vunpack.c.l.b16 %v590
    %v780 = vunpack.c.h.b16 %v590
    %v781 = vunpack.c.l.b16 %v591
    %v782 = vunpack.c.h.b16 %v591
    %v783 = vunpack.c.l.b16 %v592
    %v784 = vunpack.c.h.b16 %v592
    %v785 = vunpack.c.l.b16 %v593
    %v786 = vunpack.c.h.b16 %v593
    %v787 = vunpack.c.l.b16 %v594
    %v788 = vunpack.c.h.b16 %v594
    %v789 = vunpack.c.l.b16 %v595
    %v790 = vunpack.c.h.b16 %v595
    %v791 = vunpack.c.l.b16 %v596
    %v792 = vunpack.c.h.b16 %v596
    %v793 = vunpack.c.l.b16 %v597
    %v794 = vunpack.c.h.b16 %v597
    %v795 = vunpack.c.l.b16 %v598
    %v796 = vunpack.c.h.b16 %v598
    %v797 = vunpack.c.l.b16 %v599
    %v798 = vunpack.c.h.b16 %v599
    %v799 = vpack.c.b16 %v739, %v735
    %v800 = vpack.c.b16 %v740, %v736
    %v801 = vpack.c.b16 %v741, %v737
    %v802 = vpack.c.b16 %v742, %v738
    %v803 = vpack.c.b16 %v747, %v743
    %v804 = vpack.c.b16 %v748, %v744
    %v805 = vpack.c.b16 %v749, %v745
    %v806 = vpack.c.b16 %v750, %v746
    %v807 = vpack.c.b16 %v755, %v751
    %v808 = vpack.c.b16 %v756, %v752
    %v809 = vpack.c.b16 %v757, %v753
    %v810 = vpack.c.b16 %v758, %v754
    %v811 = vpack.c.b16 %v763, %v759
    %v812 = vpack.c.b16 %v764, %v760
    %v813 = vpack.c.b16 %v765, %v761
    %v814 = vpack.c.b16 %v766, %v762
    %v815 = vpack.c.b16 %v771, %v767
    %v816 = vpack.c.b16 %v772, %v768
    %v817 = vpack.c.b16 %v773, %v769
    %v818 = vpack.c.b16 %v774, %v770
    %v819 = vpack.c.b16 %v779, %v775
    %v820 = vpack.c.b16 %v780, %v776
    %v821 = vpack.c.b16 %v781, %v777
    %v822 = vpack.c.b16 %v782, %v778
    %v823 = vpack.c.b16 %v787, %v783
    %v824 = vpack.c.b16 %v788, %v784
    %v825 = vpack.c.b16 %v789, %v785
    %v826 = vpack.c.b16 %v790, %v786
    %v827 = vpack.c.b16 %v795, %v791
    %v828 = vpack.c.b16 %v796, %v792
    %v829 = vpack.c.b16 %v797, %v793
    %v830 = vpack.c.b16 %v798, %v794
    %863 = vmatpush.bf16.msra.mxu0 %v827
    %864 = vmatpush.bf16.msra.mxu0 %v823
    %865 = vmatpush.bf16.msra.mxu0 %v819
    %866 = vmatpush.bf16.msra.mxu0 %v815
    %867 = vmatpush.bf16.msra.mxu0 %v811
    %868 = vmatpush.bf16.msra.mxu0 %v807
    %869 = vmatpush.bf16.msra.mxu0 %v803
    %870 = vmatpush.bf16.msra.mxu0 %v799
    %871 = vmatmul.bf16.gmra.mxu0 0
    %v872 = vpop.f32.mrf.mxu0
    %v873 = vadd.f32 0.0, %v872
    %v874 = vpop.f32.mrf.mxu0
    %v875 = vadd.f32 0.0, %v874
    %876 = vdwg.mxu0
    %877 = vmatpush.bf16.msra.mxu0 %v828
    %878 = vmatpush.bf16.msra.mxu0 %v824
    %879 = vmatpush.bf16.msra.mxu0 %v820
    %880 = vmatpush.bf16.msra.mxu0 %v816
    %881 = vmatpush.bf16.msra.mxu0 %v812
    %882 = vmatpush.bf16.msra.mxu0 %v808
    %883 = vmatpush.bf16.msra.mxu0 %v804
    %884 = vmatpush.bf16.msra.mxu0 %v800
    %885 = vmatmul.bf16.gmra.mxu0 0
    %v886 = vpop.f32.mrf.mxu0
    %v887 = vadd.f32 0.0, %v886
    %v888 = vpop.f32.mrf.mxu0
    %v889 = vadd.f32 0.0, %v888
    %890 = vdwg.mxu0
    %891 = vmatpush.bf16.msra.mxu0 %v829
    %892 = vmatpush.bf16.msra.mxu0 %v825
    %893 = vmatpush.bf16.msra.mxu0 %v821
    %894 = vmatpush.bf16.msra.mxu0 %v817
    %895 = vmatpush.bf16.msra.mxu0 %v813
    %896 = vmatpush.bf16.msra.mxu0 %v809
    %897 = vmatpush.bf16.msra.mxu0 %v805
    %898 = vmatpush.bf16.msra.mxu0 %v801
    %899 = vmatmul.bf16.gmra.mxu0 0
    %v900 = vpop.f32.mrf.mxu0
    %v901 = vadd.f32 0.0, %v900
    %v902 = vpop.f32.mrf.mxu0
    %v903 = vadd.f32 0.0, %v902
    %904 = vdwg.mxu0
    %905 = vmatpush.bf16.msra.mxu0 %v830
    %906 = vmatpush.bf16.msra.mxu0 %v826
    %907 = vmatpush.bf16.msra.mxu0 %v822
    %908 = vmatpush.bf16.msra.mxu0 %v818
    %909 = vmatpush.bf16.msra.mxu0 %v814
    %910 = vmatpush.bf16.msra.mxu0 %v810
    %911 = vmatpush.bf16.msra.mxu0 %v806
    %912 = vmatpush.bf16.msra.mxu0 %v802
    %913 = vmatmul.bf16.gmra.mxu0 0
    %v914 = vpop.f32.mrf.mxu0
    %v915 = vadd.f32 0.0, %v914
    %v916 = vpop.f32.mrf.mxu0
    %v917 = vadd.f32 0.0, %v916
    %918 = vdwg.mxu0
    %v919 = vadd.f32 %v695, %v873
    %v920 = vadd.f32 %v696, %v887
    %v921 = vadd.f32 %v697, %v901
    %v922 = vadd.f32 %v698, %v915
    %v923 = vadd.f32 %v699, %v875
    %v924 = vadd.f32 %v700, %v889
    %v925 = vadd.f32 %v701, %v903
    %v926 = vadd.f32 %v702, %v917
    %v927 = vxor.u32 %v919, 2147483648
    %v928 = vxor.u32 %v920, 2147483648
    %v929 = vxor.u32 %v921, 2147483648
    %v930 = vxor.u32 %v923, 2147483648
    %v931 = vxor.u32 %v924, 2147483648
    %v932 = vxor.u32 %v925, 2147483648
    %v933 = vmul.f32 %v927, 1.442695
    %v934 = vpow.pop %v933
    %v935 = vmul.f32 %v928, 1.442695
    %v936 = vpow.pop %v935
    %v937 = vmul.f32 %v929, 1.442695
    %v938 = vpow.pop %v937
    %v939 = vmul.f32 %v930, 1.442695
    %v940 = vpow.pop %v939
    %v941 = vmul.f32 %v931, 1.442695
    %v942 = vpow.pop %v941
    %v943 = vmul.f32 %v932, 1.442695
    %v944 = vpow.pop %v943
    %v945 = vadd.f32 %v934, 1.0
    %v946 = vadd.f32 %v936, 1.0
    %v947 = vadd.f32 %v938, 1.0
    %v948 = vadd.f32 %v940, 1.0
    %v949 = vadd.f32 %v942, 1.0
    %v950 = vadd.f32 %v944, 1.0
    %v951 = vrcp.pop %v945
    %v952 = vmul.f32 %v945, %v951
    %v953 = vsub.f32 1.0, %v952
    %v954 = vmul.f32 %v951, %v953
    %v955 = vadd.f32 %v951, %v954
    %vm956 = vweird.f32 %v945
    %vm957 = vweird.f32 %v951
    %vm958 = vmor %vm956, %vm957
    %v959 = vsel %vm958, %v951, %v955
    %v960 = vand.u32 2147483647, %v945
    %vm961 = vcmp.eq.f32.partialorder %v960, 8.507059e+37
    %v962 = vand.u32 %v945, 2147483648
    %v963 = vor.u32 1.1754944e-38, %v962
    %v964 = vsel %vm961, %v963, %v959
    %v965 = vmul.f32 1.0, %v964
    %v966 = vrcp.pop %v946
    %v967 = vmul.f32 %v946, %v966
    %v968 = vsub.f32 1.0, %v967
    %v969 = vmul.f32 %v966, %v968
    %v970 = vadd.f32 %v966, %v969
    %vm971 = vweird.f32 %v946
    %vm972 = vweird.f32 %v966
    %vm973 = vmor %vm971, %vm972
    %v974 = vsel %vm973, %v966, %v970
    %v975 = vand.u32 2147483647, %v946
    %vm976 = vcmp.eq.f32.partialorder %v975, 8.507059e+37
    %v977 = vand.u32 %v946, 2147483648
    %v978 = vor.u32 1.1754944e-38, %v977
    %v979 = vsel %vm976, %v978, %v974
    %v980 = vmul.f32 1.0, %v979
    %v981 = vrcp.pop %v947
    %v982 = vmul.f32 %v947, %v981
    %v983 = vsub.f32 1.0, %v982
    %v984 = vmul.f32 %v981, %v983
    %v985 = vadd.f32 %v981, %v984
    %vm986 = vweird.f32 %v947
    %vm987 = vweird.f32 %v981
    %vm988 = vmor %vm986, %vm987
    %v989 = vsel %vm988, %v981, %v985
    %v990 = vand.u32 2147483647, %v947
    %vm991 = vcmp.eq.f32.partialorder %v990, 8.507059e+37
    %v992 = vand.u32 %v947, 2147483648
    %v993 = vor.u32 1.1754944e-38, %v992
    %v994 = vsel %vm991, %v993, %v989
    %v995 = vmul.f32 1.0, %v994
    %v996 = vrcp.pop %v948
    %v997 = vmul.f32 %v948, %v996
    %v998 = vsub.f32 1.0, %v997
    %v999 = vmul.f32 %v996, %v998
    %v1000 = vadd.f32 %v996, %v999
    %vm1001 = vweird.f32 %v948
    %vm1002 = vweird.f32 %v996
    %vm1003 = vmor %vm1001, %vm1002
    %v1004 = vsel %vm1003, %v996, %v1000
    %v1005 = vand.u32 2147483647, %v948
    %vm1006 = vcmp.eq.f32.partialorder %v1005, 8.507059e+37
    %v1007 = vand.u32 %v948, 2147483648
    %v1008 = vor.u32 1.1754944e-38, %v1007
    %v1009 = vsel %vm1006, %v1008, %v1004
    %v1010 = vmul.f32 1.0, %v1009
    %v1011 = vrcp.pop %v949
    %v1012 = vmul.f32 %v949, %v1011
    %v1013 = vsub.f32 1.0, %v1012
    %v1014 = vmul.f32 %v1011, %v1013
    %v1015 = vadd.f32 %v1011, %v1014
    %vm1016 = vweird.f32 %v949
    %vm1017 = vweird.f32 %v1011
    %vm1018 = vmor %vm1016, %vm1017
    %v1019 = vsel %vm1018, %v1011, %v1015
    %v1020 = vand.u32 2147483647, %v949
    %vm1021 = vcmp.eq.f32.partialorder %v1020, 8.507059e+37
    %v1022 = vand.u32 %v949, 2147483648
    %v1023 = vor.u32 1.1754944e-38, %v1022
    %v1024 = vsel %vm1021, %v1023, %v1019
    %v1025 = vmul.f32 1.0, %v1024
    %v1026 = vrcp.pop %v950
    %v1027 = vmul.f32 %v950, %v1026
    %v1028 = vsub.f32 1.0, %v1027
    %v1029 = vmul.f32 %v1026, %v1028
    %v1030 = vadd.f32 %v1026, %v1029
    %vm1031 = vweird.f32 %v950
    %vm1032 = vweird.f32 %v1026
    %vm1033 = vmor %vm1031, %vm1032
    %v1034 = vsel %vm1033, %v1026, %v1030
    %v1035 = vand.u32 2147483647, %v950
    %vm1036 = vcmp.eq.f32.partialorder %v1035, 8.507059e+37
    %v1037 = vand.u32 %v950, 2147483648
    %v1038 = vor.u32 1.1754944e-38, %v1037
    %v1039 = vsel %vm1036, %v1038, %v1034
    %v1040 = vmul.f32 1.0, %v1039
    %v1041 = vtanh.pop %v922
    %v1042 = vtanh.pop %v926
    %v1043 = vmul.f32 %v980, 0.0
    %v1044 = vmul.f32 %v1025, 0.0
    %v1045 = vmul.f32 %v965, %v1041
    %v1046 = vmul.f32 %v1010, %v1042
    %v1047 = vadd.f32 %v1043, %v1045
    %v1048 = vadd.f32 %v1044, %v1046
    %v1049 = vtanh.pop %v1047
    %v1050 = vtanh.pop %v1048
    %v1051 = vmul.f32 %v995, %v1049
    %v1052 = vmul.f32 %v1040, %v1050
    %v1053 = vpack.c.bf16 %v1052, %v1051
    %v1086 = vunpack.c.l.b16 %v600
    %v1087 = vunpack.c.h.b16 %v600
    %v1088 = vunpack.c.l.b16 %v601
    %v1089 = vunpack.c.h.b16 %v601
    %v1090 = vunpack.c.l.b16 %v602
    %v1091 = vunpack.c.h.b16 %v602
    %v1092 = vunpack.c.l.b16 %v603
    %v1093 = vunpack.c.h.b16 %v603
    %v1094 = vunpack.c.l.b16 %v604
    %v1095 = vunpack.c.h.b16 %v604
    %v1096 = vunpack.c.l.b16 %v605
    %v1097 = vunpack.c.h.b16 %v605
    %v1098 = vunpack.c.l.b16 %v606
    %v1099 = vunpack.c.h.b16 %v606
    %v1100 = vunpack.c.l.b16 %v607
    %v1101 = vunpack.c.h.b16 %v607
    %v1102 = vunpack.c.l.b16 %v608
    %v1103 = vunpack.c.h.b16 %v608
    %v1104 = vunpack.c.l.b16 %v609
    %v1105 = vunpack.c.h.b16 %v609
    %v1106 = vunpack.c.l.b16 %v610
    %v1107 = vunpack.c.h.b16 %v610
    %v1108 = vunpack.c.l.b16 %v611
    %v1109 = vunpack.c.h.b16 %v611
    %v1110 = vunpack.c.l.b16 %v612
    %v1111 = vunpack.c.h.b16 %v612
    %v1112 = vunpack.c.l.b16 %v613
    %v1113 = vunpack.c.h.b16 %v613
    %v1114 = vunpack.c.l.b16 %v614
    %v1115 = vunpack.c.h.b16 %v614
    %v1116 = vunpack.c.l.b16 %v615
    %v1117 = vunpack.c.h.b16 %v615
    %v1118 = vunpack.c.l.b16 %v616
    %v1119 = vunpack.c.h.b16 %v616
    %v1120 = vunpack.c.l.b16 %v617
    %v1121 = vunpack.c.h.b16 %v617
    %v1122 = vunpack.c.l.b16 %v618
    %v1123 = vunpack.c.h.b16 %v618
    %v1124 = vunpack.c.l.b16 %v619
    %v1125 = vunpack.c.h.b16 %v619
    %v1126 = vunpack.c.l.b16 %v620
    %v1127 = vunpack.c.h.b16 %v620
    %v1128 = vunpack.c.l.b16 %v621
    %v1129 = vunpack.c.h.b16 %v621
    %v1130 = vunpack.c.l.b16 %v622
    %v1131 = vunpack.c.h.b16 %v622
    %v1132 = vunpack.c.l.b16 %v623
    %v1133 = vunpack.c.h.b16 %v623
    %v1134 = vunpack.c.l.b16 %v624
    %v1135 = vunpack.c.h.b16 %v624
    %v1136 = vunpack.c.l.b16 %v625
    %v1137 = vunpack.c.h.b16 %v625
    %v1138 = vunpack.c.l.b16 %v626
    %v1139 = vunpack.c.h.b16 %v626
    %v1140 = vunpack.c.l.b16 %v627
    %v1141 = vunpack.c.h.b16 %v627
    %v1142 = vunpack.c.l.b16 %v628
    %v1143 = vunpack.c.h.b16 %v628
    %v1144 = vunpack.c.l.b16 %v629
    %v1145 = vunpack.c.h.b16 %v629
    %v1146 = vunpack.c.l.b16 %v630
    %v1147 = vunpack.c.h.b16 %v630
    %v1148 = vunpack.c.l.b16 %v631
    %v1149 = vunpack.c.h.b16 %v631
    %v1150 = vpack.c.b16 %v1090, %v1086
    %v1151 = vpack.c.b16 %v1091, %v1087
    %v1152 = vpack.c.b16 %v1092, %v1088
    %v1153 = vpack.c.b16 %v1093, %v1089
    %v1154 = vpack.c.b16 %v1098, %v1094
    %v1155 = vpack.c.b16 %v1099, %v1095
    %v1156 = vpack.c.b16 %v1100, %v1096
    %v1157 = vpack.c.b16 %v1101, %v1097
    %v1158 = vpack.c.b16 %v1106, %v1102
    %v1159 = vpack.c.b16 %v1107, %v1103
    %v1160 = vpack.c.b16 %v1108, %v1104
    %v1161 = vpack.c.b16 %v1109, %v1105
    %v1162 = vpack.c.b16 %v1114, %v1110
    %v1163 = vpack.c.b16 %v1115, %v1111
    %v1164 = vpack.c.b16 %v1116, %v1112
    %v1165 = vpack.c.b16 %v1117, %v1113
    %v1166 = vpack.c.b16 %v1122, %v1118
    %v1167 = vpack.c.b16 %v1123, %v1119
    %v1168 = vpack.c.b16 %v1124, %v1120
    %v1169 = vpack.c.b16 %v1125, %v1121
    %v1170 = vpack.c.b16 %v1130, %v1126
    %v1171 = vpack.c.b16 %v1131, %v1127
    %v1172 = vpack.c.b16 %v1132, %v1128
    %v1173 = vpack.c.b16 %v1133, %v1129
    %v1174 = vpack.c.b16 %v1138, %v1134
    %v1175 = vpack.c.b16 %v1139, %v1135
    %v1176 = vpack.c.b16 %v1140, %v1136
    %v1177 = vpack.c.b16 %v1141, %v1137
    %v1178 = vpack.c.b16 %v1146, %v1142
    %v1179 = vpack.c.b16 %v1147, %v1143
    %v1180 = vpack.c.b16 %v1148, %v1144
    %v1181 = vpack.c.b16 %v1149, %v1145
    %1214 = vmatpush.bf16.msra.mxu0 %v1178
    %1215 = vmatpush.bf16.msra.mxu0 %v1174
    %1216 = vmatpush.bf16.msra.mxu0 %v1170
    %1217 = vmatpush.bf16.msra.mxu0 %v1166
    %1218 = vmatpush.bf16.msra.mxu0 %v1162
    %1219 = vmatpush.bf16.msra.mxu0 %v1158
    %1220 = vmatpush.bf16.msra.mxu0 %v1154
    %1221 = vmatpush.bf16.msra.mxu0 %v1150
    %1222 = vmatmul.bf16.gmra.mxu0 %v1053
    %v1223 = vpop.f32.mrf.mxu0
    %v1224 = vadd.f32 %v674, %v1223
    %v1225 = vpop.f32.mrf.mxu0
    %v1226 = vadd.f32 %v674, %v1225
    %1227 = vdwg.mxu0
    %1228 = vmatpush.bf16.msra.mxu0 %v1179
    %1229 = vmatpush.bf16.msra.mxu0 %v1175
    %1230 = vmatpush.bf16.msra.mxu0 %v1171
    %1231 = vmatpush.bf16.msra.mxu0 %v1167
    %1232 = vmatpush.bf16.msra.mxu0 %v1163
    %1233 = vmatpush.bf16.msra.mxu0 %v1159
    %1234 = vmatpush.bf16.msra.mxu0 %v1155
    %1235 = vmatpush.bf16.msra.mxu0 %v1151
    %1236 = vmatmul.bf16.gmra.mxu0 %v1053
    %v1237 = vpop.f32.mrf.mxu0
    %v1238 = vadd.f32 %v675, %v1237
    %v1239 = vpop.f32.mrf.mxu0
    %v1240 = vadd.f32 %v675, %v1239
    %1241 = vdwg.mxu0
    %1242 = vmatpush.bf16.msra.mxu0 %v1180
    %1243 = vmatpush.bf16.msra.mxu0 %v1176
    %1244 = vmatpush.bf16.msra.mxu0 %v1172
    %1245 = vmatpush.bf16.msra.mxu0 %v1168
    %1246 = vmatpush.bf16.msra.mxu0 %v1164
    %1247 = vmatpush.bf16.msra.mxu0 %v1160
    %1248 = vmatpush.bf16.msra.mxu0 %v1156
    %1249 = vmatpush.bf16.msra.mxu0 %v1152
    %1250 = vmatmul.bf16.gmra.mxu0 %v1053
    %v1251 = vpop.f32.mrf.mxu0
    %v1252 = vadd.f32 %v676, %v1251
    %v1253 = vpop.f32.mrf.mxu0
    %v1254 = vadd.f32 %v676, %v1253
    %1255 = vdwg.mxu0
    %1256 = vmatpush.bf16.msra.mxu0 %v1181
    %1257 = vmatpush.bf16.msra.mxu0 %v1177
    %1258 = vmatpush.bf16.msra.mxu0 %v1173
    %1259 = vmatpush.bf16.msra.mxu0 %v1169
    %1260 = vmatpush.bf16.msra.mxu0 %v1165
    %1261 = vmatpush.bf16.msra.mxu0 %v1161
    %1262 = vmatpush.bf16.msra.mxu0 %v1157
    %1263 = vmatpush.bf16.msra.mxu0 %v1153
    %1264 = vmatmul.bf16.gmra.mxu0 %v1053
    %v1265 = vpop.f32.mrf.mxu0
    %v1266 = vadd.f32 %v677, %v1265
    %v1267 = vpop.f32.mrf.mxu0
    %v1268 = vadd.f32 %v677, %v1267
    %1269 = vdwg.mxu0
    %v1286 = vunpack.c.l.b16 %v632
    %v1287 = vunpack.c.h.b16 %v632
    %v1288 = vunpack.c.l.b16 %v633
    %v1289 = vunpack.c.h.b16 %v633
    %v1290 = vunpack.c.l.b16 %v634
    %v1291 = vunpack.c.h.b16 %v634
    %v1292 = vunpack.c.l.b16 %v635
    %v1293 = vunpack.c.h.b16 %v635
    %v1294 = vunpack.c.l.b16 %v636
    %v1295 = vunpack.c.h.b16 %v636
    %v1296 = vunpack.c.l.b16 %v637
    %v1297 = vunpack.c.h.b16 %v637
    %v1298 = vunpack.c.l.b16 %v638
    %v1299 = vunpack.c.h.b16 %v638
    %v1300 = vunpack.c.l.b16 %v639
    %v1301 = vunpack.c.h.b16 %v639
    %v1302 = vunpack.c.l.b16 %v640
    %v1303 = vunpack.c.h.b16 %v640
    %v1304 = vunpack.c.l.b16 %v641
    %v1305 = vunpack.c.h.b16 %v641
    %v1306 = vunpack.c.l.b16 %v642
    %v1307 = vunpack.c.h.b16 %v642
    %v1308 = vunpack.c.l.b16 %v643
    %v1309 = vunpack.c.h.b16 %v643
    %v1310 = vunpack.c.l.b16 %v644
    %v1311 = vunpack.c.h.b16 %v644
    %v1312 = vunpack.c.l.b16 %v645
    %v1313 = vunpack.c.h.b16 %v645
    %v1314 = vunpack.c.l.b16 %v646
    %v1315 = vunpack.c.h.b16 %v646
    %v1316 = vunpack.c.l.b16 %v647
    %v1317 = vunpack.c.h.b16 %v647
    %v1318 = vpack.c.b16 %v1290, %v1286
    %v1319 = vpack.c.b16 %v1291, %v1287
    %v1320 = vpack.c.b16 %v1292, %v1288
    %v1321 = vpack.c.b16 %v1293, %v1289
    %v1322 = vpack.c.b16 %v1298, %v1294
    %v1323 = vpack.c.b16 %v1299, %v1295
    %v1324 = vpack.c.b16 %v1300, %v1296
    %v1325 = vpack.c.b16 %v1301, %v1297
    %v1326 = vpack.c.b16 %v1306, %v1302
    %v1327 = vpack.c.b16 %v1307, %v1303
    %v1328 = vpack.c.b16 %v1308, %v1304
    %v1329 = vpack.c.b16 %v1309, %v1305
    %v1330 = vpack.c.b16 %v1314, %v1310
    %v1331 = vpack.c.b16 %v1315, %v1311
    %v1332 = vpack.c.b16 %v1316, %v1312
    %v1333 = vpack.c.b16 %v1317, %v1313
    %vm1350 = vcmask 523264
    %v1352 = vsel %vm1350, 0, 0
    %1354 = vmatpush.bf16.msra.mxu0 0
    %1355 = vmatpush.bf16.msra.mxu0 0
    %1356 = vmatpush.bf16.msra.mxu0 0
    %1357 = vmatpush.bf16.msra.mxu0 0
    %1358 = vmatpush.bf16.msra.mxu0 %v1330
    %1359 = vmatpush.bf16.msra.mxu0 %v1326
    %1360 = vmatpush.bf16.msra.mxu0 %v1322
    %1361 = vmatpush.bf16.msra.mxu0 %v1318
    %1362 = vmatmul.bf16.gmra.mxu0 %v1352
    %v1363 = vpop.f32.mrf.mxu0
    %v1364 = vadd.f32 0.0, %v1363
    %v1365 = vpop.f32.mrf.mxu0
    %v1366 = vadd.f32 0.0, %v1365
    %1367 = vdwg.mxu0
    %1368 = vmatpush.bf16.msra.mxu0 0
    %1369 = vmatpush.bf16.msra.mxu0 0
    %1370 = vmatpush.bf16.msra.mxu0 0
    %1371 = vmatpush.bf16.msra.mxu0 0
    %1372 = vmatpush.bf16.msra.mxu0 %v1331
    %1373 = vmatpush.bf16.msra.mxu0 %v1327
    %1374 = vmatpush.bf16.msra.mxu0 %v1323
    %1375 = vmatpush.bf16.msra.mxu0 %v1319
    %1376 = vmatmul.bf16.gmra.mxu0 %v1352
    %v1377 = vpop.f32.mrf.mxu0
    %v1378 = vadd.f32 0.0, %v1377
    %v1379 = vpop.f32.mrf.mxu0
    %v1380 = vadd.f32 0.0, %v1379
    %1381 = vdwg.mxu0
    %1382 = vmatpush.bf16.msra.mxu0 0
    %1383 = vmatpush.bf16.msra.mxu0 0
    %1384 = vmatpush.bf16.msra.mxu0 0
    %1385 = vmatpush.bf16.msra.mxu0 0
    %1386 = vmatpush.bf16.msra.mxu0 %v1332
    %1387 = vmatpush.bf16.msra.mxu0 %v1328
    %1388 = vmatpush.bf16.msra.mxu0 %v1324
    %1389 = vmatpush.bf16.msra.mxu0 %v1320
    %1390 = vmatmul.bf16.gmra.mxu0 %v1352
    %v1391 = vpop.f32.mrf.mxu0
    %v1392 = vadd.f32 0.0, %v1391
    %v1393 = vpop.f32.mrf.mxu0
    %v1394 = vadd.f32 0.0, %v1393
    %1395 = vdwg.mxu0
    %1396 = vmatpush.bf16.msra.mxu0 0
    %1397 = vmatpush.bf16.msra.mxu0 0
    %1398 = vmatpush.bf16.msra.mxu0 0
    %1399 = vmatpush.bf16.msra.mxu0 0
    %1400 = vmatpush.bf16.msra.mxu0 %v1333
    %1401 = vmatpush.bf16.msra.mxu0 %v1329
    %1402 = vmatpush.bf16.msra.mxu0 %v1325
    %1403 = vmatpush.bf16.msra.mxu0 %v1321
    %1404 = vmatmul.bf16.gmra.mxu0 %v1352
    %v1405 = vpop.f32.mrf.mxu0
    %v1406 = vadd.f32 0.0, %v1405
    %v1407 = vpop.f32.mrf.mxu0
    %v1408 = vadd.f32 0.0, %v1407
    %1409 = vdwg.mxu0
    %v1410 = vadd.f32 %v1224, %v1364
    %v1411 = vadd.f32 %v1238, %v1378
    %v1412 = vadd.f32 %v1252, %v1392
    %v1413 = vadd.f32 %v1266, %v1406
    %v1414 = vadd.f32 %v1226, %v1366
    %v1415 = vadd.f32 %v1240, %v1380
    %v1416 = vadd.f32 %v1254, %v1394
    %v1417 = vadd.f32 %v1268, %v1408
    %v1418 = vxor.u32 %v1410, 2147483648
    %v1419 = vxor.u32 %v1411, 2147483648
    %v1420 = vxor.u32 %v1412, 2147483648
    %v1421 = vxor.u32 %v1414, 2147483648
    %v1422 = vxor.u32 %v1415, 2147483648
    %v1423 = vxor.u32 %v1416, 2147483648
    %v1424 = vmul.f32 %v1418, 1.442695
    %v1425 = vpow.pop %v1424
    %v1426 = vmul.f32 %v1419, 1.442695
    %v1427 = vpow.pop %v1426
    %v1428 = vmul.f32 %v1420, 1.442695
    %v1429 = vpow.pop %v1428
    %v1430 = vmul.f32 %v1421, 1.442695
    %v1431 = vpow.pop %v1430
    %v1432 = vmul.f32 %v1422, 1.442695
    %v1433 = vpow.pop %v1432
    %v1434 = vmul.f32 %v1423, 1.442695
    %v1435 = vpow.pop %v1434
    %v1436 = vadd.f32 %v1425, 1.0
    %v1437 = vadd.f32 %v1427, 1.0
    %v1438 = vadd.f32 %v1429, 1.0
    %v1439 = vadd.f32 %v1431, 1.0
    %v1440 = vadd.f32 %v1433, 1.0
    %v1441 = vadd.f32 %v1435, 1.0
    %v1442 = vrcp.pop %v1436
    %v1443 = vmul.f32 %v1436, %v1442
    %v1444 = vsub.f32 1.0, %v1443
    %v1445 = vmul.f32 %v1442, %v1444
    %v1446 = vadd.f32 %v1442, %v1445
    %vm1447 = vweird.f32 %v1436
    %vm1448 = vweird.f32 %v1442
    %vm1449 = vmor %vm1447, %vm1448
    %v1450 = vsel %vm1449, %v1442, %v1446
    %v1451 = vand.u32 2147483647, %v1436
    %vm1452 = vcmp.eq.f32.partialorder %v1451, 8.507059e+37
    %v1453 = vand.u32 %v1436, 2147483648
    %v1454 = vor.u32 1.1754944e-38, %v1453
    %v1455 = vsel %vm1452, %v1454, %v1450
    %v1456 = vmul.f32 1.0, %v1455
    %v1457 = vrcp.pop %v1437
    %v1458 = vmul.f32 %v1437, %v1457
    %v1459 = vsub.f32 1.0, %v1458
    %v1460 = vmul.f32 %v1457, %v1459
    %v1461 = vadd.f32 %v1457, %v1460
    %vm1462 = vweird.f32 %v1437
    %vm1463 = vweird.f32 %v1457
    %vm1464 = vmor %vm1462, %vm1463
    %v1465 = vsel %vm1464, %v1457, %v1461
    %v1466 = vand.u32 2147483647, %v1437
    %vm1467 = vcmp.eq.f32.partialorder %v1466, 8.507059e+37
    %v1468 = vand.u32 %v1437, 2147483648
    %v1469 = vor.u32 1.1754944e-38, %v1468
    %v1470 = vsel %vm1467, %v1469, %v1465
    %v1471 = vmul.f32 1.0, %v1470
    %v1472 = vrcp.pop %v1438
    %v1473 = vmul.f32 %v1438, %v1472
    %v1474 = vsub.f32 1.0, %v1473
    %v1475 = vmul.f32 %v1472, %v1474
    %v1476 = vadd.f32 %v1472, %v1475
    %vm1477 = vweird.f32 %v1438
    %vm1478 = vweird.f32 %v1472
    %vm1479 = vmor %vm1477, %vm1478
    %v1480 = vsel %vm1479, %v1472, %v1476
    %v1481 = vand.u32 2147483647, %v1438
    %vm1482 = vcmp.eq.f32.partialorder %v1481, 8.507059e+37
    %v1483 = vand.u32 %v1438, 2147483648
    %v1484 = vor.u32 1.1754944e-38, %v1483
    %v1485 = vsel %vm1482, %v1484, %v1480
    %v1486 = vmul.f32 1.0, %v1485
    %v1487 = vrcp.pop %v1439
    %v1488 = vmul.f32 %v1439, %v1487
    %v1489 = vsub.f32 1.0, %v1488
    %v1490 = vmul.f32 %v1487, %v1489
    %v1491 = vadd.f32 %v1487, %v1490
    %vm1492 = vweird.f32 %v1439
    %vm1493 = vweird.f32 %v1487
    %vm1494 = vmor %vm1492, %vm1493
    %v1495 = vsel %vm1494, %v1487, %v1491
    %v1496 = vand.u32 2147483647, %v1439
    %vm1497 = vcmp.eq.f32.partialorder %v1496, 8.507059e+37
    %v1498 = vand.u32 %v1439, 2147483648
    %v1499 = vor.u32 1.1754944e-38, %v1498
    %v1500 = vsel %vm1497, %v1499, %v1495
    %v1501 = vmul.f32 1.0, %v1500
    %v1502 = vrcp.pop %v1440
    %v1503 = vmul.f32 %v1440, %v1502
    %v1504 = vsub.f32 1.0, %v1503
    %v1505 = vmul.f32 %v1502, %v1504
    %v1506 = vadd.f32 %v1502, %v1505
    %vm1507 = vweird.f32 %v1440
    %vm1508 = vweird.f32 %v1502
    %vm1509 = vmor %vm1507, %vm1508
    %v1510 = vsel %vm1509, %v1502, %v1506
    %v1511 = vand.u32 2147483647, %v1440
    %vm1512 = vcmp.eq.f32.partialorder %v1511, 8.507059e+37
    %v1513 = vand.u32 %v1440, 2147483648
    %v1514 = vor.u32 1.1754944e-38, %v1513
    %v1515 = vsel %vm1512, %v1514, %v1510
    %v1516 = vmul.f32 1.0, %v1515
    %v1517 = vrcp.pop %v1441
    %v1518 = vmul.f32 %v1441, %v1517
    %v1519 = vsub.f32 1.0, %v1518
    %v1520 = vmul.f32 %v1517, %v1519
    %v1521 = vadd.f32 %v1517, %v1520
    %vm1522 = vweird.f32 %v1441
    %vm1523 = vweird.f32 %v1517
    %vm1524 = vmor %vm1522, %vm1523
    %v1525 = vsel %vm1524, %v1517, %v1521
    %v1526 = vand.u32 2147483647, %v1441
    %vm1527 = vcmp.eq.f32.partialorder %v1526, 8.507059e+37
    %v1528 = vand.u32 %v1441, 2147483648
    %v1529 = vor.u32 1.1754944e-38, %v1528
    %v1530 = vsel %vm1527, %v1529, %v1525
    %v1531 = vmul.f32 1.0, %v1530
    %v1532 = vtanh.pop %v1413
    %v1533 = vtanh.pop %v1417
    %v1534 = vmul.f32 %v1471, 0.0
    %v1535 = vmul.f32 %v1516, 0.0
    %v1536 = vmul.f32 %v1456, %v1532
    %v1537 = vmul.f32 %v1501, %v1533
    %v1538 = vadd.f32 %v1534, %v1536
    %v1539 = vadd.f32 %v1535, %v1537
    %v1540 = vtanh.pop %v1538
    %v1541 = vtanh.pop %v1539
    %v1542 = vmul.f32 %v1486, %v1540
    %v1543 = vmul.f32 %v1531, %v1541
    %v1544 = vpack.c.bf16 %v1543, %v1542
    %v1561 = vunpack.c.l.b16 %v648
    %v1562 = vunpack.c.h.b16 %v648
    %v1563 = vunpack.c.l.b16 %v649
    %v1564 = vunpack.c.h.b16 %v649
    %v1565 = vunpack.c.l.b16 %v650
    %v1566 = vunpack.c.h.b16 %v650
    %v1567 = vunpack.c.l.b16 %v651
    %v1568 = vunpack.c.h.b16 %v651
    %v1569 = vunpack.c.l.b16 %v652
    %v1570 = vunpack.c.h.b16 %v652
    %v1571 = vunpack.c.l.b16 %v653
    %v1572 = vunpack.c.h.b16 %v653
    %v1573 = vunpack.c.l.b16 %v654
    %v1574 = vunpack.c.h.b16 %v654
    %v1575 = vunpack.c.l.b16 %v655
    %v1576 = vunpack.c.h.b16 %v655
    %v1577 = vunpack.c.l.b16 %v656
    %v1578 = vunpack.c.h.b16 %v656
    %v1579 = vunpack.c.l.b16 %v657
    %v1580 = vunpack.c.h.b16 %v657
    %v1581 = vunpack.c.l.b16 %v658
    %v1582 = vunpack.c.h.b16 %v658
    %v1583 = vunpack.c.l.b16 %v659
    %v1584 = vunpack.c.h.b16 %v659
    %v1585 = vunpack.c.l.b16 %v660
    %v1586 = vunpack.c.h.b16 %v660
    %v1587 = vunpack.c.l.b16 %v661
    %v1588 = vunpack.c.h.b16 %v661
    %v1589 = vunpack.c.l.b16 %v662
    %v1590 = vunpack.c.h.b16 %v662
    %v1591 = vunpack.c.l.b16 %v663
    %v1592 = vunpack.c.h.b16 %v663
    %v1593 = vpack.c.b16 %v1565, %v1561
    %v1594 = vpack.c.b16 %v1566, %v1562
    %v1595 = vpack.c.b16 %v1567, %v1563
    %v1596 = vpack.c.b16 %v1568, %v1564
    %v1597 = vpack.c.b16 %v1573, %v1569
    %v1598 = vpack.c.b16 %v1574, %v1570
    %v1599 = vpack.c.b16 %v1575, %v1571
    %v1600 = vpack.c.b16 %v1576, %v1572
    %v1601 = vpack.c.b16 %v1581, %v1577
    %v1602 = vpack.c.b16 %v1582, %v1578
    %v1603 = vpack.c.b16 %v1583, %v1579
    %v1604 = vpack.c.b16 %v1584, %v1580
    %v1605 = vpack.c.b16 %v1589, %v1585
    %v1606 = vpack.c.b16 %v1590, %v1586
    %v1607 = vpack.c.b16 %v1591, %v1587
    %v1608 = vpack.c.b16 %v1592, %v1588
    %v1626 = vsel %vm1350, %v1544, 0
    %1628 = vmatpush.bf16.msra.mxu0 0
    %1629 = vmatpush.bf16.msra.mxu0 0
    %1630 = vmatpush.bf16.msra.mxu0 0
    %1631 = vmatpush.bf16.msra.mxu0 0
    %1632 = vmatpush.bf16.msra.mxu0 %v1605
    %1633 = vmatpush.bf16.msra.mxu0 %v1601
    %1634 = vmatpush.bf16.msra.mxu0 %v1597
    %1635 = vmatpush.bf16.msra.mxu0 %v1593
    %1636 = vmatmul.bf16.gmra.mxu0 %v1626
    %v1637 = vpop.f32.mrf.mxu0
    %v1638 = vadd.f32 %v684, %v1637
    %v1639 = vpop.f32.mrf.mxu0
    %v1640 = vadd.f32 %v684, %v1639
    %1641 = vdwg.mxu0
    %1642 = vmatpush.bf16.msra.mxu0 0
    %1643 = vmatpush.bf16.msra.mxu0 0
    %1644 = vmatpush.bf16.msra.mxu0 0
    %1645 = vmatpush.bf16.msra.mxu0 0
    %1646 = vmatpush.bf16.msra.mxu0 %v1606
    %1647 = vmatpush.bf16.msra.mxu0 %v1602
    %1648 = vmatpush.bf16.msra.mxu0 %v1598
    %1649 = vmatpush.bf16.msra.mxu0 %v1594
    %1650 = vmatmul.bf16.gmra.mxu0 %v1626
    %v1651 = vpop.f32.mrf.mxu0
    %v1652 = vadd.f32 %v685, %v1651
    %v1653 = vpop.f32.mrf.mxu0
    %v1654 = vadd.f32 %v685, %v1653
    %1655 = vdwg.mxu0
    %1656 = vmatpush.bf16.msra.mxu0 0
    %1657 = vmatpush.bf16.msra.mxu0 0
    %1658 = vmatpush.bf16.msra.mxu0 0
    %1659 = vmatpush.bf16.msra.mxu0 0
    %1660 = vmatpush.bf16.msra.mxu0 %v1607
    %1661 = vmatpush.bf16.msra.mxu0 %v1603
    %1662 = vmatpush.bf16.msra.mxu0 %v1599
    %1663 = vmatpush.bf16.msra.mxu0 %v1595
    %1664 = vmatmul.bf16.gmra.mxu0 %v1626
    %v1665 = vpop.f32.mrf.mxu0
    %v1666 = vadd.f32 %v686, %v1665
    %v1667 = vpop.f32.mrf.mxu0
    %v1668 = vadd.f32 %v686, %v1667
    %1669 = vdwg.mxu0
    %1670 = vmatpush.bf16.msra.mxu0 0
    %1671 = vmatpush.bf16.msra.mxu0 0
    %1672 = vmatpush.bf16.msra.mxu0 0
    %1673 = vmatpush.bf16.msra.mxu0 0
    %1674 = vmatpush.bf16.msra.mxu0 %v1608
    %1675 = vmatpush.bf16.msra.mxu0 %v1604
    %1676 = vmatpush.bf16.msra.mxu0 %v1600
    %1677 = vmatpush.bf16.msra.mxu0 %v1596
    %1678 = vmatmul.bf16.gmra.mxu0 %v1626
    %v1679 = vpop.f32.mrf.mxu0
    %v1680 = vadd.f32 %v687, %v1679
    %v1681 = vpop.f32.mrf.mxu0
    %v1682 = vadd.f32 %v687, %v1681
    %1683 = vdwg.mxu0
    %v1692 = vunpack.c.l.b16 %v664
    %v1693 = vunpack.c.h.b16 %v664
    %v1694 = vunpack.c.l.b16 %v665
    %v1695 = vunpack.c.h.b16 %v665
    %v1696 = vunpack.c.l.b16 %v666
    %v1697 = vunpack.c.h.b16 %v666
    %v1698 = vunpack.c.l.b16 %v667
    %v1699 = vunpack.c.h.b16 %v667
    %v1700 = vunpack.c.l.b16 %v668
    %v1701 = vunpack.c.h.b16 %v668
    %v1702 = vunpack.c.l.b16 %v669
    %v1703 = vunpack.c.h.b16 %v669
    %v1704 = vunpack.c.l.b16 %v670
    %v1705 = vunpack.c.h.b16 %v670
    %v1706 = vunpack.c.l.b16 %v671
    %v1707 = vunpack.c.h.b16 %v671
    %v1708 = vpack.c.b16 %v1696, %v1692
    %v1709 = vpack.c.b16 %v1697, %v1693
    %v1710 = vpack.c.b16 %v1698, %v1694
    %v1711 = vpack.c.b16 %v1699, %v1695
    %v1712 = vpack.c.b16 %v1704, %v1700
    %v1713 = vpack.c.b16 %v1705, %v1701
    %v1714 = vpack.c.b16 %v1706, %v1702
    %v1715 = vpack.c.b16 %v1707, %v1703
    %vm1724 = vcmask 261120
    %v1725 = vsel %vm1724, 0, 0
    %1727 = vmatpush.bf16.msra.mxu0 0
    %1728 = vmatpush.bf16.msra.mxu0 0
    %1729 = vmatpush.bf16.msra.mxu0 0
    %1730 = vmatpush.bf16.msra.mxu0 0
    %1731 = vmatpush.bf16.msra.mxu0 0
    %1732 = vmatpush.bf16.msra.mxu0 0
    %1733 = vmatpush.bf16.msra.mxu0 %v1712
    %1734 = vmatpush.bf16.msra.mxu0 %v1708
    %1735 = vmatmul.bf16.gmra.mxu0 %v1725
    %v1736 = vpop.f32.mrf.mxu0
    %v1737 = vadd.f32 0.0, %v1736
    %v1738 = vpop.f32.mrf.mxu0
    %v1739 = vadd.f32 0.0, %v1738
    %1740 = vdwg.mxu0
    %1741 = vmatpush.bf16.msra.mxu0 0
    %1742 = vmatpush.bf16.msra.mxu0 0
    %1743 = vmatpush.bf16.msra.mxu0 0
    %1744 = vmatpush.bf16.msra.mxu0 0
    %1745 = vmatpush.bf16.msra.mxu0 0
    %1746 = vmatpush.bf16.msra.mxu0 0
    %1747 = vmatpush.bf16.msra.mxu0 %v1713
    %1748 = vmatpush.bf16.msra.mxu0 %v1709
    %1749 = vmatmul.bf16.gmra.mxu0 %v1725
    %v1750 = vpop.f32.mrf.mxu0
    %v1751 = vadd.f32 0.0, %v1750
    %v1752 = vpop.f32.mrf.mxu0
    %v1753 = vadd.f32 0.0, %v1752
    %1754 = vdwg.mxu0
    %1755 = vmatpush.bf16.msra.mxu0 0
    %1756 = vmatpush.bf16.msra.mxu0 0
    %1757 = vmatpush.bf16.msra.mxu0 0
    %1758 = vmatpush.bf16.msra.mxu0 0
    %1759 = vmatpush.bf16.msra.mxu0 0
    %1760 = vmatpush.bf16.msra.mxu0 0
    %1761 = vmatpush.bf16.msra.mxu0 %v1714
    %1762 = vmatpush.bf16.msra.mxu0 %v1710
    %1763 = vmatmul.bf16.gmra.mxu0 %v1725
    %v1764 = vpop.f32.mrf.mxu0
    %v1765 = vadd.f32 0.0, %v1764
    %v1766 = vpop.f32.mrf.mxu0
    %v1767 = vadd.f32 0.0, %v1766
    %1768 = vdwg.mxu0
    %1769 = vmatpush.bf16.msra.mxu0 0
    %1770 = vmatpush.bf16.msra.mxu0 0
    %1771 = vmatpush.bf16.msra.mxu0 0
    %1772 = vmatpush.bf16.msra.mxu0 0
    %1773 = vmatpush.bf16.msra.mxu0 0
    %1774 = vmatpush.bf16.msra.mxu0 0
    %1775 = vmatpush.bf16.msra.mxu0 %v1715
    %1776 = vmatpush.bf16.msra.mxu0 %v1711
    %1777 = vmatmul.bf16.gmra.mxu0 %v1725
    %v1778 = vpop.f32.mrf.mxu0
    %v1779 = vadd.f32 0.0, %v1778
    %v1780 = vpop.f32.mrf.mxu0
    %v1781 = vadd.f32 0.0, %v1780
    %1782 = vdwg.mxu0
    %v1783 = vadd.f32 %v1638, %v1737
    %v1784 = vadd.f32 %v1652, %v1751
    %v1785 = vadd.f32 %v1666, %v1765
    %v1786 = vadd.f32 %v1680, %v1779
    %v1787 = vadd.f32 %v1640, %v1739
    %v1788 = vadd.f32 %v1654, %v1753
    %v1789 = vadd.f32 %v1668, %v1767
    %v1790 = vadd.f32 %v1682, %v1781
    %v1791 = vxor.u32 %v1783, 2147483648
    %v1792 = vxor.u32 %v1784, 2147483648
    %v1793 = vxor.u32 %v1785, 2147483648
    %v1794 = vxor.u32 %v1787, 2147483648
    %v1795 = vxor.u32 %v1788, 2147483648
    %v1796 = vxor.u32 %v1789, 2147483648
    %v1797 = vmul.f32 %v1791, 1.442695
    %v1798 = vpow.pop %v1797
    %v1799 = vmul.f32 %v1792, 1.442695
    %v1800 = vpow.pop %v1799
    %v1801 = vmul.f32 %v1793, 1.442695
    %v1802 = vpow.pop %v1801
    %v1803 = vmul.f32 %v1794, 1.442695
    %v1804 = vpow.pop %v1803
    %v1805 = vmul.f32 %v1795, 1.442695
    %v1806 = vpow.pop %v1805
    %v1807 = vmul.f32 %v1796, 1.442695
    %v1808 = vpow.pop %v1807
    %v1809 = vadd.f32 %v1798, 1.0
    %v1810 = vadd.f32 %v1800, 1.0
    %v1811 = vadd.f32 %v1802, 1.0
    %v1812 = vadd.f32 %v1804, 1.0
    %v1813 = vadd.f32 %v1806, 1.0
    %v1814 = vadd.f32 %v1808, 1.0
    %v1815 = vrcp.pop %v1809
    %v1816 = vmul.f32 %v1809, %v1815
    %v1817 = vsub.f32 1.0, %v1816
    %v1818 = vmul.f32 %v1815, %v1817
    %v1819 = vadd.f32 %v1815, %v1818
    %vm1820 = vweird.f32 %v1809
    %vm1821 = vweird.f32 %v1815
    %vm1822 = vmor %vm1820, %vm1821
    %v1823 = vsel %vm1822, %v1815, %v1819
    %v1824 = vand.u32 2147483647, %v1809
    %vm1825 = vcmp.eq.f32.partialorder %v1824, 8.507059e+37
    %v1826 = vand.u32 %v1809, 2147483648
    %v1827 = vor.u32 1.1754944e-38, %v1826
    %v1828 = vsel %vm1825, %v1827, %v1823
    %v1829 = vmul.f32 1.0, %v1828
    %v1830 = vrcp.pop %v1810
    %v1831 = vmul.f32 %v1810, %v1830
    %v1832 = vsub.f32 1.0, %v1831
    %v1833 = vmul.f32 %v1830, %v1832
    %v1834 = vadd.f32 %v1830, %v1833
    %vm1835 = vweird.f32 %v1810
    %vm1836 = vweird.f32 %v1830
    %vm1837 = vmor %vm1835, %vm1836
    %v1838 = vsel %vm1837, %v1830, %v1834
    %v1839 = vand.u32 2147483647, %v1810
    %vm1840 = vcmp.eq.f32.partialorder %v1839, 8.507059e+37
    %v1841 = vand.u32 %v1810, 2147483648
    %v1842 = vor.u32 1.1754944e-38, %v1841
    %v1843 = vsel %vm1840, %v1842, %v1838
    %v1844 = vmul.f32 1.0, %v1843
    %v1845 = vrcp.pop %v1811
    %v1846 = vmul.f32 %v1811, %v1845
    %v1847 = vsub.f32 1.0, %v1846
    %v1848 = vmul.f32 %v1845, %v1847
    %v1849 = vadd.f32 %v1845, %v1848
    %vm1850 = vweird.f32 %v1811
    %vm1851 = vweird.f32 %v1845
    %vm1852 = vmor %vm1850, %vm1851
    %v1853 = vsel %vm1852, %v1845, %v1849
    %v1854 = vand.u32 2147483647, %v1811
    %vm1855 = vcmp.eq.f32.partialorder %v1854, 8.507059e+37
    %v1856 = vand.u32 %v1811, 2147483648
    %v1857 = vor.u32 1.1754944e-38, %v1856
    %v1858 = vsel %vm1855, %v1857, %v1853
    %v1859 = vmul.f32 1.0, %v1858
    %v1860 = vrcp.pop %v1812
    %v1861 = vmul.f32 %v1812, %v1860
    %v1862 = vsub.f32 1.0, %v1861
    %v1863 = vmul.f32 %v1860, %v1862
    %v1864 = vadd.f32 %v1860, %v1863
    %vm1865 = vweird.f32 %v1812
    %vm1866 = vweird.f32 %v1860
    %vm1867 = vmor %vm1865, %vm1866
    %v1868 = vsel %vm1867, %v1860, %v1864
    %v1869 = vand.u32 2147483647, %v1812
    %vm1870 = vcmp.eq.f32.partialorder %v1869, 8.507059e+37
    %v1871 = vand.u32 %v1812, 2147483648
    %v1872 = vor.u32 1.1754944e-38, %v1871
    %v1873 = vsel %vm1870, %v1872, %v1868
    %v1874 = vmul.f32 1.0, %v1873
    %v1875 = vrcp.pop %v1813
    %v1876 = vmul.f32 %v1813, %v1875
    %v1877 = vsub.f32 1.0, %v1876
    %v1878 = vmul.f32 %v1875, %v1877
    %v1879 = vadd.f32 %v1875, %v1878
    %vm1880 = vweird.f32 %v1813
    %vm1881 = vweird.f32 %v1875
    %vm1882 = vmor %vm1880, %vm1881
    %v1883 = vsel %vm1882, %v1875, %v1879
    %v1884 = vand.u32 2147483647, %v1813
    %vm1885 = vcmp.eq.f32.partialorder %v1884, 8.507059e+37
    %v1886 = vand.u32 %v1813, 2147483648
    %v1887 = vor.u32 1.1754944e-38, %v1886
    %v1888 = vsel %vm1885, %v1887, %v1883
    %v1889 = vmul.f32 1.0, %v1888
    %v1890 = vrcp.pop %v1814
    %v1891 = vmul.f32 %v1814, %v1890
    %v1892 = vsub.f32 1.0, %v1891
    %v1893 = vmul.f32 %v1890, %v1892
    %v1894 = vadd.f32 %v1890, %v1893
    %vm1895 = vweird.f32 %v1814
    %vm1896 = vweird.f32 %v1890
    %vm1897 = vmor %vm1895, %vm1896
    %v1898 = vsel %vm1897, %v1890, %v1894
    %v1899 = vand.u32 2147483647, %v1814
    %vm1900 = vcmp.eq.f32.partialorder %v1899, 8.507059e+37
    %v1901 = vand.u32 %v1814, 2147483648
    %v1902 = vor.u32 1.1754944e-38, %v1901
    %v1903 = vsel %vm1900, %v1902, %v1898
    %v1904 = vmul.f32 1.0, %v1903
    %v1905 = vtanh.pop %v1786
    %v1906 = vtanh.pop %v1790
    %v1907 = vmul.f32 %v1844, 0.0
    %v1908 = vmul.f32 %v1889, 0.0
    %v1909 = vmul.f32 %v1829, %v1905
    %v1910 = vmul.f32 %v1874, %v1906
    %v1911 = vadd.f32 %v1907, %v1909
    %v1912 = vadd.f32 %v1908, %v1910
    %v1913 = vtanh.pop %v1911
    %v1914 = vtanh.pop %v1912
    %v1915 = vmul.f32 %v1859, %v1913
    %v1916 = vmul.f32 %v1904, %v1914
    %s1917 = smul.u32 2, 4
    %s1918 = smul.addr %s1917, 8
    %s1919 = scalar_lea.vmem [#allocation2], %s1918
    %v1920 = vld [vmem:[%s1919] sm:$0xff]
    %v1921 = vld [vmem:[%s1919 + $0x8] sm:$0xff]
    %v1922 = vld [vmem:[%s1919 + $0x10] sm:$0xff]
    %v1923 = vld [vmem:[%s1919 + $0x18] sm:$0xff]
    %v1924 = vld [vmem:[%s1919 + $0x20] sm:$0xff]
    %v1925 = vld [vmem:[%s1919 + $0x28] sm:$0xff]
    %v1926 = vld [vmem:[%s1919 + $0x30] sm:$0xff]
    %v1927 = vld [vmem:[%s1919 + $0x38] sm:$0xff]
    %1928 = vmatpush.bf16.msra.mxu0 %v827
    %1929 = vmatpush.bf16.msra.mxu0 %v823
    %1930 = vmatpush.bf16.msra.mxu0 %v819
    %1931 = vmatpush.bf16.msra.mxu0 %v815
    %1932 = vmatpush.bf16.msra.mxu0 %v811
    %1933 = vmatpush.bf16.msra.mxu0 %v807
    %1934 = vmatpush.bf16.msra.mxu0 %v803
    %1935 = vmatpush.bf16.msra.mxu0 %v799
    %1936 = vmatmul.bf16.gmra.mxu0 %v1053
    %v1937 = vpop.f32.mrf.mxu0
    %v1938 = vadd.f32 0.0, %v1937
    %v1939 = vpop.f32.mrf.mxu0
    %v1940 = vadd.f32 0.0, %v1939
    %1941 = vdwg.mxu0
    %1942 = vmatpush.bf16.msra.mxu0 %v828
    %1943 = vmatpush.bf16.msra.mxu0 %v824
    %1944 = vmatpush.bf16.msra.mxu0 %v820
    %1945 = vmatpush.bf16.msra.mxu0 %v816
    %1946 = vmatpush.bf16.msra.mxu0 %v812
    %1947 = vmatpush.bf16.msra.mxu0 %v808
    %1948 = vmatpush.bf16.msra.mxu0 %v804
    %1949 = vmatpush.bf16.msra.mxu0 %v800
    %1950 = vmatmul.bf16.gmra.mxu0 %v1053
    %v1951 = vpop.f32.mrf.mxu0
    %v1952 = vadd.f32 0.0, %v1951
    %v1953 = vpop.f32.mrf.mxu0
    %v1954 = vadd.f32 0.0, %v1953
    %1955 = vdwg.mxu0
    %1956 = vmatpush.bf16.msra.mxu0 %v829
    %1957 = vmatpush.bf16.msra.mxu0 %v825
    %1958 = vmatpush.bf16.msra.mxu0 %v821
    %1959 = vmatpush.bf16.msra.mxu0 %v817
    %1960 = vmatpush.bf16.msra.mxu0 %v813
    %1961 = vmatpush.bf16.msra.mxu0 %v809
    %1962 = vmatpush.bf16.msra.mxu0 %v805
    %1963 = vmatpush.bf16.msra.mxu0 %v801
    %1964 = vmatmul.bf16.gmra.mxu0 %v1053
    %v1965 = vpop.f32.mrf.mxu0
    %v1966 = vadd.f32 0.0, %v1965
    %v1967 = vpop.f32.mrf.mxu0
    %v1968 = vadd.f32 0.0, %v1967
    %1969 = vdwg.mxu0
    %1970 = vmatpush.bf16.msra.mxu0 %v830
    %1971 = vmatpush.bf16.msra.mxu0 %v826
    %1972 = vmatpush.bf16.msra.mxu0 %v822
    %1973 = vmatpush.bf16.msra.mxu0 %v818
    %1974 = vmatpush.bf16.msra.mxu0 %v814
    %1975 = vmatpush.bf16.msra.mxu0 %v810
    %1976 = vmatpush.bf16.msra.mxu0 %v806
    %1977 = vmatpush.bf16.msra.mxu0 %v802
    %1978 = vmatmul.bf16.gmra.mxu0 %v1053
    %v1979 = vpop.f32.mrf.mxu0
    %v1980 = vadd.f32 0.0, %v1979
    %v1981 = vpop.f32.mrf.mxu0
    %v1982 = vadd.f32 0.0, %v1981
    %1983 = vdwg.mxu0
    %v1984 = vadd.f32 %v1920, %v1938
    %v1985 = vadd.f32 %v1921, %v1952
    %v1986 = vadd.f32 %v1922, %v1966
    %v1987 = vadd.f32 %v1923, %v1980
    %v1988 = vadd.f32 %v1924, %v1940
    %v1989 = vadd.f32 %v1925, %v1954
    %v1990 = vadd.f32 %v1926, %v1968
    %v1991 = vadd.f32 %v1927, %v1982
    %v1992 = vxor.u32 %v1984, 2147483648
    %v1993 = vxor.u32 %v1985, 2147483648
    %v1994 = vxor.u32 %v1986, 2147483648
    %v1995 = vxor.u32 %v1988, 2147483648
    %v1996 = vxor.u32 %v1989, 2147483648
    %v1997 = vxor.u32 %v1990, 2147483648
    %v1998 = vmul.f32 %v1992, 1.442695
    %v1999 = vpow.pop %v1998
    %v2000 = vmul.f32 %v1993, 1.442695
    %v2001 = vpow.pop %v2000
    %v2002 = vmul.f32 %v1994, 1.442695
    %v2003 = vpow.pop %v2002
    %v2004 = vmul.f32 %v1995, 1.442695
    %v2005 = vpow.pop %v2004
    %v2006 = vmul.f32 %v1996, 1.442695
    %v2007 = vpow.pop %v2006
    %v2008 = vmul.f32 %v1997, 1.442695
    %v2009 = vpow.pop %v2008
    %v2010 = vadd.f32 %v1999, 1.0
    %v2011 = vadd.f32 %v2001, 1.0
    %v2012 = vadd.f32 %v2003, 1.0
    %v2013 = vadd.f32 %v2005, 1.0
    %v2014 = vadd.f32 %v2007, 1.0
    %v2015 = vadd.f32 %v2009, 1.0
    %v2016 = vrcp.pop %v2010
    %v2017 = vmul.f32 %v2010, %v2016
    %v2018 = vsub.f32 1.0, %v2017
    %v2019 = vmul.f32 %v2016, %v2018
    %v2020 = vadd.f32 %v2016, %v2019
    %vm2021 = vweird.f32 %v2010
    %vm2022 = vweird.f32 %v2016
    %vm2023 = vmor %vm2021, %vm2022
    %v2024 = vsel %vm2023, %v2016, %v2020
    %v2025 = vand.u32 2147483647, %v2010
    %vm2026 = vcmp.eq.f32.partialorder %v2025, 8.507059e+37
    %v2027 = vand.u32 %v2010, 2147483648
    %v2028 = vor.u32 1.1754944e-38, %v2027
    %v2029 = vsel %vm2026, %v2028, %v2024
    %v2030 = vmul.f32 1.0, %v2029
    %v2031 = vrcp.pop %v2011
    %v2032 = vmul.f32 %v2011, %v2031
    %v2033 = vsub.f32 1.0, %v2032
    %v2034 = vmul.f32 %v2031, %v2033
    %v2035 = vadd.f32 %v2031, %v2034
    %vm2036 = vweird.f32 %v2011
    %vm2037 = vweird.f32 %v2031
    %vm2038 = vmor %vm2036, %vm2037
    %v2039 = vsel %vm2038, %v2031, %v2035
    %v2040 = vand.u32 2147483647, %v2011
    %vm2041 = vcmp.eq.f32.partialorder %v2040, 8.507059e+37
    %v2042 = vand.u32 %v2011, 2147483648
    %v2043 = vor.u32 1.1754944e-38, %v2042
    %v2044 = vsel %vm2041, %v2043, %v2039
    %v2045 = vmul.f32 1.0, %v2044
    %v2046 = vrcp.pop %v2012
    %v2047 = vmul.f32 %v2012, %v2046
    %v2048 = vsub.f32 1.0, %v2047
    %v2049 = vmul.f32 %v2046, %v2048
    %v2050 = vadd.f32 %v2046, %v2049
    %vm2051 = vweird.f32 %v2012
    %vm2052 = vweird.f32 %v2046
    %vm2053 = vmor %vm2051, %vm2052
    %v2054 = vsel %vm2053, %v2046, %v2050
    %v2055 = vand.u32 2147483647, %v2012
    %vm2056 = vcmp.eq.f32.partialorder %v2055, 8.507059e+37
    %v2057 = vand.u32 %v2012, 2147483648
    %v2058 = vor.u32 1.1754944e-38, %v2057
    %v2059 = vsel %vm2056, %v2058, %v2054
    %v2060 = vmul.f32 1.0, %v2059
    %v2061 = vrcp.pop %v2013
    %v2062 = vmul.f32 %v2013, %v2061
    %v2063 = vsub.f32 1.0, %v2062
    %v2064 = vmul.f32 %v2061, %v2063
    %v2065 = vadd.f32 %v2061, %v2064
    %vm2066 = vweird.f32 %v2013
    %vm2067 = vweird.f32 %v2061
    %vm2068 = vmor %vm2066, %vm2067
    %v2069 = vsel %vm2068, %v2061, %v2065
    %v2070 = vand.u32 2147483647, %v2013
    %vm2071 = vcmp.eq.f32.partialorder %v2070, 8.507059e+37
    %v2072 = vand.u32 %v2013, 2147483648
    %v2073 = vor.u32 1.1754944e-38, %v2072
    %v2074 = vsel %vm2071, %v2073, %v2069
    %v2075 = vmul.f32 1.0, %v2074
    %v2076 = vrcp.pop %v2014
    %v2077 = vmul.f32 %v2014, %v2076
    %v2078 = vsub.f32 1.0, %v2077
    %v2079 = vmul.f32 %v2076, %v2078
    %v2080 = vadd.f32 %v2076, %v2079
    %vm2081 = vweird.f32 %v2014
    %vm2082 = vweird.f32 %v2076
    %vm2083 = vmor %vm2081, %vm2082
    %v2084 = vsel %vm2083, %v2076, %v2080
    %v2085 = vand.u32 2147483647, %v2014
    %vm2086 = vcmp.eq.f32.partialorder %v2085, 8.507059e+37
    %v2087 = vand.u32 %v2014, 2147483648
    %v2088 = vor.u32 1.1754944e-38, %v2087
    %v2089 = vsel %vm2086, %v2088, %v2084
    %v2090 = vmul.f32 1.0, %v2089
    %v2091 = vrcp.pop %v2015
    %v2092 = vmul.f32 %v2015, %v2091
    %v2093 = vsub.f32 1.0, %v2092
    %v2094 = vmul.f32 %v2091, %v2093
    %v2095 = vadd.f32 %v2091, %v2094
    %vm2096 = vweird.f32 %v2015
    %vm2097 = vweird.f32 %v2091
    %vm2098 = vmor %vm2096, %vm2097
    %v2099 = vsel %vm2098, %v2091, %v2095
    %v2100 = vand.u32 2147483647, %v2015
    %vm2101 = vcmp.eq.f32.partialorder %v2100, 8.507059e+37
    %v2102 = vand.u32 %v2015, 2147483648
    %v2103 = vor.u32 1.1754944e-38, %v2102
    %v2104 = vsel %vm2101, %v2103, %v2099
    %v2105 = vmul.f32 1.0, %v2104
    %v2106 = vtanh.pop %v1987
    %v2107 = vtanh.pop %v1991
    %v2108 = vmul.f32 %v2045, %v1047
    %v2109 = vmul.f32 %v2090, %v1048
    %v2110 = vmul.f32 %v2030, %v2106
    %v2111 = vmul.f32 %v2075, %v2107
    %v2112 = vadd.f32 %v2108, %v2110
    %v2113 = vadd.f32 %v2109, %v2111
    %v2114 = vtanh.pop %v2112
    %v2115 = vtanh.pop %v2113
    %v2116 = vmul.f32 %v2060, %v2114
    %v2117 = vmul.f32 %v2105, %v2115
    %v2118 = vpack.c.bf16 %v2117, %v2116
    %2119 = vmatpush.bf16.msra.mxu0 %v1178
    %2120 = vmatpush.bf16.msra.mxu0 %v1174
    %2121 = vmatpush.bf16.msra.mxu0 %v1170
    %2122 = vmatpush.bf16.msra.mxu0 %v1166
    %2123 = vmatpush.bf16.msra.mxu0 %v1162
    %2124 = vmatpush.bf16.msra.mxu0 %v1158
    %2125 = vmatpush.bf16.msra.mxu0 %v1154
    %2126 = vmatpush.bf16.msra.mxu0 %v1150
    %2127 = vmatmul.bf16.gmra.mxu0 %v2118
    %v2128 = vpop.f32.mrf.mxu0
    %v2129 = vadd.f32 %v674, %v2128
    %v2130 = vpop.f32.mrf.mxu0
    %v2131 = vadd.f32 %v674, %v2130
    %2132 = vdwg.mxu0
    %2133 = vmatpush.bf16.msra.mxu0 %v1179
    %2134 = vmatpush.bf16.msra.mxu0 %v1175
    %2135 = vmatpush.bf16.msra.mxu0 %v1171
    %2136 = vmatpush.bf16.msra.mxu0 %v1167
    %2137 = vmatpush.bf16.msra.mxu0 %v1163
    %2138 = vmatpush.bf16.msra.mxu0 %v1159
    %2139 = vmatpush.bf16.msra.mxu0 %v1155
    %2140 = vmatpush.bf16.msra.mxu0 %v1151
    %2141 = vmatmul.bf16.gmra.mxu0 %v2118
    %v2142 = vpop.f32.mrf.mxu0
    %v2143 = vadd.f32 %v675, %v2142
    %v2144 = vpop.f32.mrf.mxu0
    %v2145 = vadd.f32 %v675, %v2144
    %2146 = vdwg.mxu0
    %2147 = vmatpush.bf16.msra.mxu0 %v1180
    %2148 = vmatpush.bf16.msra.mxu0 %v1176
    %2149 = vmatpush.bf16.msra.mxu0 %v1172
    %2150 = vmatpush.bf16.msra.mxu0 %v1168
    %2151 = vmatpush.bf16.msra.mxu0 %v1164
    %2152 = vmatpush.bf16.msra.mxu0 %v1160
    %2153 = vmatpush.bf16.msra.mxu0 %v1156
    %2154 = vmatpush.bf16.msra.mxu0 %v1152
    %2155 = vmatmul.bf16.gmra.mxu0 %v2118
    %v2156 = vpop.f32.mrf.mxu0
    %v2157 = vadd.f32 %v676, %v2156
    %v2158 = vpop.f32.mrf.mxu0
    %v2159 = vadd.f32 %v676, %v2158
    %2160 = vdwg.mxu0
    %2161 = vmatpush.bf16.msra.mxu0 %v1181
    %2162 = vmatpush.bf16.msra.mxu0 %v1177
    %2163 = vmatpush.bf16.msra.mxu0 %v1173
    %2164 = vmatpush.bf16.msra.mxu0 %v1169
    %2165 = vmatpush.bf16.msra.mxu0 %v1165
    %2166 = vmatpush.bf16.msra.mxu0 %v1161
    %2167 = vmatpush.bf16.msra.mxu0 %v1157
    %2168 = vmatpush.bf16.msra.mxu0 %v1153
    %2169 = vmatmul.bf16.gmra.mxu0 %v2118
    %v2170 = vpop.f32.mrf.mxu0
    %v2171 = vadd.f32 %v677, %v2170
    %v2172 = vpop.f32.mrf.mxu0
    %v2173 = vadd.f32 %v677, %v2172
    %2174 = vdwg.mxu0
    %2175 = vmatpush.bf16.msra.mxu0 0
    %2176 = vmatpush.bf16.msra.mxu0 0
    %2177 = vmatpush.bf16.msra.mxu0 0
    %2178 = vmatpush.bf16.msra.mxu0 0
    %2179 = vmatpush.bf16.msra.mxu0 %v1330
    %2180 = vmatpush.bf16.msra.mxu0 %v1326
    %2181 = vmatpush.bf16.msra.mxu0 %v1322
    %2182 = vmatpush.bf16.msra.mxu0 %v1318
    %2183 = vmatmul.bf16.gmra.mxu0 %v1626
    %v2184 = vpop.f32.mrf.mxu0
    %v2185 = vadd.f32 0.0, %v2184
    %v2186 = vpop.f32.mrf.mxu0
    %v2187 = vadd.f32 0.0, %v2186
    %2188 = vdwg.mxu0
    %2189 = vmatpush.bf16.msra.mxu0 0
    %2190 = vmatpush.bf16.msra.mxu0 0
    %2191 = vmatpush.bf16.msra.mxu0 0
    %2192 = vmatpush.bf16.msra.mxu0 0
    %2193 = vmatpush.bf16.msra.mxu0 %v1331
    %2194 = vmatpush.bf16.msra.mxu0 %v1327
    %2195 = vmatpush.bf16.msra.mxu0 %v1323
    %2196 = vmatpush.bf16.msra.mxu0 %v1319
    %2197 = vmatmul.bf16.gmra.mxu0 %v1626
    %v2198 = vpop.f32.mrf.mxu0
    %v2199 = vadd.f32 0.0, %v2198
    %v2200 = vpop.f32.mrf.mxu0
    %v2201 = vadd.f32 0.0, %v2200
    %2202 = vdwg.mxu0
    %2203 = vmatpush.bf16.msra.mxu0 0
    %2204 = vmatpush.bf16.msra.mxu0 0
    %2205 = vmatpush.bf16.msra.mxu0 0
    %2206 = vmatpush.bf16.msra.mxu0 0
    %2207 = vmatpush.bf16.msra.mxu0 %v1332
    %2208 = vmatpush.bf16.msra.mxu0 %v1328
    %2209 = vmatpush.bf16.msra.mxu0 %v1324
    %2210 = vmatpush.bf16.msra.mxu0 %v1320
    %2211 = vmatmul.bf16.gmra.mxu0 %v1626
    %v2212 = vpop.f32.mrf.mxu0
    %v2213 = vadd.f32 0.0, %v2212
    %v2214 = vpop.f32.mrf.mxu0
    %v2215 = vadd.f32 0.0, %v2214
    %2216 = vdwg.mxu0
    %2217 = vmatpush.bf16.msra.mxu0 0
    %2218 = vmatpush.bf16.msra.mxu0 0
    %2219 = vmatpush.bf16.msra.mxu0 0
    %2220 = vmatpush.bf16.msra.mxu0 0
    %2221 = vmatpush.bf16.msra.mxu0 %v1333
    %2222 = vmatpush.bf16.msra.mxu0 %v1329
    %2223 = vmatpush.bf16.msra.mxu0 %v1325
    %2224 = vmatpush.bf16.msra.mxu0 %v1321
    %2225 = vmatmul.bf16.gmra.mxu0 %v1626
    %v2226 = vpop.f32.mrf.mxu0
    %v2227 = vadd.f32 0.0, %v2226
    %v2228 = vpop.f32.mrf.mxu0
    %v2229 = vadd.f32 0.0, %v2228
    %2230 = vdwg.mxu0
    %v2231 = vadd.f32 %v2129, %v2185
    %v2232 = vadd.f32 %v2143, %v2199
    %v2233 = vadd.f32 %v2157, %v2213
    %v2234 = vadd.f32 %v2171, %v2227
    %v2235 = vadd.f32 %v2131, %v2187
    %v2236 = vadd.f32 %v2145, %v2201
    %v2237 = vadd.f32 %v2159, %v2215
    %v2238 = vadd.f32 %v2173, %v2229
    %v2239 = vxor.u32 %v2231, 2147483648
    %v2240 = vxor.u32 %v2232, 2147483648
    %v2241 = vxor.u32 %v2233, 2147483648
    %v2242 = vxor.u32 %v2235, 2147483648
    %v2243 = vxor.u32 %v2236, 2147483648
    %v2244 = vxor.u32 %v2237, 2147483648
    %v2245 = vmul.f32 %v2239, 1.442695
    %v2246 = vpow.pop %v2245
    %v2247 = vmul.f32 %v2240, 1.442695
    %v2248 = vpow.pop %v2247
    %v2249 = vmul.f32 %v2241, 1.442695
    %v2250 = vpow.pop %v2249
    %v2251 = vmul.f32 %v2242, 1.442695
    %v2252 = vpow.pop %v2251
    %v2253 = vmul.f32 %v2243, 1.442695
    %v2254 = vpow.pop %v2253
    %v2255 = vmul.f32 %v2244, 1.442695
    %v2256 = vpow.pop %v2255
    %v2257 = vadd.f32 %v2246, 1.0
    %v2258 = vadd.f32 %v2248, 1.0
    %v2259 = vadd.f32 %v2250, 1.0
    %v2260 = vadd.f32 %v2252, 1.0
    %v2261 = vadd.f32 %v2254, 1.0
    %v2262 = vadd.f32 %v2256, 1.0
    %v2263 = vrcp.pop %v2257
    %v2264 = vmul.f32 %v2257, %v2263
    %v2265 = vsub.f32 1.0, %v2264
    %v2266 = vmul.f32 %v2263, %v2265
    %v2267 = vadd.f32 %v2263, %v2266
    %vm2268 = vweird.f32 %v2257
    %vm2269 = vweird.f32 %v2263
    %vm2270 = vmor %vm2268, %vm2269
    %v2271 = vsel %vm2270, %v2263, %v2267
    %v2272 = vand.u32 2147483647, %v2257
    %vm2273 = vcmp.eq.f32.partialorder %v2272, 8.507059e+37
    %v2274 = vand.u32 %v2257, 2147483648
    %v2275 = vor.u32 1.1754944e-38, %v2274
    %v2276 = vsel %vm2273, %v2275, %v2271
    %v2277 = vmul.f32 1.0, %v2276
    %v2278 = vrcp.pop %v2258
    %v2279 = vmul.f32 %v2258, %v2278
    %v2280 = vsub.f32 1.0, %v2279
    %v2281 = vmul.f32 %v2278, %v2280
    %v2282 = vadd.f32 %v2278, %v2281
    %vm2283 = vweird.f32 %v2258
    %vm2284 = vweird.f32 %v2278
    %vm2285 = vmor %vm2283, %vm2284
    %v2286 = vsel %vm2285, %v2278, %v2282
    %v2287 = vand.u32 2147483647, %v2258
    %vm2288 = vcmp.eq.f32.partialorder %v2287, 8.507059e+37
    %v2289 = vand.u32 %v2258, 2147483648
    %v2290 = vor.u32 1.1754944e-38, %v2289
    %v2291 = vsel %vm2288, %v2290, %v2286
    %v2292 = vmul.f32 1.0, %v2291
    %v2293 = vrcp.pop %v2259
    %v2294 = vmul.f32 %v2259, %v2293
    %v2295 = vsub.f32 1.0, %v2294
    %v2296 = vmul.f32 %v2293, %v2295
    %v2297 = vadd.f32 %v2293, %v2296
    %vm2298 = vweird.f32 %v2259
    %vm2299 = vweird.f32 %v2293
    %vm2300 = vmor %vm2298, %vm2299
    %v2301 = vsel %vm2300, %v2293, %v2297
    %v2302 = vand.u32 2147483647, %v2259
    %vm2303 = vcmp.eq.f32.partialorder %v2302, 8.507059e+37
    %v2304 = vand.u32 %v2259, 2147483648
    %v2305 = vor.u32 1.1754944e-38, %v2304
    %v2306 = vsel %vm2303, %v2305, %v2301
    %v2307 = vmul.f32 1.0, %v2306
    %v2308 = vrcp.pop %v2260
    %v2309 = vmul.f32 %v2260, %v2308
    %v2310 = vsub.f32 1.0, %v2309
    %v2311 = vmul.f32 %v2308, %v2310
    %v2312 = vadd.f32 %v2308, %v2311
    %vm2313 = vweird.f32 %v2260
    %vm2314 = vweird.f32 %v2308
    %vm2315 = vmor %vm2313, %vm2314
    %v2316 = vsel %vm2315, %v2308, %v2312
    %v2317 = vand.u32 2147483647, %v2260
    %vm2318 = vcmp.eq.f32.partialorder %v2317, 8.507059e+37
    %v2319 = vand.u32 %v2260, 2147483648
    %v2320 = vor.u32 1.1754944e-38, %v2319
    %v2321 = vsel %vm2318, %v2320, %v2316
    %v2322 = vmul.f32 1.0, %v2321
    %v2323 = vrcp.pop %v2261
    %v2324 = vmul.f32 %v2261, %v2323
    %v2325 = vsub.f32 1.0, %v2324
    %v2326 = vmul.f32 %v2323, %v2325
    %v2327 = vadd.f32 %v2323, %v2326
    %vm2328 = vweird.f32 %v2261
    %vm2329 = vweird.f32 %v2323
    %vm2330 = vmor %vm2328, %vm2329
    %v2331 = vsel %vm2330, %v2323, %v2327
    %v2332 = vand.u32 2147483647, %v2261
    %vm2333 = vcmp.eq.f32.partialorder %v2332, 8.507059e+37
    %v2334 = vand.u32 %v2261, 2147483648
    %v2335 = vor.u32 1.1754944e-38, %v2334
    %v2336 = vsel %vm2333, %v2335, %v2331
    %v2337 = vmul.f32 1.0, %v2336
    %v2338 = vrcp.pop %v2262
    %v2339 = vmul.f32 %v2262, %v2338
    %v2340 = vsub.f32 1.0, %v2339
    %v2341 = vmul.f32 %v2338, %v2340
    %v2342 = vadd.f32 %v2338, %v2341
    %vm2343 = vweird.f32 %v2262
    %vm2344 = vweird.f32 %v2338
    %vm2345 = vmor %vm2343, %vm2344
    %v2346 = vsel %vm2345, %v2338, %v2342
    %v2347 = vand.u32 2147483647, %v2262
    %vm2348 = vcmp.eq.f32.partialorder %v2347, 8.507059e+37
    %v2349 = vand.u32 %v2262, 2147483648
    %v2350 = vor.u32 1.1754944e-38, %v2349
    %v2351 = vsel %vm2348, %v2350, %v2346
    %v2352 = vmul.f32 1.0, %v2351
    %v2353 = vtanh.pop %v2234
    %v2354 = vtanh.pop %v2238
    %v2355 = vmul.f32 %v2292, %v1538
    %v2356 = vmul.f32 %v2337, %v1539
    %v2357 = vmul.f32 %v2277, %v2353
    %v2358 = vmul.f32 %v2322, %v2354
    %v2359 = vadd.f32 %v2355, %v2357
    %v2360 = vadd.f32 %v2356, %v2358
    %v2361 = vtanh.pop %v2359
    %v2362 = vtanh.pop %v2360
    %v2363 = vmul.f32 %v2307, %v2361
    %v2364 = vmul.f32 %v2352, %v2362
    %v2365 = vpack.c.bf16 %v2364, %v2363
    %v2367 = vsel %vm1350, %v2365, 0
    %2369 = vmatpush.bf16.msra.mxu0 0
    %2370 = vmatpush.bf16.msra.mxu0 0
    %2371 = vmatpush.bf16.msra.mxu0 0
    %2372 = vmatpush.bf16.msra.mxu0 0
    %2373 = vmatpush.bf16.msra.mxu0 %v1605
    %2374 = vmatpush.bf16.msra.mxu0 %v1601
    %2375 = vmatpush.bf16.msra.mxu0 %v1597
    %2376 = vmatpush.bf16.msra.mxu0 %v1593
    %2377 = vmatmul.bf16.gmra.mxu0 %v2367
    %v2378 = vpop.f32.mrf.mxu0
    %v2379 = vadd.f32 %v684, %v2378
    %v2380 = vpop.f32.mrf.mxu0
    %v2381 = vadd.f32 %v684, %v2380
    %2382 = vdwg.mxu0
    %2383 = vmatpush.bf16.msra.mxu0 0
    %2384 = vmatpush.bf16.msra.mxu0 0
    %2385 = vmatpush.bf16.msra.mxu0 0
    %2386 = vmatpush.bf16.msra.mxu0 0
    %2387 = vmatpush.bf16.msra.mxu0 %v1606
    %2388 = vmatpush.bf16.msra.mxu0 %v1602
    %2389 = vmatpush.bf16.msra.mxu0 %v1598
    %2390 = vmatpush.bf16.msra.mxu0 %v1594
    %2391 = vmatmul.bf16.gmra.mxu0 %v2367
    %v2392 = vpop.f32.mrf.mxu0
    %v2393 = vadd.f32 %v685, %v2392
    %v2394 = vpop.f32.mrf.mxu0
    %v2395 = vadd.f32 %v685, %v2394
    %2396 = vdwg.mxu0
    %2397 = vmatpush.bf16.msra.mxu0 0
    %2398 = vmatpush.bf16.msra.mxu0 0
    %2399 = vmatpush.bf16.msra.mxu0 0
    %2400 = vmatpush.bf16.msra.mxu0 0
    %2401 = vmatpush.bf16.msra.mxu0 %v1607
    %2402 = vmatpush.bf16.msra.mxu0 %v1603
    %2403 = vmatpush.bf16.msra.mxu0 %v1599
    %2404 = vmatpush.bf16.msra.mxu0 %v1595
    %2405 = vmatmul.bf16.gmra.mxu0 %v2367
    %v2406 = vpop.f32.mrf.mxu0
    %v2407 = vadd.f32 %v686, %v2406
    %v2408 = vpop.f32.mrf.mxu0
    %v2409 = vadd.f32 %v686, %v2408
    %2410 = vdwg.mxu0
    %2411 = vmatpush.bf16.msra.mxu0 0
    %2412 = vmatpush.bf16.msra.mxu0 0
    %2413 = vmatpush.bf16.msra.mxu0 0
    %2414 = vmatpush.bf16.msra.mxu0 0
    %2415 = vmatpush.bf16.msra.mxu0 %v1608
    %2416 = vmatpush.bf16.msra.mxu0 %v1604
    %2417 = vmatpush.bf16.msra.mxu0 %v1600
    %2418 = vmatpush.bf16.msra.mxu0 %v1596
    %2419 = vmatmul.bf16.gmra.mxu0 %v2367
    %v2420 = vpop.f32.mrf.mxu0
    %v2421 = vadd.f32 %v687, %v2420
    %v2422 = vpop.f32.mrf.mxu0
    %v2423 = vadd.f32 %v687, %v2422
    %2424 = vdwg.mxu0
    %v2425 = vpack.c.bf16 %v1916, %v1915
    %v2427 = vsel %vm1724, %v2425, 0
    %2429 = vmatpush.bf16.msra.mxu0 0
    %2430 = vmatpush.bf16.msra.mxu0 0
    %2431 = vmatpush.bf16.msra.mxu0 0
    %2432 = vmatpush.bf16.msra.mxu0 0
    %2433 = vmatpush.bf16.msra.mxu0 0
    %2434 = vmatpush.bf16.msra.mxu0 0
    %2435 = vmatpush.bf16.msra.mxu0 %v1712
    %2436 = vmatpush.bf16.msra.mxu0 %v1708
    %2437 = vmatmul.bf16.gmra.mxu0 %v2427
    %v2438 = vpop.f32.mrf.mxu0
    %v2439 = vadd.f32 0.0, %v2438
    %v2440 = vpop.f32.mrf.mxu0
    %v2441 = vadd.f32 0.0, %v2440
    %2442 = vdwg.mxu0
    %2443 = vmatpush.bf16.msra.mxu0 0
    %2444 = vmatpush.bf16.msra.mxu0 0
    %2445 = vmatpush.bf16.msra.mxu0 0
    %2446 = vmatpush.bf16.msra.mxu0 0
    %2447 = vmatpush.bf16.msra.mxu0 0
    %2448 = vmatpush.bf16.msra.mxu0 0
    %2449 = vmatpush.bf16.msra.mxu0 %v1713
    %2450 = vmatpush.bf16.msra.mxu0 %v1709
    %2451 = vmatmul.bf16.gmra.mxu0 %v2427
    %v2452 = vpop.f32.mrf.mxu0
    %v2453 = vadd.f32 0.0, %v2452
    %v2454 = vpop.f32.mrf.mxu0
    %v2455 = vadd.f32 0.0, %v2454
    %2456 = vdwg.mxu0
    %2457 = vmatpush.bf16.msra.mxu0 0
    %2458 = vmatpush.bf16.msra.mxu0 0
    %2459 = vmatpush.bf16.msra.mxu0 0
    %2460 = vmatpush.bf16.msra.mxu0 0
    %2461 = vmatpush.bf16.msra.mxu0 0
    %2462 = vmatpush.bf16.msra.mxu0 0
    %2463 = vmatpush.bf16.msra.mxu0 %v1714
    %2464 = vmatpush.bf16.msra.mxu0 %v1710
    %2465 = vmatmul.bf16.gmra.mxu0 %v2427
    %v2466 = vpop.f32.mrf.mxu0
    %v2467 = vadd.f32 0.0, %v2466
    %v2468 = vpop.f32.mrf.mxu0
    %v2469 = vadd.f32 0.0, %v2468
    %2470 = vdwg.mxu0
    %2471 = vmatpush.bf16.msra.mxu0 0
    %2472 = vmatpush.bf16.msra.mxu0 0
    %2473 = vmatpush.bf16.msra.mxu0 0
    %2474 = vmatpush.bf16.msra.mxu0 0
    %2475 = vmatpush.bf16.msra.mxu0 0
    %2476 = vmatpush.bf16.msra.mxu0 0
    %2477 = vmatpush.bf16.msra.mxu0 %v1715
    %2478 = vmatpush.bf16.msra.mxu0 %v1711
    %2479 = vmatmul.bf16.gmra.mxu0 %v2427
    %v2480 = vpop.f32.mrf.mxu0
    %v2481 = vadd.f32 0.0, %v2480
    %v2482 = vpop.f32.mrf.mxu0
    %v2483 = vadd.f32 0.0, %v2482
    %2484 = vdwg.mxu0
    %v2485 = vadd.f32 %v2379, %v2439
    %v2486 = vadd.f32 %v2393, %v2453
    %v2487 = vadd.f32 %v2407, %v2467
    %v2488 = vadd.f32 %v2421, %v2481
    %v2489 = vadd.f32 %v2381, %v2441
    %v2490 = vadd.f32 %v2395, %v2455
    %v2491 = vadd.f32 %v2409, %v2469
    %v2492 = vadd.f32 %v2423, %v2483
    %v2493 = vxor.u32 %v2485, 2147483648
    %v2494 = vxor.u32 %v2486, 2147483648
    %v2495 = vxor.u32 %v2487, 2147483648
    %v2496 = vxor.u32 %v2489, 2147483648
    %v2497 = vxor.u32 %v2490, 2147483648
    %v2498 = vxor.u32 %v2491, 2147483648
    %v2499 = vmul.f32 %v2493, 1.442695
    %v2500 = vpow.pop %v2499
    %v2501 = vmul.f32 %v2494, 1.442695
    %v2502 = vpow.pop %v2501
    %v2503 = vmul.f32 %v2495, 1.442695
    %v2504 = vpow.pop %v2503
    %v2505 = vmul.f32 %v2496, 1.442695
    %v2506 = vpow.pop %v2505
    %v2507 = vmul.f32 %v2497, 1.442695
    %v2508 = vpow.pop %v2507
    %v2509 = vmul.f32 %v2498, 1.442695
    %v2510 = vpow.pop %v2509
    %v2511 = vadd.f32 %v2500, 1.0
    %v2512 = vadd.f32 %v2502, 1.0
    %v2513 = vadd.f32 %v2504, 1.0
    %v2514 = vadd.f32 %v2506, 1.0
    %v2515 = vadd.f32 %v2508, 1.0
    %v2516 = vadd.f32 %v2510, 1.0
    %v2517 = vrcp.pop %v2511
    %v2518 = vmul.f32 %v2511, %v2517
    %v2519 = vsub.f32 1.0, %v2518
    %v2520 = vmul.f32 %v2517, %v2519
    %v2521 = vadd.f32 %v2517, %v2520
    %vm2522 = vweird.f32 %v2511
    %vm2523 = vweird.f32 %v2517
    %vm2524 = vmor %vm2522, %vm2523
    %v2525 = vsel %vm2524, %v2517, %v2521
    %v2526 = vand.u32 2147483647, %v2511
    %vm2527 = vcmp.eq.f32.partialorder %v2526, 8.507059e+37
    %v2528 = vand.u32 %v2511, 2147483648
    %v2529 = vor.u32 1.1754944e-38, %v2528
    %v2530 = vsel %vm2527, %v2529, %v2525
    %v2531 = vmul.f32 1.0, %v2530
    %v2532 = vrcp.pop %v2512
    %v2533 = vmul.f32 %v2512, %v2532
    %v2534 = vsub.f32 1.0, %v2533
    %v2535 = vmul.f32 %v2532, %v2534
    %v2536 = vadd.f32 %v2532, %v2535
    %vm2537 = vweird.f32 %v2512
    %vm2538 = vweird.f32 %v2532
    %vm2539 = vmor %vm2537, %vm2538
    %v2540 = vsel %vm2539, %v2532, %v2536
    %v2541 = vand.u32 2147483647, %v2512
    %vm2542 = vcmp.eq.f32.partialorder %v2541, 8.507059e+37
    %v2543 = vand.u32 %v2512, 2147483648
    %v2544 = vor.u32 1.1754944e-38, %v2543
    %v2545 = vsel %vm2542, %v2544, %v2540
    %v2546 = vmul.f32 1.0, %v2545
    %v2547 = vrcp.pop %v2513
    %v2548 = vmul.f32 %v2513, %v2547
    %v2549 = vsub.f32 1.0, %v2548
    %v2550 = vmul.f32 %v2547, %v2549
    %v2551 = vadd.f32 %v2547, %v2550
    %vm2552 = vweird.f32 %v2513
    %vm2553 = vweird.f32 %v2547
    %vm2554 = vmor %vm2552, %vm2553
    %v2555 = vsel %vm2554, %v2547, %v2551
    %v2556 = vand.u32 2147483647, %v2513
    %vm2557 = vcmp.eq.f32.partialorder %v2556, 8.507059e+37
    %v2558 = vand.u32 %v2513, 2147483648
    %v2559 = vor.u32 1.1754944e-38, %v2558
    %v2560 = vsel %vm2557, %v2559, %v2555
    %v2561 = vmul.f32 1.0, %v2560
    %v2562 = vrcp.pop %v2514
    %v2563 = vmul.f32 %v2514, %v2562
    %v2564 = vsub.f32 1.0, %v2563
    %v2565 = vmul.f32 %v2562, %v2564
    %v2566 = vadd.f32 %v2562, %v2565
    %vm2567 = vweird.f32 %v2514
    %vm2568 = vweird.f32 %v2562
    %vm2569 = vmor %vm2567, %vm2568
    %v2570 = vsel %vm2569, %v2562, %v2566
    %v2571 = vand.u32 2147483647, %v2514
    %vm2572 = vcmp.eq.f32.partialorder %v2571, 8.507059e+37
    %v2573 = vand.u32 %v2514, 2147483648
    %v2574 = vor.u32 1.1754944e-38, %v2573
    %v2575 = vsel %vm2572, %v2574, %v2570
    %v2576 = vmul.f32 1.0, %v2575
    %v2577 = vrcp.pop %v2515
    %v2578 = vmul.f32 %v2515, %v2577
    %v2579 = vsub.f32 1.0, %v2578
    %v2580 = vmul.f32 %v2577, %v2579
    %v2581 = vadd.f32 %v2577, %v2580
    %vm2582 = vweird.f32 %v2515
    %vm2583 = vweird.f32 %v2577
    %vm2584 = vmor %vm2582, %vm2583
    %v2585 = vsel %vm2584, %v2577, %v2581
    %v2586 = vand.u32 2147483647, %v2515
    %vm2587 = vcmp.eq.f32.partialorder %v2586, 8.507059e+37
    %v2588 = vand.u32 %v2515, 2147483648
    %v2589 = vor.u32 1.1754944e-38, %v2588
    %v2590 = vsel %vm2587, %v2589, %v2585
    %v2591 = vmul.f32 1.0, %v2590
    %v2592 = vrcp.pop %v2516
    %v2593 = vmul.f32 %v2516, %v2592
    %v2594 = vsub.f32 1.0, %v2593
    %v2595 = vmul.f32 %v2592, %v2594
    %v2596 = vadd.f32 %v2592, %v2595
    %vm2597 = vweird.f32 %v2516
    %vm2598 = vweird.f32 %v2592
    %vm2599 = vmor %vm2597, %vm2598
    %v2600 = vsel %vm2599, %v2592, %v2596
    %v2601 = vand.u32 2147483647, %v2516
    %vm2602 = vcmp.eq.f32.partialorder %v2601, 8.507059e+37
    %v2603 = vand.u32 %v2516, 2147483648
    %v2604 = vor.u32 1.1754944e-38, %v2603
    %v2605 = vsel %vm2602, %v2604, %v2600
    %v2606 = vmul.f32 1.0, %v2605
    %v2607 = vtanh.pop %v2488
    %v2608 = vtanh.pop %v2492
    %v2609 = vmul.f32 %v2546, %v1911
    %v2610 = vmul.f32 %v2591, %v1912
    %v2611 = vmul.f32 %v2531, %v2607
    %v2612 = vmul.f32 %v2576, %v2608
    %v2613 = vadd.f32 %v2609, %v2611
    %v2614 = vadd.f32 %v2610, %v2612
    %v2615 = vtanh.pop %v2613
    %v2616 = vtanh.pop %v2614
    %v2617 = vmul.f32 %v2561, %v2615
    %v2618 = vmul.f32 %v2606, %v2616
    %s2619 = smul.u32 4, 4
    %s2620 = smul.addr %s2619, 8
    %s2621 = scalar_lea.vmem [#allocation2], %s2620
    %v2622 = vld [vmem:[%s2621] sm:$0xff]
    %v2623 = vld [vmem:[%s2621 + $0x8] sm:$0xff]
    %v2624 = vld [vmem:[%s2621 + $0x10] sm:$0xff]
    %v2625 = vld [vmem:[%s2621 + $0x18] sm:$0xff]
    %v2626 = vld [vmem:[%s2621 + $0x20] sm:$0xff]
    %v2627 = vld [vmem:[%s2621 + $0x28] sm:$0xff]
    %v2628 = vld [vmem:[%s2621 + $0x30] sm:$0xff]
    %v2629 = vld [vmem:[%s2621 + $0x38] sm:$0xff]
    %2630 = vmatpush.bf16.msra.mxu0 %v827
    %2631 = vmatpush.bf16.msra.mxu0 %v823
    %2632 = vmatpush.bf16.msra.mxu0 %v819
    %2633 = vmatpush.bf16.msra.mxu0 %v815
    %2634 = vmatpush.bf16.msra.mxu0 %v811
    %2635 = vmatpush.bf16.msra.mxu0 %v807
    %2636 = vmatpush.bf16.msra.mxu0 %v803
    %2637 = vmatpush.bf16.msra.mxu0 %v799
    %2638 = vmatmul.bf16.gmra.mxu0 %v2118
    %v2639 = vpop.f32.mrf.mxu0
    %v2640 = vadd.f32 0.0, %v2639
    %v2641 = vpop.f32.mrf.mxu0
    %v2642 = vadd.f32 0.0, %v2641
    %2643 = vdwg.mxu0
    %2644 = vmatpush.bf16.msra.mxu0 %v828
    %2645 = vmatpush.bf16.msra.mxu0 %v824
    %2646 = vmatpush.bf16.msra.mxu0 %v820
    %2647 = vmatpush.bf16.msra.mxu0 %v816
    %2648 = vmatpush.bf16.msra.mxu0 %v812
    %2649 = vmatpush.bf16.msra.mxu0 %v808
    %2650 = vmatpush.bf16.msra.mxu0 %v804
    %2651 = vmatpush.bf16.msra.mxu0 %v800
    %2652 = vmatmul.bf16.gmra.mxu0 %v2118
    %v2653 = vpop.f32.mrf.mxu0
    %v2654 = vadd.f32 0.0, %v2653
    %v2655 = vpop.f32.mrf.mxu0
    %v2656 = vadd.f32 0.0, %v2655
    %2657 = vdwg.mxu0
    %2658 = vmatpush.bf16.msra.mxu0 %v829
    %2659 = vmatpush.bf16.msra.mxu0 %v825
    %2660 = vmatpush.bf16.msra.mxu0 %v821
    %2661 = vmatpush.bf16.msra.mxu0 %v817
    %2662 = vmatpush.bf16.msra.mxu0 %v813
    %2663 = vmatpush.bf16.msra.mxu0 %v809
    %2664 = vmatpush.bf16.msra.mxu0 %v805
    %2665 = vmatpush.bf16.msra.mxu0 %v801
    %2666 = vmatmul.bf16.gmra.mxu0 %v2118
    %v2667 = vpop.f32.mrf.mxu0
    %v2668 = vadd.f32 0.0, %v2667
    %v2669 = vpop.f32.mrf.mxu0
    %v2670 = vadd.f32 0.0, %v2669
    %2671 = vdwg.mxu0
    %2672 = vmatpush.bf16.msra.mxu0 %v830
    %2673 = vmatpush.bf16.msra.mxu0 %v826
    %2674 = vmatpush.bf16.msra.mxu0 %v822
    %2675 = vmatpush.bf16.msra.mxu0 %v818
    %2676 = vmatpush.bf16.msra.mxu0 %v814
    %2677 = vmatpush.bf16.msra.mxu0 %v810
    %2678 = vmatpush.bf16.msra.mxu0 %v806
    %2679 = vmatpush.bf16.msra.mxu0 %v802
    %2680 = vmatmul.bf16.gmra.mxu0 %v2118
    %v2681 = vpop.f32.mrf.mxu0
    %v2682 = vadd.f32 0.0, %v2681
    %v2683 = vpop.f32.mrf.mxu0
    %v2684 = vadd.f32 0.0, %v2683
    %2685 = vdwg.mxu0
    %v2686 = vadd.f32 %v2622, %v2640
    %v2687 = vadd.f32 %v2623, %v2654
    %v2688 = vadd.f32 %v2624, %v2668
    %v2689 = vadd.f32 %v2625, %v2682
    %v2690 = vadd.f32 %v2626, %v2642
    %v2691 = vadd.f32 %v2627, %v2656
    %v2692 = vadd.f32 %v2628, %v2670
    %v2693 = vadd.f32 %v2629, %v2684
    %v2694 = vxor.u32 %v2686, 2147483648
    %v2695 = vxor.u32 %v2687, 2147483648
    %v2696 = vxor.u32 %v2688, 2147483648
    %v2697 = vxor.u32 %v2690, 2147483648
    %v2698 = vxor.u32 %v2691, 2147483648
    %v2699 = vxor.u32 %v2692, 2147483648
    %v2700 = vmul.f32 %v2694, 1.442695
    %v2701 = vpow.pop %v2700
    %v2702 = vmul.f32 %v2695, 1.442695
    %v2703 = vpow.pop %v2702
    %v2704 = vmul.f32 %v2696, 1.442695
    %v2705 = vpow.pop %v2704
    %v2706 = vmul.f32 %v2697, 1.442695
    %v2707 = vpow.pop %v2706
    %v2708 = vmul.f32 %v2698, 1.442695
    %v2709 = vpow.pop %v2708
    %v2710 = vmul.f32 %v2699, 1.442695
    %v2711 = vpow.pop %v2710
    %v2712 = vadd.f32 %v2701, 1.0
    %v2713 = vadd.f32 %v2703, 1.0
    %v2714 = vadd.f32 %v2705, 1.0
    %v2715 = vadd.f32 %v2707, 1.0
    %v2716 = vadd.f32 %v2709, 1.0
    %v2717 = vadd.f32 %v2711, 1.0
    %v2718 = vrcp.pop %v2712
    %v2719 = vmul.f32 %v2712, %v2718
    %v2720 = vsub.f32 1.0, %v2719
    %v2721 = vmul.f32 %v2718, %v2720
    %v2722 = vadd.f32 %v2718, %v2721
    %vm2723 = vweird.f32 %v2712
    %vm2724 = vweird.f32 %v2718
    %vm2725 = vmor %vm2723, %vm2724
    %v2726 = vsel %vm2725, %v2718, %v2722
    %v2727 = vand.u32 2147483647, %v2712
    %vm2728 = vcmp.eq.f32.partialorder %v2727, 8.507059e+37
    %v2729 = vand.u32 %v2712, 2147483648
    %v2730 = vor.u32 1.1754944e-38, %v2729
    %v2731 = vsel %vm2728, %v2730, %v2726
    %v2732 = vmul.f32 1.0, %v2731
    %v2733 = vrcp.pop %v2713
    %v2734 = vmul.f32 %v2713, %v2733
    %v2735 = vsub.f32 1.0, %v2734
    %v2736 = vmul.f32 %v2733, %v2735
    %v2737 = vadd.f32 %v2733, %v2736
    %vm2738 = vweird.f32 %v2713
    %vm2739 = vweird.f32 %v2733
    %vm2740 = vmor %vm2738, %vm2739
    %v2741 = vsel %vm2740, %v2733, %v2737
    %v2742 = vand.u32 2147483647, %v2713
    %vm2743 = vcmp.eq.f32.partialorder %v2742, 8.507059e+37
    %v2744 = vand.u32 %v2713, 2147483648
    %v2745 = vor.u32 1.1754944e-38, %v2744
    %v2746 = vsel %vm2743, %v2745, %v2741
    %v2747 = vmul.f32 1.0, %v2746
    %v2748 = vrcp.pop %v2714
    %v2749 = vmul.f32 %v2714, %v2748
    %v2750 = vsub.f32 1.0, %v2749
    %v2751 = vmul.f32 %v2748, %v2750
    %v2752 = vadd.f32 %v2748, %v2751
    %vm2753 = vweird.f32 %v2714
    %vm2754 = vweird.f32 %v2748
    %vm2755 = vmor %vm2753, %vm2754
    %v2756 = vsel %vm2755, %v2748, %v2752
    %v2757 = vand.u32 2147483647, %v2714
    %vm2758 = vcmp.eq.f32.partialorder %v2757, 8.507059e+37
    %v2759 = vand.u32 %v2714, 2147483648
    %v2760 = vor.u32 1.1754944e-38, %v2759
    %v2761 = vsel %vm2758, %v2760, %v2756
    %v2762 = vmul.f32 1.0, %v2761
    %v2763 = vrcp.pop %v2715
    %v2764 = vmul.f32 %v2715, %v2763
    %v2765 = vsub.f32 1.0, %v2764
    %v2766 = vmul.f32 %v2763, %v2765
    %v2767 = vadd.f32 %v2763, %v2766
    %vm2768 = vweird.f32 %v2715
    %vm2769 = vweird.f32 %v2763
    %vm2770 = vmor %vm2768, %vm2769
    %v2771 = vsel %vm2770, %v2763, %v2767
    %v2772 = vand.u32 2147483647, %v2715
    %vm2773 = vcmp.eq.f32.partialorder %v2772, 8.507059e+37
    %v2774 = vand.u32 %v2715, 2147483648
    %v2775 = vor.u32 1.1754944e-38, %v2774
    %v2776 = vsel %vm2773, %v2775, %v2771
    %v2777 = vmul.f32 1.0, %v2776
    %v2778 = vrcp.pop %v2716
    %v2779 = vmul.f32 %v2716, %v2778
    %v2780 = vsub.f32 1.0, %v2779
    %v2781 = vmul.f32 %v2778, %v2780
    %v2782 = vadd.f32 %v2778, %v2781
    %vm2783 = vweird.f32 %v2716
    %vm2784 = vweird.f32 %v2778
    %vm2785 = vmor %vm2783, %vm2784
    %v2786 = vsel %vm2785, %v2778, %v2782
    %v2787 = vand.u32 2147483647, %v2716
    %vm2788 = vcmp.eq.f32.partialorder %v2787, 8.507059e+37
    %v2789 = vand.u32 %v2716, 2147483648
    %v2790 = vor.u32 1.1754944e-38, %v2789
    %v2791 = vsel %vm2788, %v2790, %v2786
    %v2792 = vmul.f32 1.0, %v2791
    %v2793 = vrcp.pop %v2717
    %v2794 = vmul.f32 %v2717, %v2793
    %v2795 = vsub.f32 1.0, %v2794
    %v2796 = vmul.f32 %v2793, %v2795
    %v2797 = vadd.f32 %v2793, %v2796
    %vm2798 = vweird.f32 %v2717
    %vm2799 = vweird.f32 %v2793
    %vm2800 = vmor %vm2798, %vm2799
    %v2801 = vsel %vm2800, %v2793, %v2797
    %v2802 = vand.u32 2147483647, %v2717
    %vm2803 = vcmp.eq.f32.partialorder %v2802, 8.507059e+37
    %v2804 = vand.u32 %v2717, 2147483648
    %v2805 = vor.u32 1.1754944e-38, %v2804
    %v2806 = vsel %vm2803, %v2805, %v2801
    %v2807 = vmul.f32 1.0, %v2806
    %v2808 = vtanh.pop %v2689
    %v2809 = vtanh.pop %v2693
    %v2810 = vmul.f32 %v2747, %v2112
    %v2811 = vmul.f32 %v2792, %v2113
    %v2812 = vmul.f32 %v2732, %v2808
    %v2813 = vmul.f32 %v2777, %v2809
    %v2814 = vadd.f32 %v2810, %v2812
    %v2815 = vadd.f32 %v2811, %v2813
    %v2816 = vtanh.pop %v2814
    %v2817 = vtanh.pop %v2815
    %v2818 = vmul.f32 %v2762, %v2816
    %v2819 = vmul.f32 %v2807, %v2817
    %v2820 = vpack.c.bf16 %v2819, %v2818
    %2821 = vmatpush.bf16.msra.mxu0 %v1178
    %2822 = vmatpush.bf16.msra.mxu0 %v1174
    %2823 = vmatpush.bf16.msra.mxu0 %v1170
    %2824 = vmatpush.bf16.msra.mxu0 %v1166
    %2825 = vmatpush.bf16.msra.mxu0 %v1162
    %2826 = vmatpush.bf16.msra.mxu0 %v1158
    %2827 = vmatpush.bf16.msra.mxu0 %v1154
    %2828 = vmatpush.bf16.msra.mxu0 %v1150
    %2829 = vmatmul.bf16.gmra.mxu0 %v2820
    %v2830 = vpop.f32.mrf.mxu0
    %v2831 = vadd.f32 %v674, %v2830
    %v2832 = vpop.f32.mrf.mxu0
    %v2833 = vadd.f32 %v674, %v2832
    %2834 = vdwg.mxu0
    %2835 = vmatpush.bf16.msra.mxu0 %v1179
    %2836 = vmatpush.bf16.msra.mxu0 %v1175
    %2837 = vmatpush.bf16.msra.mxu0 %v1171
    %2838 = vmatpush.bf16.msra.mxu0 %v1167
    %2839 = vmatpush.bf16.msra.mxu0 %v1163
    %2840 = vmatpush.bf16.msra.mxu0 %v1159
    %2841 = vmatpush.bf16.msra.mxu0 %v1155
    %2842 = vmatpush.bf16.msra.mxu0 %v1151
    %2843 = vmatmul.bf16.gmra.mxu0 %v2820
    %v2844 = vpop.f32.mrf.mxu0
    %v2845 = vadd.f32 %v675, %v2844
    %v2846 = vpop.f32.mrf.mxu0
    %v2847 = vadd.f32 %v675, %v2846
    %2848 = vdwg.mxu0
    %2849 = vmatpush.bf16.msra.mxu0 %v1180
    %2850 = vmatpush.bf16.msra.mxu0 %v1176
    %2851 = vmatpush.bf16.msra.mxu0 %v1172
    %2852 = vmatpush.bf16.msra.mxu0 %v1168
    %2853 = vmatpush.bf16.msra.mxu0 %v1164
    %2854 = vmatpush.bf16.msra.mxu0 %v1160
    %2855 = vmatpush.bf16.msra.mxu0 %v1156
    %2856 = vmatpush.bf16.msra.mxu0 %v1152
    %2857 = vmatmul.bf16.gmra.mxu0 %v2820
    %v2858 = vpop.f32.mrf.mxu0
    %v2859 = vadd.f32 %v676, %v2858
    %v2860 = vpop.f32.mrf.mxu0
    %v2861 = vadd.f32 %v676, %v2860
    %2862 = vdwg.mxu0
    %2863 = vmatpush.bf16.msra.mxu0 %v1181
    %2864 = vmatpush.bf16.msra.mxu0 %v1177
    %2865 = vmatpush.bf16.msra.mxu0 %v1173
    %2866 = vmatpush.bf16.msra.mxu0 %v1169
    %2867 = vmatpush.bf16.msra.mxu0 %v1165
    %2868 = vmatpush.bf16.msra.mxu0 %v1161
    %2869 = vmatpush.bf16.msra.mxu0 %v1157
    %2870 = vmatpush.bf16.msra.mxu0 %v1153
    %2871 = vmatmul.bf16.gmra.mxu0 %v2820
    %v2872 = vpop.f32.mrf.mxu0
    %v2873 = vadd.f32 %v677, %v2872
    %v2874 = vpop.f32.mrf.mxu0
    %v2875 = vadd.f32 %v677, %v2874
    %2876 = vdwg.mxu0
    %2877 = vmatpush.bf16.msra.mxu0 0
    %2878 = vmatpush.bf16.msra.mxu0 0
    %2879 = vmatpush.bf16.msra.mxu0 0
    %2880 = vmatpush.bf16.msra.mxu0 0
    %2881 = vmatpush.bf16.msra.mxu0 %v1330
    %2882 = vmatpush.bf16.msra.mxu0 %v1326
    %2883 = vmatpush.bf16.msra.mxu0 %v1322
    %2884 = vmatpush.bf16.msra.mxu0 %v1318
    %2885 = vmatmul.bf16.gmra.mxu0 %v2367
    %v2886 = vpop.f32.mrf.mxu0
    %v2887 = vadd.f32 0.0, %v2886
    %v2888 = vpop.f32.mrf.mxu0
    %v2889 = vadd.f32 0.0, %v2888
    %2890 = vdwg.mxu0
    %2891 = vmatpush.bf16.msra.mxu0 0
    %2892 = vmatpush.bf16.msra.mxu0 0
    %2893 = vmatpush.bf16.msra.mxu0 0
    %2894 = vmatpush.bf16.msra.mxu0 0
    %2895 = vmatpush.bf16.msra.mxu0 %v1331
    %2896 = vmatpush.bf16.msra.mxu0 %v1327
    %2897 = vmatpush.bf16.msra.mxu0 %v1323
    %2898 = vmatpush.bf16.msra.mxu0 %v1319
    %2899 = vmatmul.bf16.gmra.mxu0 %v2367
    %v2900 = vpop.f32.mrf.mxu0
    %v2901 = vadd.f32 0.0, %v2900
    %v2902 = vpop.f32.mrf.mxu0
    %v2903 = vadd.f32 0.0, %v2902
    %2904 = vdwg.mxu0
    %2905 = vmatpush.bf16.msra.mxu0 0
    %2906 = vmatpush.bf16.msra.mxu0 0
    %2907 = vmatpush.bf16.msra.mxu0 0
    %2908 = vmatpush.bf16.msra.mxu0 0
    %2909 = vmatpush.bf16.msra.mxu0 %v1332
    %2910 = vmatpush.bf16.msra.mxu0 %v1328
    %2911 = vmatpush.bf16.msra.mxu0 %v1324
    %2912 = vmatpush.bf16.msra.mxu0 %v1320
    %2913 = vmatmul.bf16.gmra.mxu0 %v2367
    %v2914 = vpop.f32.mrf.mxu0
    %v2915 = vadd.f32 0.0, %v2914
    %v2916 = vpop.f32.mrf.mxu0
    %v2917 = vadd.f32 0.0, %v2916
    %2918 = vdwg.mxu0
    %2919 = vmatpush.bf16.msra.mxu0 0
    %2920 = vmatpush.bf16.msra.mxu0 0
    %2921 = vmatpush.bf16.msra.mxu0 0
    %2922 = vmatpush.bf16.msra.mxu0 0
    %2923 = vmatpush.bf16.msra.mxu0 %v1333
    %2924 = vmatpush.bf16.msra.mxu0 %v1329
    %2925 = vmatpush.bf16.msra.mxu0 %v1325
    %2926 = vmatpush.bf16.msra.mxu0 %v1321
    %2927 = vmatmul.bf16.gmra.mxu0 %v2367
    %v2928 = vpop.f32.mrf.mxu0
    %v2929 = vadd.f32 0.0, %v2928
    %v2930 = vpop.f32.mrf.mxu0
    %v2931 = vadd.f32 0.0, %v2930
    %2932 = vdwg.mxu0
    %v2933 = vadd.f32 %v2831, %v2887
    %v2934 = vadd.f32 %v2845, %v2901
    %v2935 = vadd.f32 %v2859, %v2915
    %v2936 = vadd.f32 %v2873, %v2929
    %v2937 = vadd.f32 %v2833, %v2889
    %v2938 = vadd.f32 %v2847, %v2903
    %v2939 = vadd.f32 %v2861, %v2917
    %v2940 = vadd.f32 %v2875, %v2931
    %v2941 = vxor.u32 %v2933, 2147483648
    %v2942 = vxor.u32 %v2934, 2147483648
    %v2943 = vxor.u32 %v2935, 2147483648
    %v2944 = vxor.u32 %v2937, 2147483648
    %v2945 = vxor.u32 %v2938, 2147483648
    %v2946 = vxor.u32 %v2939, 2147483648
    %v2947 = vmul.f32 %v2941, 1.442695
    %v2948 = vpow.pop %v2947
    %v2949 = vmul.f32 %v2942, 1.442695
    %v2950 = vpow.pop %v2949
    %v2951 = vmul.f32 %v2943, 1.442695
    %v2952 = vpow.pop %v2951
    %v2953 = vmul.f32 %v2944, 1.442695
    %v2954 = vpow.pop %v2953
    %v2955 = vmul.f32 %v2945, 1.442695
    %v2956 = vpow.pop %v2955
    %v2957 = vmul.f32 %v2946, 1.442695
    %v2958 = vpow.pop %v2957
    %v2959 = vadd.f32 %v2948, 1.0
    %v2960 = vadd.f32 %v2950, 1.0
    %v2961 = vadd.f32 %v2952, 1.0
    %v2962 = vadd.f32 %v2954, 1.0
    %v2963 = vadd.f32 %v2956, 1.0
    %v2964 = vadd.f32 %v2958, 1.0
    %v2965 = vrcp.pop %v2959
    %v2966 = vmul.f32 %v2959, %v2965
    %v2967 = vsub.f32 1.0, %v2966
    %v2968 = vmul.f32 %v2965, %v2967
    %v2969 = vadd.f32 %v2965, %v2968
    %vm2970 = vweird.f32 %v2959
    %vm2971 = vweird.f32 %v2965
    %vm2972 = vmor %vm2970, %vm2971
    %v2973 = vsel %vm2972, %v2965, %v2969
    %v2974 = vand.u32 2147483647, %v2959
    %vm2975 = vcmp.eq.f32.partialorder %v2974, 8.507059e+37
    %v2976 = vand.u32 %v2959, 2147483648
    %v2977 = vor.u32 1.1754944e-38, %v2976
    %v2978 = vsel %vm2975, %v2977, %v2973
    %v2979 = vmul.f32 1.0, %v2978
    %v2980 = vrcp.pop %v2960
    %v2981 = vmul.f32 %v2960, %v2980
    %v2982 = vsub.f32 1.0, %v2981
    %v2983 = vmul.f32 %v2980, %v2982
    %v2984 = vadd.f32 %v2980, %v2983
    %vm2985 = vweird.f32 %v2960
    %vm2986 = vweird.f32 %v2980
    %vm2987 = vmor %vm2985, %vm2986
    %v2988 = vsel %vm2987, %v2980, %v2984
    %v2989 = vand.u32 2147483647, %v2960
    %vm2990 = vcmp.eq.f32.partialorder %v2989, 8.507059e+37
    %v2991 = vand.u32 %v2960, 2147483648
    %v2992 = vor.u32 1.1754944e-38, %v2991
    %v2993 = vsel %vm2990, %v2992, %v2988
    %v2994 = vmul.f32 1.0, %v2993
    %v2995 = vrcp.pop %v2961
    %v2996 = vmul.f32 %v2961, %v2995
    %v2997 = vsub.f32 1.0, %v2996
    %v2998 = vmul.f32 %v2995, %v2997
    %v2999 = vadd.f32 %v2995, %v2998
    %vm3000 = vweird.f32 %v2961
    %vm3001 = vweird.f32 %v2995
    %vm3002 = vmor %vm3000, %vm3001
    %v3003 = vsel %vm3002, %v2995, %v2999
    %v3004 = vand.u32 2147483647, %v2961
    %vm3005 = vcmp.eq.f32.partialorder %v3004, 8.507059e+37
    %v3006 = vand.u32 %v2961, 2147483648
    %v3007 = vor.u32 1.1754944e-38, %v3006
    %v3008 = vsel %vm3005, %v3007, %v3003
    %v3009 = vmul.f32 1.0, %v3008
    %v3010 = vrcp.pop %v2962
    %v3011 = vmul.f32 %v2962, %v3010
    %v3012 = vsub.f32 1.0, %v3011
    %v3013 = vmul.f32 %v3010, %v3012
    %v3014 = vadd.f32 %v3010, %v3013
    %vm3015 = vweird.f32 %v2962
    %vm3016 = vweird.f32 %v3010
    %vm3017 = vmor %vm3015, %vm3016
    %v3018 = vsel %vm3017, %v3010, %v3014
    %v3019 = vand.u32 2147483647, %v2962
    %vm3020 = vcmp.eq.f32.partialorder %v3019, 8.507059e+37
    %v3021 = vand.u32 %v2962, 2147483648
    %v3022 = vor.u32 1.1754944e-38, %v3021
    %v3023 = vsel %vm3020, %v3022, %v3018
    %v3024 = vmul.f32 1.0, %v3023
    %v3025 = vrcp.pop %v2963
    %v3026 = vmul.f32 %v2963, %v3025
    %v3027 = vsub.f32 1.0, %v3026
    %v3028 = vmul.f32 %v3025, %v3027
    %v3029 = vadd.f32 %v3025, %v3028
    %vm3030 = vweird.f32 %v2963
    %vm3031 = vweird.f32 %v3025
    %vm3032 = vmor %vm3030, %vm3031
    %v3033 = vsel %vm3032, %v3025, %v3029
    %v3034 = vand.u32 2147483647, %v2963
    %vm3035 = vcmp.eq.f32.partialorder %v3034, 8.507059e+37
    %v3036 = vand.u32 %v2963, 2147483648
    %v3037 = vor.u32 1.1754944e-38, %v3036
    %v3038 = vsel %vm3035, %v3037, %v3033
    %v3039 = vmul.f32 1.0, %v3038
    %v3040 = vrcp.pop %v2964
    %v3041 = vmul.f32 %v2964, %v3040
    %v3042 = vsub.f32 1.0, %v3041
    %v3043 = vmul.f32 %v3040, %v3042
    %v3044 = vadd.f32 %v3040, %v3043
    %vm3045 = vweird.f32 %v2964
    %vm3046 = vweird.f32 %v3040
    %vm3047 = vmor %vm3045, %vm3046
    %v3048 = vsel %vm3047, %v3040, %v3044
    %v3049 = vand.u32 2147483647, %v2964
    %vm3050 = vcmp.eq.f32.partialorder %v3049, 8.507059e+37
    %v3051 = vand.u32 %v2964, 2147483648
    %v3052 = vor.u32 1.1754944e-38, %v3051
    %v3053 = vsel %vm3050, %v3052, %v3048
    %v3054 = vmul.f32 1.0, %v3053
    %v3055 = vtanh.pop %v2936
    %v3056 = vtanh.pop %v2940
    %v3057 = vmul.f32 %v2994, %v2359
    %v3058 = vmul.f32 %v3039, %v2360
    %v3059 = vmul.f32 %v2979, %v3055
    %v3060 = vmul.f32 %v3024, %v3056
    %v3061 = vadd.f32 %v3057, %v3059
    %v3062 = vadd.f32 %v3058, %v3060
    %v3063 = vtanh.pop %v3061
    %v3064 = vtanh.pop %v3062
    %v3065 = vmul.f32 %v3009, %v3063
    %v3066 = vmul.f32 %v3054, %v3064
    %v3067 = vpack.c.bf16 %v3066, %v3065
    %v3069 = vsel %vm1350, %v3067, 0
    %3071 = vmatpush.bf16.msra.mxu0 0
    %3072 = vmatpush.bf16.msra.mxu0 0
    %3073 = vmatpush.bf16.msra.mxu0 0
    %3074 = vmatpush.bf16.msra.mxu0 0
    %3075 = vmatpush.bf16.msra.mxu0 %v1605
    %3076 = vmatpush.bf16.msra.mxu0 %v1601
    %3077 = vmatpush.bf16.msra.mxu0 %v1597
    %3078 = vmatpush.bf16.msra.mxu0 %v1593
    %3079 = vmatmul.bf16.gmra.mxu0 %v3069
    %v3080 = vpop.f32.mrf.mxu0
    %v3081 = vadd.f32 %v684, %v3080
    %v3082 = vpop.f32.mrf.mxu0
    %v3083 = vadd.f32 %v684, %v3082
    %3084 = vdwg.mxu0
    %3085 = vmatpush.bf16.msra.mxu0 0
    %3086 = vmatpush.bf16.msra.mxu0 0
    %3087 = vmatpush.bf16.msra.mxu0 0
    %3088 = vmatpush.bf16.msra.mxu0 0
    %3089 = vmatpush.bf16.msra.mxu0 %v1606
    %3090 = vmatpush.bf16.msra.mxu0 %v1602
    %3091 = vmatpush.bf16.msra.mxu0 %v1598
    %3092 = vmatpush.bf16.msra.mxu0 %v1594
    %3093 = vmatmul.bf16.gmra.mxu0 %v3069
    %v3094 = vpop.f32.mrf.mxu0
    %v3095 = vadd.f32 %v685, %v3094
    %v3096 = vpop.f32.mrf.mxu0
    %v3097 = vadd.f32 %v685, %v3096
    %3098 = vdwg.mxu0
    %3099 = vmatpush.bf16.msra.mxu0 0
    %3100 = vmatpush.bf16.msra.mxu0 0
    %3101 = vmatpush.bf16.msra.mxu0 0
    %3102 = vmatpush.bf16.msra.mxu0 0
    %3103 = vmatpush.bf16.msra.mxu0 %v1607
    %3104 = vmatpush.bf16.msra.mxu0 %v1603
    %3105 = vmatpush.bf16.msra.mxu0 %v1599
    %3106 = vmatpush.bf16.msra.mxu0 %v1595
    %3107 = vmatmul.bf16.gmra.mxu0 %v3069
    %v3108 = vpop.f32.mrf.mxu0
    %v3109 = vadd.f32 %v686, %v3108
    %v3110 = vpop.f32.mrf.mxu0
    %v3111 = vadd.f32 %v686, %v3110
    %3112 = vdwg.mxu0
    %3113 = vmatpush.bf16.msra.mxu0 0
    %3114 = vmatpush.bf16.msra.mxu0 0
    %3115 = vmatpush.bf16.msra.mxu0 0
    %3116 = vmatpush.bf16.msra.mxu0 0
    %3117 = vmatpush.bf16.msra.mxu0 %v1608
    %3118 = vmatpush.bf16.msra.mxu0 %v1604
    %3119 = vmatpush.bf16.msra.mxu0 %v1600
    %3120 = vmatpush.bf16.msra.mxu0 %v1596
    %3121 = vmatmul.bf16.gmra.mxu0 %v3069
    %v3122 = vpop.f32.mrf.mxu0
    %v3123 = vadd.f32 %v687, %v3122
    %v3124 = vpop.f32.mrf.mxu0
    %v3125 = vadd.f32 %v687, %v3124
    %3126 = vdwg.mxu0
    %v3127 = vpack.c.bf16 %v2618, %v2617
    %v3129 = vsel %vm1724, %v3127, 0
    %3131 = vmatpush.bf16.msra.mxu0 0
    %3132 = vmatpush.bf16.msra.mxu0 0
    %3133 = vmatpush.bf16.msra.mxu0 0
    %3134 = vmatpush.bf16.msra.mxu0 0
    %3135 = vmatpush.bf16.msra.mxu0 0
    %3136 = vmatpush.bf16.msra.mxu0 0
    %3137 = vmatpush.bf16.msra.mxu0 %v1712
    %3138 = vmatpush.bf16.msra.mxu0 %v1708
    %3139 = vmatmul.bf16.gmra.mxu0 %v3129
    %v3140 = vpop.f32.mrf.mxu0
    %v3141 = vadd.f32 0.0, %v3140
    %v3142 = vpop.f32.mrf.mxu0
    %v3143 = vadd.f32 0.0, %v3142
    %3144 = vdwg.mxu0
    %3145 = vmatpush.bf16.msra.mxu0 0
    %3146 = vmatpush.bf16.msra.mxu0 0
    %3147 = vmatpush.bf16.msra.mxu0 0
    %3148 = vmatpush.bf16.msra.mxu0 0
    %3149 = vmatpush.bf16.msra.mxu0 0
    %3150 = vmatpush.bf16.msra.mxu0 0
    %3151 = vmatpush.bf16.msra.mxu0 %v1713
    %3152 = vmatpush.bf16.msra.mxu0 %v1709
    %3153 = vmatmul.bf16.gmra.mxu0 %v3129
    %v3154 = vpop.f32.mrf.mxu0
    %v3155 = vadd.f32 0.0, %v3154
    %v3156 = vpop.f32.mrf.mxu0
    %v3157 = vadd.f32 0.0, %v3156
    %3158 = vdwg.mxu0
    %3159 = vmatpush.bf16.msra.mxu0 0
    %3160 = vmatpush.bf16.msra.mxu0 0
    %3161 = vmatpush.bf16.msra.mxu0 0
    %3162 = vmatpush.bf16.msra.mxu0 0
    %3163 = vmatpush.bf16.msra.mxu0 0
    %3164 = vmatpush.bf16.msra.mxu0 0
    %3165 = vmatpush.bf16.msra.mxu0 %v1714
    %3166 = vmatpush.bf16.msra.mxu0 %v1710
    %3167 = vmatmul.bf16.gmra.mxu0 %v3129
    %v3168 = vpop.f32.mrf.mxu0
    %v3169 = vadd.f32 0.0, %v3168
    %v3170 = vpop.f32.mrf.mxu0
    %v3171 = vadd.f32 0.0, %v3170
    %3172 = vdwg.mxu0
    %3173 = vmatpush.bf16.msra.mxu0 0
    %3174 = vmatpush.bf16.msra.mxu0 0
    %3175 = vmatpush.bf16.msra.mxu0 0
    %3176 = vmatpush.bf16.msra.mxu0 0
    %3177 = vmatpush.bf16.msra.mxu0 0
    %3178 = vmatpush.bf16.msra.mxu0 0
    %3179 = vmatpush.bf16.msra.mxu0 %v1715
    %3180 = vmatpush.bf16.msra.mxu0 %v1711
    %3181 = vmatmul.bf16.gmra.mxu0 %v3129
    %v3182 = vpop.f32.mrf.mxu0
    %v3183 = vadd.f32 0.0, %v3182
    %v3184 = vpop.f32.mrf.mxu0
    %v3185 = vadd.f32 0.0, %v3184
    %3186 = vdwg.mxu0
    %v3187 = vadd.f32 %v3081, %v3141
    %v3188 = vadd.f32 %v3095, %v3155
    %v3189 = vadd.f32 %v3109, %v3169
    %v3190 = vadd.f32 %v3123, %v3183
    %v3191 = vadd.f32 %v3083, %v3143
    %v3192 = vadd.f32 %v3097, %v3157
    %v3193 = vadd.f32 %v3111, %v3171
    %v3194 = vadd.f32 %v3125, %v3185
    %v3195 = vxor.u32 %v3187, 2147483648
    %v3196 = vxor.u32 %v3188, 2147483648
    %v3197 = vxor.u32 %v3189, 2147483648
    %v3198 = vxor.u32 %v3191, 2147483648
    %v3199 = vxor.u32 %v3192, 2147483648
    %v3200 = vxor.u32 %v3193, 2147483648
    %v3201 = vmul.f32 %v3195, 1.442695
    %v3202 = vpow.pop %v3201
    %v3203 = vmul.f32 %v3196, 1.442695
    %v3204 = vpow.pop %v3203
    %v3205 = vmul.f32 %v3197, 1.442695
    %v3206 = vpow.pop %v3205
    %v3207 = vmul.f32 %v3198, 1.442695
    %v3208 = vpow.pop %v3207
    %v3209 = vmul.f32 %v3199, 1.442695
    %v3210 = vpow.pop %v3209
    %v3211 = vmul.f32 %v3200, 1.442695
    %v3212 = vpow.pop %v3211
    %v3213 = vadd.f32 %v3202, 1.0
    %v3214 = vadd.f32 %v3204, 1.0
    %v3215 = vadd.f32 %v3206, 1.0
    %v3216 = vadd.f32 %v3208, 1.0
    %v3217 = vadd.f32 %v3210, 1.0
    %v3218 = vadd.f32 %v3212, 1.0
    %v3219 = vrcp.pop %v3213
    %v3220 = vmul.f32 %v3213, %v3219
    %v3221 = vsub.f32 1.0, %v3220
    %v3222 = vmul.f32 %v3219, %v3221
    %v3223 = vadd.f32 %v3219, %v3222
    %vm3224 = vweird.f32 %v3213
    %vm3225 = vweird.f32 %v3219
    %vm3226 = vmor %vm3224, %vm3225
    %v3227 = vsel %vm3226, %v3219, %v3223
    %v3228 = vand.u32 2147483647, %v3213
    %vm3229 = vcmp.eq.f32.partialorder %v3228, 8.507059e+37
    %v3230 = vand.u32 %v3213, 2147483648
    %v3231 = vor.u32 1.1754944e-38, %v3230
    %v3232 = vsel %vm3229, %v3231, %v3227
    %v3233 = vmul.f32 1.0, %v3232
    %v3234 = vrcp.pop %v3214
    %v3235 = vmul.f32 %v3214, %v3234
    %v3236 = vsub.f32 1.0, %v3235
    %v3237 = vmul.f32 %v3234, %v3236
    %v3238 = vadd.f32 %v3234, %v3237
    %vm3239 = vweird.f32 %v3214
    %vm3240 = vweird.f32 %v3234
    %vm3241 = vmor %vm3239, %vm3240
    %v3242 = vsel %vm3241, %v3234, %v3238
    %v3243 = vand.u32 2147483647, %v3214
    %vm3244 = vcmp.eq.f32.partialorder %v3243, 8.507059e+37
    %v3245 = vand.u32 %v3214, 2147483648
    %v3246 = vor.u32 1.1754944e-38, %v3245
    %v3247 = vsel %vm3244, %v3246, %v3242
    %v3248 = vmul.f32 1.0, %v3247
    %v3249 = vrcp.pop %v3215
    %v3250 = vmul.f32 %v3215, %v3249
    %v3251 = vsub.f32 1.0, %v3250
    %v3252 = vmul.f32 %v3249, %v3251
    %v3253 = vadd.f32 %v3249, %v3252
    %vm3254 = vweird.f32 %v3215
    %vm3255 = vweird.f32 %v3249
    %vm3256 = vmor %vm3254, %vm3255
    %v3257 = vsel %vm3256, %v3249, %v3253
    %v3258 = vand.u32 2147483647, %v3215
    %vm3259 = vcmp.eq.f32.partialorder %v3258, 8.507059e+37
    %v3260 = vand.u32 %v3215, 2147483648
    %v3261 = vor.u32 1.1754944e-38, %v3260
    %v3262 = vsel %vm3259, %v3261, %v3257
    %v3263 = vmul.f32 1.0, %v3262
    %v3264 = vrcp.pop %v3216
    %v3265 = vmul.f32 %v3216, %v3264
    %v3266 = vsub.f32 1.0, %v3265
    %v3267 = vmul.f32 %v3264, %v3266
    %v3268 = vadd.f32 %v3264, %v3267
    %vm3269 = vweird.f32 %v3216
    %vm3270 = vweird.f32 %v3264
    %vm3271 = vmor %vm3269, %vm3270
    %v3272 = vsel %vm3271, %v3264, %v3268
    %v3273 = vand.u32 2147483647, %v3216
    %vm3274 = vcmp.eq.f32.partialorder %v3273, 8.507059e+37
    %v3275 = vand.u32 %v3216, 2147483648
    %v3276 = vor.u32 1.1754944e-38, %v3275
    %v3277 = vsel %vm3274, %v3276, %v3272
    %v3278 = vmul.f32 1.0, %v3277
    %v3279 = vrcp.pop %v3217
    %v3280 = vmul.f32 %v3217, %v3279
    %v3281 = vsub.f32 1.0, %v3280
    %v3282 = vmul.f32 %v3279, %v3281
    %v3283 = vadd.f32 %v3279, %v3282
    %vm3284 = vweird.f32 %v3217
    %vm3285 = vweird.f32 %v3279
    %vm3286 = vmor %vm3284, %vm3285
    %v3287 = vsel %vm3286, %v3279, %v3283
    %v3288 = vand.u32 2147483647, %v3217
    %vm3289 = vcmp.eq.f32.partialorder %v3288, 8.507059e+37
    %v3290 = vand.u32 %v3217, 2147483648
    %v3291 = vor.u32 1.1754944e-38, %v3290
    %v3292 = vsel %vm3289, %v3291, %v3287
    %v3293 = vmul.f32 1.0, %v3292
    %v3294 = vrcp.pop %v3218
    %v3295 = vmul.f32 %v3218, %v3294
    %v3296 = vsub.f32 1.0, %v3295
    %v3297 = vmul.f32 %v3294, %v3296
    %v3298 = vadd.f32 %v3294, %v3297
    %vm3299 = vweird.f32 %v3218
    %vm3300 = vweird.f32 %v3294
    %vm3301 = vmor %vm3299, %vm3300
    %v3302 = vsel %vm3301, %v3294, %v3298
    %v3303 = vand.u32 2147483647, %v3218
    %vm3304 = vcmp.eq.f32.partialorder %v3303, 8.507059e+37
    %v3305 = vand.u32 %v3218, 2147483648
    %v3306 = vor.u32 1.1754944e-38, %v3305
    %v3307 = vsel %vm3304, %v3306, %v3302
    %v3308 = vmul.f32 1.0, %v3307
    %v3309 = vtanh.pop %v3190
    %v3310 = vtanh.pop %v3194
    %v3311 = vmul.f32 %v3248, %v2613
    %v3312 = vmul.f32 %v3293, %v2614
    %v3313 = vmul.f32 %v3233, %v3309
    %v3314 = vmul.f32 %v3278, %v3310
    %v3315 = vadd.f32 %v3311, %v3313
    %v3316 = vadd.f32 %v3312, %v3314
    %v3317 = vtanh.pop %v3315
    %v3318 = vtanh.pop %v3316
    %v3319 = vmul.f32 %v3263, %v3317
    %v3320 = vmul.f32 %v3308, %v3318
    %s3321 = smul.u32 6, 4
    %s3322 = smul.addr %s3321, 8
    %s3323 = scalar_lea.vmem [#allocation2], %s3322
    %v3324 = vld [vmem:[%s3323] sm:$0xff]
    %v3325 = vld [vmem:[%s3323 + $0x8] sm:$0xff]
    %v3326 = vld [vmem:[%s3323 + $0x10] sm:$0xff]
    %v3327 = vld [vmem:[%s3323 + $0x18] sm:$0xff]
    %v3328 = vld [vmem:[%s3323 + $0x20] sm:$0xff]
    %v3329 = vld [vmem:[%s3323 + $0x28] sm:$0xff]
    %v3330 = vld [vmem:[%s3323 + $0x30] sm:$0xff]
    %v3331 = vld [vmem:[%s3323 + $0x38] sm:$0xff]
    %3332 = vmatpush.bf16.msra.mxu0 %v827
    %3333 = vmatpush.bf16.msra.mxu0 %v823
    %3334 = vmatpush.bf16.msra.mxu0 %v819
    %3335 = vmatpush.bf16.msra.mxu0 %v815
    %3336 = vmatpush.bf16.msra.mxu0 %v811
    %3337 = vmatpush.bf16.msra.mxu0 %v807
    %3338 = vmatpush.bf16.msra.mxu0 %v803
    %3339 = vmatpush.bf16.msra.mxu0 %v799
    %3340 = vmatmul.bf16.gmra.mxu0 %v2820
    %v3341 = vpop.f32.mrf.mxu0
    %v3342 = vadd.f32 0.0, %v3341
    %v3343 = vpop.f32.mrf.mxu0
    %v3344 = vadd.f32 0.0, %v3343
    %3345 = vdwg.mxu0
    %3346 = vmatpush.bf16.msra.mxu0 %v828
    %3347 = vmatpush.bf16.msra.mxu0 %v824
    %3348 = vmatpush.bf16.msra.mxu0 %v820
    %3349 = vmatpush.bf16.msra.mxu0 %v816
    %3350 = vmatpush.bf16.msra.mxu0 %v812
    %3351 = vmatpush.bf16.msra.mxu0 %v808
    %3352 = vmatpush.bf16.msra.mxu0 %v804
    %3353 = vmatpush.bf16.msra.mxu0 %v800
    %3354 = vmatmul.bf16.gmra.mxu0 %v2820
    %v3355 = vpop.f32.mrf.mxu0
    %v3356 = vadd.f32 0.0, %v3355
    %v3357 = vpop.f32.mrf.mxu0
    %v3358 = vadd.f32 0.0, %v3357
    %3359 = vdwg.mxu0
    %3360 = vmatpush.bf16.msra.mxu0 %v829
    %3361 = vmatpush.bf16.msra.mxu0 %v825
    %3362 = vmatpush.bf16.msra.mxu0 %v821
    %3363 = vmatpush.bf16.msra.mxu0 %v817
    %3364 = vmatpush.bf16.msra.mxu0 %v813
    %3365 = vmatpush.bf16.msra.mxu0 %v809
    %3366 = vmatpush.bf16.msra.mxu0 %v805
    %3367 = vmatpush.bf16.msra.mxu0 %v801
    %3368 = vmatmul.bf16.gmra.mxu0 %v2820
    %v3369 = vpop.f32.mrf.mxu0
    %v3370 = vadd.f32 0.0, %v3369
    %v3371 = vpop.f32.mrf.mxu0
    %v3372 = vadd.f32 0.0, %v3371
    %3373 = vdwg.mxu0
    %3374 = vmatpush.bf16.msra.mxu0 %v830
    %3375 = vmatpush.bf16.msra.mxu0 %v826
    %3376 = vmatpush.bf16.msra.mxu0 %v822
    %3377 = vmatpush.bf16.msra.mxu0 %v818
    %3378 = vmatpush.bf16.msra.mxu0 %v814
    %3379 = vmatpush.bf16.msra.mxu0 %v810
    %3380 = vmatpush.bf16.msra.mxu0 %v806
    %3381 = vmatpush.bf16.msra.mxu0 %v802
    %3382 = vmatmul.bf16.gmra.mxu0 %v2820
    %v3383 = vpop.f32.mrf.mxu0
    %v3384 = vadd.f32 0.0, %v3383
    %v3385 = vpop.f32.mrf.mxu0
    %v3386 = vadd.f32 0.0, %v3385
    %3387 = vdwg.mxu0
    %v3388 = vadd.f32 %v3324, %v3342
    %v3389 = vadd.f32 %v3325, %v3356
    %v3390 = vadd.f32 %v3326, %v3370
    %v3391 = vadd.f32 %v3327, %v3384
    %v3392 = vadd.f32 %v3328, %v3344
    %v3393 = vadd.f32 %v3329, %v3358
    %v3394 = vadd.f32 %v3330, %v3372
    %v3395 = vadd.f32 %v3331, %v3386
    %v3396 = vxor.u32 %v3388, 2147483648
    %v3397 = vxor.u32 %v3389, 2147483648
    %v3398 = vxor.u32 %v3390, 2147483648
    %v3399 = vxor.u32 %v3392, 2147483648
    %v3400 = vxor.u32 %v3393, 2147483648
    %v3401 = vxor.u32 %v3394, 2147483648
    %v3402 = vmul.f32 %v3396, 1.442695
    %v3403 = vpow.pop %v3402
    %v3404 = vmul.f32 %v3397, 1.442695
    %v3405 = vpow.pop %v3404
    %v3406 = vmul.f32 %v3398, 1.442695
    %v3407 = vpow.pop %v3406
    %v3408 = vmul.f32 %v3399, 1.442695
    %v3409 = vpow.pop %v3408
    %v3410 = vmul.f32 %v3400, 1.442695
    %v3411 = vpow.pop %v3410
    %v3412 = vmul.f32 %v3401, 1.442695
    %v3413 = vpow.pop %v3412
    %v3414 = vadd.f32 %v3403, 1.0
    %v3415 = vadd.f32 %v3405, 1.0
    %v3416 = vadd.f32 %v3407, 1.0
    %v3417 = vadd.f32 %v3409, 1.0
    %v3418 = vadd.f32 %v3411, 1.0
    %v3419 = vadd.f32 %v3413, 1.0
    %v3420 = vrcp.pop %v3414
    %v3421 = vmul.f32 %v3414, %v3420
    %v3422 = vsub.f32 1.0, %v3421
    %v3423 = vmul.f32 %v3420, %v3422
    %v3424 = vadd.f32 %v3420, %v3423
    %vm3425 = vweird.f32 %v3414
    %vm3426 = vweird.f32 %v3420
    %vm3427 = vmor %vm3425, %vm3426
    %v3428 = vsel %vm3427, %v3420, %v3424
    %v3429 = vand.u32 2147483647, %v3414
    %vm3430 = vcmp.eq.f32.partialorder %v3429, 8.507059e+37
    %v3431 = vand.u32 %v3414, 2147483648
    %v3432 = vor.u32 1.1754944e-38, %v3431
    %v3433 = vsel %vm3430, %v3432, %v3428
    %v3434 = vmul.f32 1.0, %v3433
    %v3435 = vrcp.pop %v3415
    %v3436 = vmul.f32 %v3415, %v3435
    %v3437 = vsub.f32 1.0, %v3436
    %v3438 = vmul.f32 %v3435, %v3437
    %v3439 = vadd.f32 %v3435, %v3438
    %vm3440 = vweird.f32 %v3415
    %vm3441 = vweird.f32 %v3435
    %vm3442 = vmor %vm3440, %vm3441
    %v3443 = vsel %vm3442, %v3435, %v3439
    %v3444 = vand.u32 2147483647, %v3415
    %vm3445 = vcmp.eq.f32.partialorder %v3444, 8.507059e+37
    %v3446 = vand.u32 %v3415, 2147483648
    %v3447 = vor.u32 1.1754944e-38, %v3446
    %v3448 = vsel %vm3445, %v3447, %v3443
    %v3449 = vmul.f32 1.0, %v3448
    %v3450 = vrcp.pop %v3416
    %v3451 = vmul.f32 %v3416, %v3450
    %v3452 = vsub.f32 1.0, %v3451
    %v3453 = vmul.f32 %v3450, %v3452
    %v3454 = vadd.f32 %v3450, %v3453
    %vm3455 = vweird.f32 %v3416
    %vm3456 = vweird.f32 %v3450
    %vm3457 = vmor %vm3455, %vm3456
    %v3458 = vsel %vm3457, %v3450, %v3454
    %v3459 = vand.u32 2147483647, %v3416
    %vm3460 = vcmp.eq.f32.partialorder %v3459, 8.507059e+37
    %v3461 = vand.u32 %v3416, 2147483648
    %v3462 = vor.u32 1.1754944e-38, %v3461
    %v3463 = vsel %vm3460, %v3462, %v3458
    %v3464 = vmul.f32 1.0, %v3463
    %v3465 = vrcp.pop %v3417
    %v3466 = vmul.f32 %v3417, %v3465
    %v3467 = vsub.f32 1.0, %v3466
    %v3468 = vmul.f32 %v3465, %v3467
    %v3469 = vadd.f32 %v3465, %v3468
    %vm3470 = vweird.f32 %v3417
    %vm3471 = vweird.f32 %v3465
    %vm3472 = vmor %vm3470, %vm3471
    %v3473 = vsel %vm3472, %v3465, %v3469
    %v3474 = vand.u32 2147483647, %v3417
    %vm3475 = vcmp.eq.f32.partialorder %v3474, 8.507059e+37
    %v3476 = vand.u32 %v3417, 2147483648
    %v3477 = vor.u32 1.1754944e-38, %v3476
    %v3478 = vsel %vm3475, %v3477, %v3473
    %v3479 = vmul.f32 1.0, %v3478
    %v3480 = vrcp.pop %v3418
    %v3481 = vmul.f32 %v3418, %v3480
    %v3482 = vsub.f32 1.0, %v3481
    %v3483 = vmul.f32 %v3480, %v3482
    %v3484 = vadd.f32 %v3480, %v3483
    %vm3485 = vweird.f32 %v3418
    %vm3486 = vweird.f32 %v3480
    %vm3487 = vmor %vm3485, %vm3486
    %v3488 = vsel %vm3487, %v3480, %v3484
    %v3489 = vand.u32 2147483647, %v3418
    %vm3490 = vcmp.eq.f32.partialorder %v3489, 8.507059e+37
    %v3491 = vand.u32 %v3418, 2147483648
    %v3492 = vor.u32 1.1754944e-38, %v3491
    %v3493 = vsel %vm3490, %v3492, %v3488
    %v3494 = vmul.f32 1.0, %v3493
    %v3495 = vrcp.pop %v3419
    %v3496 = vmul.f32 %v3419, %v3495
    %v3497 = vsub.f32 1.0, %v3496
    %v3498 = vmul.f32 %v3495, %v3497
    %v3499 = vadd.f32 %v3495, %v3498
    %vm3500 = vweird.f32 %v3419
    %vm3501 = vweird.f32 %v3495
    %vm3502 = vmor %vm3500, %vm3501
    %v3503 = vsel %vm3502, %v3495, %v3499
    %v3504 = vand.u32 2147483647, %v3419
    %vm3505 = vcmp.eq.f32.partialorder %v3504, 8.507059e+37
    %v3506 = vand.u32 %v3419, 2147483648
    %v3507 = vor.u32 1.1754944e-38, %v3506
    %v3508 = vsel %vm3505, %v3507, %v3503
    %v3509 = vmul.f32 1.0, %v3508
    %v3510 = vtanh.pop %v3391
    %v3511 = vtanh.pop %v3395
    %v3512 = vmul.f32 %v3449, %v2814
    %v3513 = vmul.f32 %v3494, %v2815
    %v3514 = vmul.f32 %v3434, %v3510
    %v3515 = vmul.f32 %v3479, %v3511
    %v3516 = vadd.f32 %v3512, %v3514
    %v3517 = vadd.f32 %v3513, %v3515
    %v3518 = vtanh.pop %v3516
    %v3519 = vtanh.pop %v3517
    %v3520 = vmul.f32 %v3464, %v3518
    %v3521 = vmul.f32 %v3509, %v3519
    %v3522 = vpack.c.bf16 %v3521, %v3520
    %3523 = vmatpush.bf16.msra.mxu0 %v1178
    %3524 = vmatpush.bf16.msra.mxu0 %v1174
    %3525 = vmatpush.bf16.msra.mxu0 %v1170
    %3526 = vmatpush.bf16.msra.mxu0 %v1166
    %3527 = vmatpush.bf16.msra.mxu0 %v1162
    %3528 = vmatpush.bf16.msra.mxu0 %v1158
    %3529 = vmatpush.bf16.msra.mxu0 %v1154
    %3530 = vmatpush.bf16.msra.mxu0 %v1150
    %3531 = vmatmul.bf16.gmra.mxu0 %v3522
    %v3532 = vpop.f32.mrf.mxu0
    %v3533 = vadd.f32 %v674, %v3532
    %v3534 = vpop.f32.mrf.mxu0
    %v3535 = vadd.f32 %v674, %v3534
    %3536 = vdwg.mxu0
    %3537 = vmatpush.bf16.msra.mxu0 %v1179
    %3538 = vmatpush.bf16.msra.mxu0 %v1175
    %3539 = vmatpush.bf16.msra.mxu0 %v1171
    %3540 = vmatpush.bf16.msra.mxu0 %v1167
    %3541 = vmatpush.bf16.msra.mxu0 %v1163
    %3542 = vmatpush.bf16.msra.mxu0 %v1159
    %3543 = vmatpush.bf16.msra.mxu0 %v1155
    %3544 = vmatpush.bf16.msra.mxu0 %v1151
    %3545 = vmatmul.bf16.gmra.mxu0 %v3522
    %v3546 = vpop.f32.mrf.mxu0
    %v3547 = vadd.f32 %v675, %v3546
    %v3548 = vpop.f32.mrf.mxu0
    %v3549 = vadd.f32 %v675, %v3548
    %3550 = vdwg.mxu0
    %3551 = vmatpush.bf16.msra.mxu0 %v1180
    %3552 = vmatpush.bf16.msra.mxu0 %v1176
    %3553 = vmatpush.bf16.msra.mxu0 %v1172
    %3554 = vmatpush.bf16.msra.mxu0 %v1168
    %3555 = vmatpush.bf16.msra.mxu0 %v1164
    %3556 = vmatpush.bf16.msra.mxu0 %v1160
    %3557 = vmatpush.bf16.msra.mxu0 %v1156
    %3558 = vmatpush.bf16.msra.mxu0 %v1152
    %3559 = vmatmul.bf16.gmra.mxu0 %v3522
    %v3560 = vpop.f32.mrf.mxu0
    %v3561 = vadd.f32 %v676, %v3560
    %v3562 = vpop.f32.mrf.mxu0
    %v3563 = vadd.f32 %v676, %v3562
    %3564 = vdwg.mxu0
    %3565 = vmatpush.bf16.msra.mxu0 %v1181
    %3566 = vmatpush.bf16.msra.mxu0 %v1177
    %3567 = vmatpush.bf16.msra.mxu0 %v1173
    %3568 = vmatpush.bf16.msra.mxu0 %v1169
    %3569 = vmatpush.bf16.msra.mxu0 %v1165
    %3570 = vmatpush.bf16.msra.mxu0 %v1161
    %3571 = vmatpush.bf16.msra.mxu0 %v1157
    %3572 = vmatpush.bf16.msra.mxu0 %v1153
    %3573 = vmatmul.bf16.gmra.mxu0 %v3522
    %v3574 = vpop.f32.mrf.mxu0
    %v3575 = vadd.f32 %v677, %v3574
    %v3576 = vpop.f32.mrf.mxu0
    %v3577 = vadd.f32 %v677, %v3576
    %3578 = vdwg.mxu0
    %3579 = vmatpush.bf16.msra.mxu0 0
    %3580 = vmatpush.bf16.msra.mxu0 0
    %3581 = vmatpush.bf16.msra.mxu0 0
    %3582 = vmatpush.bf16.msra.mxu0 0
    %3583 = vmatpush.bf16.msra.mxu0 %v1330
    %3584 = vmatpush.bf16.msra.mxu0 %v1326
    %3585 = vmatpush.bf16.msra.mxu0 %v1322
    %3586 = vmatpush.bf16.msra.mxu0 %v1318
    %3587 = vmatmul.bf16.gmra.mxu0 %v3069
    %v3588 = vpop.f32.mrf.mxu0
    %v3589 = vadd.f32 0.0, %v3588
    %v3590 = vpop.f32.mrf.mxu0
    %v3591 = vadd.f32 0.0, %v3590
    %3592 = vdwg.mxu0
    %3593 = vmatpush.bf16.msra.mxu0 0
    %3594 = vmatpush.bf16.msra.mxu0 0
    %3595 = vmatpush.bf16.msra.mxu0 0
    %3596 = vmatpush.bf16.msra.mxu0 0
    %3597 = vmatpush.bf16.msra.mxu0 %v1331
    %3598 = vmatpush.bf16.msra.mxu0 %v1327
    %3599 = vmatpush.bf16.msra.mxu0 %v1323
    %3600 = vmatpush.bf16.msra.mxu0 %v1319
    %3601 = vmatmul.bf16.gmra.mxu0 %v3069
    %v3602 = vpop.f32.mrf.mxu0
    %v3603 = vadd.f32 0.0, %v3602
    %v3604 = vpop.f32.mrf.mxu0
    %v3605 = vadd.f32 0.0, %v3604
    %3606 = vdwg.mxu0
    %3607 = vmatpush.bf16.msra.mxu0 0
    %3608 = vmatpush.bf16.msra.mxu0 0
    %3609 = vmatpush.bf16.msra.mxu0 0
    %3610 = vmatpush.bf16.msra.mxu0 0
    %3611 = vmatpush.bf16.msra.mxu0 %v1332
    %3612 = vmatpush.bf16.msra.mxu0 %v1328
    %3613 = vmatpush.bf16.msra.mxu0 %v1324
    %3614 = vmatpush.bf16.msra.mxu0 %v1320
    %3615 = vmatmul.bf16.gmra.mxu0 %v3069
    %v3616 = vpop.f32.mrf.mxu0
    %v3617 = vadd.f32 0.0, %v3616
    %v3618 = vpop.f32.mrf.mxu0
    %v3619 = vadd.f32 0.0, %v3618
    %3620 = vdwg.mxu0
    %3621 = vmatpush.bf16.msra.mxu0 0
    %3622 = vmatpush.bf16.msra.mxu0 0
    %3623 = vmatpush.bf16.msra.mxu0 0
    %3624 = vmatpush.bf16.msra.mxu0 0
    %3625 = vmatpush.bf16.msra.mxu0 %v1333
    %3626 = vmatpush.bf16.msra.mxu0 %v1329
    %3627 = vmatpush.bf16.msra.mxu0 %v1325
    %3628 = vmatpush.bf16.msra.mxu0 %v1321
    %3629 = vmatmul.bf16.gmra.mxu0 %v3069
    %v3630 = vpop.f32.mrf.mxu0
    %v3631 = vadd.f32 0.0, %v3630
    %v3632 = vpop.f32.mrf.mxu0
    %v3633 = vadd.f32 0.0, %v3632
    %3634 = vdwg.mxu0
    %v3635 = vadd.f32 %v3533, %v3589
    %v3636 = vadd.f32 %v3547, %v3603
    %v3637 = vadd.f32 %v3561, %v3617
    %v3638 = vadd.f32 %v3575, %v3631
    %v3639 = vadd.f32 %v3535, %v3591
    %v3640 = vadd.f32 %v3549, %v3605
    %v3641 = vadd.f32 %v3563, %v3619
    %v3642 = vadd.f32 %v3577, %v3633
    %v3643 = vxor.u32 %v3635, 2147483648
    %v3644 = vxor.u32 %v3636, 2147483648
    %v3645 = vxor.u32 %v3637, 2147483648
    %v3646 = vxor.u32 %v3639, 2147483648
    %v3647 = vxor.u32 %v3640, 2147483648
    %v3648 = vxor.u32 %v3641, 2147483648
    %v3649 = vmul.f32 %v3643, 1.442695
    %v3650 = vpow.pop %v3649
    %v3651 = vmul.f32 %v3644, 1.442695
    %v3652 = vpow.pop %v3651
    %v3653 = vmul.f32 %v3645, 1.442695
    %v3654 = vpow.pop %v3653
    %v3655 = vmul.f32 %v3646, 1.442695
    %v3656 = vpow.pop %v3655
    %v3657 = vmul.f32 %v3647, 1.442695
    %v3658 = vpow.pop %v3657
    %v3659 = vmul.f32 %v3648, 1.442695
    %v3660 = vpow.pop %v3659
    %v3661 = vadd.f32 %v3650, 1.0
    %v3662 = vadd.f32 %v3652, 1.0
    %v3663 = vadd.f32 %v3654, 1.0
    %v3664 = vadd.f32 %v3656, 1.0
    %v3665 = vadd.f32 %v3658, 1.0
    %v3666 = vadd.f32 %v3660, 1.0
    %v3667 = vrcp.pop %v3661
    %v3668 = vmul.f32 %v3661, %v3667
    %v3669 = vsub.f32 1.0, %v3668
    %v3670 = vmul.f32 %v3667, %v3669
    %v3671 = vadd.f32 %v3667, %v3670
    %vm3672 = vweird.f32 %v3661
    %vm3673 = vweird.f32 %v3667
    %vm3674 = vmor %vm3672, %vm3673
    %v3675 = vsel %vm3674, %v3667, %v3671
    %v3676 = vand.u32 2147483647, %v3661
    %vm3677 = vcmp.eq.f32.partialorder %v3676, 8.507059e+37
    %v3678 = vand.u32 %v3661, 2147483648
    %v3679 = vor.u32 1.1754944e-38, %v3678
    %v3680 = vsel %vm3677, %v3679, %v3675
    %v3681 = vmul.f32 1.0, %v3680
    %v3682 = vrcp.pop %v3662
    %v3683 = vmul.f32 %v3662, %v3682
    %v3684 = vsub.f32 1.0, %v3683
    %v3685 = vmul.f32 %v3682, %v3684
    %v3686 = vadd.f32 %v3682, %v3685
    %vm3687 = vweird.f32 %v3662
    %vm3688 = vweird.f32 %v3682
    %vm3689 = vmor %vm3687, %vm3688
    %v3690 = vsel %vm3689, %v3682, %v3686
    %v3691 = vand.u32 2147483647, %v3662
    %vm3692 = vcmp.eq.f32.partialorder %v3691, 8.507059e+37
    %v3693 = vand.u32 %v3662, 2147483648
    %v3694 = vor.u32 1.1754944e-38, %v3693
    %v3695 = vsel %vm3692, %v3694, %v3690
    %v3696 = vmul.f32 1.0, %v3695
    %v3697 = vrcp.pop %v3663
    %v3698 = vmul.f32 %v3663, %v3697
    %v3699 = vsub.f32 1.0, %v3698
    %v3700 = vmul.f32 %v3697, %v3699
    %v3701 = vadd.f32 %v3697, %v3700
    %vm3702 = vweird.f32 %v3663
    %vm3703 = vweird.f32 %v3697
    %vm3704 = vmor %vm3702, %vm3703
    %v3705 = vsel %vm3704, %v3697, %v3701
    %v3706 = vand.u32 2147483647, %v3663
    %vm3707 = vcmp.eq.f32.partialorder %v3706, 8.507059e+37
    %v3708 = vand.u32 %v3663, 2147483648
    %v3709 = vor.u32 1.1754944e-38, %v3708
    %v3710 = vsel %vm3707, %v3709, %v3705
    %v3711 = vmul.f32 1.0, %v3710
    %v3712 = vrcp.pop %v3664
    %v3713 = vmul.f32 %v3664, %v3712
    %v3714 = vsub.f32 1.0, %v3713
    %v3715 = vmul.f32 %v3712, %v3714
    %v3716 = vadd.f32 %v3712, %v3715
    %vm3717 = vweird.f32 %v3664
    %vm3718 = vweird.f32 %v3712
    %vm3719 = vmor %vm3717, %vm3718
    %v3720 = vsel %vm3719, %v3712, %v3716
    %v3721 = vand.u32 2147483647, %v3664
    %vm3722 = vcmp.eq.f32.partialorder %v3721, 8.507059e+37
    %v3723 = vand.u32 %v3664, 2147483648
    %v3724 = vor.u32 1.1754944e-38, %v3723
    %v3725 = vsel %vm3722, %v3724, %v3720
    %v3726 = vmul.f32 1.0, %v3725
    %v3727 = vrcp.pop %v3665
    %v3728 = vmul.f32 %v3665, %v3727
    %v3729 = vsub.f32 1.0, %v3728
    %v3730 = vmul.f32 %v3727, %v3729
    %v3731 = vadd.f32 %v3727, %v3730
    %vm3732 = vweird.f32 %v3665
    %vm3733 = vweird.f32 %v3727
    %vm3734 = vmor %vm3732, %vm3733
    %v3735 = vsel %vm3734, %v3727, %v3731
    %v3736 = vand.u32 2147483647, %v3665
    %vm3737 = vcmp.eq.f32.partialorder %v3736, 8.507059e+37
    %v3738 = vand.u32 %v3665, 2147483648
    %v3739 = vor.u32 1.1754944e-38, %v3738
    %v3740 = vsel %vm3737, %v3739, %v3735
    %v3741 = vmul.f32 1.0, %v3740
    %v3742 = vrcp.pop %v3666
    %v3743 = vmul.f32 %v3666, %v3742
    %v3744 = vsub.f32 1.0, %v3743
    %v3745 = vmul.f32 %v3742, %v3744
    %v3746 = vadd.f32 %v3742, %v3745
    %vm3747 = vweird.f32 %v3666
    %vm3748 = vweird.f32 %v3742
    %vm3749 = vmor %vm3747, %vm3748
    %v3750 = vsel %vm3749, %v3742, %v3746
    %v3751 = vand.u32 2147483647, %v3666
    %vm3752 = vcmp.eq.f32.partialorder %v3751, 8.507059e+37
    %v3753 = vand.u32 %v3666, 2147483648
    %v3754 = vor.u32 1.1754944e-38, %v3753
    %v3755 = vsel %vm3752, %v3754, %v3750
    %v3756 = vmul.f32 1.0, %v3755
    %v3757 = vtanh.pop %v3638
    %v3758 = vtanh.pop %v3642
    %v3759 = vmul.f32 %v3696, %v3061
    %v3760 = vmul.f32 %v3741, %v3062
    %v3761 = vmul.f32 %v3681, %v3757
    %v3762 = vmul.f32 %v3726, %v3758
    %v3763 = vadd.f32 %v3759, %v3761
    %v3764 = vadd.f32 %v3760, %v3762
    %v3765 = vtanh.pop %v3763
    %v3766 = vtanh.pop %v3764
    %v3767 = vmul.f32 %v3711, %v3765
    %v3768 = vmul.f32 %v3756, %v3766
    %v3769 = vpack.c.bf16 %v3768, %v3767
    %v3771 = vsel %vm1350, %v3769, 0
    %3773 = vmatpush.bf16.msra.mxu0 0
    %3774 = vmatpush.bf16.msra.mxu0 0
    %3775 = vmatpush.bf16.msra.mxu0 0
    %3776 = vmatpush.bf16.msra.mxu0 0
    %3777 = vmatpush.bf16.msra.mxu0 %v1605
    %3778 = vmatpush.bf16.msra.mxu0 %v1601
    %3779 = vmatpush.bf16.msra.mxu0 %v1597
    %3780 = vmatpush.bf16.msra.mxu0 %v1593
    %3781 = vmatmul.bf16.gmra.mxu0 %v3771
    %v3782 = vpop.f32.mrf.mxu0
    %v3783 = vadd.f32 %v684, %v3782
    %v3784 = vpop.f32.mrf.mxu0
    %v3785 = vadd.f32 %v684, %v3784
    %3786 = vdwg.mxu0
    %3787 = vmatpush.bf16.msra.mxu0 0
    %3788 = vmatpush.bf16.msra.mxu0 0
    %3789 = vmatpush.bf16.msra.mxu0 0
    %3790 = vmatpush.bf16.msra.mxu0 0
    %3791 = vmatpush.bf16.msra.mxu0 %v1606
    %3792 = vmatpush.bf16.msra.mxu0 %v1602
    %3793 = vmatpush.bf16.msra.mxu0 %v1598
    %3794 = vmatpush.bf16.msra.mxu0 %v1594
    %3795 = vmatmul.bf16.gmra.mxu0 %v3771
    %v3796 = vpop.f32.mrf.mxu0
    %v3797 = vadd.f32 %v685, %v3796
    %v3798 = vpop.f32.mrf.mxu0
    %v3799 = vadd.f32 %v685, %v3798
    %3800 = vdwg.mxu0
    %3801 = vmatpush.bf16.msra.mxu0 0
    %3802 = vmatpush.bf16.msra.mxu0 0
    %3803 = vmatpush.bf16.msra.mxu0 0
    %3804 = vmatpush.bf16.msra.mxu0 0
    %3805 = vmatpush.bf16.msra.mxu0 %v1607
    %3806 = vmatpush.bf16.msra.mxu0 %v1603
    %3807 = vmatpush.bf16.msra.mxu0 %v1599
    %3808 = vmatpush.bf16.msra.mxu0 %v1595
    %3809 = vmatmul.bf16.gmra.mxu0 %v3771
    %v3810 = vpop.f32.mrf.mxu0
    %v3811 = vadd.f32 %v686, %v3810
    %v3812 = vpop.f32.mrf.mxu0
    %v3813 = vadd.f32 %v686, %v3812
    %3814 = vdwg.mxu0
    %3815 = vmatpush.bf16.msra.mxu0 0
    %3816 = vmatpush.bf16.msra.mxu0 0
    %3817 = vmatpush.bf16.msra.mxu0 0
    %3818 = vmatpush.bf16.msra.mxu0 0
    %3819 = vmatpush.bf16.msra.mxu0 %v1608
    %3820 = vmatpush.bf16.msra.mxu0 %v1604
    %3821 = vmatpush.bf16.msra.mxu0 %v1600
    %3822 = vmatpush.bf16.msra.mxu0 %v1596
    %3823 = vmatmul.bf16.gmra.mxu0 %v3771
    %v3824 = vpop.f32.mrf.mxu0
    %v3825 = vadd.f32 %v687, %v3824
    %v3826 = vpop.f32.mrf.mxu0
    %v3827 = vadd.f32 %v687, %v3826
    %3828 = vdwg.mxu0
    %v3829 = vpack.c.bf16 %v3320, %v3319
    %v3831 = vsel %vm1724, %v3829, 0
    %3833 = vmatpush.bf16.msra.mxu0 0
    %3834 = vmatpush.bf16.msra.mxu0 0
    %3835 = vmatpush.bf16.msra.mxu0 0
    %3836 = vmatpush.bf16.msra.mxu0 0
    %3837 = vmatpush.bf16.msra.mxu0 0
    %3838 = vmatpush.bf16.msra.mxu0 0
    %3839 = vmatpush.bf16.msra.mxu0 %v1712
    %3840 = vmatpush.bf16.msra.mxu0 %v1708
    %3841 = vmatmul.bf16.gmra.mxu0 %v3831
    %v3842 = vpop.f32.mrf.mxu0
    %v3843 = vadd.f32 0.0, %v3842
    %v3844 = vpop.f32.mrf.mxu0
    %v3845 = vadd.f32 0.0, %v3844
    %3846 = vdwg.mxu0
    %3847 = vmatpush.bf16.msra.mxu0 0
    %3848 = vmatpush.bf16.msra.mxu0 0
    %3849 = vmatpush.bf16.msra.mxu0 0
    %3850 = vmatpush.bf16.msra.mxu0 0
    %3851 = vmatpush.bf16.msra.mxu0 0
    %3852 = vmatpush.bf16.msra.mxu0 0
    %3853 = vmatpush.bf16.msra.mxu0 %v1713
    %3854 = vmatpush.bf16.msra.mxu0 %v1709
    %3855 = vmatmul.bf16.gmra.mxu0 %v3831
    %v3856 = vpop.f32.mrf.mxu0
    %v3857 = vadd.f32 0.0, %v3856
    %v3858 = vpop.f32.mrf.mxu0
    %v3859 = vadd.f32 0.0, %v3858
    %3860 = vdwg.mxu0
    %3861 = vmatpush.bf16.msra.mxu0 0
    %3862 = vmatpush.bf16.msra.mxu0 0
    %3863 = vmatpush.bf16.msra.mxu0 0
    %3864 = vmatpush.bf16.msra.mxu0 0
    %3865 = vmatpush.bf16.msra.mxu0 0
    %3866 = vmatpush.bf16.msra.mxu0 0
    %3867 = vmatpush.bf16.msra.mxu0 %v1714
    %3868 = vmatpush.bf16.msra.mxu0 %v1710
    %3869 = vmatmul.bf16.gmra.mxu0 %v3831
    %v3870 = vpop.f32.mrf.mxu0
    %v3871 = vadd.f32 0.0, %v3870
    %v3872 = vpop.f32.mrf.mxu0
    %v3873 = vadd.f32 0.0, %v3872
    %3874 = vdwg.mxu0
    %3875 = vmatpush.bf16.msra.mxu0 0
    %3876 = vmatpush.bf16.msra.mxu0 0
    %3877 = vmatpush.bf16.msra.mxu0 0
    %3878 = vmatpush.bf16.msra.mxu0 0
    %3879 = vmatpush.bf16.msra.mxu0 0
    %3880 = vmatpush.bf16.msra.mxu0 0
    %3881 = vmatpush.bf16.msra.mxu0 %v1715
    %3882 = vmatpush.bf16.msra.mxu0 %v1711
    %3883 = vmatmul.bf16.gmra.mxu0 %v3831
    %v3884 = vpop.f32.mrf.mxu0
    %v3885 = vadd.f32 0.0, %v3884
    %v3886 = vpop.f32.mrf.mxu0
    %v3887 = vadd.f32 0.0, %v3886
    %3888 = vdwg.mxu0
    %v3889 = vadd.f32 %v3783, %v3843
    %v3890 = vadd.f32 %v3797, %v3857
    %v3891 = vadd.f32 %v3811, %v3871
    %v3892 = vadd.f32 %v3825, %v3885
    %v3893 = vadd.f32 %v3785, %v3845
    %v3894 = vadd.f32 %v3799, %v3859
    %v3895 = vadd.f32 %v3813, %v3873
    %v3896 = vadd.f32 %v3827, %v3887
    %v3897 = vxor.u32 %v3889, 2147483648
    %v3898 = vxor.u32 %v3890, 2147483648
    %v3899 = vxor.u32 %v3891, 2147483648
    %v3900 = vxor.u32 %v3893, 2147483648
    %v3901 = vxor.u32 %v3894, 2147483648
    %v3902 = vxor.u32 %v3895, 2147483648
    %v3903 = vmul.f32 %v3897, 1.442695
    %v3904 = vpow.pop %v3903
    %v3905 = vmul.f32 %v3898, 1.442695
    %v3906 = vpow.pop %v3905
    %v3907 = vmul.f32 %v3899, 1.442695
    %v3908 = vpow.pop %v3907
    %v3909 = vmul.f32 %v3900, 1.442695
    %v3910 = vpow.pop %v3909
    %v3911 = vmul.f32 %v3901, 1.442695
    %v3912 = vpow.pop %v3911
    %v3913 = vmul.f32 %v3902, 1.442695
    %v3914 = vpow.pop %v3913
    %v3915 = vadd.f32 %v3904, 1.0
    %v3916 = vadd.f32 %v3906, 1.0
    %v3917 = vadd.f32 %v3908, 1.0
    %v3918 = vadd.f32 %v3910, 1.0
    %v3919 = vadd.f32 %v3912, 1.0
    %v3920 = vadd.f32 %v3914, 1.0
    %v3921 = vrcp.pop %v3915
    %v3922 = vmul.f32 %v3915, %v3921
    %v3923 = vsub.f32 1.0, %v3922
    %v3924 = vmul.f32 %v3921, %v3923
    %v3925 = vadd.f32 %v3921, %v3924
    %vm3926 = vweird.f32 %v3915
    %vm3927 = vweird.f32 %v3921
    %vm3928 = vmor %vm3926, %vm3927
    %v3929 = vsel %vm3928, %v3921, %v3925
    %v3930 = vand.u32 2147483647, %v3915
    %vm3931 = vcmp.eq.f32.partialorder %v3930, 8.507059e+37
    %v3932 = vand.u32 %v3915, 2147483648
    %v3933 = vor.u32 1.1754944e-38, %v3932
    %v3934 = vsel %vm3931, %v3933, %v3929
    %v3935 = vmul.f32 1.0, %v3934
    %v3936 = vrcp.pop %v3916
    %v3937 = vmul.f32 %v3916, %v3936
    %v3938 = vsub.f32 1.0, %v3937
    %v3939 = vmul.f32 %v3936, %v3938
    %v3940 = vadd.f32 %v3936, %v3939
    %vm3941 = vweird.f32 %v3916
    %vm3942 = vweird.f32 %v3936
    %vm3943 = vmor %vm3941, %vm3942
    %v3944 = vsel %vm3943, %v3936, %v3940
    %v3945 = vand.u32 2147483647, %v3916
    %vm3946 = vcmp.eq.f32.partialorder %v3945, 8.507059e+37
    %v3947 = vand.u32 %v3916, 2147483648
    %v3948 = vor.u32 1.1754944e-38, %v3947
    %v3949 = vsel %vm3946, %v3948, %v3944
    %v3950 = vmul.f32 1.0, %v3949
    %v3951 = vrcp.pop %v3917
    %v3952 = vmul.f32 %v3917, %v3951
    %v3953 = vsub.f32 1.0, %v3952
    %v3954 = vmul.f32 %v3951, %v3953
    %v3955 = vadd.f32 %v3951, %v3954
    %vm3956 = vweird.f32 %v3917
    %vm3957 = vweird.f32 %v3951
    %vm3958 = vmor %vm3956, %vm3957
    %v3959 = vsel %vm3958, %v3951, %v3955
    %v3960 = vand.u32 2147483647, %v3917
    %vm3961 = vcmp.eq.f32.partialorder %v3960, 8.507059e+37
    %v3962 = vand.u32 %v3917, 2147483648
    %v3963 = vor.u32 1.1754944e-38, %v3962
    %v3964 = vsel %vm3961, %v3963, %v3959
    %v3965 = vmul.f32 1.0, %v3964
    %v3966 = vrcp.pop %v3918
    %v3967 = vmul.f32 %v3918, %v3966
    %v3968 = vsub.f32 1.0, %v3967
    %v3969 = vmul.f32 %v3966, %v3968
    %v3970 = vadd.f32 %v3966, %v3969
    %vm3971 = vweird.f32 %v3918
    %vm3972 = vweird.f32 %v3966
    %vm3973 = vmor %vm3971, %vm3972
    %v3974 = vsel %vm3973, %v3966, %v3970
    %v3975 = vand.u32 2147483647, %v3918
    %vm3976 = vcmp.eq.f32.partialorder %v3975, 8.507059e+37
    %v3977 = vand.u32 %v3918, 2147483648
    %v3978 = vor.u32 1.1754944e-38, %v3977
    %v3979 = vsel %vm3976, %v3978, %v3974
    %v3980 = vmul.f32 1.0, %v3979
    %v3981 = vrcp.pop %v3919
    %v3982 = vmul.f32 %v3919, %v3981
    %v3983 = vsub.f32 1.0, %v3982
    %v3984 = vmul.f32 %v3981, %v3983
    %v3985 = vadd.f32 %v3981, %v3984
    %vm3986 = vweird.f32 %v3919
    %vm3987 = vweird.f32 %v3981
    %vm3988 = vmor %vm3986, %vm3987
    %v3989 = vsel %vm3988, %v3981, %v3985
    %v3990 = vand.u32 2147483647, %v3919
    %vm3991 = vcmp.eq.f32.partialorder %v3990, 8.507059e+37
    %v3992 = vand.u32 %v3919, 2147483648
    %v3993 = vor.u32 1.1754944e-38, %v3992
    %v3994 = vsel %vm3991, %v3993, %v3989
    %v3995 = vmul.f32 1.0, %v3994
    %v3996 = vrcp.pop %v3920
    %v3997 = vmul.f32 %v3920, %v3996
    %v3998 = vsub.f32 1.0, %v3997
    %v3999 = vmul.f32 %v3996, %v3998
    %v4000 = vadd.f32 %v3996, %v3999
    %vm4001 = vweird.f32 %v3920
    %vm4002 = vweird.f32 %v3996
    %vm4003 = vmor %vm4001, %vm4002
    %v4004 = vsel %vm4003, %v3996, %v4000
    %v4005 = vand.u32 2147483647, %v3920
    %vm4006 = vcmp.eq.f32.partialorder %v4005, 8.507059e+37
    %v4007 = vand.u32 %v3920, 2147483648
    %v4008 = vor.u32 1.1754944e-38, %v4007
    %v4009 = vsel %vm4006, %v4008, %v4004
    %v4010 = vmul.f32 1.0, %v4009
    %v4011 = vtanh.pop %v3892
    %v4012 = vtanh.pop %v3896
    %v4013 = vmul.f32 %v3950, %v3315
    %v4014 = vmul.f32 %v3995, %v3316
    %v4015 = vmul.f32 %v3935, %v4011
    %v4016 = vmul.f32 %v3980, %v4012
    %v4017 = vadd.f32 %v4013, %v4015
    %v4018 = vadd.f32 %v4014, %v4016
    %v4019 = vtanh.pop %v4017
    %v4020 = vtanh.pop %v4018
    %v4021 = vmul.f32 %v3965, %v4019
    %v4022 = vmul.f32 %v4010, %v4020
    %s4023 = smul.u32 8, 4
    %s4024 = smul.addr %s4023, 8
    %s4025 = scalar_lea.vmem [#allocation2], %s4024
    %v4026 = vld [vmem:[%s4025] sm:$0xff]
    %v4027 = vld [vmem:[%s4025 + $0x8] sm:$0xff]
    %v4028 = vld [vmem:[%s4025 + $0x10] sm:$0xff]
    %v4029 = vld [vmem:[%s4025 + $0x18] sm:$0xff]
    %v4030 = vld [vmem:[%s4025 + $0x20] sm:$0xff]
    %v4031 = vld [vmem:[%s4025 + $0x28] sm:$0xff]
    %v4032 = vld [vmem:[%s4025 + $0x30] sm:$0xff]
    %v4033 = vld [vmem:[%s4025 + $0x38] sm:$0xff]
    %4034 = vmatpush.bf16.msra.mxu0 %v827
    %4035 = vmatpush.bf16.msra.mxu0 %v823
    %4036 = vmatpush.bf16.msra.mxu0 %v819
    %4037 = vmatpush.bf16.msra.mxu0 %v815
    %4038 = vmatpush.bf16.msra.mxu0 %v811
    %4039 = vmatpush.bf16.msra.mxu0 %v807
    %4040 = vmatpush.bf16.msra.mxu0 %v803
    %4041 = vmatpush.bf16.msra.mxu0 %v799
    %4042 = vmatmul.bf16.gmra.mxu0 %v3522
    %v4043 = vpop.f32.mrf.mxu0
    %v4044 = vadd.f32 0.0, %v4043
    %v4045 = vpop.f32.mrf.mxu0
    %v4046 = vadd.f32 0.0, %v4045
    %4047 = vdwg.mxu0
    %4048 = vmatpush.bf16.msra.mxu0 %v828
    %4049 = vmatpush.bf16.msra.mxu0 %v824
    %4050 = vmatpush.bf16.msra.mxu0 %v820
    %4051 = vmatpush.bf16.msra.mxu0 %v816
    %4052 = vmatpush.bf16.msra.mxu0 %v812
    %4053 = vmatpush.bf16.msra.mxu0 %v808
    %4054 = vmatpush.bf16.msra.mxu0 %v804
    %4055 = vmatpush.bf16.msra.mxu0 %v800
    %4056 = vmatmul.bf16.gmra.mxu0 %v3522
    %v4057 = vpop.f32.mrf.mxu0
    %v4058 = vadd.f32 0.0, %v4057
    %v4059 = vpop.f32.mrf.mxu0
    %v4060 = vadd.f32 0.0, %v4059
    %4061 = vdwg.mxu0
    %4062 = vmatpush.bf16.msra.mxu0 %v829
    %4063 = vmatpush.bf16.msra.mxu0 %v825
    %4064 = vmatpush.bf16.msra.mxu0 %v821
    %4065 = vmatpush.bf16.msra.mxu0 %v817
    %4066 = vmatpush.bf16.msra.mxu0 %v813
    %4067 = vmatpush.bf16.msra.mxu0 %v809
    %4068 = vmatpush.bf16.msra.mxu0 %v805
    %4069 = vmatpush.bf16.msra.mxu0 %v801
    %4070 = vmatmul.bf16.gmra.mxu0 %v3522
    %v4071 = vpop.f32.mrf.mxu0
    %v4072 = vadd.f32 0.0, %v4071
    %v4073 = vpop.f32.mrf.mxu0
    %v4074 = vadd.f32 0.0, %v4073
    %4075 = vdwg.mxu0
    %4076 = vmatpush.bf16.msra.mxu0 %v830
    %4077 = vmatpush.bf16.msra.mxu0 %v826
    %4078 = vmatpush.bf16.msra.mxu0 %v822
    %4079 = vmatpush.bf16.msra.mxu0 %v818
    %4080 = vmatpush.bf16.msra.mxu0 %v814
    %4081 = vmatpush.bf16.msra.mxu0 %v810
    %4082 = vmatpush.bf16.msra.mxu0 %v806
    %4083 = vmatpush.bf16.msra.mxu0 %v802
    %4084 = vmatmul.bf16.gmra.mxu0 %v3522
    %v4085 = vpop.f32.mrf.mxu0
    %v4086 = vadd.f32 0.0, %v4085
    %v4087 = vpop.f32.mrf.mxu0
    %v4088 = vadd.f32 0.0, %v4087
    %4089 = vdwg.mxu0
    %v4090 = vadd.f32 %v4026, %v4044
    %v4091 = vadd.f32 %v4027, %v4058
    %v4092 = vadd.f32 %v4028, %v4072
    %v4093 = vadd.f32 %v4029, %v4086
    %v4094 = vadd.f32 %v4030, %v4046
    %v4095 = vadd.f32 %v4031, %v4060
    %v4096 = vadd.f32 %v4032, %v4074
    %v4097 = vadd.f32 %v4033, %v4088
    %v4098 = vxor.u32 %v4090, 2147483648
    %v4099 = vxor.u32 %v4091, 2147483648
    %v4100 = vxor.u32 %v4092, 2147483648
    %v4101 = vxor.u32 %v4094, 2147483648
    %v4102 = vxor.u32 %v4095, 2147483648
    %v4103 = vxor.u32 %v4096, 2147483648
    %v4104 = vmul.f32 %v4098, 1.442695
    %v4105 = vpow.pop %v4104
    %v4106 = vmul.f32 %v4099, 1.442695
    %v4107 = vpow.pop %v4106
    %v4108 = vmul.f32 %v4100, 1.442695
    %v4109 = vpow.pop %v4108
    %v4110 = vmul.f32 %v4101, 1.442695
    %v4111 = vpow.pop %v4110
    %v4112 = vmul.f32 %v4102, 1.442695
    %v4113 = vpow.pop %v4112
    %v4114 = vmul.f32 %v4103, 1.442695
    %v4115 = vpow.pop %v4114
    %v4116 = vadd.f32 %v4105, 1.0
    %v4117 = vadd.f32 %v4107, 1.0
    %v4118 = vadd.f32 %v4109, 1.0
    %v4119 = vadd.f32 %v4111, 1.0
    %v4120 = vadd.f32 %v4113, 1.0
    %v4121 = vadd.f32 %v4115, 1.0
    %v4122 = vrcp.pop %v4116
    %v4123 = vmul.f32 %v4116, %v4122
    %v4124 = vsub.f32 1.0, %v4123
    %v4125 = vmul.f32 %v4122, %v4124
    %v4126 = vadd.f32 %v4122, %v4125
    %vm4127 = vweird.f32 %v4116
    %vm4128 = vweird.f32 %v4122
    %vm4129 = vmor %vm4127, %vm4128
    %v4130 = vsel %vm4129, %v4122, %v4126
    %v4131 = vand.u32 2147483647, %v4116
    %vm4132 = vcmp.eq.f32.partialorder %v4131, 8.507059e+37
    %v4133 = vand.u32 %v4116, 2147483648
    %v4134 = vor.u32 1.1754944e-38, %v4133
    %v4135 = vsel %vm4132, %v4134, %v4130
    %v4136 = vmul.f32 1.0, %v4135
    %v4137 = vrcp.pop %v4117
    %v4138 = vmul.f32 %v4117, %v4137
    %v4139 = vsub.f32 1.0, %v4138
    %v4140 = vmul.f32 %v4137, %v4139
    %v4141 = vadd.f32 %v4137, %v4140
    %vm4142 = vweird.f32 %v4117
    %vm4143 = vweird.f32 %v4137
    %vm4144 = vmor %vm4142, %vm4143
    %v4145 = vsel %vm4144, %v4137, %v4141
    %v4146 = vand.u32 2147483647, %v4117
    %vm4147 = vcmp.eq.f32.partialorder %v4146, 8.507059e+37
    %v4148 = vand.u32 %v4117, 2147483648
    %v4149 = vor.u32 1.1754944e-38, %v4148
    %v4150 = vsel %vm4147, %v4149, %v4145
    %v4151 = vmul.f32 1.0, %v4150
    %v4152 = vrcp.pop %v4118
    %v4153 = vmul.f32 %v4118, %v4152
    %v4154 = vsub.f32 1.0, %v4153
    %v4155 = vmul.f32 %v4152, %v4154
    %v4156 = vadd.f32 %v4152, %v4155
    %vm4157 = vweird.f32 %v4118
    %vm4158 = vweird.f32 %v4152
    %vm4159 = vmor %vm4157, %vm4158
    %v4160 = vsel %vm4159, %v4152, %v4156
    %v4161 = vand.u32 2147483647, %v4118
    %vm4162 = vcmp.eq.f32.partialorder %v4161, 8.507059e+37
    %v4163 = vand.u32 %v4118, 2147483648
    %v4164 = vor.u32 1.1754944e-38, %v4163
    %v4165 = vsel %vm4162, %v4164, %v4160
    %v4166 = vmul.f32 1.0, %v4165
    %v4167 = vrcp.pop %v4119
    %v4168 = vmul.f32 %v4119, %v4167
    %v4169 = vsub.f32 1.0, %v4168
    %v4170 = vmul.f32 %v4167, %v4169
    %v4171 = vadd.f32 %v4167, %v4170
    %vm4172 = vweird.f32 %v4119
    %vm4173 = vweird.f32 %v4167
    %vm4174 = vmor %vm4172, %vm4173
    %v4175 = vsel %vm4174, %v4167, %v4171
    %v4176 = vand.u32 2147483647, %v4119
    %vm4177 = vcmp.eq.f32.partialorder %v4176, 8.507059e+37
    %v4178 = vand.u32 %v4119, 2147483648
    %v4179 = vor.u32 1.1754944e-38, %v4178
    %v4180 = vsel %vm4177, %v4179, %v4175
    %v4181 = vmul.f32 1.0, %v4180
    %v4182 = vrcp.pop %v4120
    %v4183 = vmul.f32 %v4120, %v4182
    %v4184 = vsub.f32 1.0, %v4183
    %v4185 = vmul.f32 %v4182, %v4184
    %v4186 = vadd.f32 %v4182, %v4185
    %vm4187 = vweird.f32 %v4120
    %vm4188 = vweird.f32 %v4182
    %vm4189 = vmor %vm4187, %vm4188
    %v4190 = vsel %vm4189, %v4182, %v4186
    %v4191 = vand.u32 2147483647, %v4120
    %vm4192 = vcmp.eq.f32.partialorder %v4191, 8.507059e+37
    %v4193 = vand.u32 %v4120, 2147483648
    %v4194 = vor.u32 1.1754944e-38, %v4193
    %v4195 = vsel %vm4192, %v4194, %v4190
    %v4196 = vmul.f32 1.0, %v4195
    %v4197 = vrcp.pop %v4121
    %v4198 = vmul.f32 %v4121, %v4197
    %v4199 = vsub.f32 1.0, %v4198
    %v4200 = vmul.f32 %v4197, %v4199
    %v4201 = vadd.f32 %v4197, %v4200
    %vm4202 = vweird.f32 %v4121
    %vm4203 = vweird.f32 %v4197
    %vm4204 = vmor %vm4202, %vm4203
    %v4205 = vsel %vm4204, %v4197, %v4201
    %v4206 = vand.u32 2147483647, %v4121
    %vm4207 = vcmp.eq.f32.partialorder %v4206, 8.507059e+37
    %v4208 = vand.u32 %v4121, 2147483648
    %v4209 = vor.u32 1.1754944e-38, %v4208
    %v4210 = vsel %vm4207, %v4209, %v4205
    %v4211 = vmul.f32 1.0, %v4210
    %v4212 = vtanh.pop %v4093
    %v4213 = vtanh.pop %v4097
    %v4214 = vmul.f32 %v4151, %v3516
    %v4215 = vmul.f32 %v4196, %v3517
    %v4216 = vmul.f32 %v4136, %v4212
    %v4217 = vmul.f32 %v4181, %v4213
    %v4218 = vadd.f32 %v4214, %v4216
    %v4219 = vadd.f32 %v4215, %v4217
    %v4220 = vtanh.pop %v4218
    %v4221 = vtanh.pop %v4219
    %v4222 = vmul.f32 %v4166, %v4220
    %v4223 = vmul.f32 %v4211, %v4221
    %v4224 = vpack.c.bf16 %v4223, %v4222
    %4225 = vmatpush.bf16.msra.mxu0 %v1178
    %4226 = vmatpush.bf16.msra.mxu0 %v1174
    %4227 = vmatpush.bf16.msra.mxu0 %v1170
    %4228 = vmatpush.bf16.msra.mxu0 %v1166
    %4229 = vmatpush.bf16.msra.mxu0 %v1162
    %4230 = vmatpush.bf16.msra.mxu0 %v1158
    %4231 = vmatpush.bf16.msra.mxu0 %v1154
    %4232 = vmatpush.bf16.msra.mxu0 %v1150
    %4233 = vmatmul.bf16.gmra.mxu0 %v4224
    %v4234 = vpop.f32.mrf.mxu0
    %v4235 = vadd.f32 %v674, %v4234
    %v4236 = vpop.f32.mrf.mxu0
    %v4237 = vadd.f32 %v674, %v4236
    %4238 = vdwg.mxu0
    %4239 = vmatpush.bf16.msra.mxu0 %v1179
    %4240 = vmatpush.bf16.msra.mxu0 %v1175
    %4241 = vmatpush.bf16.msra.mxu0 %v1171
    %4242 = vmatpush.bf16.msra.mxu0 %v1167
    %4243 = vmatpush.bf16.msra.mxu0 %v1163
    %4244 = vmatpush.bf16.msra.mxu0 %v1159
    %4245 = vmatpush.bf16.msra.mxu0 %v1155
    %4246 = vmatpush.bf16.msra.mxu0 %v1151
    %4247 = vmatmul.bf16.gmra.mxu0 %v4224
    %v4248 = vpop.f32.mrf.mxu0
    %v4249 = vadd.f32 %v675, %v4248
    %v4250 = vpop.f32.mrf.mxu0
    %v4251 = vadd.f32 %v675, %v4250
    %4252 = vdwg.mxu0
    %4253 = vmatpush.bf16.msra.mxu0 %v1180
    %4254 = vmatpush.bf16.msra.mxu0 %v1176
    %4255 = vmatpush.bf16.msra.mxu0 %v1172
    %4256 = vmatpush.bf16.msra.mxu0 %v1168
    %4257 = vmatpush.bf16.msra.mxu0 %v1164
    %4258 = vmatpush.bf16.msra.mxu0 %v1160
    %4259 = vmatpush.bf16.msra.mxu0 %v1156
    %4260 = vmatpush.bf16.msra.mxu0 %v1152
    %4261 = vmatmul.bf16.gmra.mxu0 %v4224
    %v4262 = vpop.f32.mrf.mxu0
    %v4263 = vadd.f32 %v676, %v4262
    %v4264 = vpop.f32.mrf.mxu0
    %v4265 = vadd.f32 %v676, %v4264
    %4266 = vdwg.mxu0
    %4267 = vmatpush.bf16.msra.mxu0 %v1181
    %4268 = vmatpush.bf16.msra.mxu0 %v1177
    %4269 = vmatpush.bf16.msra.mxu0 %v1173
    %4270 = vmatpush.bf16.msra.mxu0 %v1169
    %4271 = vmatpush.bf16.msra.mxu0 %v1165
    %4272 = vmatpush.bf16.msra.mxu0 %v1161
    %4273 = vmatpush.bf16.msra.mxu0 %v1157
    %4274 = vmatpush.bf16.msra.mxu0 %v1153
    %4275 = vmatmul.bf16.gmra.mxu0 %v4224
    %v4276 = vpop.f32.mrf.mxu0
    %v4277 = vadd.f32 %v677, %v4276
    %v4278 = vpop.f32.mrf.mxu0
    %v4279 = vadd.f32 %v677, %v4278
    %4280 = vdwg.mxu0
    %4281 = vmatpush.bf16.msra.mxu0 0
    %4282 = vmatpush.bf16.msra.mxu0 0
    %4283 = vmatpush.bf16.msra.mxu0 0
    %4284 = vmatpush.bf16.msra.mxu0 0
    %4285 = vmatpush.bf16.msra.mxu0 %v1330
    %4286 = vmatpush.bf16.msra.mxu0 %v1326
    %4287 = vmatpush.bf16.msra.mxu0 %v1322
    %4288 = vmatpush.bf16.msra.mxu0 %v1318
    %4289 = vmatmul.bf16.gmra.mxu0 %v3771
    %v4290 = vpop.f32.mrf.mxu0
    %v4291 = vadd.f32 0.0, %v4290
    %v4292 = vpop.f32.mrf.mxu0
    %v4293 = vadd.f32 0.0, %v4292
    %4294 = vdwg.mxu0
    %4295 = vmatpush.bf16.msra.mxu0 0
    %4296 = vmatpush.bf16.msra.mxu0 0
    %4297 = vmatpush.bf16.msra.mxu0 0
    %4298 = vmatpush.bf16.msra.mxu0 0
    %4299 = vmatpush.bf16.msra.mxu0 %v1331
    %4300 = vmatpush.bf16.msra.mxu0 %v1327
    %4301 = vmatpush.bf16.msra.mxu0 %v1323
    %4302 = vmatpush.bf16.msra.mxu0 %v1319
    %4303 = vmatmul.bf16.gmra.mxu0 %v3771
    %v4304 = vpop.f32.mrf.mxu0
    %v4305 = vadd.f32 0.0, %v4304
    %v4306 = vpop.f32.mrf.mxu0
    %v4307 = vadd.f32 0.0, %v4306
    %4308 = vdwg.mxu0
    %4309 = vmatpush.bf16.msra.mxu0 0
    %4310 = vmatpush.bf16.msra.mxu0 0
    %4311 = vmatpush.bf16.msra.mxu0 0
    %4312 = vmatpush.bf16.msra.mxu0 0
    %4313 = vmatpush.bf16.msra.mxu0 %v1332
    %4314 = vmatpush.bf16.msra.mxu0 %v1328
    %4315 = vmatpush.bf16.msra.mxu0 %v1324
    %4316 = vmatpush.bf16.msra.mxu0 %v1320
    %4317 = vmatmul.bf16.gmra.mxu0 %v3771
    %v4318 = vpop.f32.mrf.mxu0
    %v4319 = vadd.f32 0.0, %v4318
    %v4320 = vpop.f32.mrf.mxu0
    %v4321 = vadd.f32 0.0, %v4320
    %4322 = vdwg.mxu0
    %4323 = vmatpush.bf16.msra.mxu0 0
    %4324 = vmatpush.bf16.msra.mxu0 0
    %4325 = vmatpush.bf16.msra.mxu0 0
    %4326 = vmatpush.bf16.msra.mxu0 0
    %4327 = vmatpush.bf16.msra.mxu0 %v1333
    %4328 = vmatpush.bf16.msra.mxu0 %v1329
    %4329 = vmatpush.bf16.msra.mxu0 %v1325
    %4330 = vmatpush.bf16.msra.mxu0 %v1321
    %4331 = vmatmul.bf16.gmra.mxu0 %v3771
    %v4332 = vpop.f32.mrf.mxu0
    %v4333 = vadd.f32 0.0, %v4332
    %v4334 = vpop.f32.mrf.mxu0
    %v4335 = vadd.f32 0.0, %v4334
    %4336 = vdwg.mxu0
    %v4337 = vadd.f32 %v4235, %v4291
    %v4338 = vadd.f32 %v4249, %v4305
    %v4339 = vadd.f32 %v4263, %v4319
    %v4340 = vadd.f32 %v4277, %v4333
    %v4341 = vadd.f32 %v4237, %v4293
    %v4342 = vadd.f32 %v4251, %v4307
    %v4343 = vadd.f32 %v4265, %v4321
    %v4344 = vadd.f32 %v4279, %v4335
    %v4345 = vxor.u32 %v4337, 2147483648
    %v4346 = vxor.u32 %v4338, 2147483648
    %v4347 = vxor.u32 %v4339, 2147483648
    %v4348 = vxor.u32 %v4341, 2147483648
    %v4349 = vxor.u32 %v4342, 2147483648
    %v4350 = vxor.u32 %v4343, 2147483648
    %v4351 = vmul.f32 %v4345, 1.442695
    %v4352 = vpow.pop %v4351
    %v4353 = vmul.f32 %v4346, 1.442695
    %v4354 = vpow.pop %v4353
    %v4355 = vmul.f32 %v4347, 1.442695
    %v4356 = vpow.pop %v4355
    %v4357 = vmul.f32 %v4348, 1.442695
    %v4358 = vpow.pop %v4357
    %v4359 = vmul.f32 %v4349, 1.442695
    %v4360 = vpow.pop %v4359
    %v4361 = vmul.f32 %v4350, 1.442695
    %v4362 = vpow.pop %v4361
    %v4363 = vadd.f32 %v4352, 1.0
    %v4364 = vadd.f32 %v4354, 1.0
    %v4365 = vadd.f32 %v4356, 1.0
    %v4366 = vadd.f32 %v4358, 1.0
    %v4367 = vadd.f32 %v4360, 1.0
    %v4368 = vadd.f32 %v4362, 1.0
    %v4369 = vrcp.pop %v4363
    %v4370 = vmul.f32 %v4363, %v4369
    %v4371 = vsub.f32 1.0, %v4370
    %v4372 = vmul.f32 %v4369, %v4371
    %v4373 = vadd.f32 %v4369, %v4372
    %vm4374 = vweird.f32 %v4363
    %vm4375 = vweird.f32 %v4369
    %vm4376 = vmor %vm4374, %vm4375
    %v4377 = vsel %vm4376, %v4369, %v4373
    %v4378 = vand.u32 2147483647, %v4363
    %vm4379 = vcmp.eq.f32.partialorder %v4378, 8.507059e+37
    %v4380 = vand.u32 %v4363, 2147483648
    %v4381 = vor.u32 1.1754944e-38, %v4380
    %v4382 = vsel %vm4379, %v4381, %v4377
    %v4383 = vmul.f32 1.0, %v4382
    %v4384 = vrcp.pop %v4364
    %v4385 = vmul.f32 %v4364, %v4384
    %v4386 = vsub.f32 1.0, %v4385
    %v4387 = vmul.f32 %v4384, %v4386
    %v4388 = vadd.f32 %v4384, %v4387
    %vm4389 = vweird.f32 %v4364
    %vm4390 = vweird.f32 %v4384
    %vm4391 = vmor %vm4389, %vm4390
    %v4392 = vsel %vm4391, %v4384, %v4388
    %v4393 = vand.u32 2147483647, %v4364
    %vm4394 = vcmp.eq.f32.partialorder %v4393, 8.507059e+37
    %v4395 = vand.u32 %v4364, 2147483648
    %v4396 = vor.u32 1.1754944e-38, %v4395
    %v4397 = vsel %vm4394, %v4396, %v4392
    %v4398 = vmul.f32 1.0, %v4397
    %v4399 = vrcp.pop %v4365
    %v4400 = vmul.f32 %v4365, %v4399
    %v4401 = vsub.f32 1.0, %v4400
    %v4402 = vmul.f32 %v4399, %v4401
    %v4403 = vadd.f32 %v4399, %v4402
    %vm4404 = vweird.f32 %v4365
    %vm4405 = vweird.f32 %v4399
    %vm4406 = vmor %vm4404, %vm4405
    %v4407 = vsel %vm4406, %v4399, %v4403
    %v4408 = vand.u32 2147483647, %v4365
    %vm4409 = vcmp.eq.f32.partialorder %v4408, 8.507059e+37
    %v4410 = vand.u32 %v4365, 2147483648
    %v4411 = vor.u32 1.1754944e-38, %v4410
    %v4412 = vsel %vm4409, %v4411, %v4407
    %v4413 = vmul.f32 1.0, %v4412
    %v4414 = vrcp.pop %v4366
    %v4415 = vmul.f32 %v4366, %v4414
    %v4416 = vsub.f32 1.0, %v4415
    %v4417 = vmul.f32 %v4414, %v4416
    %v4418 = vadd.f32 %v4414, %v4417
    %vm4419 = vweird.f32 %v4366
    %vm4420 = vweird.f32 %v4414
    %vm4421 = vmor %vm4419, %vm4420
    %v4422 = vsel %vm4421, %v4414, %v4418
    %v4423 = vand.u32 2147483647, %v4366
    %vm4424 = vcmp.eq.f32.partialorder %v4423, 8.507059e+37
    %v4425 = vand.u32 %v4366, 2147483648
    %v4426 = vor.u32 1.1754944e-38, %v4425
    %v4427 = vsel %vm4424, %v4426, %v4422
    %v4428 = vmul.f32 1.0, %v4427
    %v4429 = vrcp.pop %v4367
    %v4430 = vmul.f32 %v4367, %v4429
    %v4431 = vsub.f32 1.0, %v4430
    %v4432 = vmul.f32 %v4429, %v4431
    %v4433 = vadd.f32 %v4429, %v4432
    %vm4434 = vweird.f32 %v4367
    %vm4435 = vweird.f32 %v4429
    %vm4436 = vmor %vm4434, %vm4435
    %v4437 = vsel %vm4436, %v4429, %v4433
    %v4438 = vand.u32 2147483647, %v4367
    %vm4439 = vcmp.eq.f32.partialorder %v4438, 8.507059e+37
    %v4440 = vand.u32 %v4367, 2147483648
    %v4441 = vor.u32 1.1754944e-38, %v4440
    %v4442 = vsel %vm4439, %v4441, %v4437
    %v4443 = vmul.f32 1.0, %v4442
    %v4444 = vrcp.pop %v4368
    %v4445 = vmul.f32 %v4368, %v4444
    %v4446 = vsub.f32 1.0, %v4445
    %v4447 = vmul.f32 %v4444, %v4446
    %v4448 = vadd.f32 %v4444, %v4447
    %vm4449 = vweird.f32 %v4368
    %vm4450 = vweird.f32 %v4444
    %vm4451 = vmor %vm4449, %vm4450
    %v4452 = vsel %vm4451, %v4444, %v4448
    %v4453 = vand.u32 2147483647, %v4368
    %vm4454 = vcmp.eq.f32.partialorder %v4453, 8.507059e+37
    %v4455 = vand.u32 %v4368, 2147483648
    %v4456 = vor.u32 1.1754944e-38, %v4455
    %v4457 = vsel %vm4454, %v4456, %v4452
    %v4458 = vmul.f32 1.0, %v4457
    %v4459 = vtanh.pop %v4340
    %v4460 = vtanh.pop %v4344
    %v4461 = vmul.f32 %v4398, %v3763
    %v4462 = vmul.f32 %v4443, %v3764
    %v4463 = vmul.f32 %v4383, %v4459
    %v4464 = vmul.f32 %v4428, %v4460
    %v4465 = vadd.f32 %v4461, %v4463
    %v4466 = vadd.f32 %v4462, %v4464
    %v4467 = vtanh.pop %v4465
    %v4468 = vtanh.pop %v4466
    %v4469 = vmul.f32 %v4413, %v4467
    %v4470 = vmul.f32 %v4458, %v4468
    %v4471 = vpack.c.bf16 %v4470, %v4469
    %v4473 = vsel %vm1350, %v4471, 0
    %4475 = vmatpush.bf16.msra.mxu0 0
    %4476 = vmatpush.bf16.msra.mxu0 0
    %4477 = vmatpush.bf16.msra.mxu0 0
    %4478 = vmatpush.bf16.msra.mxu0 0
    %4479 = vmatpush.bf16.msra.mxu0 %v1605
    %4480 = vmatpush.bf16.msra.mxu0 %v1601
    %4481 = vmatpush.bf16.msra.mxu0 %v1597
    %4482 = vmatpush.bf16.msra.mxu0 %v1593
    %4483 = vmatmul.bf16.gmra.mxu0 %v4473
    %v4484 = vpop.f32.mrf.mxu0
    %v4485 = vadd.f32 %v684, %v4484
    %v4486 = vpop.f32.mrf.mxu0
    %v4487 = vadd.f32 %v684, %v4486
    %4488 = vdwg.mxu0
    %4489 = vmatpush.bf16.msra.mxu0 0
    %4490 = vmatpush.bf16.msra.mxu0 0
    %4491 = vmatpush.bf16.msra.mxu0 0
    %4492 = vmatpush.bf16.msra.mxu0 0
    %4493 = vmatpush.bf16.msra.mxu0 %v1606
    %4494 = vmatpush.bf16.msra.mxu0 %v1602
    %4495 = vmatpush.bf16.msra.mxu0 %v1598
    %4496 = vmatpush.bf16.msra.mxu0 %v1594
    %4497 = vmatmul.bf16.gmra.mxu0 %v4473
    %v4498 = vpop.f32.mrf.mxu0
    %v4499 = vadd.f32 %v685, %v4498
    %v4500 = vpop.f32.mrf.mxu0
    %v4501 = vadd.f32 %v685, %v4500
    %4502 = vdwg.mxu0
    %4503 = vmatpush.bf16.msra.mxu0 0
    %4504 = vmatpush.bf16.msra.mxu0 0
    %4505 = vmatpush.bf16.msra.mxu0 0
    %4506 = vmatpush.bf16.msra.mxu0 0
    %4507 = vmatpush.bf16.msra.mxu0 %v1607
    %4508 = vmatpush.bf16.msra.mxu0 %v1603
    %4509 = vmatpush.bf16.msra.mxu0 %v1599
    %4510 = vmatpush.bf16.msra.mxu0 %v1595
    %4511 = vmatmul.bf16.gmra.mxu0 %v4473
    %v4512 = vpop.f32.mrf.mxu0
    %v4513 = vadd.f32 %v686, %v4512
    %v4514 = vpop.f32.mrf.mxu0
    %v4515 = vadd.f32 %v686, %v4514
    %4516 = vdwg.mxu0
    %4517 = vmatpush.bf16.msra.mxu0 0
    %4518 = vmatpush.bf16.msra.mxu0 0
    %4519 = vmatpush.bf16.msra.mxu0 0
    %4520 = vmatpush.bf16.msra.mxu0 0
    %4521 = vmatpush.bf16.msra.mxu0 %v1608
    %4522 = vmatpush.bf16.msra.mxu0 %v1604
    %4523 = vmatpush.bf16.msra.mxu0 %v1600
    %4524 = vmatpush.bf16.msra.mxu0 %v1596
    %4525 = vmatmul.bf16.gmra.mxu0 %v4473
    %v4526 = vpop.f32.mrf.mxu0
    %v4527 = vadd.f32 %v687, %v4526
    %v4528 = vpop.f32.mrf.mxu0
    %v4529 = vadd.f32 %v687, %v4528
    %4530 = vdwg.mxu0
    %v4531 = vpack.c.bf16 %v4022, %v4021
    %v4533 = vsel %vm1724, %v4531, 0
    %4535 = vmatpush.bf16.msra.mxu0 0
    %4536 = vmatpush.bf16.msra.mxu0 0
    %4537 = vmatpush.bf16.msra.mxu0 0
    %4538 = vmatpush.bf16.msra.mxu0 0
    %4539 = vmatpush.bf16.msra.mxu0 0
    %4540 = vmatpush.bf16.msra.mxu0 0
    %4541 = vmatpush.bf16.msra.mxu0 %v1712
    %4542 = vmatpush.bf16.msra.mxu0 %v1708
    %4543 = vmatmul.bf16.gmra.mxu0 %v4533
    %v4544 = vpop.f32.mrf.mxu0
    %v4545 = vadd.f32 0.0, %v4544
    %v4546 = vpop.f32.mrf.mxu0
    %v4547 = vadd.f32 0.0, %v4546
    %4548 = vdwg.mxu0
    %4549 = vmatpush.bf16.msra.mxu0 0
    %4550 = vmatpush.bf16.msra.mxu0 0
    %4551 = vmatpush.bf16.msra.mxu0 0
    %4552 = vmatpush.bf16.msra.mxu0 0
    %4553 = vmatpush.bf16.msra.mxu0 0
    %4554 = vmatpush.bf16.msra.mxu0 0
    %4555 = vmatpush.bf16.msra.mxu0 %v1713
    %4556 = vmatpush.bf16.msra.mxu0 %v1709
    %4557 = vmatmul.bf16.gmra.mxu0 %v4533
    %v4558 = vpop.f32.mrf.mxu0
    %v4559 = vadd.f32 0.0, %v4558
    %v4560 = vpop.f32.mrf.mxu0
    %v4561 = vadd.f32 0.0, %v4560
    %4562 = vdwg.mxu0
    %4563 = vmatpush.bf16.msra.mxu0 0
    %4564 = vmatpush.bf16.msra.mxu0 0
    %4565 = vmatpush.bf16.msra.mxu0 0
    %4566 = vmatpush.bf16.msra.mxu0 0
    %4567 = vmatpush.bf16.msra.mxu0 0
    %4568 = vmatpush.bf16.msra.mxu0 0
    %4569 = vmatpush.bf16.msra.mxu0 %v1714
    %4570 = vmatpush.bf16.msra.mxu0 %v1710
    %4571 = vmatmul.bf16.gmra.mxu0 %v4533
    %v4572 = vpop.f32.mrf.mxu0
    %v4573 = vadd.f32 0.0, %v4572
    %v4574 = vpop.f32.mrf.mxu0
    %v4575 = vadd.f32 0.0, %v4574
    %4576 = vdwg.mxu0
    %4577 = vmatpush.bf16.msra.mxu0 0
    %4578 = vmatpush.bf16.msra.mxu0 0
    %4579 = vmatpush.bf16.msra.mxu0 0
    %4580 = vmatpush.bf16.msra.mxu0 0
    %4581 = vmatpush.bf16.msra.mxu0 0
    %4582 = vmatpush.bf16.msra.mxu0 0
    %4583 = vmatpush.bf16.msra.mxu0 %v1715
    %4584 = vmatpush.bf16.msra.mxu0 %v1711
    %4585 = vmatmul.bf16.gmra.mxu0 %v4533
    %v4586 = vpop.f32.mrf.mxu0
    %v4587 = vadd.f32 0.0, %v4586
    %v4588 = vpop.f32.mrf.mxu0
    %v4589 = vadd.f32 0.0, %v4588
    %4590 = vdwg.mxu0
    %v4591 = vadd.f32 %v4485, %v4545
    %v4592 = vadd.f32 %v4499, %v4559
    %v4593 = vadd.f32 %v4513, %v4573
    %v4594 = vadd.f32 %v4527, %v4587
    %v4595 = vadd.f32 %v4487, %v4547
    %v4596 = vadd.f32 %v4501, %v4561
    %v4597 = vadd.f32 %v4515, %v4575
    %v4598 = vadd.f32 %v4529, %v4589
    %v4599 = vxor.u32 %v4591, 2147483648
    %v4600 = vxor.u32 %v4592, 2147483648
    %v4601 = vxor.u32 %v4593, 2147483648
    %v4602 = vxor.u32 %v4595, 2147483648
    %v4603 = vxor.u32 %v4596, 2147483648
    %v4604 = vxor.u32 %v4597, 2147483648
    %v4605 = vmul.f32 %v4599, 1.442695
    %v4606 = vpow.pop %v4605
    %v4607 = vmul.f32 %v4600, 1.442695
    %v4608 = vpow.pop %v4607
    %v4609 = vmul.f32 %v4601, 1.442695
    %v4610 = vpow.pop %v4609
    %v4611 = vmul.f32 %v4602, 1.442695
    %v4612 = vpow.pop %v4611
    %v4613 = vmul.f32 %v4603, 1.442695
    %v4614 = vpow.pop %v4613
    %v4615 = vmul.f32 %v4604, 1.442695
    %v4616 = vpow.pop %v4615
    %v4617 = vadd.f32 %v4606, 1.0
    %v4618 = vadd.f32 %v4608, 1.0
    %v4619 = vadd.f32 %v4610, 1.0
    %v4620 = vadd.f32 %v4612, 1.0
    %v4621 = vadd.f32 %v4614, 1.0
    %v4622 = vadd.f32 %v4616, 1.0
    %v4623 = vrcp.pop %v4617
    %v4624 = vmul.f32 %v4617, %v4623
    %v4625 = vsub.f32 1.0, %v4624
    %v4626 = vmul.f32 %v4623, %v4625
    %v4627 = vadd.f32 %v4623, %v4626
    %vm4628 = vweird.f32 %v4617
    %vm4629 = vweird.f32 %v4623
    %vm4630 = vmor %vm4628, %vm4629
    %v4631 = vsel %vm4630, %v4623, %v4627
    %v4632 = vand.u32 2147483647, %v4617
    %vm4633 = vcmp.eq.f32.partialorder %v4632, 8.507059e+37
    %v4634 = vand.u32 %v4617, 2147483648
    %v4635 = vor.u32 1.1754944e-38, %v4634
    %v4636 = vsel %vm4633, %v4635, %v4631
    %v4637 = vmul.f32 1.0, %v4636
    %v4638 = vrcp.pop %v4618
    %v4639 = vmul.f32 %v4618, %v4638
    %v4640 = vsub.f32 1.0, %v4639
    %v4641 = vmul.f32 %v4638, %v4640
    %v4642 = vadd.f32 %v4638, %v4641
    %vm4643 = vweird.f32 %v4618
    %vm4644 = vweird.f32 %v4638
    %vm4645 = vmor %vm4643, %vm4644
    %v4646 = vsel %vm4645, %v4638, %v4642
    %v4647 = vand.u32 2147483647, %v4618
    %vm4648 = vcmp.eq.f32.partialorder %v4647, 8.507059e+37
    %v4649 = vand.u32 %v4618, 2147483648
    %v4650 = vor.u32 1.1754944e-38, %v4649
    %v4651 = vsel %vm4648, %v4650, %v4646
    %v4652 = vmul.f32 1.0, %v4651
    %v4653 = vrcp.pop %v4619
    %v4654 = vmul.f32 %v4619, %v4653
    %v4655 = vsub.f32 1.0, %v4654
    %v4656 = vmul.f32 %v4653, %v4655
    %v4657 = vadd.f32 %v4653, %v4656
    %vm4658 = vweird.f32 %v4619
    %vm4659 = vweird.f32 %v4653
    %vm4660 = vmor %vm4658, %vm4659
    %v4661 = vsel %vm4660, %v4653, %v4657
    %v4662 = vand.u32 2147483647, %v4619
    %vm4663 = vcmp.eq.f32.partialorder %v4662, 8.507059e+37
    %v4664 = vand.u32 %v4619, 2147483648
    %v4665 = vor.u32 1.1754944e-38, %v4664
    %v4666 = vsel %vm4663, %v4665, %v4661
    %v4667 = vmul.f32 1.0, %v4666
    %v4668 = vrcp.pop %v4620
    %v4669 = vmul.f32 %v4620, %v4668
    %v4670 = vsub.f32 1.0, %v4669
    %v4671 = vmul.f32 %v4668, %v4670
    %v4672 = vadd.f32 %v4668, %v4671
    %vm4673 = vweird.f32 %v4620
    %vm4674 = vweird.f32 %v4668
    %vm4675 = vmor %vm4673, %vm4674
    %v4676 = vsel %vm4675, %v4668, %v4672
    %v4677 = vand.u32 2147483647, %v4620
    %vm4678 = vcmp.eq.f32.partialorder %v4677, 8.507059e+37
    %v4679 = vand.u32 %v4620, 2147483648
    %v4680 = vor.u32 1.1754944e-38, %v4679
    %v4681 = vsel %vm4678, %v4680, %v4676
    %v4682 = vmul.f32 1.0, %v4681
    %v4683 = vrcp.pop %v4621
    %v4684 = vmul.f32 %v4621, %v4683
    %v4685 = vsub.f32 1.0, %v4684
    %v4686 = vmul.f32 %v4683, %v4685
    %v4687 = vadd.f32 %v4683, %v4686
    %vm4688 = vweird.f32 %v4621
    %vm4689 = vweird.f32 %v4683
    %vm4690 = vmor %vm4688, %vm4689
    %v4691 = vsel %vm4690, %v4683, %v4687
    %v4692 = vand.u32 2147483647, %v4621
    %vm4693 = vcmp.eq.f32.partialorder %v4692, 8.507059e+37
    %v4694 = vand.u32 %v4621, 2147483648
    %v4695 = vor.u32 1.1754944e-38, %v4694
    %v4696 = vsel %vm4693, %v4695, %v4691
    %v4697 = vmul.f32 1.0, %v4696
    %v4698 = vrcp.pop %v4622
    %v4699 = vmul.f32 %v4622, %v4698
    %v4700 = vsub.f32 1.0, %v4699
    %v4701 = vmul.f32 %v4698, %v4700
    %v4702 = vadd.f32 %v4698, %v4701
    %vm4703 = vweird.f32 %v4622
    %vm4704 = vweird.f32 %v4698
    %vm4705 = vmor %vm4703, %vm4704
    %v4706 = vsel %vm4705, %v4698, %v4702
    %v4707 = vand.u32 2147483647, %v4622
    %vm4708 = vcmp.eq.f32.partialorder %v4707, 8.507059e+37
    %v4709 = vand.u32 %v4622, 2147483648
    %v4710 = vor.u32 1.1754944e-38, %v4709
    %v4711 = vsel %vm4708, %v4710, %v4706
    %v4712 = vmul.f32 1.0, %v4711
    %v4713 = vtanh.pop %v4594
    %v4714 = vtanh.pop %v4598
    %v4715 = vmul.f32 %v4652, %v4017
    %v4716 = vmul.f32 %v4697, %v4018
    %v4717 = vmul.f32 %v4637, %v4713
    %v4718 = vmul.f32 %v4682, %v4714
    %v4719 = vadd.f32 %v4715, %v4717
    %v4720 = vadd.f32 %v4716, %v4718
    %v4721 = vtanh.pop %v4719
    %v4722 = vtanh.pop %v4720
    %v4723 = vmul.f32 %v4667, %v4721
    %v4724 = vmul.f32 %v4712, %v4722
    %s4725 = smul.u32 10, 4
    %s4726 = smul.addr %s4725, 8
    %s4727 = scalar_lea.vmem [#allocation2], %s4726
    %v4728 = vld [vmem:[%s4727] sm:$0xff]
    %v4729 = vld [vmem:[%s4727 + $0x8] sm:$0xff]
    %v4730 = vld [vmem:[%s4727 + $0x10] sm:$0xff]
    %v4731 = vld [vmem:[%s4727 + $0x18] sm:$0xff]
    %v4732 = vld [vmem:[%s4727 + $0x20] sm:$0xff]
    %v4733 = vld [vmem:[%s4727 + $0x28] sm:$0xff]
    %v4734 = vld [vmem:[%s4727 + $0x30] sm:$0xff]
    %v4735 = vld [vmem:[%s4727 + $0x38] sm:$0xff]
    %4736 = vmatpush.bf16.msra.mxu0 %v827
    %4737 = vmatpush.bf16.msra.mxu0 %v823
    %4738 = vmatpush.bf16.msra.mxu0 %v819
    %4739 = vmatpush.bf16.msra.mxu0 %v815
    %4740 = vmatpush.bf16.msra.mxu0 %v811
    %4741 = vmatpush.bf16.msra.mxu0 %v807
    %4742 = vmatpush.bf16.msra.mxu0 %v803
    %4743 = vmatpush.bf16.msra.mxu0 %v799
    %4744 = vmatmul.bf16.gmra.mxu0 %v4224
    %v4745 = vpop.f32.mrf.mxu0
    %v4746 = vadd.f32 0.0, %v4745
    %v4747 = vpop.f32.mrf.mxu0
    %v4748 = vadd.f32 0.0, %v4747
    %4749 = vdwg.mxu0
    %4750 = vmatpush.bf16.msra.mxu0 %v828
    %4751 = vmatpush.bf16.msra.mxu0 %v824
    %4752 = vmatpush.bf16.msra.mxu0 %v820
    %4753 = vmatpush.bf16.msra.mxu0 %v816
    %4754 = vmatpush.bf16.msra.mxu0 %v812
    %4755 = vmatpush.bf16.msra.mxu0 %v808
    %4756 = vmatpush.bf16.msra.mxu0 %v804
    %4757 = vmatpush.bf16.msra.mxu0 %v800
    %4758 = vmatmul.bf16.gmra.mxu0 %v4224
    %v4759 = vpop.f32.mrf.mxu0
    %v4760 = vadd.f32 0.0, %v4759
    %v4761 = vpop.f32.mrf.mxu0
    %v4762 = vadd.f32 0.0, %v4761
    %4763 = vdwg.mxu0
    %4764 = vmatpush.bf16.msra.mxu0 %v829
    %4765 = vmatpush.bf16.msra.mxu0 %v825
    %4766 = vmatpush.bf16.msra.mxu0 %v821
    %4767 = vmatpush.bf16.msra.mxu0 %v817
    %4768 = vmatpush.bf16.msra.mxu0 %v813
    %4769 = vmatpush.bf16.msra.mxu0 %v809
    %4770 = vmatpush.bf16.msra.mxu0 %v805
    %4771 = vmatpush.bf16.msra.mxu0 %v801
    %4772 = vmatmul.bf16.gmra.mxu0 %v4224
    %v4773 = vpop.f32.mrf.mxu0
    %v4774 = vadd.f32 0.0, %v4773
    %v4775 = vpop.f32.mrf.mxu0
    %v4776 = vadd.f32 0.0, %v4775
    %4777 = vdwg.mxu0
    %4778 = vmatpush.bf16.msra.mxu0 %v830
    %4779 = vmatpush.bf16.msra.mxu0 %v826
    %4780 = vmatpush.bf16.msra.mxu0 %v822
    %4781 = vmatpush.bf16.msra.mxu0 %v818
    %4782 = vmatpush.bf16.msra.mxu0 %v814
    %4783 = vmatpush.bf16.msra.mxu0 %v810
    %4784 = vmatpush.bf16.msra.mxu0 %v806
    %4785 = vmatpush.bf16.msra.mxu0 %v802
    %4786 = vmatmul.bf16.gmra.mxu0 %v4224
    %v4787 = vpop.f32.mrf.mxu0
    %v4788 = vadd.f32 0.0, %v4787
    %v4789 = vpop.f32.mrf.mxu0
    %v4790 = vadd.f32 0.0, %v4789
    %4791 = vdwg.mxu0
    %v4792 = vadd.f32 %v4728, %v4746
    %v4793 = vadd.f32 %v4729, %v4760
    %v4794 = vadd.f32 %v4730, %v4774
    %v4795 = vadd.f32 %v4731, %v4788
    %v4796 = vadd.f32 %v4732, %v4748
    %v4797 = vadd.f32 %v4733, %v4762
    %v4798 = vadd.f32 %v4734, %v4776
    %v4799 = vadd.f32 %v4735, %v4790
    %v4800 = vxor.u32 %v4792, 2147483648
    %v4801 = vxor.u32 %v4793, 2147483648
    %v4802 = vxor.u32 %v4794, 2147483648
    %v4803 = vxor.u32 %v4796, 2147483648
    %v4804 = vxor.u32 %v4797, 2147483648
    %v4805 = vxor.u32 %v4798, 2147483648
    %v4806 = vmul.f32 %v4800, 1.442695
    %v4807 = vpow.pop %v4806
    %v4808 = vmul.f32 %v4801, 1.442695
    %v4809 = vpow.pop %v4808
    %v4810 = vmul.f32 %v4802, 1.442695
    %v4811 = vpow.pop %v4810
    %v4812 = vmul.f32 %v4803, 1.442695
    %v4813 = vpow.pop %v4812
    %v4814 = vmul.f32 %v4804, 1.442695
    %v4815 = vpow.pop %v4814
    %v4816 = vmul.f32 %v4805, 1.442695
    %v4817 = vpow.pop %v4816
    %v4818 = vadd.f32 %v4807, 1.0
    %v4819 = vadd.f32 %v4809, 1.0
    %v4820 = vadd.f32 %v4811, 1.0
    %v4821 = vadd.f32 %v4813, 1.0
    %v4822 = vadd.f32 %v4815, 1.0
    %v4823 = vadd.f32 %v4817, 1.0
    %v4824 = vrcp.pop %v4818
    %v4825 = vmul.f32 %v4818, %v4824
    %v4826 = vsub.f32 1.0, %v4825
    %v4827 = vmul.f32 %v4824, %v4826
    %v4828 = vadd.f32 %v4824, %v4827
    %vm4829 = vweird.f32 %v4818
    %vm4830 = vweird.f32 %v4824
    %vm4831 = vmor %vm4829, %vm4830
    %v4832 = vsel %vm4831, %v4824, %v4828
    %v4833 = vand.u32 2147483647, %v4818
    %vm4834 = vcmp.eq.f32.partialorder %v4833, 8.507059e+37
    %v4835 = vand.u32 %v4818, 2147483648
    %v4836 = vor.u32 1.1754944e-38, %v4835
    %v4837 = vsel %vm4834, %v4836, %v4832
    %v4838 = vmul.f32 1.0, %v4837
    %v4839 = vrcp.pop %v4819
    %v4840 = vmul.f32 %v4819, %v4839
    %v4841 = vsub.f32 1.0, %v4840
    %v4842 = vmul.f32 %v4839, %v4841
    %v4843 = vadd.f32 %v4839, %v4842
    %vm4844 = vweird.f32 %v4819
    %vm4845 = vweird.f32 %v4839
    %vm4846 = vmor %vm4844, %vm4845
    %v4847 = vsel %vm4846, %v4839, %v4843
    %v4848 = vand.u32 2147483647, %v4819
    %vm4849 = vcmp.eq.f32.partialorder %v4848, 8.507059e+37
    %v4850 = vand.u32 %v4819, 2147483648
    %v4851 = vor.u32 1.1754944e-38, %v4850
    %v4852 = vsel %vm4849, %v4851, %v4847
    %v4853 = vmul.f32 1.0, %v4852
    %v4854 = vrcp.pop %v4820
    %v4855 = vmul.f32 %v4820, %v4854
    %v4856 = vsub.f32 1.0, %v4855
    %v4857 = vmul.f32 %v4854, %v4856
    %v4858 = vadd.f32 %v4854, %v4857
    %vm4859 = vweird.f32 %v4820
    %vm4860 = vweird.f32 %v4854
    %vm4861 = vmor %vm4859, %vm4860
    %v4862 = vsel %vm4861, %v4854, %v4858
    %v4863 = vand.u32 2147483647, %v4820
    %vm4864 = vcmp.eq.f32.partialorder %v4863, 8.507059e+37
    %v4865 = vand.u32 %v4820, 2147483648
    %v4866 = vor.u32 1.1754944e-38, %v4865
    %v4867 = vsel %vm4864, %v4866, %v4862
    %v4868 = vmul.f32 1.0, %v4867
    %v4869 = vrcp.pop %v4821
    %v4870 = vmul.f32 %v4821, %v4869
    %v4871 = vsub.f32 1.0, %v4870
    %v4872 = vmul.f32 %v4869, %v4871
    %v4873 = vadd.f32 %v4869, %v4872
    %vm4874 = vweird.f32 %v4821
    %vm4875 = vweird.f32 %v4869
    %vm4876 = vmor %vm4874, %vm4875
    %v4877 = vsel %vm4876, %v4869, %v4873
    %v4878 = vand.u32 2147483647, %v4821
    %vm4879 = vcmp.eq.f32.partialorder %v4878, 8.507059e+37
    %v4880 = vand.u32 %v4821, 2147483648
    %v4881 = vor.u32 1.1754944e-38, %v4880
    %v4882 = vsel %vm4879, %v4881, %v4877
    %v4883 = vmul.f32 1.0, %v4882
    %v4884 = vrcp.pop %v4822
    %v4885 = vmul.f32 %v4822, %v4884
    %v4886 = vsub.f32 1.0, %v4885
    %v4887 = vmul.f32 %v4884, %v4886
    %v4888 = vadd.f32 %v4884, %v4887
    %vm4889 = vweird.f32 %v4822
    %vm4890 = vweird.f32 %v4884
    %vm4891 = vmor %vm4889, %vm4890
    %v4892 = vsel %vm4891, %v4884, %v4888
    %v4893 = vand.u32 2147483647, %v4822
    %vm4894 = vcmp.eq.f32.partialorder %v4893, 8.507059e+37
    %v4895 = vand.u32 %v4822, 2147483648
    %v4896 = vor.u32 1.1754944e-38, %v4895
    %v4897 = vsel %vm4894, %v4896, %v4892
    %v4898 = vmul.f32 1.0, %v4897
    %v4899 = vrcp.pop %v4823
    %v4900 = vmul.f32 %v4823, %v4899
    %v4901 = vsub.f32 1.0, %v4900
    %v4902 = vmul.f32 %v4899, %v4901
    %v4903 = vadd.f32 %v4899, %v4902
    %vm4904 = vweird.f32 %v4823
    %vm4905 = vweird.f32 %v4899
    %vm4906 = vmor %vm4904, %vm4905
    %v4907 = vsel %vm4906, %v4899, %v4903
    %v4908 = vand.u32 2147483647, %v4823
    %vm4909 = vcmp.eq.f32.partialorder %v4908, 8.507059e+37
    %v4910 = vand.u32 %v4823, 2147483648
    %v4911 = vor.u32 1.1754944e-38, %v4910
    %v4912 = vsel %vm4909, %v4911, %v4907
    %v4913 = vmul.f32 1.0, %v4912
    %v4914 = vtanh.pop %v4795
    %v4915 = vtanh.pop %v4799
    %v4916 = vmul.f32 %v4853, %v4218
    %v4917 = vmul.f32 %v4898, %v4219
    %v4918 = vmul.f32 %v4838, %v4914
    %v4919 = vmul.f32 %v4883, %v4915
    %v4920 = vadd.f32 %v4916, %v4918
    %v4921 = vadd.f32 %v4917, %v4919
    %v4922 = vtanh.pop %v4920
    %v4923 = vtanh.pop %v4921
    %v4924 = vmul.f32 %v4868, %v4922
    %v4925 = vmul.f32 %v4913, %v4923
    %v4926 = vpack.c.bf16 %v4925, %v4924
    %4927 = vmatpush.bf16.msra.mxu0 %v1178
    %4928 = vmatpush.bf16.msra.mxu0 %v1174
    %4929 = vmatpush.bf16.msra.mxu0 %v1170
    %4930 = vmatpush.bf16.msra.mxu0 %v1166
    %4931 = vmatpush.bf16.msra.mxu0 %v1162
    %4932 = vmatpush.bf16.msra.mxu0 %v1158
    %4933 = vmatpush.bf16.msra.mxu0 %v1154
    %4934 = vmatpush.bf16.msra.mxu0 %v1150
    %4935 = vmatmul.bf16.gmra.mxu0 %v4926
    %v4936 = vpop.f32.mrf.mxu0
    %v4937 = vadd.f32 %v674, %v4936
    %v4938 = vpop.f32.mrf.mxu0
    %v4939 = vadd.f32 %v674, %v4938
    %4940 = vdwg.mxu0
    %4941 = vmatpush.bf16.msra.mxu0 %v1179
    %4942 = vmatpush.bf16.msra.mxu0 %v1175
    %4943 = vmatpush.bf16.msra.mxu0 %v1171
    %4944 = vmatpush.bf16.msra.mxu0 %v1167
    %4945 = vmatpush.bf16.msra.mxu0 %v1163
    %4946 = vmatpush.bf16.msra.mxu0 %v1159
    %4947 = vmatpush.bf16.msra.mxu0 %v1155
    %4948 = vmatpush.bf16.msra.mxu0 %v1151
    %4949 = vmatmul.bf16.gmra.mxu0 %v4926
    %v4950 = vpop.f32.mrf.mxu0
    %v4951 = vadd.f32 %v675, %v4950
    %v4952 = vpop.f32.mrf.mxu0
    %v4953 = vadd.f32 %v675, %v4952
    %4954 = vdwg.mxu0
    %4955 = vmatpush.bf16.msra.mxu0 %v1180
    %4956 = vmatpush.bf16.msra.mxu0 %v1176
    %4957 = vmatpush.bf16.msra.mxu0 %v1172
    %4958 = vmatpush.bf16.msra.mxu0 %v1168
    %4959 = vmatpush.bf16.msra.mxu0 %v1164
    %4960 = vmatpush.bf16.msra.mxu0 %v1160
    %4961 = vmatpush.bf16.msra.mxu0 %v1156
    %4962 = vmatpush.bf16.msra.mxu0 %v1152
    %4963 = vmatmul.bf16.gmra.mxu0 %v4926
    %v4964 = vpop.f32.mrf.mxu0
    %v4965 = vadd.f32 %v676, %v4964
    %v4966 = vpop.f32.mrf.mxu0
    %v4967 = vadd.f32 %v676, %v4966
    %4968 = vdwg.mxu0
    %4969 = vmatpush.bf16.msra.mxu0 %v1181
    %4970 = vmatpush.bf16.msra.mxu0 %v1177
    %4971 = vmatpush.bf16.msra.mxu0 %v1173
    %4972 = vmatpush.bf16.msra.mxu0 %v1169
    %4973 = vmatpush.bf16.msra.mxu0 %v1165
    %4974 = vmatpush.bf16.msra.mxu0 %v1161
    %4975 = vmatpush.bf16.msra.mxu0 %v1157
    %4976 = vmatpush.bf16.msra.mxu0 %v1153
    %4977 = vmatmul.bf16.gmra.mxu0 %v4926
    %v4978 = vpop.f32.mrf.mxu0
    %v4979 = vadd.f32 %v677, %v4978
    %v4980 = vpop.f32.mrf.mxu0
    %v4981 = vadd.f32 %v677, %v4980
    %4982 = vdwg.mxu0
    %4983 = vmatpush.bf16.msra.mxu0 0
    %4984 = vmatpush.bf16.msra.mxu0 0
    %4985 = vmatpush.bf16.msra.mxu0 0
    %4986 = vmatpush.bf16.msra.mxu0 0
    %4987 = vmatpush.bf16.msra.mxu0 %v1330
    %4988 = vmatpush.bf16.msra.mxu0 %v1326
    %4989 = vmatpush.bf16.msra.mxu0 %v1322
    %4990 = vmatpush.bf16.msra.mxu0 %v1318
    %4991 = vmatmul.bf16.gmra.mxu0 %v4473
    %v4992 = vpop.f32.mrf.mxu0
    %v4993 = vadd.f32 0.0, %v4992
    %v4994 = vpop.f32.mrf.mxu0
    %v4995 = vadd.f32 0.0, %v4994
    %4996 = vdwg.mxu0
    %4997 = vmatpush.bf16.msra.mxu0 0
    %4998 = vmatpush.bf16.msra.mxu0 0
    %4999 = vmatpush.bf16.msra.mxu0 0
    %5000 = vmatpush.bf16.msra.mxu0 0
    %5001 = vmatpush.bf16.msra.mxu0 %v1331
    %5002 = vmatpush.bf16.msra.mxu0 %v1327
    %5003 = vmatpush.bf16.msra.mxu0 %v1323
    %5004 = vmatpush.bf16.msra.mxu0 %v1319
    %5005 = vmatmul.bf16.gmra.mxu0 %v4473
    %v5006 = vpop.f32.mrf.mxu0
    %v5007 = vadd.f32 0.0, %v5006
    %v5008 = vpop.f32.mrf.mxu0
    %v5009 = vadd.f32 0.0, %v5008
    %5010 = vdwg.mxu0
    %5011 = vmatpush.bf16.msra.mxu0 0
    %5012 = vmatpush.bf16.msra.mxu0 0
    %5013 = vmatpush.bf16.msra.mxu0 0
    %5014 = vmatpush.bf16.msra.mxu0 0
    %5015 = vmatpush.bf16.msra.mxu0 %v1332
    %5016 = vmatpush.bf16.msra.mxu0 %v1328
    %5017 = vmatpush.bf16.msra.mxu0 %v1324
    %5018 = vmatpush.bf16.msra.mxu0 %v1320
    %5019 = vmatmul.bf16.gmra.mxu0 %v4473
    %v5020 = vpop.f32.mrf.mxu0
    %v5021 = vadd.f32 0.0, %v5020
    %v5022 = vpop.f32.mrf.mxu0
    %v5023 = vadd.f32 0.0, %v5022
    %5024 = vdwg.mxu0
    %5025 = vmatpush.bf16.msra.mxu0 0
    %5026 = vmatpush.bf16.msra.mxu0 0
    %5027 = vmatpush.bf16.msra.mxu0 0
    %5028 = vmatpush.bf16.msra.mxu0 0
    %5029 = vmatpush.bf16.msra.mxu0 %v1333
    %5030 = vmatpush.bf16.msra.mxu0 %v1329
    %5031 = vmatpush.bf16.msra.mxu0 %v1325
    %5032 = vmatpush.bf16.msra.mxu0 %v1321
    %5033 = vmatmul.bf16.gmra.mxu0 %v4473
    %v5034 = vpop.f32.mrf.mxu0
    %v5035 = vadd.f32 0.0, %v5034
    %v5036 = vpop.f32.mrf.mxu0
    %v5037 = vadd.f32 0.0, %v5036
    %5038 = vdwg.mxu0
    %v5039 = vadd.f32 %v4937, %v4993
    %v5040 = vadd.f32 %v4951, %v5007
    %v5041 = vadd.f32 %v4965, %v5021
    %v5042 = vadd.f32 %v4979, %v5035
    %v5043 = vadd.f32 %v4939, %v4995
    %v5044 = vadd.f32 %v4953, %v5009
    %v5045 = vadd.f32 %v4967, %v5023
    %v5046 = vadd.f32 %v4981, %v5037
    %v5047 = vxor.u32 %v5039, 2147483648
    %v5048 = vxor.u32 %v5040, 2147483648
    %v5049 = vxor.u32 %v5041, 2147483648
    %v5050 = vxor.u32 %v5043, 2147483648
    %v5051 = vxor.u32 %v5044, 2147483648
    %v5052 = vxor.u32 %v5045, 2147483648
    %v5053 = vmul.f32 %v5047, 1.442695
    %v5054 = vpow.pop %v5053
    %v5055 = vmul.f32 %v5048, 1.442695
    %v5056 = vpow.pop %v5055
    %v5057 = vmul.f32 %v5049, 1.442695
    %v5058 = vpow.pop %v5057
    %v5059 = vmul.f32 %v5050, 1.442695
    %v5060 = vpow.pop %v5059
    %v5061 = vmul.f32 %v5051, 1.442695
    %v5062 = vpow.pop %v5061
    %v5063 = vmul.f32 %v5052, 1.442695
    %v5064 = vpow.pop %v5063
    %v5065 = vadd.f32 %v5054, 1.0
    %v5066 = vadd.f32 %v5056, 1.0
    %v5067 = vadd.f32 %v5058, 1.0
    %v5068 = vadd.f32 %v5060, 1.0
    %v5069 = vadd.f32 %v5062, 1.0
    %v5070 = vadd.f32 %v5064, 1.0
    %v5071 = vrcp.pop %v5065
    %v5072 = vmul.f32 %v5065, %v5071
    %v5073 = vsub.f32 1.0, %v5072
    %v5074 = vmul.f32 %v5071, %v5073
    %v5075 = vadd.f32 %v5071, %v5074
    %vm5076 = vweird.f32 %v5065
    %vm5077 = vweird.f32 %v5071
    %vm5078 = vmor %vm5076, %vm5077
    %v5079 = vsel %vm5078, %v5071, %v5075
    %v5080 = vand.u32 2147483647, %v5065
    %vm5081 = vcmp.eq.f32.partialorder %v5080, 8.507059e+37
    %v5082 = vand.u32 %v5065, 2147483648
    %v5083 = vor.u32 1.1754944e-38, %v5082
    %v5084 = vsel %vm5081, %v5083, %v5079
    %v5085 = vmul.f32 1.0, %v5084
    %v5086 = vrcp.pop %v5066
    %v5087 = vmul.f32 %v5066, %v5086
    %v5088 = vsub.f32 1.0, %v5087
    %v5089 = vmul.f32 %v5086, %v5088
    %v5090 = vadd.f32 %v5086, %v5089
    %vm5091 = vweird.f32 %v5066
    %vm5092 = vweird.f32 %v5086
    %vm5093 = vmor %vm5091, %vm5092
    %v5094 = vsel %vm5093, %v5086, %v5090
    %v5095 = vand.u32 2147483647, %v5066
    %vm5096 = vcmp.eq.f32.partialorder %v5095, 8.507059e+37
    %v5097 = vand.u32 %v5066, 2147483648
    %v5098 = vor.u32 1.1754944e-38, %v5097
    %v5099 = vsel %vm5096, %v5098, %v5094
    %v5100 = vmul.f32 1.0, %v5099
    %v5101 = vrcp.pop %v5067
    %v5102 = vmul.f32 %v5067, %v5101
    %v5103 = vsub.f32 1.0, %v5102
    %v5104 = vmul.f32 %v5101, %v5103
    %v5105 = vadd.f32 %v5101, %v5104
    %vm5106 = vweird.f32 %v5067
    %vm5107 = vweird.f32 %v5101
    %vm5108 = vmor %vm5106, %vm5107
    %v5109 = vsel %vm5108, %v5101, %v5105
    %v5110 = vand.u32 2147483647, %v5067
    %vm5111 = vcmp.eq.f32.partialorder %v5110, 8.507059e+37
    %v5112 = vand.u32 %v5067, 2147483648
    %v5113 = vor.u32 1.1754944e-38, %v5112
    %v5114 = vsel %vm5111, %v5113, %v5109
    %v5115 = vmul.f32 1.0, %v5114
    %v5116 = vrcp.pop %v5068
    %v5117 = vmul.f32 %v5068, %v5116
    %v5118 = vsub.f32 1.0, %v5117
    %v5119 = vmul.f32 %v5116, %v5118
    %v5120 = vadd.f32 %v5116, %v5119
    %vm5121 = vweird.f32 %v5068
    %vm5122 = vweird.f32 %v5116
    %vm5123 = vmor %vm5121, %vm5122
    %v5124 = vsel %vm5123, %v5116, %v5120
    %v5125 = vand.u32 2147483647, %v5068
    %vm5126 = vcmp.eq.f32.partialorder %v5125, 8.507059e+37
    %v5127 = vand.u32 %v5068, 2147483648
    %v5128 = vor.u32 1.1754944e-38, %v5127
    %v5129 = vsel %vm5126, %v5128, %v5124
    %v5130 = vmul.f32 1.0, %v5129
    %v5131 = vrcp.pop %v5069
    %v5132 = vmul.f32 %v5069, %v5131
    %v5133 = vsub.f32 1.0, %v5132
    %v5134 = vmul.f32 %v5131, %v5133
    %v5135 = vadd.f32 %v5131, %v5134
    %vm5136 = vweird.f32 %v5069
    %vm5137 = vweird.f32 %v5131
    %vm5138 = vmor %vm5136, %vm5137
    %v5139 = vsel %vm5138, %v5131, %v5135
    %v5140 = vand.u32 2147483647, %v5069
    %vm5141 = vcmp.eq.f32.partialorder %v5140, 8.507059e+37
    %v5142 = vand.u32 %v5069, 2147483648
    %v5143 = vor.u32 1.1754944e-38, %v5142
    %v5144 = vsel %vm5141, %v5143, %v5139
    %v5145 = vmul.f32 1.0, %v5144
    %v5146 = vrcp.pop %v5070
    %v5147 = vmul.f32 %v5070, %v5146
    %v5148 = vsub.f32 1.0, %v5147
    %v5149 = vmul.f32 %v5146, %v5148
    %v5150 = vadd.f32 %v5146, %v5149
    %vm5151 = vweird.f32 %v5070
    %vm5152 = vweird.f32 %v5146
    %vm5153 = vmor %vm5151, %vm5152
    %v5154 = vsel %vm5153, %v5146, %v5150
    %v5155 = vand.u32 2147483647, %v5070
    %vm5156 = vcmp.eq.f32.partialorder %v5155, 8.507059e+37
    %v5157 = vand.u32 %v5070, 2147483648
    %v5158 = vor.u32 1.1754944e-38, %v5157
    %v5159 = vsel %vm5156, %v5158, %v5154
    %v5160 = vmul.f32 1.0, %v5159
    %v5161 = vtanh.pop %v5042
    %v5162 = vtanh.pop %v5046
    %v5163 = vmul.f32 %v5100, %v4465
    %v5164 = vmul.f32 %v5145, %v4466
    %v5165 = vmul.f32 %v5085, %v5161
    %v5166 = vmul.f32 %v5130, %v5162
    %v5167 = vadd.f32 %v5163, %v5165
    %v5168 = vadd.f32 %v5164, %v5166
    %v5169 = vtanh.pop %v5167
    %v5170 = vtanh.pop %v5168
    %v5171 = vmul.f32 %v5115, %v5169
    %v5172 = vmul.f32 %v5160, %v5170
    %v5173 = vpack.c.bf16 %v5172, %v5171
    %v5175 = vsel %vm1350, %v5173, 0
    %5177 = vmatpush.bf16.msra.mxu0 0
    %5178 = vmatpush.bf16.msra.mxu0 0
    %5179 = vmatpush.bf16.msra.mxu0 0
    %5180 = vmatpush.bf16.msra.mxu0 0
    %5181 = vmatpush.bf16.msra.mxu0 %v1605
    %5182 = vmatpush.bf16.msra.mxu0 %v1601
    %5183 = vmatpush.bf16.msra.mxu0 %v1597
    %5184 = vmatpush.bf16.msra.mxu0 %v1593
    %5185 = vmatmul.bf16.gmra.mxu0 %v5175
    %v5186 = vpop.f32.mrf.mxu0
    %v5187 = vadd.f32 %v684, %v5186
    %v5188 = vpop.f32.mrf.mxu0
    %v5189 = vadd.f32 %v684, %v5188
    %5190 = vdwg.mxu0
    %5191 = vmatpush.bf16.msra.mxu0 0
    %5192 = vmatpush.bf16.msra.mxu0 0
    %5193 = vmatpush.bf16.msra.mxu0 0
    %5194 = vmatpush.bf16.msra.mxu0 0
    %5195 = vmatpush.bf16.msra.mxu0 %v1606
    %5196 = vmatpush.bf16.msra.mxu0 %v1602
    %5197 = vmatpush.bf16.msra.mxu0 %v1598
    %5198 = vmatpush.bf16.msra.mxu0 %v1594
    %5199 = vmatmul.bf16.gmra.mxu0 %v5175
    %v5200 = vpop.f32.mrf.mxu0
    %v5201 = vadd.f32 %v685, %v5200
    %v5202 = vpop.f32.mrf.mxu0
    %v5203 = vadd.f32 %v685, %v5202
    %5204 = vdwg.mxu0
    %5205 = vmatpush.bf16.msra.mxu0 0
    %5206 = vmatpush.bf16.msra.mxu0 0
    %5207 = vmatpush.bf16.msra.mxu0 0
    %5208 = vmatpush.bf16.msra.mxu0 0
    %5209 = vmatpush.bf16.msra.mxu0 %v1607
    %5210 = vmatpush.bf16.msra.mxu0 %v1603
    %5211 = vmatpush.bf16.msra.mxu0 %v1599
    %5212 = vmatpush.bf16.msra.mxu0 %v1595
    %5213 = vmatmul.bf16.gmra.mxu0 %v5175
    %v5214 = vpop.f32.mrf.mxu0
    %v5215 = vadd.f32 %v686, %v5214
    %v5216 = vpop.f32.mrf.mxu0
    %v5217 = vadd.f32 %v686, %v5216
    %5218 = vdwg.mxu0
    %5219 = vmatpush.bf16.msra.mxu0 0
    %5220 = vmatpush.bf16.msra.mxu0 0
    %5221 = vmatpush.bf16.msra.mxu0 0
    %5222 = vmatpush.bf16.msra.mxu0 0
    %5223 = vmatpush.bf16.msra.mxu0 %v1608
    %5224 = vmatpush.bf16.msra.mxu0 %v1604
    %5225 = vmatpush.bf16.msra.mxu0 %v1600
    %5226 = vmatpush.bf16.msra.mxu0 %v1596
    %5227 = vmatmul.bf16.gmra.mxu0 %v5175
    %v5228 = vpop.f32.mrf.mxu0
    %v5229 = vadd.f32 %v687, %v5228
    %v5230 = vpop.f32.mrf.mxu0
    %v5231 = vadd.f32 %v687, %v5230
    %5232 = vdwg.mxu0
    %v5233 = vpack.c.bf16 %v4724, %v4723
    %v5235 = vsel %vm1724, %v5233, 0
    %5237 = vmatpush.bf16.msra.mxu0 0
    %5238 = vmatpush.bf16.msra.mxu0 0
    %5239 = vmatpush.bf16.msra.mxu0 0
    %5240 = vmatpush.bf16.msra.mxu0 0
    %5241 = vmatpush.bf16.msra.mxu0 0
    %5242 = vmatpush.bf16.msra.mxu0 0
    %5243 = vmatpush.bf16.msra.mxu0 %v1712
    %5244 = vmatpush.bf16.msra.mxu0 %v1708
    %5245 = vmatmul.bf16.gmra.mxu0 %v5235
    %v5246 = vpop.f32.mrf.mxu0
    %v5247 = vadd.f32 0.0, %v5246
    %v5248 = vpop.f32.mrf.mxu0
    %v5249 = vadd.f32 0.0, %v5248
    %5250 = vdwg.mxu0
    %5251 = vmatpush.bf16.msra.mxu0 0
    %5252 = vmatpush.bf16.msra.mxu0 0
    %5253 = vmatpush.bf16.msra.mxu0 0
    %5254 = vmatpush.bf16.msra.mxu0 0
    %5255 = vmatpush.bf16.msra.mxu0 0
    %5256 = vmatpush.bf16.msra.mxu0 0
    %5257 = vmatpush.bf16.msra.mxu0 %v1713
    %5258 = vmatpush.bf16.msra.mxu0 %v1709
    %5259 = vmatmul.bf16.gmra.mxu0 %v5235
    %v5260 = vpop.f32.mrf.mxu0
    %v5261 = vadd.f32 0.0, %v5260
    %v5262 = vpop.f32.mrf.mxu0
    %v5263 = vadd.f32 0.0, %v5262
    %5264 = vdwg.mxu0
    %5265 = vmatpush.bf16.msra.mxu0 0
    %5266 = vmatpush.bf16.msra.mxu0 0
    %5267 = vmatpush.bf16.msra.mxu0 0
    %5268 = vmatpush.bf16.msra.mxu0 0
    %5269 = vmatpush.bf16.msra.mxu0 0
    %5270 = vmatpush.bf16.msra.mxu0 0
    %5271 = vmatpush.bf16.msra.mxu0 %v1714
    %5272 = vmatpush.bf16.msra.mxu0 %v1710
    %5273 = vmatmul.bf16.gmra.mxu0 %v5235
    %v5274 = vpop.f32.mrf.mxu0
    %v5275 = vadd.f32 0.0, %v5274
    %v5276 = vpop.f32.mrf.mxu0
    %v5277 = vadd.f32 0.0, %v5276
    %5278 = vdwg.mxu0
    %5279 = vmatpush.bf16.msra.mxu0 0
    %5280 = vmatpush.bf16.msra.mxu0 0
    %5281 = vmatpush.bf16.msra.mxu0 0
    %5282 = vmatpush.bf16.msra.mxu0 0
    %5283 = vmatpush.bf16.msra.mxu0 0
    %5284 = vmatpush.bf16.msra.mxu0 0
    %5285 = vmatpush.bf16.msra.mxu0 %v1715
    %5286 = vmatpush.bf16.msra.mxu0 %v1711
    %5287 = vmatmul.bf16.gmra.mxu0 %v5235
    %v5288 = vpop.f32.mrf.mxu0
    %v5289 = vadd.f32 0.0, %v5288
    %v5290 = vpop.f32.mrf.mxu0
    %v5291 = vadd.f32 0.0, %v5290
    %5292 = vdwg.mxu0
    %v5293 = vadd.f32 %v5187, %v5247
    %v5294 = vadd.f32 %v5201, %v5261
    %v5295 = vadd.f32 %v5215, %v5275
    %v5296 = vadd.f32 %v5229, %v5289
    %v5297 = vadd.f32 %v5189, %v5249
    %v5298 = vadd.f32 %v5203, %v5263
    %v5299 = vadd.f32 %v5217, %v5277
    %v5300 = vadd.f32 %v5231, %v5291
    %v5301 = vxor.u32 %v5293, 2147483648
    %v5302 = vxor.u32 %v5294, 2147483648
    %v5303 = vxor.u32 %v5295, 2147483648
    %v5304 = vxor.u32 %v5297, 2147483648
    %v5305 = vxor.u32 %v5298, 2147483648
    %v5306 = vxor.u32 %v5299, 2147483648
    %v5307 = vmul.f32 %v5301, 1.442695
    %v5308 = vpow.pop %v5307
    %v5309 = vmul.f32 %v5302, 1.442695
    %v5310 = vpow.pop %v5309
    %v5311 = vmul.f32 %v5303, 1.442695
    %v5312 = vpow.pop %v5311
    %v5313 = vmul.f32 %v5304, 1.442695
    %v5314 = vpow.pop %v5313
    %v5315 = vmul.f32 %v5305, 1.442695
    %v5316 = vpow.pop %v5315
    %v5317 = vmul.f32 %v5306, 1.442695
    %v5318 = vpow.pop %v5317
    %v5319 = vadd.f32 %v5308, 1.0
    %v5320 = vadd.f32 %v5310, 1.0
    %v5321 = vadd.f32 %v5312, 1.0
    %v5322 = vadd.f32 %v5314, 1.0
    %v5323 = vadd.f32 %v5316, 1.0
    %v5324 = vadd.f32 %v5318, 1.0
    %v5325 = vrcp.pop %v5319
    %v5326 = vmul.f32 %v5319, %v5325
    %v5327 = vsub.f32 1.0, %v5326
    %v5328 = vmul.f32 %v5325, %v5327
    %v5329 = vadd.f32 %v5325, %v5328
    %vm5330 = vweird.f32 %v5319
    %vm5331 = vweird.f32 %v5325
    %vm5332 = vmor %vm5330, %vm5331
    %v5333 = vsel %vm5332, %v5325, %v5329
    %v5334 = vand.u32 2147483647, %v5319
    %vm5335 = vcmp.eq.f32.partialorder %v5334, 8.507059e+37
    %v5336 = vand.u32 %v5319, 2147483648
    %v5337 = vor.u32 1.1754944e-38, %v5336
    %v5338 = vsel %vm5335, %v5337, %v5333
    %v5339 = vmul.f32 1.0, %v5338
    %v5340 = vrcp.pop %v5320
    %v5341 = vmul.f32 %v5320, %v5340
    %v5342 = vsub.f32 1.0, %v5341
    %v5343 = vmul.f32 %v5340, %v5342
    %v5344 = vadd.f32 %v5340, %v5343
    %vm5345 = vweird.f32 %v5320
    %vm5346 = vweird.f32 %v5340
    %vm5347 = vmor %vm5345, %vm5346
    %v5348 = vsel %vm5347, %v5340, %v5344
    %v5349 = vand.u32 2147483647, %v5320
    %vm5350 = vcmp.eq.f32.partialorder %v5349, 8.507059e+37
    %v5351 = vand.u32 %v5320, 2147483648
    %v5352 = vor.u32 1.1754944e-38, %v5351
    %v5353 = vsel %vm5350, %v5352, %v5348
    %v5354 = vmul.f32 1.0, %v5353
    %v5355 = vrcp.pop %v5321
    %v5356 = vmul.f32 %v5321, %v5355
    %v5357 = vsub.f32 1.0, %v5356
    %v5358 = vmul.f32 %v5355, %v5357
    %v5359 = vadd.f32 %v5355, %v5358
    %vm5360 = vweird.f32 %v5321
    %vm5361 = vweird.f32 %v5355
    %vm5362 = vmor %vm5360, %vm5361
    %v5363 = vsel %vm5362, %v5355, %v5359
    %v5364 = vand.u32 2147483647, %v5321
    %vm5365 = vcmp.eq.f32.partialorder %v5364, 8.507059e+37
    %v5366 = vand.u32 %v5321, 2147483648
    %v5367 = vor.u32 1.1754944e-38, %v5366
    %v5368 = vsel %vm5365, %v5367, %v5363
    %v5369 = vmul.f32 1.0, %v5368
    %v5370 = vrcp.pop %v5322
    %v5371 = vmul.f32 %v5322, %v5370
    %v5372 = vsub.f32 1.0, %v5371
    %v5373 = vmul.f32 %v5370, %v5372
    %v5374 = vadd.f32 %v5370, %v5373
    %vm5375 = vweird.f32 %v5322
    %vm5376 = vweird.f32 %v5370
    %vm5377 = vmor %vm5375, %vm5376
    %v5378 = vsel %vm5377, %v5370, %v5374
    %v5379 = vand.u32 2147483647, %v5322
    %vm5380 = vcmp.eq.f32.partialorder %v5379, 8.507059e+37
    %v5381 = vand.u32 %v5322, 2147483648
    %v5382 = vor.u32 1.1754944e-38, %v5381
    %v5383 = vsel %vm5380, %v5382, %v5378
    %v5384 = vmul.f32 1.0, %v5383
    %v5385 = vrcp.pop %v5323
    %v5386 = vmul.f32 %v5323, %v5385
    %v5387 = vsub.f32 1.0, %v5386
    %v5388 = vmul.f32 %v5385, %v5387
    %v5389 = vadd.f32 %v5385, %v5388
    %vm5390 = vweird.f32 %v5323
    %vm5391 = vweird.f32 %v5385
    %vm5392 = vmor %vm5390, %vm5391
    %v5393 = vsel %vm5392, %v5385, %v5389
    %v5394 = vand.u32 2147483647, %v5323
    %vm5395 = vcmp.eq.f32.partialorder %v5394, 8.507059e+37
    %v5396 = vand.u32 %v5323, 2147483648
    %v5397 = vor.u32 1.1754944e-38, %v5396
    %v5398 = vsel %vm5395, %v5397, %v5393
    %v5399 = vmul.f32 1.0, %v5398
    %v5400 = vrcp.pop %v5324
    %v5401 = vmul.f32 %v5324, %v5400
    %v5402 = vsub.f32 1.0, %v5401
    %v5403 = vmul.f32 %v5400, %v5402
    %v5404 = vadd.f32 %v5400, %v5403
    %vm5405 = vweird.f32 %v5324
    %vm5406 = vweird.f32 %v5400
    %vm5407 = vmor %vm5405, %vm5406
    %v5408 = vsel %vm5407, %v5400, %v5404
    %v5409 = vand.u32 2147483647, %v5324
    %vm5410 = vcmp.eq.f32.partialorder %v5409, 8.507059e+37
    %v5411 = vand.u32 %v5324, 2147483648
    %v5412 = vor.u32 1.1754944e-38, %v5411
    %v5413 = vsel %vm5410, %v5412, %v5408
    %v5414 = vmul.f32 1.0, %v5413
    %v5415 = vtanh.pop %v5296
    %v5416 = vtanh.pop %v5300
    %v5417 = vmul.f32 %v5354, %v4719
    %v5418 = vmul.f32 %v5399, %v4720
    %v5419 = vmul.f32 %v5339, %v5415
    %v5420 = vmul.f32 %v5384, %v5416
    %v5421 = vadd.f32 %v5417, %v5419
    %v5422 = vadd.f32 %v5418, %v5420
    %v5423 = vtanh.pop %v5421
    %v5424 = vtanh.pop %v5422
    %v5425 = vmul.f32 %v5369, %v5423
    %v5426 = vmul.f32 %v5414, %v5424
    %s5427 = smul.u32 12, 4
    %s5428 = smul.addr %s5427, 8
    %s5429 = scalar_lea.vmem [#allocation2], %s5428
    %v5430 = vld [vmem:[%s5429] sm:$0xff]
    %v5431 = vld [vmem:[%s5429 + $0x8] sm:$0xff]
    %v5432 = vld [vmem:[%s5429 + $0x10] sm:$0xff]
    %v5433 = vld [vmem:[%s5429 + $0x18] sm:$0xff]
    %v5434 = vld [vmem:[%s5429 + $0x20] sm:$0xff]
    %v5435 = vld [vmem:[%s5429 + $0x28] sm:$0xff]
    %v5436 = vld [vmem:[%s5429 + $0x30] sm:$0xff]
    %v5437 = vld [vmem:[%s5429 + $0x38] sm:$0xff]
    %5438 = vmatpush.bf16.msra.mxu0 %v827
    %5439 = vmatpush.bf16.msra.mxu0 %v823
    %5440 = vmatpush.bf16.msra.mxu0 %v819
    %5441 = vmatpush.bf16.msra.mxu0 %v815
    %5442 = vmatpush.bf16.msra.mxu0 %v811
    %5443 = vmatpush.bf16.msra.mxu0 %v807
    %5444 = vmatpush.bf16.msra.mxu0 %v803
    %5445 = vmatpush.bf16.msra.mxu0 %v799
    %5446 = vmatmul.bf16.gmra.mxu0 %v4926
    %v5447 = vpop.f32.mrf.mxu0
    %v5448 = vadd.f32 0.0, %v5447
    %v5449 = vpop.f32.mrf.mxu0
    %v5450 = vadd.f32 0.0, %v5449
    %5451 = vdwg.mxu0
    %5452 = vmatpush.bf16.msra.mxu0 %v828
    %5453 = vmatpush.bf16.msra.mxu0 %v824
    %5454 = vmatpush.bf16.msra.mxu0 %v820
    %5455 = vmatpush.bf16.msra.mxu0 %v816
    %5456 = vmatpush.bf16.msra.mxu0 %v812
    %5457 = vmatpush.bf16.msra.mxu0 %v808
    %5458 = vmatpush.bf16.msra.mxu0 %v804
    %5459 = vmatpush.bf16.msra.mxu0 %v800
    %5460 = vmatmul.bf16.gmra.mxu0 %v4926
    %v5461 = vpop.f32.mrf.mxu0
    %v5462 = vadd.f32 0.0, %v5461
    %v5463 = vpop.f32.mrf.mxu0
    %v5464 = vadd.f32 0.0, %v5463
    %5465 = vdwg.mxu0
    %5466 = vmatpush.bf16.msra.mxu0 %v829
    %5467 = vmatpush.bf16.msra.mxu0 %v825
    %5468 = vmatpush.bf16.msra.mxu0 %v821
    %5469 = vmatpush.bf16.msra.mxu0 %v817
    %5470 = vmatpush.bf16.msra.mxu0 %v813
    %5471 = vmatpush.bf16.msra.mxu0 %v809
    %5472 = vmatpush.bf16.msra.mxu0 %v805
    %5473 = vmatpush.bf16.msra.mxu0 %v801
    %5474 = vmatmul.bf16.gmra.mxu0 %v4926
    %v5475 = vpop.f32.mrf.mxu0
    %v5476 = vadd.f32 0.0, %v5475
    %v5477 = vpop.f32.mrf.mxu0
    %v5478 = vadd.f32 0.0, %v5477
    %5479 = vdwg.mxu0
    %5480 = vmatpush.bf16.msra.mxu0 %v830
    %5481 = vmatpush.bf16.msra.mxu0 %v826
    %5482 = vmatpush.bf16.msra.mxu0 %v822
    %5483 = vmatpush.bf16.msra.mxu0 %v818
    %5484 = vmatpush.bf16.msra.mxu0 %v814
    %5485 = vmatpush.bf16.msra.mxu0 %v810
    %5486 = vmatpush.bf16.msra.mxu0 %v806
    %5487 = vmatpush.bf16.msra.mxu0 %v802
    %5488 = vmatmul.bf16.gmra.mxu0 %v4926
    %v5489 = vpop.f32.mrf.mxu0
    %v5490 = vadd.f32 0.0, %v5489
    %v5491 = vpop.f32.mrf.mxu0
    %v5492 = vadd.f32 0.0, %v5491
    %5493 = vdwg.mxu0
    %v5494 = vadd.f32 %v5430, %v5448
    %v5495 = vadd.f32 %v5431, %v5462
    %v5496 = vadd.f32 %v5432, %v5476
    %v5497 = vadd.f32 %v5433, %v5490
    %v5498 = vadd.f32 %v5434, %v5450
    %v5499 = vadd.f32 %v5435, %v5464
    %v5500 = vadd.f32 %v5436, %v5478
    %v5501 = vadd.f32 %v5437, %v5492
    %v5502 = vxor.u32 %v5494, 2147483648
    %v5503 = vxor.u32 %v5495, 2147483648
    %v5504 = vxor.u32 %v5496, 2147483648
    %v5505 = vxor.u32 %v5498, 2147483648
    %v5506 = vxor.u32 %v5499, 2147483648
    %v5507 = vxor.u32 %v5500, 2147483648
    %v5508 = vmul.f32 %v5502, 1.442695
    %v5509 = vpow.pop %v5508
    %v5510 = vmul.f32 %v5503, 1.442695
    %v5511 = vpow.pop %v5510
    %v5512 = vmul.f32 %v5504, 1.442695
    %v5513 = vpow.pop %v5512
    %v5514 = vmul.f32 %v5505, 1.442695
    %v5515 = vpow.pop %v5514
    %v5516 = vmul.f32 %v5506, 1.442695
    %v5517 = vpow.pop %v5516
    %v5518 = vmul.f32 %v5507, 1.442695
    %v5519 = vpow.pop %v5518
    %v5520 = vadd.f32 %v5509, 1.0
    %v5521 = vadd.f32 %v5511, 1.0
    %v5522 = vadd.f32 %v5513, 1.0
    %v5523 = vadd.f32 %v5515, 1.0
    %v5524 = vadd.f32 %v5517, 1.0
    %v5525 = vadd.f32 %v5519, 1.0
    %v5526 = vrcp.pop %v5520
    %v5527 = vmul.f32 %v5520, %v5526
    %v5528 = vsub.f32 1.0, %v5527
    %v5529 = vmul.f32 %v5526, %v5528
    %v5530 = vadd.f32 %v5526, %v5529
    %vm5531 = vweird.f32 %v5520
    %vm5532 = vweird.f32 %v5526
    %vm5533 = vmor %vm5531, %vm5532
    %v5534 = vsel %vm5533, %v5526, %v5530
    %v5535 = vand.u32 2147483647, %v5520
    %vm5536 = vcmp.eq.f32.partialorder %v5535, 8.507059e+37
    %v5537 = vand.u32 %v5520, 2147483648
    %v5538 = vor.u32 1.1754944e-38, %v5537
    %v5539 = vsel %vm5536, %v5538, %v5534
    %v5540 = vmul.f32 1.0, %v5539
    %v5541 = vrcp.pop %v5521
    %v5542 = vmul.f32 %v5521, %v5541
    %v5543 = vsub.f32 1.0, %v5542
    %v5544 = vmul.f32 %v5541, %v5543
    %v5545 = vadd.f32 %v5541, %v5544
    %vm5546 = vweird.f32 %v5521
    %vm5547 = vweird.f32 %v5541
    %vm5548 = vmor %vm5546, %vm5547
    %v5549 = vsel %vm5548, %v5541, %v5545
    %v5550 = vand.u32 2147483647, %v5521
    %vm5551 = vcmp.eq.f32.partialorder %v5550, 8.507059e+37
    %v5552 = vand.u32 %v5521, 2147483648
    %v5553 = vor.u32 1.1754944e-38, %v5552
    %v5554 = vsel %vm5551, %v5553, %v5549
    %v5555 = vmul.f32 1.0, %v5554
    %v5556 = vrcp.pop %v5522
    %v5557 = vmul.f32 %v5522, %v5556
    %v5558 = vsub.f32 1.0, %v5557
    %v5559 = vmul.f32 %v5556, %v5558
    %v5560 = vadd.f32 %v5556, %v5559
    %vm5561 = vweird.f32 %v5522
    %vm5562 = vweird.f32 %v5556
    %vm5563 = vmor %vm5561, %vm5562
    %v5564 = vsel %vm5563, %v5556, %v5560
    %v5565 = vand.u32 2147483647, %v5522
    %vm5566 = vcmp.eq.f32.partialorder %v5565, 8.507059e+37
    %v5567 = vand.u32 %v5522, 2147483648
    %v5568 = vor.u32 1.1754944e-38, %v5567
    %v5569 = vsel %vm5566, %v5568, %v5564
    %v5570 = vmul.f32 1.0, %v5569
    %v5571 = vrcp.pop %v5523
    %v5572 = vmul.f32 %v5523, %v5571
    %v5573 = vsub.f32 1.0, %v5572
    %v5574 = vmul.f32 %v5571, %v5573
    %v5575 = vadd.f32 %v5571, %v5574
    %vm5576 = vweird.f32 %v5523
    %vm5577 = vweird.f32 %v5571
    %vm5578 = vmor %vm5576, %vm5577
    %v5579 = vsel %vm5578, %v5571, %v5575
    %v5580 = vand.u32 2147483647, %v5523
    %vm5581 = vcmp.eq.f32.partialorder %v5580, 8.507059e+37
    %v5582 = vand.u32 %v5523, 2147483648
    %v5583 = vor.u32 1.1754944e-38, %v5582
    %v5584 = vsel %vm5581, %v5583, %v5579
    %v5585 = vmul.f32 1.0, %v5584
    %v5586 = vrcp.pop %v5524
    %v5587 = vmul.f32 %v5524, %v5586
    %v5588 = vsub.f32 1.0, %v5587
    %v5589 = vmul.f32 %v5586, %v5588
    %v5590 = vadd.f32 %v5586, %v5589
    %vm5591 = vweird.f32 %v5524
    %vm5592 = vweird.f32 %v5586
    %vm5593 = vmor %vm5591, %vm5592
    %v5594 = vsel %vm5593, %v5586, %v5590
    %v5595 = vand.u32 2147483647, %v5524
    %vm5596 = vcmp.eq.f32.partialorder %v5595, 8.507059e+37
    %v5597 = vand.u32 %v5524, 2147483648
    %v5598 = vor.u32 1.1754944e-38, %v5597
    %v5599 = vsel %vm5596, %v5598, %v5594
    %v5600 = vmul.f32 1.0, %v5599
    %v5601 = vrcp.pop %v5525
    %v5602 = vmul.f32 %v5525, %v5601
    %v5603 = vsub.f32 1.0, %v5602
    %v5604 = vmul.f32 %v5601, %v5603
    %v5605 = vadd.f32 %v5601, %v5604
    %vm5606 = vweird.f32 %v5525
    %vm5607 = vweird.f32 %v5601
    %vm5608 = vmor %vm5606, %vm5607
    %v5609 = vsel %vm5608, %v5601, %v5605
    %v5610 = vand.u32 2147483647, %v5525
    %vm5611 = vcmp.eq.f32.partialorder %v5610, 8.507059e+37
    %v5612 = vand.u32 %v5525, 2147483648
    %v5613 = vor.u32 1.1754944e-38, %v5612
    %v5614 = vsel %vm5611, %v5613, %v5609
    %v5615 = vmul.f32 1.0, %v5614
    %v5616 = vtanh.pop %v5497
    %v5617 = vtanh.pop %v5501
    %v5618 = vmul.f32 %v5555, %v4920
    %v5619 = vmul.f32 %v5600, %v4921
    %v5620 = vmul.f32 %v5540, %v5616
    %v5621 = vmul.f32 %v5585, %v5617
    %v5622 = vadd.f32 %v5618, %v5620
    %v5623 = vadd.f32 %v5619, %v5621
    %v5624 = vtanh.pop %v5622
    %v5625 = vtanh.pop %v5623
    %v5626 = vmul.f32 %v5570, %v5624
    %v5627 = vmul.f32 %v5615, %v5625
    %v5628 = vpack.c.bf16 %v5627, %v5626
    %5629 = vmatpush.bf16.msra.mxu0 %v1178
    %5630 = vmatpush.bf16.msra.mxu0 %v1174
    %5631 = vmatpush.bf16.msra.mxu0 %v1170
    %5632 = vmatpush.bf16.msra.mxu0 %v1166
    %5633 = vmatpush.bf16.msra.mxu0 %v1162
    %5634 = vmatpush.bf16.msra.mxu0 %v1158
    %5635 = vmatpush.bf16.msra.mxu0 %v1154
    %5636 = vmatpush.bf16.msra.mxu0 %v1150
    %5637 = vmatmul.bf16.gmra.mxu0 %v5628
    %v5638 = vpop.f32.mrf.mxu0
    %v5639 = vadd.f32 %v674, %v5638
    %v5640 = vpop.f32.mrf.mxu0
    %v5641 = vadd.f32 %v674, %v5640
    %5642 = vdwg.mxu0
    %5643 = vmatpush.bf16.msra.mxu0 %v1179
    %5644 = vmatpush.bf16.msra.mxu0 %v1175
    %5645 = vmatpush.bf16.msra.mxu0 %v1171
    %5646 = vmatpush.bf16.msra.mxu0 %v1167
    %5647 = vmatpush.bf16.msra.mxu0 %v1163
    %5648 = vmatpush.bf16.msra.mxu0 %v1159
    %5649 = vmatpush.bf16.msra.mxu0 %v1155
    %5650 = vmatpush.bf16.msra.mxu0 %v1151
    %5651 = vmatmul.bf16.gmra.mxu0 %v5628
    %v5652 = vpop.f32.mrf.mxu0
    %v5653 = vadd.f32 %v675, %v5652
    %v5654 = vpop.f32.mrf.mxu0
    %v5655 = vadd.f32 %v675, %v5654
    %5656 = vdwg.mxu0
    %5657 = vmatpush.bf16.msra.mxu0 %v1180
    %5658 = vmatpush.bf16.msra.mxu0 %v1176
    %5659 = vmatpush.bf16.msra.mxu0 %v1172
    %5660 = vmatpush.bf16.msra.mxu0 %v1168
    %5661 = vmatpush.bf16.msra.mxu0 %v1164
    %5662 = vmatpush.bf16.msra.mxu0 %v1160
    %5663 = vmatpush.bf16.msra.mxu0 %v1156
    %5664 = vmatpush.bf16.msra.mxu0 %v1152
    %5665 = vmatmul.bf16.gmra.mxu0 %v5628
    %v5666 = vpop.f32.mrf.mxu0
    %v5667 = vadd.f32 %v676, %v5666
    %v5668 = vpop.f32.mrf.mxu0
    %v5669 = vadd.f32 %v676, %v5668
    %5670 = vdwg.mxu0
    %5671 = vmatpush.bf16.msra.mxu0 %v1181
    %5672 = vmatpush.bf16.msra.mxu0 %v1177
    %5673 = vmatpush.bf16.msra.mxu0 %v1173
    %5674 = vmatpush.bf16.msra.mxu0 %v1169
    %5675 = vmatpush.bf16.msra.mxu0 %v1165
    %5676 = vmatpush.bf16.msra.mxu0 %v1161
    %5677 = vmatpush.bf16.msra.mxu0 %v1157
    %5678 = vmatpush.bf16.msra.mxu0 %v1153
    %5679 = vmatmul.bf16.gmra.mxu0 %v5628
    %v5680 = vpop.f32.mrf.mxu0
    %v5681 = vadd.f32 %v677, %v5680
    %v5682 = vpop.f32.mrf.mxu0
    %v5683 = vadd.f32 %v677, %v5682
    %5684 = vdwg.mxu0
    %5685 = vmatpush.bf16.msra.mxu0 0
    %5686 = vmatpush.bf16.msra.mxu0 0
    %5687 = vmatpush.bf16.msra.mxu0 0
    %5688 = vmatpush.bf16.msra.mxu0 0
    %5689 = vmatpush.bf16.msra.mxu0 %v1330
    %5690 = vmatpush.bf16.msra.mxu0 %v1326
    %5691 = vmatpush.bf16.msra.mxu0 %v1322
    %5692 = vmatpush.bf16.msra.mxu0 %v1318
    %5693 = vmatmul.bf16.gmra.mxu0 %v5175
    %v5694 = vpop.f32.mrf.mxu0
    %v5695 = vadd.f32 0.0, %v5694
    %v5696 = vpop.f32.mrf.mxu0
    %v5697 = vadd.f32 0.0, %v5696
    %5698 = vdwg.mxu0
    %5699 = vmatpush.bf16.msra.mxu0 0
    %5700 = vmatpush.bf16.msra.mxu0 0
    %5701 = vmatpush.bf16.msra.mxu0 0
    %5702 = vmatpush.bf16.msra.mxu0 0
    %5703 = vmatpush.bf16.msra.mxu0 %v1331
    %5704 = vmatpush.bf16.msra.mxu0 %v1327
    %5705 = vmatpush.bf16.msra.mxu0 %v1323
    %5706 = vmatpush.bf16.msra.mxu0 %v1319
    %5707 = vmatmul.bf16.gmra.mxu0 %v5175
    %v5708 = vpop.f32.mrf.mxu0
    %v5709 = vadd.f32 0.0, %v5708
    %v5710 = vpop.f32.mrf.mxu0
    %v5711 = vadd.f32 0.0, %v5710
    %5712 = vdwg.mxu0
    %5713 = vmatpush.bf16.msra.mxu0 0
    %5714 = vmatpush.bf16.msra.mxu0 0
    %5715 = vmatpush.bf16.msra.mxu0 0
    %5716 = vmatpush.bf16.msra.mxu0 0
    %5717 = vmatpush.bf16.msra.mxu0 %v1332
    %5718 = vmatpush.bf16.msra.mxu0 %v1328
    %5719 = vmatpush.bf16.msra.mxu0 %v1324
    %5720 = vmatpush.bf16.msra.mxu0 %v1320
    %5721 = vmatmul.bf16.gmra.mxu0 %v5175
    %v5722 = vpop.f32.mrf.mxu0
    %v5723 = vadd.f32 0.0, %v5722
    %v5724 = vpop.f32.mrf.mxu0
    %v5725 = vadd.f32 0.0, %v5724
    %5726 = vdwg.mxu0
    %5727 = vmatpush.bf16.msra.mxu0 0
    %5728 = vmatpush.bf16.msra.mxu0 0
    %5729 = vmatpush.bf16.msra.mxu0 0
    %5730 = vmatpush.bf16.msra.mxu0 0
    %5731 = vmatpush.bf16.msra.mxu0 %v1333
    %5732 = vmatpush.bf16.msra.mxu0 %v1329
    %5733 = vmatpush.bf16.msra.mxu0 %v1325
    %5734 = vmatpush.bf16.msra.mxu0 %v1321
    %5735 = vmatmul.bf16.gmra.mxu0 %v5175
    %v5736 = vpop.f32.mrf.mxu0
    %v5737 = vadd.f32 0.0, %v5736
    %v5738 = vpop.f32.mrf.mxu0
    %v5739 = vadd.f32 0.0, %v5738
    %5740 = vdwg.mxu0
    %v5741 = vadd.f32 %v5639, %v5695
    %v5742 = vadd.f32 %v5653, %v5709
    %v5743 = vadd.f32 %v5667, %v5723
    %v5744 = vadd.f32 %v5681, %v5737
    %v5745 = vadd.f32 %v5641, %v5697
    %v5746 = vadd.f32 %v5655, %v5711
    %v5747 = vadd.f32 %v5669, %v5725
    %v5748 = vadd.f32 %v5683, %v5739
    %v5749 = vxor.u32 %v5741, 2147483648
    %v5750 = vxor.u32 %v5742, 2147483648
    %v5751 = vxor.u32 %v5743, 2147483648
    %v5752 = vxor.u32 %v5745, 2147483648
    %v5753 = vxor.u32 %v5746, 2147483648
    %v5754 = vxor.u32 %v5747, 2147483648
    %v5755 = vmul.f32 %v5749, 1.442695
    %v5756 = vpow.pop %v5755
    %v5757 = vmul.f32 %v5750, 1.442695
    %v5758 = vpow.pop %v5757
    %v5759 = vmul.f32 %v5751, 1.442695
    %v5760 = vpow.pop %v5759
    %v5761 = vmul.f32 %v5752, 1.442695
    %v5762 = vpow.pop %v5761
    %v5763 = vmul.f32 %v5753, 1.442695
    %v5764 = vpow.pop %v5763
    %v5765 = vmul.f32 %v5754, 1.442695
    %v5766 = vpow.pop %v5765
    %v5767 = vadd.f32 %v5756, 1.0
    %v5768 = vadd.f32 %v5758, 1.0
    %v5769 = vadd.f32 %v5760, 1.0
    %v5770 = vadd.f32 %v5762, 1.0
    %v5771 = vadd.f32 %v5764, 1.0
    %v5772 = vadd.f32 %v5766, 1.0
    %v5773 = vrcp.pop %v5767
    %v5774 = vmul.f32 %v5767, %v5773
    %v5775 = vsub.f32 1.0, %v5774
    %v5776 = vmul.f32 %v5773, %v5775
    %v5777 = vadd.f32 %v5773, %v5776
    %vm5778 = vweird.f32 %v5767
    %vm5779 = vweird.f32 %v5773
    %vm5780 = vmor %vm5778, %vm5779
    %v5781 = vsel %vm5780, %v5773, %v5777
    %v5782 = vand.u32 2147483647, %v5767
    %vm5783 = vcmp.eq.f32.partialorder %v5782, 8.507059e+37
    %v5784 = vand.u32 %v5767, 2147483648
    %v5785 = vor.u32 1.1754944e-38, %v5784
    %v5786 = vsel %vm5783, %v5785, %v5781
    %v5787 = vmul.f32 1.0, %v5786
    %v5788 = vrcp.pop %v5768
    %v5789 = vmul.f32 %v5768, %v5788
    %v5790 = vsub.f32 1.0, %v5789
    %v5791 = vmul.f32 %v5788, %v5790
    %v5792 = vadd.f32 %v5788, %v5791
    %vm5793 = vweird.f32 %v5768
    %vm5794 = vweird.f32 %v5788
    %vm5795 = vmor %vm5793, %vm5794
    %v5796 = vsel %vm5795, %v5788, %v5792
    %v5797 = vand.u32 2147483647, %v5768
    %vm5798 = vcmp.eq.f32.partialorder %v5797, 8.507059e+37
    %v5799 = vand.u32 %v5768, 2147483648
    %v5800 = vor.u32 1.1754944e-38, %v5799
    %v5801 = vsel %vm5798, %v5800, %v5796
    %v5802 = vmul.f32 1.0, %v5801
    %v5803 = vrcp.pop %v5769
    %v5804 = vmul.f32 %v5769, %v5803
    %v5805 = vsub.f32 1.0, %v5804
    %v5806 = vmul.f32 %v5803, %v5805
    %v5807 = vadd.f32 %v5803, %v5806
    %vm5808 = vweird.f32 %v5769
    %vm5809 = vweird.f32 %v5803
    %vm5810 = vmor %vm5808, %vm5809
    %v5811 = vsel %vm5810, %v5803, %v5807
    %v5812 = vand.u32 2147483647, %v5769
    %vm5813 = vcmp.eq.f32.partialorder %v5812, 8.507059e+37
    %v5814 = vand.u32 %v5769, 2147483648
    %v5815 = vor.u32 1.1754944e-38, %v5814
    %v5816 = vsel %vm5813, %v5815, %v5811
    %v5817 = vmul.f32 1.0, %v5816
    %v5818 = vrcp.pop %v5770
    %v5819 = vmul.f32 %v5770, %v5818
    %v5820 = vsub.f32 1.0, %v5819
    %v5821 = vmul.f32 %v5818, %v5820
    %v5822 = vadd.f32 %v5818, %v5821
    %vm5823 = vweird.f32 %v5770
    %vm5824 = vweird.f32 %v5818
    %vm5825 = vmor %vm5823, %vm5824
    %v5826 = vsel %vm5825, %v5818, %v5822
    %v5827 = vand.u32 2147483647, %v5770
    %vm5828 = vcmp.eq.f32.partialorder %v5827, 8.507059e+37
    %v5829 = vand.u32 %v5770, 2147483648
    %v5830 = vor.u32 1.1754944e-38, %v5829
    %v5831 = vsel %vm5828, %v5830, %v5826
    %v5832 = vmul.f32 1.0, %v5831
    %v5833 = vrcp.pop %v5771
    %v5834 = vmul.f32 %v5771, %v5833
    %v5835 = vsub.f32 1.0, %v5834
    %v5836 = vmul.f32 %v5833, %v5835
    %v5837 = vadd.f32 %v5833, %v5836
    %vm5838 = vweird.f32 %v5771
    %vm5839 = vweird.f32 %v5833
    %vm5840 = vmor %vm5838, %vm5839
    %v5841 = vsel %vm5840, %v5833, %v5837
    %v5842 = vand.u32 2147483647, %v5771
    %vm5843 = vcmp.eq.f32.partialorder %v5842, 8.507059e+37
    %v5844 = vand.u32 %v5771, 2147483648
    %v5845 = vor.u32 1.1754944e-38, %v5844
    %v5846 = vsel %vm5843, %v5845, %v5841
    %v5847 = vmul.f32 1.0, %v5846
    %v5848 = vrcp.pop %v5772
    %v5849 = vmul.f32 %v5772, %v5848
    %v5850 = vsub.f32 1.0, %v5849
    %v5851 = vmul.f32 %v5848, %v5850
    %v5852 = vadd.f32 %v5848, %v5851
    %vm5853 = vweird.f32 %v5772
    %vm5854 = vweird.f32 %v5848
    %vm5855 = vmor %vm5853, %vm5854
    %v5856 = vsel %vm5855, %v5848, %v5852
    %v5857 = vand.u32 2147483647, %v5772
    %vm5858 = vcmp.eq.f32.partialorder %v5857, 8.507059e+37
    %v5859 = vand.u32 %v5772, 2147483648
    %v5860 = vor.u32 1.1754944e-38, %v5859
    %v5861 = vsel %vm5858, %v5860, %v5856
    %v5862 = vmul.f32 1.0, %v5861
    %v5863 = vtanh.pop %v5744
    %v5864 = vtanh.pop %v5748
    %v5865 = vmul.f32 %v5802, %v5167
    %v5866 = vmul.f32 %v5847, %v5168
    %v5867 = vmul.f32 %v5787, %v5863
    %v5868 = vmul.f32 %v5832, %v5864
    %v5869 = vadd.f32 %v5865, %v5867
    %v5870 = vadd.f32 %v5866, %v5868
    %v5871 = vtanh.pop %v5869
    %v5872 = vtanh.pop %v5870
    %v5873 = vmul.f32 %v5817, %v5871
    %v5874 = vmul.f32 %v5862, %v5872
    %v5875 = vpack.c.bf16 %v5874, %v5873
    %v5877 = vsel %vm1350, %v5875, 0
    %5879 = vmatpush.bf16.msra.mxu0 0
    %5880 = vmatpush.bf16.msra.mxu0 0
    %5881 = vmatpush.bf16.msra.mxu0 0
    %5882 = vmatpush.bf16.msra.mxu0 0
    %5883 = vmatpush.bf16.msra.mxu0 %v1605
    %5884 = vmatpush.bf16.msra.mxu0 %v1601
    %5885 = vmatpush.bf16.msra.mxu0 %v1597
    %5886 = vmatpush.bf16.msra.mxu0 %v1593
    %5887 = vmatmul.bf16.gmra.mxu0 %v5877
    %v5888 = vpop.f32.mrf.mxu0
    %v5889 = vadd.f32 %v684, %v5888
    %v5890 = vpop.f32.mrf.mxu0
    %v5891 = vadd.f32 %v684, %v5890
    %5892 = vdwg.mxu0
    %5893 = vmatpush.bf16.msra.mxu0 0
    %5894 = vmatpush.bf16.msra.mxu0 0
    %5895 = vmatpush.bf16.msra.mxu0 0
    %5896 = vmatpush.bf16.msra.mxu0 0
    %5897 = vmatpush.bf16.msra.mxu0 %v1606
    %5898 = vmatpush.bf16.msra.mxu0 %v1602
    %5899 = vmatpush.bf16.msra.mxu0 %v1598
    %5900 = vmatpush.bf16.msra.mxu0 %v1594
    %5901 = vmatmul.bf16.gmra.mxu0 %v5877
    %v5902 = vpop.f32.mrf.mxu0
    %v5903 = vadd.f32 %v685, %v5902
    %v5904 = vpop.f32.mrf.mxu0
    %v5905 = vadd.f32 %v685, %v5904
    %5906 = vdwg.mxu0
    %5907 = vmatpush.bf16.msra.mxu0 0
    %5908 = vmatpush.bf16.msra.mxu0 0
    %5909 = vmatpush.bf16.msra.mxu0 0
    %5910 = vmatpush.bf16.msra.mxu0 0
    %5911 = vmatpush.bf16.msra.mxu0 %v1607
    %5912 = vmatpush.bf16.msra.mxu0 %v1603
    %5913 = vmatpush.bf16.msra.mxu0 %v1599
    %5914 = vmatpush.bf16.msra.mxu0 %v1595
    %5915 = vmatmul.bf16.gmra.mxu0 %v5877
    %v5916 = vpop.f32.mrf.mxu0
    %v5917 = vadd.f32 %v686, %v5916
    %v5918 = vpop.f32.mrf.mxu0
    %v5919 = vadd.f32 %v686, %v5918
    %5920 = vdwg.mxu0
    %5921 = vmatpush.bf16.msra.mxu0 0
    %5922 = vmatpush.bf16.msra.mxu0 0
    %5923 = vmatpush.bf16.msra.mxu0 0
    %5924 = vmatpush.bf16.msra.mxu0 0
    %5925 = vmatpush.bf16.msra.mxu0 %v1608
    %5926 = vmatpush.bf16.msra.mxu0 %v1604
    %5927 = vmatpush.bf16.msra.mxu0 %v1600
    %5928 = vmatpush.bf16.msra.mxu0 %v1596
    %5929 = vmatmul.bf16.gmra.mxu0 %v5877
    %v5930 = vpop.f32.mrf.mxu0
    %v5931 = vadd.f32 %v687, %v5930
    %v5932 = vpop.f32.mrf.mxu0
    %v5933 = vadd.f32 %v687, %v5932
    %5934 = vdwg.mxu0
    %v5935 = vpack.c.bf16 %v5426, %v5425
    %v5937 = vsel %vm1724, %v5935, 0
    %5939 = vmatpush.bf16.msra.mxu0 0
    %5940 = vmatpush.bf16.msra.mxu0 0
    %5941 = vmatpush.bf16.msra.mxu0 0
    %5942 = vmatpush.bf16.msra.mxu0 0
    %5943 = vmatpush.bf16.msra.mxu0 0
    %5944 = vmatpush.bf16.msra.mxu0 0
    %5945 = vmatpush.bf16.msra.mxu0 %v1712
    %5946 = vmatpush.bf16.msra.mxu0 %v1708
    %5947 = vmatmul.bf16.gmra.mxu0 %v5937
    %v5948 = vpop.f32.mrf.mxu0
    %v5949 = vadd.f32 0.0, %v5948
    %v5950 = vpop.f32.mrf.mxu0
    %v5951 = vadd.f32 0.0, %v5950
    %5952 = vdwg.mxu0
    %5953 = vmatpush.bf16.msra.mxu0 0
    %5954 = vmatpush.bf16.msra.mxu0 0
    %5955 = vmatpush.bf16.msra.mxu0 0
    %5956 = vmatpush.bf16.msra.mxu0 0
    %5957 = vmatpush.bf16.msra.mxu0 0
    %5958 = vmatpush.bf16.msra.mxu0 0
    %5959 = vmatpush.bf16.msra.mxu0 %v1713
    %5960 = vmatpush.bf16.msra.mxu0 %v1709
    %5961 = vmatmul.bf16.gmra.mxu0 %v5937
    %v5962 = vpop.f32.mrf.mxu0
    %v5963 = vadd.f32 0.0, %v5962
    %v5964 = vpop.f32.mrf.mxu0
    %v5965 = vadd.f32 0.0, %v5964
    %5966 = vdwg.mxu0
    %5967 = vmatpush.bf16.msra.mxu0 0
    %5968 = vmatpush.bf16.msra.mxu0 0
    %5969 = vmatpush.bf16.msra.mxu0 0
    %5970 = vmatpush.bf16.msra.mxu0 0
    %5971 = vmatpush.bf16.msra.mxu0 0
    %5972 = vmatpush.bf16.msra.mxu0 0
    %5973 = vmatpush.bf16.msra.mxu0 %v1714
    %5974 = vmatpush.bf16.msra.mxu0 %v1710
    %5975 = vmatmul.bf16.gmra.mxu0 %v5937
    %v5976 = vpop.f32.mrf.mxu0
    %v5977 = vadd.f32 0.0, %v5976
    %v5978 = vpop.f32.mrf.mxu0
    %v5979 = vadd.f32 0.0, %v5978
    %5980 = vdwg.mxu0
    %5981 = vmatpush.bf16.msra.mxu0 0
    %5982 = vmatpush.bf16.msra.mxu0 0
    %5983 = vmatpush.bf16.msra.mxu0 0
    %5984 = vmatpush.bf16.msra.mxu0 0
    %5985 = vmatpush.bf16.msra.mxu0 0
    %5986 = vmatpush.bf16.msra.mxu0 0
    %5987 = vmatpush.bf16.msra.mxu0 %v1715
    %5988 = vmatpush.bf16.msra.mxu0 %v1711
    %5989 = vmatmul.bf16.gmra.mxu0 %v5937
    %v5990 = vpop.f32.mrf.mxu0
    %v5991 = vadd.f32 0.0, %v5990
    %v5992 = vpop.f32.mrf.mxu0
    %v5993 = vadd.f32 0.0, %v5992
    %5994 = vdwg.mxu0
    %v5995 = vadd.f32 %v5889, %v5949
    %v5996 = vadd.f32 %v5903, %v5963
    %v5997 = vadd.f32 %v5917, %v5977
    %v5998 = vadd.f32 %v5931, %v5991
    %v5999 = vadd.f32 %v5891, %v5951
    %v6000 = vadd.f32 %v5905, %v5965
    %v6001 = vadd.f32 %v5919, %v5979
    %v6002 = vadd.f32 %v5933, %v5993
    %v6003 = vxor.u32 %v5995, 2147483648
    %v6004 = vxor.u32 %v5996, 2147483648
    %v6005 = vxor.u32 %v5997, 2147483648
    %v6006 = vxor.u32 %v5999, 2147483648
    %v6007 = vxor.u32 %v6000, 2147483648
    %v6008 = vxor.u32 %v6001, 2147483648
    %v6009 = vmul.f32 %v6003, 1.442695
    %v6010 = vpow.pop %v6009
    %v6011 = vmul.f32 %v6004, 1.442695
    %v6012 = vpow.pop %v6011
    %v6013 = vmul.f32 %v6005, 1.442695
    %v6014 = vpow.pop %v6013
    %v6015 = vmul.f32 %v6006, 1.442695
    %v6016 = vpow.pop %v6015
    %v6017 = vmul.f32 %v6007, 1.442695
    %v6018 = vpow.pop %v6017
    %v6019 = vmul.f32 %v6008, 1.442695
    %v6020 = vpow.pop %v6019
    %v6021 = vadd.f32 %v6010, 1.0
    %v6022 = vadd.f32 %v6012, 1.0
    %v6023 = vadd.f32 %v6014, 1.0
    %v6024 = vadd.f32 %v6016, 1.0
    %v6025 = vadd.f32 %v6018, 1.0
    %v6026 = vadd.f32 %v6020, 1.0
    %v6027 = vrcp.pop %v6021
    %v6028 = vmul.f32 %v6021, %v6027
    %v6029 = vsub.f32 1.0, %v6028
    %v6030 = vmul.f32 %v6027, %v6029
    %v6031 = vadd.f32 %v6027, %v6030
    %vm6032 = vweird.f32 %v6021
    %vm6033 = vweird.f32 %v6027
    %vm6034 = vmor %vm6032, %vm6033
    %v6035 = vsel %vm6034, %v6027, %v6031
    %v6036 = vand.u32 2147483647, %v6021
    %vm6037 = vcmp.eq.f32.partialorder %v6036, 8.507059e+37
    %v6038 = vand.u32 %v6021, 2147483648
    %v6039 = vor.u32 1.1754944e-38, %v6038
    %v6040 = vsel %vm6037, %v6039, %v6035
    %v6041 = vmul.f32 1.0, %v6040
    %v6042 = vrcp.pop %v6022
    %v6043 = vmul.f32 %v6022, %v6042
    %v6044 = vsub.f32 1.0, %v6043
    %v6045 = vmul.f32 %v6042, %v6044
    %v6046 = vadd.f32 %v6042, %v6045
    %vm6047 = vweird.f32 %v6022
    %vm6048 = vweird.f32 %v6042
    %vm6049 = vmor %vm6047, %vm6048
    %v6050 = vsel %vm6049, %v6042, %v6046
    %v6051 = vand.u32 2147483647, %v6022
    %vm6052 = vcmp.eq.f32.partialorder %v6051, 8.507059e+37
    %v6053 = vand.u32 %v6022, 2147483648
    %v6054 = vor.u32 1.1754944e-38, %v6053
    %v6055 = vsel %vm6052, %v6054, %v6050
    %v6056 = vmul.f32 1.0, %v6055
    %v6057 = vrcp.pop %v6023
    %v6058 = vmul.f32 %v6023, %v6057
    %v6059 = vsub.f32 1.0, %v6058
    %v6060 = vmul.f32 %v6057, %v6059
    %v6061 = vadd.f32 %v6057, %v6060
    %vm6062 = vweird.f32 %v6023
    %vm6063 = vweird.f32 %v6057
    %vm6064 = vmor %vm6062, %vm6063
    %v6065 = vsel %vm6064, %v6057, %v6061
    %v6066 = vand.u32 2147483647, %v6023
    %vm6067 = vcmp.eq.f32.partialorder %v6066, 8.507059e+37
    %v6068 = vand.u32 %v6023, 2147483648
    %v6069 = vor.u32 1.1754944e-38, %v6068
    %v6070 = vsel %vm6067, %v6069, %v6065
    %v6071 = vmul.f32 1.0, %v6070
    %v6072 = vrcp.pop %v6024
    %v6073 = vmul.f32 %v6024, %v6072
    %v6074 = vsub.f32 1.0, %v6073
    %v6075 = vmul.f32 %v6072, %v6074
    %v6076 = vadd.f32 %v6072, %v6075
    %vm6077 = vweird.f32 %v6024
    %vm6078 = vweird.f32 %v6072
    %vm6079 = vmor %vm6077, %vm6078
    %v6080 = vsel %vm6079, %v6072, %v6076
    %v6081 = vand.u32 2147483647, %v6024
    %vm6082 = vcmp.eq.f32.partialorder %v6081, 8.507059e+37
    %v6083 = vand.u32 %v6024, 2147483648
    %v6084 = vor.u32 1.1754944e-38, %v6083
    %v6085 = vsel %vm6082, %v6084, %v6080
    %v6086 = vmul.f32 1.0, %v6085
    %v6087 = vrcp.pop %v6025
    %v6088 = vmul.f32 %v6025, %v6087
    %v6089 = vsub.f32 1.0, %v6088
    %v6090 = vmul.f32 %v6087, %v6089
    %v6091 = vadd.f32 %v6087, %v6090
    %vm6092 = vweird.f32 %v6025
    %vm6093 = vweird.f32 %v6087
    %vm6094 = vmor %vm6092, %vm6093
    %v6095 = vsel %vm6094, %v6087, %v6091
    %v6096 = vand.u32 2147483647, %v6025
    %vm6097 = vcmp.eq.f32.partialorder %v6096, 8.507059e+37
    %v6098 = vand.u32 %v6025, 2147483648
    %v6099 = vor.u32 1.1754944e-38, %v6098
    %v6100 = vsel %vm6097, %v6099, %v6095
    %v6101 = vmul.f32 1.0, %v6100
    %v6102 = vrcp.pop %v6026
    %v6103 = vmul.f32 %v6026, %v6102
    %v6104 = vsub.f32 1.0, %v6103
    %v6105 = vmul.f32 %v6102, %v6104
    %v6106 = vadd.f32 %v6102, %v6105
    %vm6107 = vweird.f32 %v6026
    %vm6108 = vweird.f32 %v6102
    %vm6109 = vmor %vm6107, %vm6108
    %v6110 = vsel %vm6109, %v6102, %v6106
    %v6111 = vand.u32 2147483647, %v6026
    %vm6112 = vcmp.eq.f32.partialorder %v6111, 8.507059e+37
    %v6113 = vand.u32 %v6026, 2147483648
    %v6114 = vor.u32 1.1754944e-38, %v6113
    %v6115 = vsel %vm6112, %v6114, %v6110
    %v6116 = vmul.f32 1.0, %v6115
    %v6117 = vtanh.pop %v5998
    %v6118 = vtanh.pop %v6002
    %v6119 = vmul.f32 %v6056, %v5421
    %v6120 = vmul.f32 %v6101, %v5422
    %v6121 = vmul.f32 %v6041, %v6117
    %v6122 = vmul.f32 %v6086, %v6118
    %v6123 = vadd.f32 %v6119, %v6121
    %v6124 = vadd.f32 %v6120, %v6122
    %v6125 = vtanh.pop %v6123
    %v6126 = vtanh.pop %v6124
    %v6127 = vmul.f32 %v6071, %v6125
    %v6128 = vmul.f32 %v6116, %v6126
    %s6129 = smul.u32 14, 4
    %s6130 = smul.addr %s6129, 8
    %s6131 = scalar_lea.vmem [#allocation2], %s6130
    %v6132 = vld [vmem:[%s6131] sm:$0xff]
    %v6133 = vld [vmem:[%s6131 + $0x8] sm:$0xff]
    %v6134 = vld [vmem:[%s6131 + $0x10] sm:$0xff]
    %v6135 = vld [vmem:[%s6131 + $0x18] sm:$0xff]
    %v6136 = vld [vmem:[%s6131 + $0x20] sm:$0xff]
    %v6137 = vld [vmem:[%s6131 + $0x28] sm:$0xff]
    %v6138 = vld [vmem:[%s6131 + $0x30] sm:$0xff]
    %v6139 = vld [vmem:[%s6131 + $0x38] sm:$0xff]
    %6140 = vmatpush.bf16.msra.mxu0 %v827
    %6141 = vmatpush.bf16.msra.mxu0 %v823
    %6142 = vmatpush.bf16.msra.mxu0 %v819
    %6143 = vmatpush.bf16.msra.mxu0 %v815
    %6144 = vmatpush.bf16.msra.mxu0 %v811
    %6145 = vmatpush.bf16.msra.mxu0 %v807
    %6146 = vmatpush.bf16.msra.mxu0 %v803
    %6147 = vmatpush.bf16.msra.mxu0 %v799
    %6148 = vmatmul.bf16.gmra.mxu0 %v5628
    %v6149 = vpop.f32.mrf.mxu0
    %v6150 = vadd.f32 0.0, %v6149
    %v6151 = vpop.f32.mrf.mxu0
    %v6152 = vadd.f32 0.0, %v6151
    %6153 = vdwg.mxu0
    %6154 = vmatpush.bf16.msra.mxu0 %v828
    %6155 = vmatpush.bf16.msra.mxu0 %v824
    %6156 = vmatpush.bf16.msra.mxu0 %v820
    %6157 = vmatpush.bf16.msra.mxu0 %v816
    %6158 = vmatpush.bf16.msra.mxu0 %v812
    %6159 = vmatpush.bf16.msra.mxu0 %v808
    %6160 = vmatpush.bf16.msra.mxu0 %v804
    %6161 = vmatpush.bf16.msra.mxu0 %v800
    %6162 = vmatmul.bf16.gmra.mxu0 %v5628
    %v6163 = vpop.f32.mrf.mxu0
    %v6164 = vadd.f32 0.0, %v6163
    %v6165 = vpop.f32.mrf.mxu0
    %v6166 = vadd.f32 0.0, %v6165
    %6167 = vdwg.mxu0
    %6168 = vmatpush.bf16.msra.mxu0 %v829
    %6169 = vmatpush.bf16.msra.mxu0 %v825
    %6170 = vmatpush.bf16.msra.mxu0 %v821
    %6171 = vmatpush.bf16.msra.mxu0 %v817
    %6172 = vmatpush.bf16.msra.mxu0 %v813
    %6173 = vmatpush.bf16.msra.mxu0 %v809
    %6174 = vmatpush.bf16.msra.mxu0 %v805
    %6175 = vmatpush.bf16.msra.mxu0 %v801
    %6176 = vmatmul.bf16.gmra.mxu0 %v5628
    %v6177 = vpop.f32.mrf.mxu0
    %v6178 = vadd.f32 0.0, %v6177
    %v6179 = vpop.f32.mrf.mxu0
    %v6180 = vadd.f32 0.0, %v6179
    %6181 = vdwg.mxu0
    %6182 = vmatpush.bf16.msra.mxu0 %v830
    %6183 = vmatpush.bf16.msra.mxu0 %v826
    %6184 = vmatpush.bf16.msra.mxu0 %v822
    %6185 = vmatpush.bf16.msra.mxu0 %v818
    %6186 = vmatpush.bf16.msra.mxu0 %v814
    %6187 = vmatpush.bf16.msra.mxu0 %v810
    %6188 = vmatpush.bf16.msra.mxu0 %v806
    %6189 = vmatpush.bf16.msra.mxu0 %v802
    %6190 = vmatmul.bf16.gmra.mxu0 %v5628
    %v6191 = vpop.f32.mrf.mxu0
    %v6192 = vadd.f32 0.0, %v6191
    %v6193 = vpop.f32.mrf.mxu0
    %v6194 = vadd.f32 0.0, %v6193
    %6195 = vdwg.mxu0
    %v6196 = vadd.f32 %v6132, %v6150
    %v6197 = vadd.f32 %v6133, %v6164
    %v6198 = vadd.f32 %v6134, %v6178
    %v6199 = vadd.f32 %v6135, %v6192
    %v6200 = vadd.f32 %v6136, %v6152
    %v6201 = vadd.f32 %v6137, %v6166
    %v6202 = vadd.f32 %v6138, %v6180
    %v6203 = vadd.f32 %v6139, %v6194
    %v6204 = vxor.u32 %v6196, 2147483648
    %v6205 = vxor.u32 %v6197, 2147483648
    %v6206 = vxor.u32 %v6198, 2147483648
    %v6207 = vxor.u32 %v6200, 2147483648
    %v6208 = vxor.u32 %v6201, 2147483648
    %v6209 = vxor.u32 %v6202, 2147483648
    %v6210 = vmul.f32 %v6204, 1.442695
    %v6211 = vpow.pop %v6210
    %v6212 = vmul.f32 %v6205, 1.442695
    %v6213 = vpow.pop %v6212
    %v6214 = vmul.f32 %v6206, 1.442695
    %v6215 = vpow.pop %v6214
    %v6216 = vmul.f32 %v6207, 1.442695
    %v6217 = vpow.pop %v6216
    %v6218 = vmul.f32 %v6208, 1.442695
    %v6219 = vpow.pop %v6218
    %v6220 = vmul.f32 %v6209, 1.442695
    %v6221 = vpow.pop %v6220
    %v6222 = vadd.f32 %v6211, 1.0
    %v6223 = vadd.f32 %v6213, 1.0
    %v6224 = vadd.f32 %v6215, 1.0
    %v6225 = vadd.f32 %v6217, 1.0
    %v6226 = vadd.f32 %v6219, 1.0
    %v6227 = vadd.f32 %v6221, 1.0
    %v6228 = vrcp.pop %v6222
    %v6229 = vmul.f32 %v6222, %v6228
    %v6230 = vsub.f32 1.0, %v6229
    %v6231 = vmul.f32 %v6228, %v6230
    %v6232 = vadd.f32 %v6228, %v6231
    %vm6233 = vweird.f32 %v6222
    %vm6234 = vweird.f32 %v6228
    %vm6235 = vmor %vm6233, %vm6234
    %v6236 = vsel %vm6235, %v6228, %v6232
    %v6237 = vand.u32 2147483647, %v6222
    %vm6238 = vcmp.eq.f32.partialorder %v6237, 8.507059e+37
    %v6239 = vand.u32 %v6222, 2147483648
    %v6240 = vor.u32 1.1754944e-38, %v6239
    %v6241 = vsel %vm6238, %v6240, %v6236
    %v6242 = vmul.f32 1.0, %v6241
    %v6243 = vrcp.pop %v6223
    %v6244 = vmul.f32 %v6223, %v6243
    %v6245 = vsub.f32 1.0, %v6244
    %v6246 = vmul.f32 %v6243, %v6245
    %v6247 = vadd.f32 %v6243, %v6246
    %vm6248 = vweird.f32 %v6223
    %vm6249 = vweird.f32 %v6243
    %vm6250 = vmor %vm6248, %vm6249
    %v6251 = vsel %vm6250, %v6243, %v6247
    %v6252 = vand.u32 2147483647, %v6223
    %vm6253 = vcmp.eq.f32.partialorder %v6252, 8.507059e+37
    %v6254 = vand.u32 %v6223, 2147483648
    %v6255 = vor.u32 1.1754944e-38, %v6254
    %v6256 = vsel %vm6253, %v6255, %v6251
    %v6257 = vmul.f32 1.0, %v6256
    %v6258 = vrcp.pop %v6224
    %v6259 = vmul.f32 %v6224, %v6258
    %v6260 = vsub.f32 1.0, %v6259
    %v6261 = vmul.f32 %v6258, %v6260
    %v6262 = vadd.f32 %v6258, %v6261
    %vm6263 = vweird.f32 %v6224
    %vm6264 = vweird.f32 %v6258
    %vm6265 = vmor %vm6263, %vm6264
    %v6266 = vsel %vm6265, %v6258, %v6262
    %v6267 = vand.u32 2147483647, %v6224
    %vm6268 = vcmp.eq.f32.partialorder %v6267, 8.507059e+37
    %v6269 = vand.u32 %v6224, 2147483648
    %v6270 = vor.u32 1.1754944e-38, %v6269
    %v6271 = vsel %vm6268, %v6270, %v6266
    %v6272 = vmul.f32 1.0, %v6271
    %v6273 = vrcp.pop %v6225
    %v6274 = vmul.f32 %v6225, %v6273
    %v6275 = vsub.f32 1.0, %v6274
    %v6276 = vmul.f32 %v6273, %v6275
    %v6277 = vadd.f32 %v6273, %v6276
    %vm6278 = vweird.f32 %v6225
    %vm6279 = vweird.f32 %v6273
    %vm6280 = vmor %vm6278, %vm6279
    %v6281 = vsel %vm6280, %v6273, %v6277
    %v6282 = vand.u32 2147483647, %v6225
    %vm6283 = vcmp.eq.f32.partialorder %v6282, 8.507059e+37
    %v6284 = vand.u32 %v6225, 2147483648
    %v6285 = vor.u32 1.1754944e-38, %v6284
    %v6286 = vsel %vm6283, %v6285, %v6281
    %v6287 = vmul.f32 1.0, %v6286
    %v6288 = vrcp.pop %v6226
    %v6289 = vmul.f32 %v6226, %v6288
    %v6290 = vsub.f32 1.0, %v6289
    %v6291 = vmul.f32 %v6288, %v6290
    %v6292 = vadd.f32 %v6288, %v6291
    %vm6293 = vweird.f32 %v6226
    %vm6294 = vweird.f32 %v6288
    %vm6295 = vmor %vm6293, %vm6294
    %v6296 = vsel %vm6295, %v6288, %v6292
    %v6297 = vand.u32 2147483647, %v6226
    %vm6298 = vcmp.eq.f32.partialorder %v6297, 8.507059e+37
    %v6299 = vand.u32 %v6226, 2147483648
    %v6300 = vor.u32 1.1754944e-38, %v6299
    %v6301 = vsel %vm6298, %v6300, %v6296
    %v6302 = vmul.f32 1.0, %v6301
    %v6303 = vrcp.pop %v6227
    %v6304 = vmul.f32 %v6227, %v6303
    %v6305 = vsub.f32 1.0, %v6304
    %v6306 = vmul.f32 %v6303, %v6305
    %v6307 = vadd.f32 %v6303, %v6306
    %vm6308 = vweird.f32 %v6227
    %vm6309 = vweird.f32 %v6303
    %vm6310 = vmor %vm6308, %vm6309
    %v6311 = vsel %vm6310, %v6303, %v6307
    %v6312 = vand.u32 2147483647, %v6227
    %vm6313 = vcmp.eq.f32.partialorder %v6312, 8.507059e+37
    %v6314 = vand.u32 %v6227, 2147483648
    %v6315 = vor.u32 1.1754944e-38, %v6314
    %v6316 = vsel %vm6313, %v6315, %v6311
    %v6317 = vmul.f32 1.0, %v6316
    %v6318 = vtanh.pop %v6199
    %v6319 = vtanh.pop %v6203
    %v6320 = vmul.f32 %v6257, %v5622
    %v6321 = vmul.f32 %v6302, %v5623
    %v6322 = vmul.f32 %v6242, %v6318
    %v6323 = vmul.f32 %v6287, %v6319
    %v6324 = vadd.f32 %v6320, %v6322
    %v6325 = vadd.f32 %v6321, %v6323
    %v6326 = vtanh.pop %v6324
    %v6327 = vtanh.pop %v6325
    %v6328 = vmul.f32 %v6272, %v6326
    %v6329 = vmul.f32 %v6317, %v6327
    %v6330 = vpack.c.bf16 %v6329, %v6328
    %6331 = vmatpush.bf16.msra.mxu0 %v1178
    %6332 = vmatpush.bf16.msra.mxu0 %v1174
    %6333 = vmatpush.bf16.msra.mxu0 %v1170
    %6334 = vmatpush.bf16.msra.mxu0 %v1166
    %6335 = vmatpush.bf16.msra.mxu0 %v1162
    %6336 = vmatpush.bf16.msra.mxu0 %v1158
    %6337 = vmatpush.bf16.msra.mxu0 %v1154
    %6338 = vmatpush.bf16.msra.mxu0 %v1150
    %6339 = vmatmul.bf16.gmra.mxu0 %v6330
    %v6340 = vpop.f32.mrf.mxu0
    %v6341 = vadd.f32 %v674, %v6340
    %v6342 = vpop.f32.mrf.mxu0
    %v6343 = vadd.f32 %v674, %v6342
    %6344 = vdwg.mxu0
    %6345 = vmatpush.bf16.msra.mxu0 %v1179
    %6346 = vmatpush.bf16.msra.mxu0 %v1175
    %6347 = vmatpush.bf16.msra.mxu0 %v1171
    %6348 = vmatpush.bf16.msra.mxu0 %v1167
    %6349 = vmatpush.bf16.msra.mxu0 %v1163
    %6350 = vmatpush.bf16.msra.mxu0 %v1159
    %6351 = vmatpush.bf16.msra.mxu0 %v1155
    %6352 = vmatpush.bf16.msra.mxu0 %v1151
    %6353 = vmatmul.bf16.gmra.mxu0 %v6330
    %v6354 = vpop.f32.mrf.mxu0
    %v6355 = vadd.f32 %v675, %v6354
    %v6356 = vpop.f32.mrf.mxu0
    %v6357 = vadd.f32 %v675, %v6356
    %6358 = vdwg.mxu0
    %6359 = vmatpush.bf16.msra.mxu0 %v1180
    %6360 = vmatpush.bf16.msra.mxu0 %v1176
    %6361 = vmatpush.bf16.msra.mxu0 %v1172
    %6362 = vmatpush.bf16.msra.mxu0 %v1168
    %6363 = vmatpush.bf16.msra.mxu0 %v1164
    %6364 = vmatpush.bf16.msra.mxu0 %v1160
    %6365 = vmatpush.bf16.msra.mxu0 %v1156
    %6366 = vmatpush.bf16.msra.mxu0 %v1152
    %6367 = vmatmul.bf16.gmra.mxu0 %v6330
    %v6368 = vpop.f32.mrf.mxu0
    %v6369 = vadd.f32 %v676, %v6368
    %v6370 = vpop.f32.mrf.mxu0
    %v6371 = vadd.f32 %v676, %v6370
    %6372 = vdwg.mxu0
    %6373 = vmatpush.bf16.msra.mxu0 %v1181
    %6374 = vmatpush.bf16.msra.mxu0 %v1177
    %6375 = vmatpush.bf16.msra.mxu0 %v1173
    %6376 = vmatpush.bf16.msra.mxu0 %v1169
    %6377 = vmatpush.bf16.msra.mxu0 %v1165
    %6378 = vmatpush.bf16.msra.mxu0 %v1161
    %6379 = vmatpush.bf16.msra.mxu0 %v1157
    %6380 = vmatpush.bf16.msra.mxu0 %v1153
    %6381 = vmatmul.bf16.gmra.mxu0 %v6330
    %v6382 = vpop.f32.mrf.mxu0
    %v6383 = vadd.f32 %v677, %v6382
    %v6384 = vpop.f32.mrf.mxu0
    %v6385 = vadd.f32 %v677, %v6384
    %6386 = vdwg.mxu0
    %6387 = vmatpush.bf16.msra.mxu0 0
    %6388 = vmatpush.bf16.msra.mxu0 0
    %6389 = vmatpush.bf16.msra.mxu0 0
    %6390 = vmatpush.bf16.msra.mxu0 0
    %6391 = vmatpush.bf16.msra.mxu0 %v1330
    %6392 = vmatpush.bf16.msra.mxu0 %v1326
    %6393 = vmatpush.bf16.msra.mxu0 %v1322
    %6394 = vmatpush.bf16.msra.mxu0 %v1318
    %6395 = vmatmul.bf16.gmra.mxu0 %v5877
    %v6396 = vpop.f32.mrf.mxu0
    %v6397 = vadd.f32 0.0, %v6396
    %v6398 = vpop.f32.mrf.mxu0
    %v6399 = vadd.f32 0.0, %v6398
    %6400 = vdwg.mxu0
    %6401 = vmatpush.bf16.msra.mxu0 0
    %6402 = vmatpush.bf16.msra.mxu0 0
    %6403 = vmatpush.bf16.msra.mxu0 0
    %6404 = vmatpush.bf16.msra.mxu0 0
    %6405 = vmatpush.bf16.msra.mxu0 %v1331
    %6406 = vmatpush.bf16.msra.mxu0 %v1327
    %6407 = vmatpush.bf16.msra.mxu0 %v1323
    %6408 = vmatpush.bf16.msra.mxu0 %v1319
    %6409 = vmatmul.bf16.gmra.mxu0 %v5877
    %v6410 = vpop.f32.mrf.mxu0
    %v6411 = vadd.f32 0.0, %v6410
    %v6412 = vpop.f32.mrf.mxu0
    %v6413 = vadd.f32 0.0, %v6412
    %6414 = vdwg.mxu0
    %6415 = vmatpush.bf16.msra.mxu0 0
    %6416 = vmatpush.bf16.msra.mxu0 0
    %6417 = vmatpush.bf16.msra.mxu0 0
    %6418 = vmatpush.bf16.msra.mxu0 0
    %6419 = vmatpush.bf16.msra.mxu0 %v1332
    %6420 = vmatpush.bf16.msra.mxu0 %v1328
    %6421 = vmatpush.bf16.msra.mxu0 %v1324
    %6422 = vmatpush.bf16.msra.mxu0 %v1320
    %6423 = vmatmul.bf16.gmra.mxu0 %v5877
    %v6424 = vpop.f32.mrf.mxu0
    %v6425 = vadd.f32 0.0, %v6424
    %v6426 = vpop.f32.mrf.mxu0
    %v6427 = vadd.f32 0.0, %v6426
    %6428 = vdwg.mxu0
    %6429 = vmatpush.bf16.msra.mxu0 0
    %6430 = vmatpush.bf16.msra.mxu0 0
    %6431 = vmatpush.bf16.msra.mxu0 0
    %6432 = vmatpush.bf16.msra.mxu0 0
    %6433 = vmatpush.bf16.msra.mxu0 %v1333
    %6434 = vmatpush.bf16.msra.mxu0 %v1329
    %6435 = vmatpush.bf16.msra.mxu0 %v1325
    %6436 = vmatpush.bf16.msra.mxu0 %v1321
    %6437 = vmatmul.bf16.gmra.mxu0 %v5877
    %v6438 = vpop.f32.mrf.mxu0
    %v6439 = vadd.f32 0.0, %v6438
    %v6440 = vpop.f32.mrf.mxu0
    %v6441 = vadd.f32 0.0, %v6440
    %6442 = vdwg.mxu0
    %v6443 = vadd.f32 %v6341, %v6397
    %v6444 = vadd.f32 %v6355, %v6411
    %v6445 = vadd.f32 %v6369, %v6425
    %v6446 = vadd.f32 %v6383, %v6439
    %v6447 = vadd.f32 %v6343, %v6399
    %v6448 = vadd.f32 %v6357, %v6413
    %v6449 = vadd.f32 %v6371, %v6427
    %v6450 = vadd.f32 %v6385, %v6441
    %v6451 = vxor.u32 %v6443, 2147483648
    %v6452 = vxor.u32 %v6444, 2147483648
    %v6453 = vxor.u32 %v6445, 2147483648
    %v6454 = vxor.u32 %v6447, 2147483648
    %v6455 = vxor.u32 %v6448, 2147483648
    %v6456 = vxor.u32 %v6449, 2147483648
    %v6457 = vmul.f32 %v6451, 1.442695
    %v6458 = vpow.pop %v6457
    %v6459 = vmul.f32 %v6452, 1.442695
    %v6460 = vpow.pop %v6459
    %v6461 = vmul.f32 %v6453, 1.442695
    %v6462 = vpow.pop %v6461
    %v6463 = vmul.f32 %v6454, 1.442695
    %v6464 = vpow.pop %v6463
    %v6465 = vmul.f32 %v6455, 1.442695
    %v6466 = vpow.pop %v6465
    %v6467 = vmul.f32 %v6456, 1.442695
    %v6468 = vpow.pop %v6467
    %v6469 = vadd.f32 %v6458, 1.0
    %v6470 = vadd.f32 %v6460, 1.0
    %v6471 = vadd.f32 %v6462, 1.0
    %v6472 = vadd.f32 %v6464, 1.0
    %v6473 = vadd.f32 %v6466, 1.0
    %v6474 = vadd.f32 %v6468, 1.0
    %v6475 = vrcp.pop %v6469
    %v6476 = vmul.f32 %v6469, %v6475
    %v6477 = vsub.f32 1.0, %v6476
    %v6478 = vmul.f32 %v6475, %v6477
    %v6479 = vadd.f32 %v6475, %v6478
    %vm6480 = vweird.f32 %v6469
    %vm6481 = vweird.f32 %v6475
    %vm6482 = vmor %vm6480, %vm6481
    %v6483 = vsel %vm6482, %v6475, %v6479
    %v6484 = vand.u32 2147483647, %v6469
    %vm6485 = vcmp.eq.f32.partialorder %v6484, 8.507059e+37
    %v6486 = vand.u32 %v6469, 2147483648
    %v6487 = vor.u32 1.1754944e-38, %v6486
    %v6488 = vsel %vm6485, %v6487, %v6483
    %v6489 = vmul.f32 1.0, %v6488
    %v6490 = vrcp.pop %v6470
    %v6491 = vmul.f32 %v6470, %v6490
    %v6492 = vsub.f32 1.0, %v6491
    %v6493 = vmul.f32 %v6490, %v6492
    %v6494 = vadd.f32 %v6490, %v6493
    %vm6495 = vweird.f32 %v6470
    %vm6496 = vweird.f32 %v6490
    %vm6497 = vmor %vm6495, %vm6496
    %v6498 = vsel %vm6497, %v6490, %v6494
    %v6499 = vand.u32 2147483647, %v6470
    %vm6500 = vcmp.eq.f32.partialorder %v6499, 8.507059e+37
    %v6501 = vand.u32 %v6470, 2147483648
    %v6502 = vor.u32 1.1754944e-38, %v6501
    %v6503 = vsel %vm6500, %v6502, %v6498
    %v6504 = vmul.f32 1.0, %v6503
    %v6505 = vrcp.pop %v6471
    %v6506 = vmul.f32 %v6471, %v6505
    %v6507 = vsub.f32 1.0, %v6506
    %v6508 = vmul.f32 %v6505, %v6507
    %v6509 = vadd.f32 %v6505, %v6508
    %vm6510 = vweird.f32 %v6471
    %vm6511 = vweird.f32 %v6505
    %vm6512 = vmor %vm6510, %vm6511
    %v6513 = vsel %vm6512, %v6505, %v6509
    %v6514 = vand.u32 2147483647, %v6471
    %vm6515 = vcmp.eq.f32.partialorder %v6514, 8.507059e+37
    %v6516 = vand.u32 %v6471, 2147483648
    %v6517 = vor.u32 1.1754944e-38, %v6516
    %v6518 = vsel %vm6515, %v6517, %v6513
    %v6519 = vmul.f32 1.0, %v6518
    %v6520 = vrcp.pop %v6472
    %v6521 = vmul.f32 %v6472, %v6520
    %v6522 = vsub.f32 1.0, %v6521
    %v6523 = vmul.f32 %v6520, %v6522
    %v6524 = vadd.f32 %v6520, %v6523
    %vm6525 = vweird.f32 %v6472
    %vm6526 = vweird.f32 %v6520
    %vm6527 = vmor %vm6525, %vm6526
    %v6528 = vsel %vm6527, %v6520, %v6524
    %v6529 = vand.u32 2147483647, %v6472
    %vm6530 = vcmp.eq.f32.partialorder %v6529, 8.507059e+37
    %v6531 = vand.u32 %v6472, 2147483648
    %v6532 = vor.u32 1.1754944e-38, %v6531
    %v6533 = vsel %vm6530, %v6532, %v6528
    %v6534 = vmul.f32 1.0, %v6533
    %v6535 = vrcp.pop %v6473
    %v6536 = vmul.f32 %v6473, %v6535
    %v6537 = vsub.f32 1.0, %v6536
    %v6538 = vmul.f32 %v6535, %v6537
    %v6539 = vadd.f32 %v6535, %v6538
    %vm6540 = vweird.f32 %v6473
    %vm6541 = vweird.f32 %v6535
    %vm6542 = vmor %vm6540, %vm6541
    %v6543 = vsel %vm6542, %v6535, %v6539
    %v6544 = vand.u32 2147483647, %v6473
    %vm6545 = vcmp.eq.f32.partialorder %v6544, 8.507059e+37
    %v6546 = vand.u32 %v6473, 2147483648
    %v6547 = vor.u32 1.1754944e-38, %v6546
    %v6548 = vsel %vm6545, %v6547, %v6543
    %v6549 = vmul.f32 1.0, %v6548
    %v6550 = vrcp.pop %v6474
    %v6551 = vmul.f32 %v6474, %v6550
    %v6552 = vsub.f32 1.0, %v6551
    %v6553 = vmul.f32 %v6550, %v6552
    %v6554 = vadd.f32 %v6550, %v6553
    %vm6555 = vweird.f32 %v6474
    %vm6556 = vweird.f32 %v6550
    %vm6557 = vmor %vm6555, %vm6556
    %v6558 = vsel %vm6557, %v6550, %v6554
    %v6559 = vand.u32 2147483647, %v6474
    %vm6560 = vcmp.eq.f32.partialorder %v6559, 8.507059e+37
    %v6561 = vand.u32 %v6474, 2147483648
    %v6562 = vor.u32 1.1754944e-38, %v6561
    %v6563 = vsel %vm6560, %v6562, %v6558
    %v6564 = vmul.f32 1.0, %v6563
    %v6565 = vtanh.pop %v6446
    %v6566 = vtanh.pop %v6450
    %v6567 = vmul.f32 %v6504, %v5869
    %v6568 = vmul.f32 %v6549, %v5870
    %v6569 = vmul.f32 %v6489, %v6565
    %v6570 = vmul.f32 %v6534, %v6566
    %v6571 = vadd.f32 %v6567, %v6569
    %v6572 = vadd.f32 %v6568, %v6570
    %v6573 = vtanh.pop %v6571
    %v6574 = vtanh.pop %v6572
    %v6575 = vmul.f32 %v6519, %v6573
    %v6576 = vmul.f32 %v6564, %v6574
    %v6577 = vpack.c.bf16 %v6576, %v6575
    %v6579 = vsel %vm1350, %v6577, 0
    %6581 = vmatpush.bf16.msra.mxu0 0
    %6582 = vmatpush.bf16.msra.mxu0 0
    %6583 = vmatpush.bf16.msra.mxu0 0
    %6584 = vmatpush.bf16.msra.mxu0 0
    %6585 = vmatpush.bf16.msra.mxu0 %v1605
    %6586 = vmatpush.bf16.msra.mxu0 %v1601
    %6587 = vmatpush.bf16.msra.mxu0 %v1597
    %6588 = vmatpush.bf16.msra.mxu0 %v1593
    %6589 = vmatmul.bf16.gmra.mxu0 %v6579
    %v6590 = vpop.f32.mrf.mxu0
    %v6591 = vadd.f32 %v684, %v6590
    %v6592 = vpop.f32.mrf.mxu0
    %v6593 = vadd.f32 %v684, %v6592
    %6594 = vdwg.mxu0
    %6595 = vmatpush.bf16.msra.mxu0 0
    %6596 = vmatpush.bf16.msra.mxu0 0
    %6597 = vmatpush.bf16.msra.mxu0 0
    %6598 = vmatpush.bf16.msra.mxu0 0
    %6599 = vmatpush.bf16.msra.mxu0 %v1606
    %6600 = vmatpush.bf16.msra.mxu0 %v1602
    %6601 = vmatpush.bf16.msra.mxu0 %v1598
    %6602 = vmatpush.bf16.msra.mxu0 %v1594
    %6603 = vmatmul.bf16.gmra.mxu0 %v6579
    %v6604 = vpop.f32.mrf.mxu0
    %v6605 = vadd.f32 %v685, %v6604
    %v6606 = vpop.f32.mrf.mxu0
    %v6607 = vadd.f32 %v685, %v6606
    %6608 = vdwg.mxu0
    %6609 = vmatpush.bf16.msra.mxu0 0
    %6610 = vmatpush.bf16.msra.mxu0 0
    %6611 = vmatpush.bf16.msra.mxu0 0
    %6612 = vmatpush.bf16.msra.mxu0 0
    %6613 = vmatpush.bf16.msra.mxu0 %v1607
    %6614 = vmatpush.bf16.msra.mxu0 %v1603
    %6615 = vmatpush.bf16.msra.mxu0 %v1599
    %6616 = vmatpush.bf16.msra.mxu0 %v1595
    %6617 = vmatmul.bf16.gmra.mxu0 %v6579
    %v6618 = vpop.f32.mrf.mxu0
    %v6619 = vadd.f32 %v686, %v6618
    %v6620 = vpop.f32.mrf.mxu0
    %v6621 = vadd.f32 %v686, %v6620
    %6622 = vdwg.mxu0
    %6623 = vmatpush.bf16.msra.mxu0 0
    %6624 = vmatpush.bf16.msra.mxu0 0
    %6625 = vmatpush.bf16.msra.mxu0 0
    %6626 = vmatpush.bf16.msra.mxu0 0
    %6627 = vmatpush.bf16.msra.mxu0 %v1608
    %6628 = vmatpush.bf16.msra.mxu0 %v1604
    %6629 = vmatpush.bf16.msra.mxu0 %v1600
    %6630 = vmatpush.bf16.msra.mxu0 %v1596
    %6631 = vmatmul.bf16.gmra.mxu0 %v6579
    %v6632 = vpop.f32.mrf.mxu0
    %v6633 = vadd.f32 %v687, %v6632
    %v6634 = vpop.f32.mrf.mxu0
    %v6635 = vadd.f32 %v687, %v6634
    %6636 = vdwg.mxu0
    %v6637 = vpack.c.bf16 %v6128, %v6127
    %v6639 = vsel %vm1724, %v6637, 0
    %6641 = vmatpush.bf16.msra.mxu0 0
    %6642 = vmatpush.bf16.msra.mxu0 0
    %6643 = vmatpush.bf16.msra.mxu0 0
    %6644 = vmatpush.bf16.msra.mxu0 0
    %6645 = vmatpush.bf16.msra.mxu0 0
    %6646 = vmatpush.bf16.msra.mxu0 0
    %6647 = vmatpush.bf16.msra.mxu0 %v1712
    %6648 = vmatpush.bf16.msra.mxu0 %v1708
    %6649 = vmatmul.bf16.gmra.mxu0 %v6639
    %v6650 = vpop.f32.mrf.mxu0
    %v6651 = vadd.f32 0.0, %v6650
    %v6652 = vpop.f32.mrf.mxu0
    %v6653 = vadd.f32 0.0, %v6652
    %6654 = vdwg.mxu0
    %6655 = vmatpush.bf16.msra.mxu0 0
    %6656 = vmatpush.bf16.msra.mxu0 0
    %6657 = vmatpush.bf16.msra.mxu0 0
    %6658 = vmatpush.bf16.msra.mxu0 0
    %6659 = vmatpush.bf16.msra.mxu0 0
    %6660 = vmatpush.bf16.msra.mxu0 0
    %6661 = vmatpush.bf16.msra.mxu0 %v1713
    %6662 = vmatpush.bf16.msra.mxu0 %v1709
    %6663 = vmatmul.bf16.gmra.mxu0 %v6639
    %v6664 = vpop.f32.mrf.mxu0
    %v6665 = vadd.f32 0.0, %v6664
    %v6666 = vpop.f32.mrf.mxu0
    %v6667 = vadd.f32 0.0, %v6666
    %6668 = vdwg.mxu0
    %6669 = vmatpush.bf16.msra.mxu0 0
    %6670 = vmatpush.bf16.msra.mxu0 0
    %6671 = vmatpush.bf16.msra.mxu0 0
    %6672 = vmatpush.bf16.msra.mxu0 0
    %6673 = vmatpush.bf16.msra.mxu0 0
    %6674 = vmatpush.bf16.msra.mxu0 0
    %6675 = vmatpush.bf16.msra.mxu0 %v1714
    %6676 = vmatpush.bf16.msra.mxu0 %v1710
    %6677 = vmatmul.bf16.gmra.mxu0 %v6639
    %v6678 = vpop.f32.mrf.mxu0
    %v6679 = vadd.f32 0.0, %v6678
    %v6680 = vpop.f32.mrf.mxu0
    %v6681 = vadd.f32 0.0, %v6680
    %6682 = vdwg.mxu0
    %6683 = vmatpush.bf16.msra.mxu0 0
    %6684 = vmatpush.bf16.msra.mxu0 0
    %6685 = vmatpush.bf16.msra.mxu0 0
    %6686 = vmatpush.bf16.msra.mxu0 0
    %6687 = vmatpush.bf16.msra.mxu0 0
    %6688 = vmatpush.bf16.msra.mxu0 0
    %6689 = vmatpush.bf16.msra.mxu0 %v1715
    %6690 = vmatpush.bf16.msra.mxu0 %v1711
    %6691 = vmatmul.bf16.gmra.mxu0 %v6639
    %v6692 = vpop.f32.mrf.mxu0
    %v6693 = vadd.f32 0.0, %v6692
    %v6694 = vpop.f32.mrf.mxu0
    %v6695 = vadd.f32 0.0, %v6694
    %6696 = vdwg.mxu0
    %v6697 = vadd.f32 %v6591, %v6651
    %v6698 = vadd.f32 %v6605, %v6665
    %v6699 = vadd.f32 %v6619, %v6679
    %v6700 = vadd.f32 %v6633, %v6693
    %v6701 = vadd.f32 %v6593, %v6653
    %v6702 = vadd.f32 %v6607, %v6667
    %v6703 = vadd.f32 %v6621, %v6681
    %v6704 = vadd.f32 %v6635, %v6695
    %v6705 = vxor.u32 %v6697, 2147483648
    %v6706 = vxor.u32 %v6698, 2147483648
    %v6707 = vxor.u32 %v6699, 2147483648
    %v6708 = vxor.u32 %v6701, 2147483648
    %v6709 = vxor.u32 %v6702, 2147483648
    %v6710 = vxor.u32 %v6703, 2147483648
    %v6711 = vmul.f32 %v6705, 1.442695
    %v6712 = vpow.pop %v6711
    %v6713 = vmul.f32 %v6706, 1.442695
    %v6714 = vpow.pop %v6713
    %v6715 = vmul.f32 %v6707, 1.442695
    %v6716 = vpow.pop %v6715
    %v6717 = vmul.f32 %v6708, 1.442695
    %v6718 = vpow.pop %v6717
    %v6719 = vmul.f32 %v6709, 1.442695
    %v6720 = vpow.pop %v6719
    %v6721 = vmul.f32 %v6710, 1.442695
    %v6722 = vpow.pop %v6721
    %v6723 = vadd.f32 %v6712, 1.0
    %v6724 = vadd.f32 %v6714, 1.0
    %v6725 = vadd.f32 %v6716, 1.0
    %v6726 = vadd.f32 %v6718, 1.0
    %v6727 = vadd.f32 %v6720, 1.0
    %v6728 = vadd.f32 %v6722, 1.0
    %v6729 = vrcp.pop %v6723
    %v6730 = vmul.f32 %v6723, %v6729
    %v6731 = vsub.f32 1.0, %v6730
    %v6732 = vmul.f32 %v6729, %v6731
    %v6733 = vadd.f32 %v6729, %v6732
    %vm6734 = vweird.f32 %v6723
    %vm6735 = vweird.f32 %v6729
    %vm6736 = vmor %vm6734, %vm6735
    %v6737 = vsel %vm6736, %v6729, %v6733
    %v6738 = vand.u32 2147483647, %v6723
    %vm6739 = vcmp.eq.f32.partialorder %v6738, 8.507059e+37
    %v6740 = vand.u32 %v6723, 2147483648
    %v6741 = vor.u32 1.1754944e-38, %v6740
    %v6742 = vsel %vm6739, %v6741, %v6737
    %v6743 = vmul.f32 1.0, %v6742
    %v6744 = vrcp.pop %v6724
    %v6745 = vmul.f32 %v6724, %v6744
    %v6746 = vsub.f32 1.0, %v6745
    %v6747 = vmul.f32 %v6744, %v6746
    %v6748 = vadd.f32 %v6744, %v6747
    %vm6749 = vweird.f32 %v6724
    %vm6750 = vweird.f32 %v6744
    %vm6751 = vmor %vm6749, %vm6750
    %v6752 = vsel %vm6751, %v6744, %v6748
    %v6753 = vand.u32 2147483647, %v6724
    %vm6754 = vcmp.eq.f32.partialorder %v6753, 8.507059e+37
    %v6755 = vand.u32 %v6724, 2147483648
    %v6756 = vor.u32 1.1754944e-38, %v6755
    %v6757 = vsel %vm6754, %v6756, %v6752
    %v6758 = vmul.f32 1.0, %v6757
    %v6759 = vrcp.pop %v6725
    %v6760 = vmul.f32 %v6725, %v6759
    %v6761 = vsub.f32 1.0, %v6760
    %v6762 = vmul.f32 %v6759, %v6761
    %v6763 = vadd.f32 %v6759, %v6762
    %vm6764 = vweird.f32 %v6725
    %vm6765 = vweird.f32 %v6759
    %vm6766 = vmor %vm6764, %vm6765
    %v6767 = vsel %vm6766, %v6759, %v6763
    %v6768 = vand.u32 2147483647, %v6725
    %vm6769 = vcmp.eq.f32.partialorder %v6768, 8.507059e+37
    %v6770 = vand.u32 %v6725, 2147483648
    %v6771 = vor.u32 1.1754944e-38, %v6770
    %v6772 = vsel %vm6769, %v6771, %v6767
    %v6773 = vmul.f32 1.0, %v6772
    %v6774 = vrcp.pop %v6726
    %v6775 = vmul.f32 %v6726, %v6774
    %v6776 = vsub.f32 1.0, %v6775
    %v6777 = vmul.f32 %v6774, %v6776
    %v6778 = vadd.f32 %v6774, %v6777
    %vm6779 = vweird.f32 %v6726
    %vm6780 = vweird.f32 %v6774
    %vm6781 = vmor %vm6779, %vm6780
    %v6782 = vsel %vm6781, %v6774, %v6778
    %v6783 = vand.u32 2147483647, %v6726
    %vm6784 = vcmp.eq.f32.partialorder %v6783, 8.507059e+37
    %v6785 = vand.u32 %v6726, 2147483648
    %v6786 = vor.u32 1.1754944e-38, %v6785
    %v6787 = vsel %vm6784, %v6786, %v6782
    %v6788 = vmul.f32 1.0, %v6787
    %v6789 = vrcp.pop %v6727
    %v6790 = vmul.f32 %v6727, %v6789
    %v6791 = vsub.f32 1.0, %v6790
    %v6792 = vmul.f32 %v6789, %v6791
    %v6793 = vadd.f32 %v6789, %v6792
    %vm6794 = vweird.f32 %v6727
    %vm6795 = vweird.f32 %v6789
    %vm6796 = vmor %vm6794, %vm6795
    %v6797 = vsel %vm6796, %v6789, %v6793
    %v6798 = vand.u32 2147483647, %v6727
    %vm6799 = vcmp.eq.f32.partialorder %v6798, 8.507059e+37
    %v6800 = vand.u32 %v6727, 2147483648
    %v6801 = vor.u32 1.1754944e-38, %v6800
    %v6802 = vsel %vm6799, %v6801, %v6797
    %v6803 = vmul.f32 1.0, %v6802
    %v6804 = vrcp.pop %v6728
    %v6805 = vmul.f32 %v6728, %v6804
    %v6806 = vsub.f32 1.0, %v6805
    %v6807 = vmul.f32 %v6804, %v6806
    %v6808 = vadd.f32 %v6804, %v6807
    %vm6809 = vweird.f32 %v6728
    %vm6810 = vweird.f32 %v6804
    %vm6811 = vmor %vm6809, %vm6810
    %v6812 = vsel %vm6811, %v6804, %v6808
    %v6813 = vand.u32 2147483647, %v6728
    %vm6814 = vcmp.eq.f32.partialorder %v6813, 8.507059e+37
    %v6815 = vand.u32 %v6728, 2147483648
    %v6816 = vor.u32 1.1754944e-38, %v6815
    %v6817 = vsel %vm6814, %v6816, %v6812
    %v6818 = vmul.f32 1.0, %v6817
    %v6819 = vtanh.pop %v6700
    %v6820 = vtanh.pop %v6704
    %v6821 = vmul.f32 %v6758, %v6123
    %v6822 = vmul.f32 %v6803, %v6124
    %v6823 = vmul.f32 %v6743, %v6819
    %v6824 = vmul.f32 %v6788, %v6820
    %v6825 = vadd.f32 %v6821, %v6823
    %v6826 = vadd.f32 %v6822, %v6824
    %v6827 = vtanh.pop %v6825
    %v6828 = vtanh.pop %v6826
    %v6829 = vmul.f32 %v6773, %v6827
    %v6830 = vmul.f32 %v6818, %v6828
    %v6831 = vld [vmem:[%s10] sm:$0xff]
    %v6832 = vld [vmem:[%s10 + $0x8] sm:$0xff]
    %v6833 = vld [vmem:[%s10 + $0x10] sm:$0xff]
    %v6834 = vld [vmem:[%s10 + $0x18] sm:$0xff]
    %v6835 = vld [vmem:[%s11] sm:$0x1]
    %v6837 = vperm.slane %v6835, 0
    %v6840 = vsel %vm1724, %v6829, 0
    %v6843 = vsel %vm1724, %v6830, 0
    %6845 = vmatpush.msra.mxu0 0.0
    %6846 = vmatpush.msra.mxu0 0.0
    %6847 = vmatpush.msra.mxu0 0.0
    %6848 = vmatpush.msra.mxu0 0.0
    %6849 = vmatpush.msra.mxu0 0.0
    %6850 = vmatpush.msra.mxu0 0.0
    %6851 = vmatpush.msra.mxu0 0.0
    %6852 = vmatpush.msra.mxu0 0.0
    %6853 = vmatpush.msra.mxu0 0.0
    %6854 = vmatpush.msra.mxu0 0.0
    %6855 = vmatpush.msra.mxu0 0.0
    %6856 = vmatpush.msra.mxu0 0.0
    %6857 = vmatpush.msra.mxu0 %v6834
    %6858 = vmatpush.msra.mxu0 %v6833
    %6859 = vmatpush.msra.mxu0 %v6832
    %6860 = vmatpush.msra.mxu0 %v6831
    %6861 = vmatmul.f32.gmra.mxu0 %v6840
    %v6862 = vpop.f32.mrf.mxu0
    %v6863 = vadd.f32 %v6837, %v6862
    %6864 = vmatmul.f32.gmra.mxu0 %v6843
    %v6865 = vpop.f32.mrf.mxu0
    %v6866 = vadd.f32 %v6837, %v6865
    %6867 = vdwg.mxu0
    %v6868 = vmax.f32 %v6863, 0.0
    %v6869 = vmax.f32 %v6866, 0.0
    %v6870 = vld [vmem:[#allocation14] sm:$0xff]
    %v6871 = vld [vmem:[#allocation14 + $0x8] sm:$0xff]
    %v6872 = vld [vmem:[#allocation14 + $0x10] sm:$0xff]
    %v6873 = vld [vmem:[#allocation14 + $0x18] sm:$0xff]
    %v6874 = vld [vmem:[#allocation14 + $0x20] sm:$0xff]
    %v6875 = vld [vmem:[#allocation14 + $0x28] sm:$0xff]
    %v6876 = vld [vmem:[#allocation14 + $0x30] sm:$0xff]
    %v6877 = vld [vmem:[#allocation14 + $0x38] sm:$0xff]
    %v6878 = vld [vmem:[#allocation14 + $0x40] sm:$0xff]
    %v6879 = vld [vmem:[#allocation14 + $0x48] sm:$0xff]
    %v6880 = vld [vmem:[#allocation14 + $0x50] sm:$0xff]
    %v6881 = vld [vmem:[#allocation14 + $0x58] sm:$0xff]
    %v6882 = vld [vmem:[#allocation14 + $0x60] sm:$0xff]
    %v6883 = vld [vmem:[#allocation14 + $0x68] sm:$0xff]
    %v6884 = vld [vmem:[#allocation14 + $0x70] sm:$0xff]
    %v6885 = vld [vmem:[#allocation14 + $0x78] sm:$0xff]
    %v6886 = vld [vmem:[%s13] sm:$0x1]
    %v6888 = vperm.slane %v6886, 0
    %6890 = vmatpush.msra.mxu0 %v6885
    %6891 = vmatpush.msra.mxu0 %v6884
    %6892 = vmatpush.msra.mxu0 %v6883
    %6893 = vmatpush.msra.mxu0 %v6882
    %6894 = vmatpush.msra.mxu0 %v6881
    %6895 = vmatpush.msra.mxu0 %v6880
    %6896 = vmatpush.msra.mxu0 %v6879
    %6897 = vmatpush.msra.mxu0 %v6878
    %6898 = vmatpush.msra.mxu0 %v6877
    %6899 = vmatpush.msra.mxu0 %v6876
    %6900 = vmatpush.msra.mxu0 %v6875
    %6901 = vmatpush.msra.mxu0 %v6874
    %6902 = vmatpush.msra.mxu0 %v6873
    %6903 = vmatpush.msra.mxu0 %v6872
    %6904 = vmatpush.msra.mxu0 %v6871
    %6905 = vmatpush.msra.mxu0 %v6870
    %6906 = vmatmul.f32.gmra.mxu0 %v6868
    %v6907 = vpop.f32.mrf.mxu0
    %v6908 = vadd.f32 %v6888, %v6907
    %6909 = vmatmul.f32.gmra.mxu0 %v6869
    %v6910 = vpop.f32.mrf.mxu0
    %v6911 = vadd.f32 %v6888, %v6910
    %6912 = vdwg.mxu0
    %6913 = vst [vmem:[%s14] sm:$0xff] %v6908
    %6914 = vst [vmem:[%s14 + $0x8] sm:$0xff] %v6911
    // Predicated region
    $region90: #{price_prediction_forward.1} parent=1 // pred_check
      _
    $region91: #{price_prediction_forward.1} parent=1 // pred_check_branch
      %6916 = sbr.rel (0) target = $region93
    $region92: #{price_prediction_forward.1} parent=1 // pred_region
      _
    $region93: #{price_prediction_forward.1} parent=1 // pred_fallthru
      _
    // Predicated region
    $region94: #{price_prediction_forward.1} parent=1 // pred_check
      _
    $region95: #{price_prediction_forward.1} parent=1 // pred_check_branch
      %6918 = sbr.rel (0) target = $region97
    $region96: #{price_prediction_forward.1} parent=1 // pred_region
      _
    $region97: #{price_prediction_forward.1} parent=1 // pred_fallthru
      _
    %6919 = vsyncpa [#allocation4], 1
    %6920 = vsyncpa [#allocation6], 1
    %6921 = vsyncpa [#allocation9], 1
    %6922 = vsyncpa [#allocation12], 1
    %6923 = vsyncpa [#allocation15], 1

</llo_original>
